<compile_context>
chip_gen: v5e
topology: v5e:2x2
jax: 0.10.0
libtpu: 0.0.40
codegen_flags: <defaults>
</compile_context>

<pallas_src>
import jax
import jax.numpy as jnp
from jax.experimental import pallas as pl
from jax.experimental.pallas import tpu as pltpu

SNIP = 3200            # window length (hard-coded in forward)
STRIDE = 640           # cutting stride (hard-coded in forward)
PAD = SNIP - STRIDE    # 2560 pad samples
HID = 256              # hidden size per recurrent layer (buffer shape (2,1,256))
NCH = SNIP // STRIDE   # 5 non-overlapping 640-sample chunks per window
WB = 32                # windows per sequential grid step in the scan kernels


# --------------------- generic batched matmul (kernels A & C) ---------------------
def matmul_kernel(x_ref, w_ref, o_ref):
    o_ref[...] = jnp.dot(x_ref[...], w_ref[...], preferred_element_type=jnp.float32)


def matmul_bias_kernel(x_ref, w_ref, b_ref, o_ref):
    o_ref[...] = (jnp.dot(x_ref[...], w_ref[...], preferred_element_type=jnp.float32)
                  + b_ref[...])


def batched_matmul(x, w, bias=None, *, tm_cap=512):
    """(m,k) @ (k,n) [+ bias(1,n)] -> (m,n) f32.  M axis 'parallel' (megacore on v7x)."""
    m, k = x.shape
    n = w.shape[1]
    # >=2 M blocks when possible so both v7x TensorCores get work; 16-aligned for bf16.
    tm = min(tm_cap, max(16, pl.cdiv(pl.cdiv(m, 2), 16) * 16))
    m_pad = pl.cdiv(m, tm) * tm
    if m_pad != m:
        x = jnp.pad(x, ((0, m_pad - m), (0, 0)))

    x_spec = pl.BlockSpec((tm, k), lambda i: (i, 0))
    w_spec = pl.BlockSpec((k, n), lambda i: (0, 0))
    o_spec = pl.BlockSpec((tm, n), lambda i: (i, 0))
    if bias is None:
        kern, in_specs, args = matmul_kernel, [x_spec, w_spec], (x, w)
    else:
        b_spec = pl.BlockSpec((1, n), lambda i: (0, 0))
        kern, in_specs, args = matmul_bias_kernel, [x_spec, w_spec, b_spec], (x, w, bias)

    out = pl.pallas_call(
        kern,
        out_shape=jax.ShapeDtypeStruct((m_pad, n), jnp.float32),
        grid_spec=pltpu.PrefetchScalarGridSpec(
            num_scalar_prefetch=0,
            grid=(m_pad // tm,),
            in_specs=in_specs,
            out_specs=o_spec,
        ),
        compiler_params=pltpu.CompilerParams(dimension_semantics=("parallel",)),
    )(*args)
    return out[:m]


# --------------------- kernel B1: sequential layer-1 scan ---------------------
def h0_scan_kernel(pa_ref, pb_ref, b0_ref, u0_ref, h0_out_ref, h0_sc):
    # reset() semantics: zero hidden state before the first window block.
    @pl.when(pl.program_id(0) == 0)
    def _():
        h0_sc[...] = jnp.zeros_like(h0_sc)

    # Fused 5-way shifted sum: window w of this block needs chunk-projection rows
    # w..w+4; rows 0..WB-1 come from block i (pa), rows WB..WB+3 from block i+1 (pb).
    # xp[w] = b0 + sum_j p[w+j, j*HID:(j+1)*HID]
    xp = pa_ref[:, 0:HID] + b0_ref[...]                      # (WB, HID) f32
    for j in range(1, NCH):
        c0, c1 = j * HID, (j + 1) * HID
        xp = xp + jnp.concatenate(
            [pa_ref[j:WB, c0:c1], pb_ref[0:j, c0:c1]], axis=0)

    u0 = u0_ref[...]                                         # (HID, HID) bf16
    h0 = h0_sc[...]                                          # (1, HID) f32, carried
    rows = []
    for w in range(WB):      # short fixed trip count -> unrolled; serial path is one
        h0 = jnp.tanh(       # K=256 bf16 dot + tanh per window
            xp[w:w + 1, :]
            + jnp.dot(h0.astype(jnp.bfloat16), u0, preferred_element_type=jnp.float32))
        rows.append(h0.astype(jnp.bfloat16))
    h0_out_ref[...] = jnp.concatenate(rows, axis=0)          # aligned (WB, HID) store
    h0_sc[...] = h0


def h0_scan(p, b0, u0_bf16, nw_pad):
    nblk = nw_pad // WB
    return pl.pallas_call(
        h0_scan_kernel,
        out_shape=jax.ShapeDtypeStruct((nw_pad, HID), jnp.bfloat16),
        grid_spec=pltpu.PrefetchScalarGridSpec(
            num_scalar_prefetch=0,
            grid=(nblk,),
            in_specs=[
                pl.BlockSpec((WB, NCH * HID), lambda i: (i, 0)),      # p block i
                pl.BlockSpec((WB, NCH * HID), lambda i: (i + 1, 0)),  # p block i+1
                pl.BlockSpec((1, HID), lambda i: (0, 0)),             # b0
                pl.BlockSpec((HID, HID), lambda i: (0, 0)),           # U0 (bf16)
            ],
            out_specs=pl.BlockSpec((WB, HID), lambda i: (i, 0)),
            scratch_shapes=[pltpu.VMEM((1, HID), jnp.float32)],       # carried h0
        ),
        # recurrence -> sequential grid; must stay "arbitrary"
        compiler_params=pltpu.CompilerParams(dimension_semantics=("arbitrary",)),
    )(p, p, b0, u0_bf16)


# --------------------- kernel B2: sequential layer-2 scan ---------------------
def h1_scan_kernel(pre_ref, u1_ref, out_ref, h1_sc):
    @pl.when(pl.program_id(0) == 0)
    def _():
        h1_sc[...] = jnp.zeros_like(h1_sc)

    pre = pre_ref[...]                                       # (WB, HID) f32: h0@W1 + b1
    u1 = u1_ref[...]                                         # (HID, HID) bf16
    h1 = h1_sc[...]                                          # (1, HID) f32, carried
    rows = []
    for w in range(WB):
        h1 = jnp.tanh(
            pre[w:w + 1, :]
            + jnp.dot(h1.astype(jnp.bfloat16), u1, preferred_element_type=jnp.float32))
        rows.append(h1)
    out_ref[...] = jnp.concatenate(rows, axis=0)             # aligned (WB, HID) store
    h1_sc[...] = h1


def h1_scan(pre1, u1_bf16, nw_pad):
    nblk = nw_pad // WB
    return pl.pallas_call(
        h1_scan_kernel,
        out_shape=jax.ShapeDtypeStruct((nw_pad, HID), jnp.float32),
        grid_spec=pltpu.PrefetchScalarGridSpec(
            num_scalar_prefetch=0,
            grid=(nblk,),
            in_specs=[
                pl.BlockSpec((WB, HID), lambda i: (i, 0)),
                pl.BlockSpec((HID, HID), lambda i: (0, 0)),
            ],
            out_specs=pl.BlockSpec((WB, HID), lambda i: (i, 0)),
            scratch_shapes=[pltpu.VMEM((1, HID), jnp.float32)],       # carried h1
        ),
        compiler_params=pltpu.CompilerParams(dimension_semantics=("arbitrary",)),
    )(pre1, u1_bf16)


# --------------------- full forward ---------------------
@jax.jit
def audio_encoder_forward(audio, w_in, u0, w1, u1, b0, b1):
    """audio (1,1,T) f32 -> embeddings (nw, HID) f32 (== torch.vstack of per-window embs)."""
    _, _, t = audio.shape
    pad_left = PAD // 2
    pad_right = PAD - pad_left
    total = t + PAD
    nw = (total - SNIP) // STRIDE + 1
    nw_pad = pl.cdiv(nw, WB) * WB
    # extra WB chunk rows so the h0-scan's (i, i+1) block pair is always in range
    n_chunk_rows = nw_pad + WB

    seq = jnp.pad(audio[0, 0], (pad_left, pad_right))
    need = n_chunk_rows * STRIDE
    seq = jnp.pad(seq, (0, max(0, need - total)))[:need]
    chunks = seq.reshape(n_chunk_rows, STRIDE).astype(jnp.bfloat16)

    # Re-stack W_in so chunk j of a window hits output column group j.
    w_stacked = jnp.transpose(w_in.reshape(NCH, STRIDE, HID), (1, 0, 2))
    w_stacked = w_stacked.reshape(STRIDE, NCH * HID).astype(jnp.bfloat16)

    # Kernel A: dedup'd bf16 chunk projection (each audio sample read once).
    p = batched_matmul(chunks, w_stacked)                           # (n_chunk_rows, 1280) f32

    # Kernel B1: sequential layer-1 scan, shift-sum of p fused in the prologue.
    h0_all = h0_scan(p, b0, u0.astype(jnp.bfloat16), nw_pad)        # (nw_pad, 256) bf16

    # Kernel C: batched layer-2 input projection h0@W1 + b1 (off the serial path).
    pre1 = batched_matmul(h0_all, w1.astype(jnp.bfloat16), b1)      # (nw_pad, 256) f32

    # Kernel B2: sequential layer-2 scan -> embeddings.
    emb = h1_scan(pre1, u1.astype(jnp.bfloat16), nw_pad)            # (nw_pad, 256) f32
    return emb[:nw]   # padded trailing windows are garbage and must be sliced off


# --------------------- pure-JAX reference (original window-by-window math, f32) ---------------------
def make_windows(audio):
    b, c, t = audio.shape
    pad_left = PAD // 2
    pad_right = PAD - pad_left
    padded = jnp.pad(audio, ((0, 0), (0, 0), (pad_left, pad_right)))
    total = t + PAD
    nw = (total - SNIP) // STRIDE + 1
    idx = jnp.arange(nw)[:, None] * STRIDE + jnp.arange(SNIP)[None, :]
    win = padded[:, :, idx]                  # (B, 1, nw, SNIP)
    return jnp.transpose(win, (0, 2, 1, 3))  # (B, nw, 1, SNIP)


def reference_forward(audio, w_in, u0, w1, u1, b0, b1):
    x = make_windows(audio)[0]               # (nw, 1, SNIP)
    h0 = jnp.zeros((1, HID), jnp.float32)
    h1 = jnp.zeros((1, HID), jnp.float32)
    embs = []
    for i in range(x.shape[0]):
        xi = x[i]
        h0 = jnp.tanh(xi @ w_in + h0 @ u0 + b0)
        h1 = jnp.tanh(h0 @ w1 + h1 @ u1 + b1)
        embs.append(h1)
    return jnp.concatenate(embs, axis=0)


if __name__ == "__main__":
    key = jax.random.PRNGKey(0)
    k_audio, k_win, k_u0, k_w1, k_u1, k_b0, k_b1 = jax.random.split(key, 7)

    # T = 8320 -> nw = (8320 + 2560 - 3200)//640 + 1 = 13 windows.
    T = 8320
    audio = jax.random.normal(k_audio, (1, 1, T), dtype=jnp.float32)

    w_in = jax.random.normal(k_win, (SNIP, HID), dtype=jnp.float32) * 0.02
    u0 = jax.random.normal(k_u0, (HID, HID), dtype=jnp.float32) * 0.03
    w1 = jax.random.normal(k_w1, (HID, HID), dtype=jnp.float32) * 0.03
    u1 = jax.random.normal(k_u1, (HID, HID), dtype=jnp.float32) * 0.03
    b0 = jax.random.normal(k_b0, (1, HID), dtype=jnp.float32) * 0.01
    b1 = jax.random.normal(k_b1, (1, HID), dtype=jnp.float32) * 0.01

    out = audio_encoder_forward(audio, w_in, u0, w1, u1, b0, b1)
    out = jax.block_until_ready(out)

    ref = reference_forward(audio, w_in, u0, w1, u1, b0, b1)
    assert out.shape == (13, HID), out.shape
    # bf16 MXU operands vs f32 reference -> loosened tolerance (review noted this).
    assert jnp.allclose(out, ref, atol=5e-2, rtol=5e-2), float(jnp.max(jnp.abs(out - ref)))

    print("KERNEL_OK")
</pallas_src>

<mosaic_0001>
module attributes {stable_mosaic.version = 11 : i64} {
  func.func @matmul_kernel(%arg0: i32, %arg1: memref<32x640xbf16, #tpu.memory_space<vmem>>, %arg2: memref<640x1280xbf16, #tpu.memory_space<vmem>>, %arg3: memref<32x1280xf32, #tpu.memory_space<vmem>>) attributes {dimension_semantics = [#tpu.dimension_semantics<parallel>], iteration_bounds = array<i64: 2>, scalar_prefetch = 0 : i64, scratch_operands = 0 : i64, tpu.core_type = #tpu.core_type<tc>, window_params = [{transform_indices = @transform_0, window_bounds = array<i64: 32, 640>}, {pipeline_mode = #tpu.pipeline_mode<synchronous>, transform_indices = @transform_1, window_bounds = array<i64: 640, 1280>}, {transform_indices = @transform_2, window_bounds = array<i64: 32, 1280>}]} {
    %c0 = arith.constant 0 : index
    %c0_0 = arith.constant 0 : index
    %0 = vector.load %arg1[%c0, %c0_0] : memref<32x640xbf16, #tpu.memory_space<vmem>>, vector<32x640xbf16>
    %c0_1 = arith.constant 0 : index
    %c0_2 = arith.constant 0 : index
    %1 = vector.load %arg2[%c0_1, %c0_2] : memref<640x1280xbf16, #tpu.memory_space<vmem>>, vector<640x1280xbf16>
    %cst = arith.constant dense<0.000000e+00> : vector<32x1280xf32>
    %2 = tpu.matmul %0, %1, %cst {dimension_numbers = #tpu.dot_dimension_numbers<[1], [0], [0], [1], [0, 0, 1, 1], [], []>} : vector<32x640xbf16>, vector<640x1280xbf16>, vector<32x1280xf32> -> vector<32x1280xf32>
    %c0_3 = arith.constant 0 : index
    %c0_4 = arith.constant 0 : index
    %3 = vector.load %arg3[%c0_3, %c0_4] : memref<32x1280xf32, #tpu.memory_space<vmem>>, vector<32x1280xf32>
    tpu.vector_store %arg3[%c0_3, %c0_4], %2 {strides = array<i32>} : memref<32x1280xf32, #tpu.memory_space<vmem>>, vector<32x1280xf32>,
    return
  }
  func.func @transform_0(%arg0: i32) -> (i32, i32) {
    %c0_i32 = arith.constant 0 : i32
    %c0_i32_0 = arith.constant 0 : i32
    return %arg0, %c0_i32 : i32, i32
  }
  func.func @transform_1(%arg0: i32) -> (i32, i32) {
    %c0_i32 = arith.constant 0 : i32
    %c0_i32_0 = arith.constant 0 : i32
    %c0_i32_1 = arith.constant 0 : i32
    return %c0_i32, %c0_i32_0 : i32, i32
  }
  func.func @transform_2(%arg0: i32) -> (i32, i32) {
    %c0_i32 = arith.constant 0 : i32
    %c0_i32_0 = arith.constant 0 : i32
    return %arg0, %c0_i32 : i32, i32
  }
}

module attributes {stable_mosaic.version = 11 : i64} {
  func.func @h0_scan_kernel(%arg0: i32, %arg1: memref<32x1280xf32, #tpu.memory_space<vmem>>, %arg2: memref<32x1280xf32, #tpu.memory_space<vmem>>, %arg3: memref<1x256xf32, #tpu.memory_space<vmem>>, %arg4: memref<256x256xbf16, #tpu.memory_space<vmem>>, %arg5: memref<32x256xbf16, #tpu.memory_space<vmem>>, %arg6: memref<1x256xf32, #tpu.memory_space<vmem>>) attributes {dimension_semantics = [#tpu.dimension_semantics<arbitrary>], iteration_bounds = array<i64: 1>, scalar_prefetch = 0 : i64, scratch_operands = 1 : i64, tpu.core_type = #tpu.core_type<tc>, window_params = [{transform_indices = @transform_0, window_bounds = array<i64: 32, 1280>}, {transform_indices = @transform_1, window_bounds = array<i64: 32, 1280>}, {pipeline_mode = #tpu.pipeline_mode<synchronous>, transform_indices = @transform_2, window_bounds = array<i64: 1, 256>}, {pipeline_mode = #tpu.pipeline_mode<synchronous>, transform_indices = @transform_3, window_bounds = array<i64: 256, 256>}, {transform_indices = @transform_4, window_bounds = array<i64: 32, 256>}]} {
    %c0_i32 = arith.constant 0 : i32
    %0 = arith.cmpi eq, %arg0, %c0_i32 : i32
    %1 = arith.extui %0 : i1 to i32
    %c0_i32_0 = arith.constant 0 : i32
    %2 = arith.cmpi ne, %1, %c0_i32_0 : i32
    scf.if %2 {
      %cst_51 = arith.constant 0.000000e+00 : f32
      %222 = vector.broadcast %cst_51 : f32 to vector<1x256xf32>
      %c0_52 = arith.constant 0 : index
      %c0_53 = arith.constant 0 : index
      %223 = vector.load %arg6[%c0_52, %c0_53] : memref<1x256xf32, #tpu.memory_space<vmem>>, vector<1x256xf32>
      tpu.vector_store %arg6[%c0_52, %c0_53], %222 {strides = array<i32>} : memref<1x256xf32, #tpu.memory_space<vmem>>, vector<1x256xf32>,
    } else {
    }
    %c0 = arith.constant 0 : index
    %c0_1 = arith.constant 0 : index
    %3 = vector.load %arg1[%c0, %c0_1] : memref<32x1280xf32, #tpu.memory_space<vmem>>, vector<32x256xf32>
    %c0_2 = arith.constant 0 : index
    %c0_3 = arith.constant 0 : index
    %4 = vector.load %arg3[%c0_2, %c0_3] : memref<1x256xf32, #tpu.memory_space<vmem>>, vector<1x256xf32>
    %5 = vector.broadcast %4 : vector<1x256xf32> to vector<32x256xf32>
    %6 = arith.addf %3, %5 : vector<32x256xf32>
    %c1 = arith.constant 1 : index
    %c256 = arith.constant 256 : index
    %7 = vector.load %arg1[%c1, %c256] : memref<32x1280xf32, #tpu.memory_space<vmem>>, vector<31x256xf32>
    %c0_4 = arith.constant 0 : index
    %c256_5 = arith.constant 256 : index
    %8 = vector.load %arg2[%c0_4, %c256_5] : memref<32x1280xf32, #tpu.memory_space<vmem>>, vector<1x256xf32>
    %9 = tpu.concatenate %7, %8 in 0 : vector<31x256xf32>, vector<1x256xf32> -> vector<32x256xf32>
    %10 = arith.addf %6, %9 : vector<32x256xf32>
    %c2 = arith.constant 2 : index
    %c512 = arith.constant 512 : index
    %11 = vector.load %arg1[%c2, %c512] : memref<32x1280xf32, #tpu.memory_space<vmem>>, vector<30x256xf32>
    %c0_6 = arith.constant 0 : index
    %c512_7 = arith.constant 512 : index
    %12 = vector.load %arg2[%c0_6, %c512_7] : memref<32x1280xf32, #tpu.memory_space<vmem>>, vector<2x256xf32>
    %13 = tpu.concatenate %11, %12 in 0 : vector<30x256xf32>, vector<2x256xf32> -> vector<32x256xf32>
    %14 = arith.addf %10, %13 : vector<32x256xf32>
    %c3 = arith.constant 3 : index
    %c768 = arith.constant 768 : index
    %15 = vector.load %arg1[%c3, %c768] : memref<32x1280xf32, #tpu.memory_space<vmem>>, vector<29x256xf32>
    %c0_8 = arith.constant 0 : index
    %c768_9 = arith.constant 768 : index
    %16 = vector.load %arg2[%c0_8, %c768_9] : memref<32x1280xf32, #tpu.memory_space<vmem>>, vector<3x256xf32>
    %17 = tpu.concatenate %15, %16 in 0 : vector<29x256xf32>, vector<3x256xf32> -> vector<32x256xf32>
    %18 = arith.addf %14, %17 : vector<32x256xf32>
    %c4 = arith.constant 4 : index
    %c1024 = arith.constant 1024 : index
    %19 = vector.load %arg1[%c4, %c1024] : memref<32x1280xf32, #tpu.memory_space<vmem>>, vector<28x256xf32>
    %c0_10 = arith.constant 0 : index
    %c1024_11 = arith.constant 1024 : index
    %20 = vector.load %arg2[%c0_10, %c1024_11] : memref<32x1280xf32, #tpu.memory_space<vmem>>, vector<4x256xf32>
    %21 = tpu.concatenate %19, %20 in 0 : vector<28x256xf32>, vector<4x256xf32> -> vector<32x256xf32>
    %22 = arith.addf %18, %21 : vector<32x256xf32>
    %c0_12 = arith.constant 0 : index
    %c0_13 = arith.constant 0 : index
    %23 = vector.load %arg4[%c0_12, %c0_13] : memref<256x256xbf16, #tpu.memory_space<vmem>>, vector<256x256xbf16>
    %c0_14 = arith.constant 0 : index
    %c0_15 = arith.constant 0 : index
    %24 = vector.load %arg6[%c0_14, %c0_15] : memref<1x256xf32, #tpu.memory_space<vmem>>, vector<1x256xf32>
    %25 = vector.extract_strided_slice %22 {offsets = [0, 0], sizes = [1, 256], strides = [1, 1]} : vector<32x256xf32> to vector<1x256xf32>
    %26 = arith.truncf %24 : vector<1x256xf32> to vector<1x256xbf16>
    %cst = arith.constant dense<0.000000e+00> : vector<1x256xf32>
    %27 = tpu.matmul %26, %23, %cst {dimension_numbers = #tpu.dot_dimension_numbers<[1], [0], [0], [1], [0, 0, 1, 1], [], []>} : vector<1x256xbf16>, vector<256x256xbf16>, vector<1x256xf32> -> vector<1x256xf32>
    %28 = arith.addf %25, %27 : vector<1x256xf32>
    %29 = math.tanh %28 : vector<1x256xf32>
    %30 = arith.truncf %29 : vector<1x256xf32> to vector<1x256xbf16>
    %31 = vector.extract_strided_slice %22 {offsets = [1, 0], sizes = [1, 256], strides = [1, 1]} : vector<32x256xf32> to vector<1x256xf32>
    %32 = arith.truncf %29 : vector<1x256xf32> to vector<1x256xbf16>
    %cst_16 = arith.constant dense<0.000000e+00> : vector<1x256xf32>
    %33 = tpu.matmul %32, %23, %cst_16 {dimension_numbers = #tpu.dot_dimension_numbers<[1], [0], [0], [1], [0, 0, 1, 1], [], []>} : vector<1x256xbf16>, vector<256x256xbf16>, vector<1x256xf32> -> vector<1x256xf32>
    %34 = arith.addf %31, %33 : vector<1x256xf32>
    %35 = math.tanh %34 : vector<1x256xf32>
    %36 = arith.truncf %35 : vector<1x256xf32> to vector<1x256xbf16>
    %37 = vector.extract_strided_slice %22 {offsets = [2, 0], sizes = [1, 256], strides = [1, 1]} : vector<32x256xf32> to vector<1x256xf32>
    %38 = arith.truncf %35 : vector<1x256xf32> to vector<1x256xbf16>
    %cst_17 = arith.constant dense<0.000000e+00> : vector<1x256xf32>
    %39 = tpu.matmul %38, %23, %cst_17 {dimension_numbers = #tpu.dot_dimension_numbers<[1], [0], [0], [1], [0, 0, 1, 1], [], []>} : vector<1x256xbf16>, vector<256x256xbf16>, vector<1x256xf32> -> vector<1x256xf32>
    %40 = arith.addf %37, %39 : vector<1x256xf32>
    %41 = math.tanh %40 : vector<1x256xf32>
    %42 = arith.truncf %41 : vector<1x256xf32> to vector<1x256xbf16>
    %43 = vector.extract_strided_slice %22 {offsets = [3, 0], sizes = [1, 256], strides = [1, 1]} : vector<32x256xf32> to vector<1x256xf32>
    %44 = arith.truncf %41 : vector<1x256xf32> to vector<1x256xbf16>
    %cst_18 = arith.constant dense<0.000000e+00> : vector<1x256xf32>
    %45 = tpu.matmul %44, %23, %cst_18 {dimension_numbers = #tpu.dot_dimension_numbers<[1], [0], [0], [1], [0, 0, 1, 1], [], []>} : vector<1x256xbf16>, vector<256x256xbf16>, vector<1x256xf32> -> vector<1x256xf32>
    %46 = arith.addf %43, %45 : vector<1x256xf32>
    %47 = math.tanh %46 : vector<1x256xf32>
    %48 = arith.truncf %47 : vector<1x256xf32> to vector<1x256xbf16>
    %49 = vector.extract_strided_slice %22 {offsets = [4, 0], sizes = [1, 256], strides = [1, 1]} : vector<32x256xf32> to vector<1x256xf32>
    %50 = arith.truncf %47 : vector<1x256xf32> to vector<1x256xbf16>
    %cst_19 = arith.constant dense<0.000000e+00> : vector<1x256xf32>
    %51 = tpu.matmul %50, %23, %cst_19 {dimension_numbers = #tpu.dot_dimension_numbers<[1], [0], [0], [1], [0, 0, 1, 1], [], []>} : vector<1x256xbf16>, vector<256x256xbf16>, vector<1x256xf32> -> vector<1x256xf32>
    %52 = arith.addf %49, %51 : vector<1x256xf32>
    %53 = math.tanh %52 : vector<1x256xf32>
    %54 = arith.truncf %53 : vector<1x256xf32> to vector<1x256xbf16>
    %55 = vector.extract_strided_slice %22 {offsets = [5, 0], sizes = [1, 256], strides = [1, 1]} : vector<32x256xf32> to vector<1x256xf32>
    %56 = arith.truncf %53 : vector<1x256xf32> to vector<1x256xbf16>
    %cst_20 = arith.constant dense<0.000000e+00> : vector<1x256xf32>
    %57 = tpu.matmul %56, %23, %cst_20 {dimension_numbers = #tpu.dot_dimension_numbers<[1], [0], [0], [1], [0, 0, 1, 1], [], []>} : vector<1x256xbf16>, vector<256x256xbf16>, vector<1x256xf32> -> vector<1x256xf32>
    %58 = arith.addf %55, %57 : vector<1x256xf32>
    %59 = math.tanh %58 : vector<1x256xf32>
    %60 = arith.truncf %59 : vector<1x256xf32> to vector<1x256xbf16>
    %61 = vector.extract_strided_slice %22 {offsets = [6, 0], sizes = [1, 256], strides = [1, 1]} : vector<32x256xf32> to vector<1x256xf32>
    %62 = arith.truncf %59 : vector<1x256xf32> to vector<1x256xbf16>
    %cst_21 = arith.constant dense<0.000000e+00> : vector<1x256xf32>
    %63 = tpu.matmul %62, %23, %cst_21 {dimension_numbers = #tpu.dot_dimension_numbers<[1], [0], [0], [1], [0, 0, 1, 1], [], []>} : vector<1x256xbf16>, vector<256x256xbf16>, vector<1x256xf32> -> vector<1x256xf32>
    %64 = arith.addf %61, %63 : vector<1x256xf32>
    %65 = math.tanh %64 : vector<1x256xf32>
    %66 = arith.truncf %65 : vector<1x256xf32> to vector<1x256xbf16>
    %67 = vector.extract_strided_slice %22 {offsets = [7, 0], sizes = [1, 256], strides = [1, 1]} : vector<32x256xf32> to vector<1x256xf32>
    %68 = arith.truncf %65 : vector<1x256xf32> to vector<1x256xbf16>
    %cst_22 = arith.constant dense<0.000000e+00> : vector<1x256xf32>
    %69 = tpu.matmul %68, %23, %cst_22 {dimension_numbers = #tpu.dot_dimension_numbers<[1], [0], [0], [1], [0, 0, 1, 1], [], []>} : vector<1x256xbf16>, vector<256x256xbf16>, vector<1x256xf32> -> vector<1x256xf32>
    %70 = arith.addf %67, %69 : vector<1x256xf32>
    %71 = math.tanh %70 : vector<1x256xf32>
    %72 = arith.truncf %71 : vector<1x256xf32> to vector<1x256xbf16>
    %73 = vector.extract_strided_slice %22 {offsets = [8, 0], sizes = [1, 256], strides = [1, 1]} : vector<32x256xf32> to vector<1x256xf32>
    %74 = arith.truncf %71 : vector<1x256xf32> to vector<1x256xbf16>
    %cst_23 = arith.constant dense<0.000000e+00> : vector<1x256xf32>
    %75 = tpu.matmul %74, %23, %cst_23 {dimension_numbers = #tpu.dot_dimension_numbers<[1], [0], [0], [1], [0, 0, 1, 1], [], []>} : vector<1x256xbf16>, vector<256x256xbf16>, vector<1x256xf32> -> vector<1x256xf32>
    %76 = arith.addf %73, %75 : vector<1x256xf32>
    %77 = math.tanh %76 : vector<1x256xf32>
    %78 = arith.truncf %77 : vector<1x256xf32> to vector<1x256xbf16>
    %79 = vector.extract_strided_slice %22 {offsets = [9, 0], sizes = [1, 256], strides = [1, 1]} : vector<32x256xf32> to vector<1x256xf32>
    %80 = arith.truncf %77 : vector<1x256xf32> to vector<1x256xbf16>
    %cst_24 = arith.constant dense<0.000000e+00> : vector<1x256xf32>
    %81 = tpu.matmul %80, %23, %cst_24 {dimension_numbers = #tpu.dot_dimension_numbers<[1], [0], [0], [1], [0, 0, 1, 1], [], []>} : vector<1x256xbf16>, vector<256x256xbf16>, vector<1x256xf32> -> vector<1x256xf32>
    %82 = arith.addf %79, %81 : vector<1x256xf32>
    %83 = math.tanh %82 : vector<1x256xf32>
    %84 = arith.truncf %83 : vector<1x256xf32> to vector<1x256xbf16>
    %85 = vector.extract_strided_slice %22 {offsets = [10, 0], sizes = [1, 256], strides = [1, 1]} : vector<32x256xf32> to vector<1x256xf32>
    %86 = arith.truncf %83 : vector<1x256xf32> to vector<1x256xbf16>
    %cst_25 = arith.constant dense<0.000000e+00> : vector<1x256xf32>
    %87 = tpu.matmul %86, %23, %cst_25 {dimension_numbers = #tpu.dot_dimension_numbers<[1], [0], [0], [1], [0, 0, 1, 1], [], []>} : vector<1x256xbf16>, vector<256x256xbf16>, vector<1x256xf32> -> vector<1x256xf32>
    %88 = arith.addf %85, %87 : vector<1x256xf32>
    %89 = math.tanh %88 : vector<1x256xf32>
    %90 = arith.truncf %89 : vector<1x256xf32> to vector<1x256xbf16>
    %91 = vector.extract_strided_slice %22 {offsets = [11, 0], sizes = [1, 256], strides = [1, 1]} : vector<32x256xf32> to vector<1x256xf32>
    %92 = arith.truncf %89 : vector<1x256xf32> to vector<1x256xbf16>
    %cst_26 = arith.constant dense<0.000000e+00> : vector<1x256xf32>
    %93 = tpu.matmul %92, %23, %cst_26 {dimension_numbers = #tpu.dot_dimension_numbers<[1], [0], [0], [1], [0, 0, 1, 1], [], []>} : vector<1x256xbf16>, vector<256x256xbf16>, vector<1x256xf32> -> vector<1x256xf32>
    %94 = arith.addf %91, %93 : vector<1x256xf32>
    %95 = math.tanh %94 : vector<1x256xf32>
    %96 = arith.truncf %95 : vector<1x256xf32> to vector<1x256xbf16>
    %97 = vector.extract_strided_slice %22 {offsets = [12, 0], sizes = [1, 256], strides = [1, 1]} : vector<32x256xf32> to vector<1x256xf32>
    %98 = arith.truncf %95 : vector<1x256xf32> to vector<1x256xbf16>
    %cst_27 = arith.constant dense<0.000000e+00> : vector<1x256xf32>
    %99 = tpu.matmul %98, %23, %cst_27 {dimension_numbers = #tpu.dot_dimension_numbers<[1], [0], [0], [1], [0, 0, 1, 1], [], []>} : vector<1x256xbf16>, vector<256x256xbf16>, vector<1x256xf32> -> vector<1x256xf32>
    %100 = arith.addf %97, %99 : vector<1x256xf32>
    %101 = math.tanh %100 : vector<1x256xf32>
    %102 = arith.truncf %101 : vector<1x256xf32> to vector<1x256xbf16>
    %103 = vector.extract_strided_slice %22 {offsets = [13, 0], sizes = [1, 256], strides = [1, 1]} : vector<32x256xf32> to vector<1x256xf32>
    %104 = arith.truncf %101 : vector<1x256xf32> to vector<1x256xbf16>
    %cst_28 = arith.constant dense<0.000000e+00> : vector<1x256xf32>
    %105 = tpu.matmul %104, %23, %cst_28 {dimension_numbers = #tpu.dot_dimension_numbers<[1], [0], [0], [1], [0, 0, 1, 1], [], []>} : vector<1x256xbf16>, vector<256x256xbf16>, vector<1x256xf32> -> vector<1x256xf32>
    %106 = arith.addf %103, %105 : vector<1x256xf32>
    %107 = math.tanh %106 : vector<1x256xf32>
    %108 = arith.truncf %107 : vector<1x256xf32> to vector<1x256xbf16>
    %109 = vector.extract_strided_slice %22 {offsets = [14, 0], sizes = [1, 256], strides = [1, 1]} : vector<32x256xf32> to vector<1x256xf32>
    %110 = arith.truncf %107 : vector<1x256xf32> to vector<1x256xbf16>
    %cst_29 = arith.constant dense<0.000000e+00> : vector<1x256xf32>
    %111 = tpu.matmul %110, %23, %cst_29 {dimension_numbers = #tpu.dot_dimension_numbers<[1], [0], [0], [1], [0, 0, 1, 1], [], []>} : vector<1x256xbf16>, vector<256x256xbf16>, vector<1x256xf32> -> vector<1x256xf32>
    %112 = arith.addf %109, %111 : vector<1x256xf32>
    %113 = math.tanh %112 : vector<1x256xf32>
    %114 = arith.truncf %113 : vector<1x256xf32> to vector<1x256xbf16>
    %115 = vector.extract_strided_slice %22 {offsets = [15, 0], sizes = [1, 256], strides = [1, 1]} : vector<32x256xf32> to vector<1x256xf32>
    %116 = arith.truncf %113 : vector<1x256xf32> to vector<1x256xbf16>
    %cst_30 = arith.constant dense<0.000000e+00> : vector<1x256xf32>
    %117 = tpu.matmul %116, %23, %cst_30 {dimension_numbers = #tpu.dot_dimension_numbers<[1], [0], [0], [1], [0, 0, 1, 1], [], []>} : vector<1x256xbf16>, vector<256x256xbf16>, vector<1x256xf32> -> vector<1x256xf32>
    %118 = arith.addf %115, %117 : vector<1x256xf32>
    %119 = math.tanh %118 : vector<1x256xf32>
    %120 = arith.truncf %119 : vector<1x256xf32> to vector<1x256xbf16>
    %121 = vector.extract_strided_slice %22 {offsets = [16, 0], sizes = [1, 256], strides = [1, 1]} : vector<32x256xf32> to vector<1x256xf32>
    %122 = arith.truncf %119 : vector<1x256xf32> to vector<1x256xbf16>
    %cst_31 = arith.constant dense<0.000000e+00> : vector<1x256xf32>
    %123 = tpu.matmul %122, %23, %cst_31 {dimension_numbers = #tpu.dot_dimension_numbers<[1], [0], [0], [1], [0, 0, 1, 1], [], []>} : vector<1x256xbf16>, vector<256x256xbf16>, vector<1x256xf32> -> vector<1x256xf32>
    %124 = arith.addf %121, %123 : vector<1x256xf32>
    %125 = math.tanh %124 : vector<1x256xf32>
    %126 = arith.truncf %125 : vector<1x256xf32> to vector<1x256xbf16>
    %127 = vector.extract_strided_slice %22 {offsets = [17, 0], sizes = [1, 256], strides = [1, 1]} : vector<32x256xf32> to vector<1x256xf32>
    %128 = arith.truncf %125 : vector<1x256xf32> to vector<1x256xbf16>
    %cst_32 = arith.constant dense<0.000000e+00> : vector<1x256xf32>
    %129 = tpu.matmul %128, %23, %cst_32 {dimension_numbers = #tpu.dot_dimension_numbers<[1], [0], [0], [1], [0, 0, 1, 1], [], []>} : vector<1x256xbf16>, vector<256x256xbf16>, vector<1x256xf32> -> vector<1x256xf32>
    %130 = arith.addf %127, %129 : vector<1x256xf32>
    %131 = math.tanh %130 : vector<1x256xf32>
    %132 = arith.truncf %131 : vector<1x256xf32> to vector<1x256xbf16>
    %133 = vector.extract_strided_slice %22 {offsets = [18, 0], sizes = [1, 256], strides = [1, 1]} : vector<32x256xf32> to vector<1x256xf32>
    %134 = arith.truncf %131 : vector<1x256xf32> to vector<1x256xbf16>
    %cst_33 = arith.constant dense<0.000000e+00> : vector<1x256xf32>
    %135 = tpu.matmul %134, %23, %cst_33 {dimension_numbers = #tpu.dot_dimension_numbers<[1], [0], [0], [1], [0, 0, 1, 1], [], []>} : vector<1x256xbf16>, vector<256x256xbf16>, vector<1x256xf32> -> vector<1x256xf32>
    %136 = arith.addf %133, %135 : vector<1x256xf32>
    %137 = math.tanh %136 : vector<1x256xf32>
    %138 = arith.truncf %137 : vector<1x256xf32> to vector<1x256xbf16>
    %139 = vector.extract_strided_slice %22 {offsets = [19, 0], sizes = [1, 256], strides = [1, 1]} : vector<32x256xf32> to vector<1x256xf32>
    %140 = arith.truncf %137 : vector<1x256xf32> to vector<1x256xbf16>
    %cst_34 = arith.constant dense<0.000000e+00> : vector<1x256xf32>
    %141 = tpu.matmul %140, %23, %cst_34 {dimension_numbers = #tpu.dot_dimension_numbers<[1], [0], [0], [1], [0, 0, 1, 1], [], []>} : vector<1x256xbf16>, vector<256x256xbf16>, vector<1x256xf32> -> vector<1x256xf32>
    %142 = arith.addf %139, %141 : vector<1x256xf32>
    %143 = math.tanh %142 : vector<1x256xf32>
    %144 = arith.truncf %143 : vector<1x256xf32> to vector<1x256xbf16>
    %145 = vector.extract_strided_slice %22 {offsets = [20, 0], sizes = [1, 256], strides = [1, 1]} : vector<32x256xf32> to vector<1x256xf32>
    %146 = arith.truncf %143 : vector<1x256xf32> to vector<1x256xbf16>
    %cst_35 = arith.constant dense<0.000000e+00> : vector<1x256xf32>
    %147 = tpu.matmul %146, %23, %cst_35 {dimension_numbers = #tpu.dot_dimension_numbers<[1], [0], [0], [1], [0, 0, 1, 1], [], []>} : vector<1x256xbf16>, vector<256x256xbf16>, vector<1x256xf32> -> vector<1x256xf32>
    %148 = arith.addf %145, %147 : vector<1x256xf32>
    %149 = math.tanh %148 : vector<1x256xf32>
    %150 = arith.truncf %149 : vector<1x256xf32> to vector<1x256xbf16>
    %151 = vector.extract_strided_slice %22 {offsets = [21, 0], sizes = [1, 256], strides = [1, 1]} : vector<32x256xf32> to vector<1x256xf32>
    %152 = arith.truncf %149 : vector<1x256xf32> to vector<1x256xbf16>
    %cst_36 = arith.constant dense<0.000000e+00> : vector<1x256xf32>
    %153 = tpu.matmul %152, %23, %cst_36 {dimension_numbers = #tpu.dot_dimension_numbers<[1], [0], [0], [1], [0, 0, 1, 1], [], []>} : vector<1x256xbf16>, vector<256x256xbf16>, vector<1x256xf32> -> vector<1x256xf32>
    %154 = arith.addf %151, %153 : vector<1x256xf32>
    %155 = math.tanh %154 : vector<1x256xf32>
    %156 = arith.truncf %155 : vector<1x256xf32> to vector<1x256xbf16>
    %157 = vector.extract_strided_slice %22 {offsets = [22, 0], sizes = [1, 256], strides = [1, 1]} : vector<32x256xf32> to vector<1x256xf32>
    %158 = arith.truncf %155 : vector<1x256xf32> to vector<1x256xbf16>
    %cst_37 = arith.constant dense<0.000000e+00> : vector<1x256xf32>
    %159 = tpu.matmul %158, %23, %cst_37 {dimension_numbers = #tpu.dot_dimension_numbers<[1], [0], [0], [1], [0, 0, 1, 1], [], []>} : vector<1x256xbf16>, vector<256x256xbf16>, vector<1x256xf32> -> vector<1x256xf32>
    %160 = arith.addf %157, %159 : vector<1x256xf32>
    %161 = math.tanh %160 : vector<1x256xf32>
    %162 = arith.truncf %161 : vector<1x256xf32> to vector<1x256xbf16>
    %163 = vector.extract_strided_slice %22 {offsets = [23, 0], sizes = [1, 256], strides = [1, 1]} : vector<32x256xf32> to vector<1x256xf32>
    %164 = arith.truncf %161 : vector<1x256xf32> to vector<1x256xbf16>
    %cst_38 = arith.constant dense<0.000000e+00> : vector<1x256xf32>
    %165 = tpu.matmul %164, %23, %cst_38 {dimension_numbers = #tpu.dot_dimension_numbers<[1], [0], [0], [1], [0, 0, 1, 1], [], []>} : vector<1x256xbf16>, vector<256x256xbf16>, vector<1x256xf32> -> vector<1x256xf32>
    %166 = arith.addf %163, %165 : vector<1x256xf32>
    %167 = math.tanh %166 : vector<1x256xf32>
    %168 = arith.truncf %167 : vector<1x256xf32> to vector<1x256xbf16>
    %169 = vector.extract_strided_slice %22 {offsets = [24, 0], sizes = [1, 256], strides = [1, 1]} : vector<32x256xf32> to vector<1x256xf32>
    %170 = arith.truncf %167 : vector<1x256xf32> to vector<1x256xbf16>
    %cst_39 = arith.constant dense<0.000000e+00> : vector<1x256xf32>
    %171 = tpu.matmul %170, %23, %cst_39 {dimension_numbers = #tpu.dot_dimension_numbers<[1], [0], [0], [1], [0, 0, 1, 1], [], []>} : vector<1x256xbf16>, vector<256x256xbf16>, vector<1x256xf32> -> vector<1x256xf32>
    %172 = arith.addf %169, %171 : vector<1x256xf32>
    %173 = math.tanh %172 : vector<1x256xf32>
    %174 = arith.truncf %173 : vector<1x256xf32> to vector<1x256xbf16>
    %175 = vector.extract_strided_slice %22 {offsets = [25, 0], sizes = [1, 256], strides = [1, 1]} : vector<32x256xf32> to vector<1x256xf32>
    %176 = arith.truncf %173 : vector<1x256xf32> to vector<1x256xbf16>
    %cst_40 = arith.constant dense<0.000000e+00> : vector<1x256xf32>
    %177 = tpu.matmul %176, %23, %cst_40 {dimension_numbers = #tpu.dot_dimension_numbers<[1], [0], [0], [1], [0, 0, 1, 1], [], []>} : vector<1x256xbf16>, vector<256x256xbf16>, vector<1x256xf32> -> vector<1x256xf32>
    %178 = arith.addf %175, %177 : vector<1x256xf32>
    %179 = math.tanh %178 : vector<1x256xf32>
    %180 = arith.truncf %179 : vector<1x256xf32> to vector<1x256xbf16>
    %181 = vector.extract_strided_slice %22 {offsets = [26, 0], sizes = [1, 256], strides = [1, 1]} : vector<32x256xf32> to vector<1x256xf32>
    %182 = arith.truncf %179 : vector<1x256xf32> to vector<1x256xbf16>
    %cst_41 = arith.constant dense<0.000000e+00> : vector<1x256xf32>
    %183 = tpu.matmul %182, %23, %cst_41 {dimension_numbers = #tpu.dot_dimension_numbers<[1], [0], [0], [1], [0, 0, 1, 1], [], []>} : vector<1x256xbf16>, vector<256x256xbf16>, vector<1x256xf32> -> vector<1x256xf32>
    %184 = arith.addf %181, %183 : vector<1x256xf32>
    %185 = math.tanh %184 : vector<1x256xf32>
    %186 = arith.truncf %185 : vector<1x256xf32> to vector<1x256xbf16>
    %187 = vector.extract_strided_slice %22 {offsets = [27, 0], sizes = [1, 256], strides = [1, 1]} : vector<32x256xf32> to vector<1x256xf32>
    %188 = arith.truncf %185 : vector<1x256xf32> to vector<1x256xbf16>
    %cst_42 = arith.constant dense<0.000000e+00> : vector<1x256xf32>
    %189 = tpu.matmul %188, %23, %cst_42 {dimension_numbers = #tpu.dot_dimension_numbers<[1], [0], [0], [1], [0, 0, 1, 1], [], []>} : vector<1x256xbf16>, vector<256x256xbf16>, vector<1x256xf32> -> vector<1x256xf32>
    %190 = arith.addf %187, %189 : vector<1x256xf32>
    %191 = math.tanh %190 : vector<1x256xf32>
    %192 = arith.truncf %191 : vector<1x256xf32> to vector<1x256xbf16>
    %193 = vector.extract_strided_slice %22 {offsets = [28, 0], sizes = [1, 256], strides = [1, 1]} : vector<32x256xf32> to vector<1x256xf32>
    %194 = arith.truncf %191 : vector<1x256xf32> to vector<1x256xbf16>
    %cst_43 = arith.constant dense<0.000000e+00> : vector<1x256xf32>
    %195 = tpu.matmul %194, %23, %cst_43 {dimension_numbers = #tpu.dot_dimension_numbers<[1], [0], [0], [1], [0, 0, 1, 1], [], []>} : vector<1x256xbf16>, vector<256x256xbf16>, vector<1x256xf32> -> vector<1x256xf32>
    %196 = arith.addf %193, %195 : vector<1x256xf32>
    %197 = math.tanh %196 : vector<1x256xf32>
    %198 = arith.truncf %197 : vector<1x256xf32> to vector<1x256xbf16>
    %199 = vector.extract_strided_slice %22 {offsets = [29, 0], sizes = [1, 256], strides = [1, 1]} : vector<32x256xf32> to vector<1x256xf32>
    %200 = arith.truncf %197 : vector<1x256xf32> to vector<1x256xbf16>
    %cst_44 = arith.constant dense<0.000000e+00> : vector<1x256xf32>
    %201 = tpu.matmul %200, %23, %cst_44 {dimension_numbers = #tpu.dot_dimension_numbers<[1], [0], [0], [1], [0, 0, 1, 1], [], []>} : vector<1x256xbf16>, vector<256x256xbf16>, vector<1x256xf32> -> vector<1x256xf32>
    %202 = arith.addf %199, %201 : vector<1x256xf32>
    %203 = math.tanh %202 : vector<1x256xf32>
    %204 = arith.truncf %203 : vector<1x256xf32> to vector<1x256xbf16>
    %205 = vector.extract_strided_slice %22 {offsets = [30, 0], sizes = [1, 256], strides = [1, 1]} : vector<32x256xf32> to vector<1x256xf32>
    %206 = arith.truncf %203 : vector<1x256xf32> to vector<1x256xbf16>
    %cst_45 = arith.constant dense<0.000000e+00> : vector<1x256xf32>
    %207 = tpu.matmul %206, %23, %cst_45 {dimension_numbers = #tpu.dot_dimension_numbers<[1], [0], [0], [1], [0, 0, 1, 1], [], []>} : vector<1x256xbf16>, vector<256x256xbf16>, vector<1x256xf32> -> vector<1x256xf32>
    %208 = arith.addf %205, %207 : vector<1x256xf32>
    %209 = math.tanh %208 : vector<1x256xf32>
    %210 = arith.truncf %209 : vector<1x256xf32> to vector<1x256xbf16>
    %211 = vector.extract_strided_slice %22 {offsets = [31, 0], sizes = [1, 256], strides = [1, 1]} : vector<32x256xf32> to vector<1x256xf32>
    %212 = arith.truncf %209 : vector<1x256xf32> to vector<1x256xbf16>
    %cst_46 = arith.constant dense<0.000000e+00> : vector<1x256xf32>
    %213 = tpu.matmul %212, %23, %cst_46 {dimension_numbers = #tpu.dot_dimension_numbers<[1], [0], [0], [1], [0, 0, 1, 1], [], []>} : vector<1x256xbf16>, vector<256x256xbf16>, vector<1x256xf32> -> vector<1x256xf32>
    %214 = arith.addf %211, %213 : vector<1x256xf32>
    %215 = math.tanh %214 : vector<1x256xf32>
    %216 = arith.truncf %215 : vector<1x256xf32> to vector<1x256xbf16>
    %217 = tpu.concatenate %30, %36, %42, %48, %54, %60, %66, %72, %78, %84, %90, %96, %102, %108, %114, %120 in 0 : vector<1x256xbf16>, vector<1x256xbf16>, vector<1x256xbf16>, vector<1x256xbf16>, vector<1x256xbf16>, vector<1x256xbf16>, vector<1x256xbf16>, vector<1x256xbf16>, vector<1x256xbf16>, vector<1x256xbf16>, vector<1x256xbf16>, vector<1x256xbf16>, vector<1x256xbf16>, vector<1x256xbf16>, vector<1x256xbf16>, vector<1x256xbf16> -> vector<16x256xbf16>
    %218 = tpu.concatenate %126, %132, %138, %144, %150, %156, %162, %168, %174, %180, %186, %192, %198, %204, %210, %216 in 0 : vector<1x256xbf16>, vector<1x256xbf16>, vector<1x256xbf16>, vector<1x256xbf16>, vector<1x256xbf16>, vector<1x256xbf16>, vector<1x256xbf16>, vector<1x256xbf16>, vector<1x256xbf16>, vector<1x256xbf16>, vector<1x256xbf16>, vector<1x256xbf16>, vector<1x256xbf16>, vector<1x256xbf16>, vector<1x256xbf16>, vector<1x256xbf16> -> vector<16x256xbf16>
    %219 = tpu.concatenate %217, %218 in 0 : vector<16x256xbf16>, vector<16x256xbf16> -> vector<32x256xbf16>
    %c0_47 = arith.constant 0 : index
    %c0_48 = arith.constant 0 : index
    %220 = vector.load %arg5[%c0_47, %c0_48] : memref<32x256xbf16, #tpu.memory_space<vmem>>, vector<32x256xbf16>
    tpu.vector_store %arg5[%c0_47, %c0_48], %219 {strides = array<i32>} : memref<32x256xbf16, #tpu.memory_space<vmem>>, vector<32x256xbf16>,
    %c0_49 = arith.constant 0 : index
    %c0_50 = arith.constant 0 : index
    %221 = vector.load %arg6[%c0_49, %c0_50] : memref<1x256xf32, #tpu.memory_space<vmem>>, vector<1x256xf32>
    tpu.vector_store %arg6[%c0_49, %c0_50], %215 {strides = array<i32>} : memref<1x256xf32, #tpu.memory_space<vmem>>, vector<1x256xf32>,
    return
  }
  func.func @transform_0(%arg0: i32) -> (i32, i32) {
    %c0_i32 = arith.constant 0 : i32
    %c0_i32_0 = arith.constant 0 : i32
    return %arg0, %c0_i32 : i32, i32
  }
  func.func @transform_1(%arg0: i32) -> (i32, i32) {
    %c1_i32 = arith.constant 1 : i32
    %0 = arith.addi %arg0, %c1_i32 : i32
    %c0_i32 = arith.constant 0 : i32
    %c0_i32_0 = arith.constant 0 : i32
    return %0, %c0_i32 : i32, i32
  }
  func.func @transform_2(%arg0: i32) -> (i32, i32) {
    %c0_i32 = arith.constant 0 : i32
    %c0_i32_0 = arith.constant 0 : i32
    %c0_i32_1 = arith.constant 0 : i32
    return %c0_i32, %c0_i32_0 : i32, i32
  }
  func.func @transform_3(%arg0: i32) -> (i32, i32) {
    %c0_i32 = arith.constant 0 : i32
    %c0_i32_0 = arith.constant 0 : i32
    %c0_i32_1 = arith.constant 0 : i32
    return %c0_i32, %c0_i32_0 : i32, i32
  }
  func.func @transform_4(%arg0: i32) -> (i32, i32) {
    %c0_i32 = arith.constant 0 : i32
    %c0_i32_0 = arith.constant 0 : i32
    return %arg0, %c0_i32 : i32, i32
  }
}

module attributes {stable_mosaic.version = 11 : i64} {
  func.func @matmul_bias_kernel(%arg0: i32, %arg1: memref<16x256xbf16, #tpu.memory_space<vmem>>, %arg2: memref<256x256xbf16, #tpu.memory_space<vmem>>, %arg3: memref<1x256xf32, #tpu.memory_space<vmem>>, %arg4: memref<16x256xf32, #tpu.memory_space<vmem>>) attributes {dimension_semantics = [#tpu.dimension_semantics<parallel>], iteration_bounds = array<i64: 2>, scalar_prefetch = 0 : i64, scratch_operands = 0 : i64, tpu.core_type = #tpu.core_type<tc>, window_params = [{transform_indices = @transform_0, window_bounds = array<i64: 16, 256>}, {pipeline_mode = #tpu.pipeline_mode<synchronous>, transform_indices = @transform_1, window_bounds = array<i64: 256, 256>}, {pipeline_mode = #tpu.pipeline_mode<synchronous>, transform_indices = @transform_2, window_bounds = array<i64: 1, 256>}, {transform_indices = @transform_3, window_bounds = array<i64: 16, 256>}]} {
    %c0 = arith.constant 0 : index
    %c0_0 = arith.constant 0 : index
    %0 = vector.load %arg1[%c0, %c0_0] : memref<16x256xbf16, #tpu.memory_space<vmem>>, vector<16x256xbf16>
    %c0_1 = arith.constant 0 : index
    %c0_2 = arith.constant 0 : index
    %1 = vector.load %arg2[%c0_1, %c0_2] : memref<256x256xbf16, #tpu.memory_space<vmem>>, vector<256x256xbf16>
    %cst = arith.constant dense<0.000000e+00> : vector<16x256xf32>
    %2 = tpu.matmul %0, %1, %cst {dimension_numbers = #tpu.dot_dimension_numbers<[1], [0], [0], [1], [0, 0, 1, 1], [], []>} : vector<16x256xbf16>, vector<256x256xbf16>, vector<16x256xf32> -> vector<16x256xf32>
    %c0_3 = arith.constant 0 : index
    %c0_4 = arith.constant 0 : index
    %3 = vector.load %arg3[%c0_3, %c0_4] : memref<1x256xf32, #tpu.memory_space<vmem>>, vector<1x256xf32>
    %4 = vector.broadcast %3 : vector<1x256xf32> to vector<16x256xf32>
    %5 = arith.addf %2, %4 : vector<16x256xf32>
    %c0_5 = arith.constant 0 : index
    %c0_6 = arith.constant 0 : index
    %6 = vector.load %arg4[%c0_5, %c0_6] : memref<16x256xf32, #tpu.memory_space<vmem>>, vector<16x256xf32>
    tpu.vector_store %arg4[%c0_5, %c0_6], %5 {strides = array<i32>} : memref<16x256xf32, #tpu.memory_space<vmem>>, vector<16x256xf32>,
    return
  }
  func.func @transform_0(%arg0: i32) -> (i32, i32) {
    %c0_i32 = arith.constant 0 : i32
    %c0_i32_0 = arith.constant 0 : i32
    return %arg0, %c0_i32 : i32, i32
  }
  func.func @transform_1(%arg0: i32) -> (i32, i32) {
    %c0_i32 = arith.constant 0 : i32
    %c0_i32_0 = arith.constant 0 : i32
    %c0_i32_1 = arith.constant 0 : i32
    return %c0_i32, %c0_i32_0 : i32, i32
  }
  func.func @transform_2(%arg0: i32) -> (i32, i32) {
    %c0_i32 = arith.constant 0 : i32
    %c0_i32_0 = arith.constant 0 : i32
    %c0_i32_1 = arith.constant 0 : i32
    return %c0_i32, %c0_i32_0 : i32, i32
  }
  func.func @transform_3(%arg0: i32) -> (i32, i32) {
    %c0_i32 = arith.constant 0 : i32
    %c0_i32_0 = arith.constant 0 : i32
    return %arg0, %c0_i32 : i32, i32
  }
}

module attributes {stable_mosaic.version = 11 : i64} {
  func.func @h1_scan_kernel(%arg0: i32, %arg1: memref<32x256xf32, #tpu.memory_space<vmem>>, %arg2: memref<256x256xbf16, #tpu.memory_space<vmem>>, %arg3: memref<32x256xf32, #tpu.memory_space<vmem>>, %arg4: memref<1x256xf32, #tpu.memory_space<vmem>>) attributes {dimension_semantics = [#tpu.dimension_semantics<arbitrary>], iteration_bounds = array<i64: 1>, scalar_prefetch = 0 : i64, scratch_operands = 1 : i64, tpu.core_type = #tpu.core_type<tc>, window_params = [{transform_indices = @transform_0, window_bounds = array<i64: 32, 256>}, {pipeline_mode = #tpu.pipeline_mode<synchronous>, transform_indices = @transform_1, window_bounds = array<i64: 256, 256>}, {transform_indices = @transform_2, window_bounds = array<i64: 32, 256>}]} {
    %c0_i32 = arith.constant 0 : i32
    %0 = arith.cmpi eq, %arg0, %c0_i32 : i32
    %1 = arith.extui %0 : i1 to i32
    %c0_i32_0 = arith.constant 0 : i32
    %2 = arith.cmpi ne, %1, %c0_i32_0 : i32
    scf.if %2 {
      %cst_41 = arith.constant 0.000000e+00 : f32
      %171 = vector.broadcast %cst_41 : f32 to vector<1x256xf32>
      %c0_42 = arith.constant 0 : index
      %c0_43 = arith.constant 0 : index
      %172 = vector.load %arg4[%c0_42, %c0_43] : memref<1x256xf32, #tpu.memory_space<vmem>>, vector<1x256xf32>
      tpu.vector_store %arg4[%c0_42, %c0_43], %171 {strides = array<i32>} : memref<1x256xf32, #tpu.memory_space<vmem>>, vector<1x256xf32>,
    } else {
    }
    %c0 = arith.constant 0 : index
    %c0_1 = arith.constant 0 : index
    %3 = vector.load %arg1[%c0, %c0_1] : memref<32x256xf32, #tpu.memory_space<vmem>>, vector<32x256xf32>
    %c0_2 = arith.constant 0 : index
    %c0_3 = arith.constant 0 : index
    %4 = vector.load %arg2[%c0_2, %c0_3] : memref<256x256xbf16, #tpu.memory_space<vmem>>, vector<256x256xbf16>
    %c0_4 = arith.constant 0 : index
    %c0_5 = arith.constant 0 : index
    %5 = vector.load %arg4[%c0_4, %c0_5] : memref<1x256xf32, #tpu.memory_space<vmem>>, vector<1x256xf32>
    %6 = vector.extract_strided_slice %3 {offsets = [0, 0], sizes = [1, 256], strides = [1, 1]} : vector<32x256xf32> to vector<1x256xf32>
    %7 = arith.truncf %5 : vector<1x256xf32> to vector<1x256xbf16>
    %cst = arith.constant dense<0.000000e+00> : vector<1x256xf32>
    %8 = tpu.matmul %7, %4, %cst {dimension_numbers = #tpu.dot_dimension_numbers<[1], [0], [0], [1], [0, 0, 1, 1], [], []>} : vector<1x256xbf16>, vector<256x256xbf16>, vector<1x256xf32> -> vector<1x256xf32>
    %9 = arith.addf %6, %8 : vector<1x256xf32>
    %10 = math.tanh %9 : vector<1x256xf32>
    %11 = vector.extract_strided_slice %3 {offsets = [1, 0], sizes = [1, 256], strides = [1, 1]} : vector<32x256xf32> to vector<1x256xf32>
    %12 = arith.truncf %10 : vector<1x256xf32> to vector<1x256xbf16>
    %cst_6 = arith.constant dense<0.000000e+00> : vector<1x256xf32>
    %13 = tpu.matmul %12, %4, %cst_6 {dimension_numbers = #tpu.dot_dimension_numbers<[1], [0], [0], [1], [0, 0, 1, 1], [], []>} : vector<1x256xbf16>, vector<256x256xbf16>, vector<1x256xf32> -> vector<1x256xf32>
    %14 = arith.addf %11, %13 : vector<1x256xf32>
    %15 = math.tanh %14 : vector<1x256xf32>
    %16 = vector.extract_strided_slice %3 {offsets = [2, 0], sizes = [1, 256], strides = [1, 1]} : vector<32x256xf32> to vector<1x256xf32>
    %17 = arith.truncf %15 : vector<1x256xf32> to vector<1x256xbf16>
    %cst_7 = arith.constant dense<0.000000e+00> : vector<1x256xf32>
    %18 = tpu.matmul %17, %4, %cst_7 {dimension_numbers = #tpu.dot_dimension_numbers<[1], [0], [0], [1], [0, 0, 1, 1], [], []>} : vector<1x256xbf16>, vector<256x256xbf16>, vector<1x256xf32> -> vector<1x256xf32>
    %19 = arith.addf %16, %18 : vector<1x256xf32>
    %20 = math.tanh %19 : vector<1x256xf32>
    %21 = vector.extract_strided_slice %3 {offsets = [3, 0], sizes = [1, 256], strides = [1, 1]} : vector<32x256xf32> to vector<1x256xf32>
    %22 = arith.truncf %20 : vector<1x256xf32> to vector<1x256xbf16>
    %cst_8 = arith.constant dense<0.000000e+00> : vector<1x256xf32>
    %23 = tpu.matmul %22, %4, %cst_8 {dimension_numbers = #tpu.dot_dimension_numbers<[1], [0], [0], [1], [0, 0, 1, 1], [], []>} : vector<1x256xbf16>, vector<256x256xbf16>, vector<1x256xf32> -> vector<1x256xf32>
    %24 = arith.addf %21, %23 : vector<1x256xf32>
    %25 = math.tanh %24 : vector<1x256xf32>
    %26 = vector.extract_strided_slice %3 {offsets = [4, 0], sizes = [1, 256], strides = [1, 1]} : vector<32x256xf32> to vector<1x256xf32>
    %27 = arith.truncf %25 : vector<1x256xf32> to vector<1x256xbf16>
    %cst_9 = arith.constant dense<0.000000e+00> : vector<1x256xf32>
    %28 = tpu.matmul %27, %4, %cst_9 {dimension_numbers = #tpu.dot_dimension_numbers<[1], [0], [0], [1], [0, 0, 1, 1], [], []>} : vector<1x256xbf16>, vector<256x256xbf16>, vector<1x256xf32> -> vector<1x256xf32>
    %29 = arith.addf %26, %28 : vector<1x256xf32>
    %30 = math.tanh %29 : vector<1x256xf32>
    %31 = vector.extract_strided_slice %3 {offsets = [5, 0], sizes = [1, 256], strides = [1, 1]} : vector<32x256xf32> to vector<1x256xf32>
    %32 = arith.truncf %30 : vector<1x256xf32> to vector<1x256xbf16>
    %cst_10 = arith.constant dense<0.000000e+00> : vector<1x256xf32>
    %33 = tpu.matmul %32, %4, %cst_10 {dimension_numbers = #tpu.dot_dimension_numbers<[1], [0], [0], [1], [0, 0, 1, 1], [], []>} : vector<1x256xbf16>, vector<256x256xbf16>, vector<1x256xf32> -> vector<1x256xf32>
    %34 = arith.addf %31, %33 : vector<1x256xf32>
    %35 = math.tanh %34 : vector<1x256xf32>
    %36 = vector.extract_strided_slice %3 {offsets = [6, 0], sizes = [1, 256], strides = [1, 1]} : vector<32x256xf32> to vector<1x256xf32>
    %37 = arith.truncf %35 : vector<1x256xf32> to vector<1x256xbf16>
    %cst_11 = arith.constant dense<0.000000e+00> : vector<1x256xf32>
    %38 = tpu.matmul %37, %4, %cst_11 {dimension_numbers = #tpu.dot_dimension_numbers<[1], [0], [0], [1], [0, 0, 1, 1], [], []>} : vector<1x256xbf16>, vector<256x256xbf16>, vector<1x256xf32> -> vector<1x256xf32>
    %39 = arith.addf %36, %38 : vector<1x256xf32>
    %40 = math.tanh %39 : vector<1x256xf32>
    %41 = vector.extract_strided_slice %3 {offsets = [7, 0], sizes = [1, 256], strides = [1, 1]} : vector<32x256xf32> to vector<1x256xf32>
    %42 = arith.truncf %40 : vector<1x256xf32> to vector<1x256xbf16>
    %cst_12 = arith.constant dense<0.000000e+00> : vector<1x256xf32>
    %43 = tpu.matmul %42, %4, %cst_12 {dimension_numbers = #tpu.dot_dimension_numbers<[1], [0], [0], [1], [0, 0, 1, 1], [], []>} : vector<1x256xbf16>, vector<256x256xbf16>, vector<1x256xf32> -> vector<1x256xf32>
    %44 = arith.addf %41, %43 : vector<1x256xf32>
    %45 = math.tanh %44 : vector<1x256xf32>
    %46 = vector.extract_strided_slice %3 {offsets = [8, 0], sizes = [1, 256], strides = [1, 1]} : vector<32x256xf32> to vector<1x256xf32>
    %47 = arith.truncf %45 : vector<1x256xf32> to vector<1x256xbf16>
    %cst_13 = arith.constant dense<0.000000e+00> : vector<1x256xf32>
    %48 = tpu.matmul %47, %4, %cst_13 {dimension_numbers = #tpu.dot_dimension_numbers<[1], [0], [0], [1], [0, 0, 1, 1], [], []>} : vector<1x256xbf16>, vector<256x256xbf16>, vector<1x256xf32> -> vector<1x256xf32>
    %49 = arith.addf %46, %48 : vector<1x256xf32>
    %50 = math.tanh %49 : vector<1x256xf32>
    %51 = vector.extract_strided_slice %3 {offsets = [9, 0], sizes = [1, 256], strides = [1, 1]} : vector<32x256xf32> to vector<1x256xf32>
    %52 = arith.truncf %50 : vector<1x256xf32> to vector<1x256xbf16>
    %cst_14 = arith.constant dense<0.000000e+00> : vector<1x256xf32>
    %53 = tpu.matmul %52, %4, %cst_14 {dimension_numbers = #tpu.dot_dimension_numbers<[1], [0], [0], [1], [0, 0, 1, 1], [], []>} : vector<1x256xbf16>, vector<256x256xbf16>, vector<1x256xf32> -> vector<1x256xf32>
    %54 = arith.addf %51, %53 : vector<1x256xf32>
    %55 = math.tanh %54 : vector<1x256xf32>
    %56 = vector.extract_strided_slice %3 {offsets = [10, 0], sizes = [1, 256], strides = [1, 1]} : vector<32x256xf32> to vector<1x256xf32>
    %57 = arith.truncf %55 : vector<1x256xf32> to vector<1x256xbf16>
    %cst_15 = arith.constant dense<0.000000e+00> : vector<1x256xf32>
    %58 = tpu.matmul %57, %4, %cst_15 {dimension_numbers = #tpu.dot_dimension_numbers<[1], [0], [0], [1], [0, 0, 1, 1], [], []>} : vector<1x256xbf16>, vector<256x256xbf16>, vector<1x256xf32> -> vector<1x256xf32>
    %59 = arith.addf %56, %58 : vector<1x256xf32>
    %60 = math.tanh %59 : vector<1x256xf32>
    %61 = vector.extract_strided_slice %3 {offsets = [11, 0], sizes = [1, 256], strides = [1, 1]} : vector<32x256xf32> to vector<1x256xf32>
    %62 = arith.truncf %60 : vector<1x256xf32> to vector<1x256xbf16>
    %cst_16 = arith.constant dense<0.000000e+00> : vector<1x256xf32>
    %63 = tpu.matmul %62, %4, %cst_16 {dimension_numbers = #tpu.dot_dimension_numbers<[1], [0], [0], [1], [0, 0, 1, 1], [], []>} : vector<1x256xbf16>, vector<256x256xbf16>, vector<1x256xf32> -> vector<1x256xf32>
    %64 = arith.addf %61, %63 : vector<1x256xf32>
    %65 = math.tanh %64 : vector<1x256xf32>
    %66 = vector.extract_strided_slice %3 {offsets = [12, 0], sizes = [1, 256], strides = [1, 1]} : vector<32x256xf32> to vector<1x256xf32>
    %67 = arith.truncf %65 : vector<1x256xf32> to vector<1x256xbf16>
    %cst_17 = arith.constant dense<0.000000e+00> : vector<1x256xf32>
    %68 = tpu.matmul %67, %4, %cst_17 {dimension_numbers = #tpu.dot_dimension_numbers<[1], [0], [0], [1], [0, 0, 1, 1], [], []>} : vector<1x256xbf16>, vector<256x256xbf16>, vector<1x256xf32> -> vector<1x256xf32>
    %69 = arith.addf %66, %68 : vector<1x256xf32>
    %70 = math.tanh %69 : vector<1x256xf32>
    %71 = vector.extract_strided_slice %3 {offsets = [13, 0], sizes = [1, 256], strides = [1, 1]} : vector<32x256xf32> to vector<1x256xf32>
    %72 = arith.truncf %70 : vector<1x256xf32> to vector<1x256xbf16>
    %cst_18 = arith.constant dense<0.000000e+00> : vector<1x256xf32>
    %73 = tpu.matmul %72, %4, %cst_18 {dimension_numbers = #tpu.dot_dimension_numbers<[1], [0], [0], [1], [0, 0, 1, 1], [], []>} : vector<1x256xbf16>, vector<256x256xbf16>, vector<1x256xf32> -> vector<1x256xf32>
    %74 = arith.addf %71, %73 : vector<1x256xf32>
    %75 = math.tanh %74 : vector<1x256xf32>
    %76 = vector.extract_strided_slice %3 {offsets = [14, 0], sizes = [1, 256], strides = [1, 1]} : vector<32x256xf32> to vector<1x256xf32>
    %77 = arith.truncf %75 : vector<1x256xf32> to vector<1x256xbf16>
    %cst_19 = arith.constant dense<0.000000e+00> : vector<1x256xf32>
    %78 = tpu.matmul %77, %4, %cst_19 {dimension_numbers = #tpu.dot_dimension_numbers<[1], [0], [0], [1], [0, 0, 1, 1], [], []>} : vector<1x256xbf16>, vector<256x256xbf16>, vector<1x256xf32> -> vector<1x256xf32>
    %79 = arith.addf %76, %78 : vector<1x256xf32>
    %80 = math.tanh %79 : vector<1x256xf32>
    %81 = vector.extract_strided_slice %3 {offsets = [15, 0], sizes = [1, 256], strides = [1, 1]} : vector<32x256xf32> to vector<1x256xf32>
    %82 = arith.truncf %80 : vector<1x256xf32> to vector<1x256xbf16>
    %cst_20 = arith.constant dense<0.000000e+00> : vector<1x256xf32>
    %83 = tpu.matmul %82, %4, %cst_20 {dimension_numbers = #tpu.dot_dimension_numbers<[1], [0], [0], [1], [0, 0, 1, 1], [], []>} : vector<1x256xbf16>, vector<256x256xbf16>, vector<1x256xf32> -> vector<1x256xf32>
    %84 = arith.addf %81, %83 : vector<1x256xf32>
    %85 = math.tanh %84 : vector<1x256xf32>
    %86 = vector.extract_strided_slice %3 {offsets = [16, 0], sizes = [1, 256], strides = [1, 1]} : vector<32x256xf32> to vector<1x256xf32>
    %87 = arith.truncf %85 : vector<1x256xf32> to vector<1x256xbf16>
    %cst_21 = arith.constant dense<0.000000e+00> : vector<1x256xf32>
    %88 = tpu.matmul %87, %4, %cst_21 {dimension_numbers = #tpu.dot_dimension_numbers<[1], [0], [0], [1], [0, 0, 1, 1], [], []>} : vector<1x256xbf16>, vector<256x256xbf16>, vector<1x256xf32> -> vector<1x256xf32>
    %89 = arith.addf %86, %88 : vector<1x256xf32>
    %90 = math.tanh %89 : vector<1x256xf32>
    %91 = vector.extract_strided_slice %3 {offsets = [17, 0], sizes = [1, 256], strides = [1, 1]} : vector<32x256xf32> to vector<1x256xf32>
    %92 = arith.truncf %90 : vector<1x256xf32> to vector<1x256xbf16>
    %cst_22 = arith.constant dense<0.000000e+00> : vector<1x256xf32>
    %93 = tpu.matmul %92, %4, %cst_22 {dimension_numbers = #tpu.dot_dimension_numbers<[1], [0], [0], [1], [0, 0, 1, 1], [], []>} : vector<1x256xbf16>, vector<256x256xbf16>, vector<1x256xf32> -> vector<1x256xf32>
    %94 = arith.addf %91, %93 : vector<1x256xf32>
    %95 = math.tanh %94 : vector<1x256xf32>
    %96 = vector.extract_strided_slice %3 {offsets = [18, 0], sizes = [1, 256], strides = [1, 1]} : vector<32x256xf32> to vector<1x256xf32>
    %97 = arith.truncf %95 : vector<1x256xf32> to vector<1x256xbf16>
    %cst_23 = arith.constant dense<0.000000e+00> : vector<1x256xf32>
    %98 = tpu.matmul %97, %4, %cst_23 {dimension_numbers = #tpu.dot_dimension_numbers<[1], [0], [0], [1], [0, 0, 1, 1], [], []>} : vector<1x256xbf16>, vector<256x256xbf16>, vector<1x256xf32> -> vector<1x256xf32>
    %99 = arith.addf %96, %98 : vector<1x256xf32>
    %100 = math.tanh %99 : vector<1x256xf32>
    %101 = vector.extract_strided_slice %3 {offsets = [19, 0], sizes = [1, 256], strides = [1, 1]} : vector<32x256xf32> to vector<1x256xf32>
    %102 = arith.truncf %100 : vector<1x256xf32> to vector<1x256xbf16>
    %cst_24 = arith.constant dense<0.000000e+00> : vector<1x256xf32>
    %103 = tpu.matmul %102, %4, %cst_24 {dimension_numbers = #tpu.dot_dimension_numbers<[1], [0], [0], [1], [0, 0, 1, 1], [], []>} : vector<1x256xbf16>, vector<256x256xbf16>, vector<1x256xf32> -> vector<1x256xf32>
    %104 = arith.addf %101, %103 : vector<1x256xf32>
    %105 = math.tanh %104 : vector<1x256xf32>
    %106 = vector.extract_strided_slice %3 {offsets = [20, 0], sizes = [1, 256], strides = [1, 1]} : vector<32x256xf32> to vector<1x256xf32>
    %107 = arith.truncf %105 : vector<1x256xf32> to vector<1x256xbf16>
    %cst_25 = arith.constant dense<0.000000e+00> : vector<1x256xf32>
    %108 = tpu.matmul %107, %4, %cst_25 {dimension_numbers = #tpu.dot_dimension_numbers<[1], [0], [0], [1], [0, 0, 1, 1], [], []>} : vector<1x256xbf16>, vector<256x256xbf16>, vector<1x256xf32> -> vector<1x256xf32>
    %109 = arith.addf %106, %108 : vector<1x256xf32>
    %110 = math.tanh %109 : vector<1x256xf32>
    %111 = vector.extract_strided_slice %3 {offsets = [21, 0], sizes = [1, 256], strides = [1, 1]} : vector<32x256xf32> to vector<1x256xf32>
    %112 = arith.truncf %110 : vector<1x256xf32> to vector<1x256xbf16>
    %cst_26 = arith.constant dense<0.000000e+00> : vector<1x256xf32>
    %113 = tpu.matmul %112, %4, %cst_26 {dimension_numbers = #tpu.dot_dimension_numbers<[1], [0], [0], [1], [0, 0, 1, 1], [], []>} : vector<1x256xbf16>, vector<256x256xbf16>, vector<1x256xf32> -> vector<1x256xf32>
    %114 = arith.addf %111, %113 : vector<1x256xf32>
    %115 = math.tanh %114 : vector<1x256xf32>
    %116 = vector.extract_strided_slice %3 {offsets = [22, 0], sizes = [1, 256], strides = [1, 1]} : vector<32x256xf32> to vector<1x256xf32>
    %117 = arith.truncf %115 : vector<1x256xf32> to vector<1x256xbf16>
    %cst_27 = arith.constant dense<0.000000e+00> : vector<1x256xf32>
    %118 = tpu.matmul %117, %4, %cst_27 {dimension_numbers = #tpu.dot_dimension_numbers<[1], [0], [0], [1], [0, 0, 1, 1], [], []>} : vector<1x256xbf16>, vector<256x256xbf16>, vector<1x256xf32> -> vector<1x256xf32>
    %119 = arith.addf %116, %118 : vector<1x256xf32>
    %120 = math.tanh %119 : vector<1x256xf32>
    %121 = vector.extract_strided_slice %3 {offsets = [23, 0], sizes = [1, 256], strides = [1, 1]} : vector<32x256xf32> to vector<1x256xf32>
    %122 = arith.truncf %120 : vector<1x256xf32> to vector<1x256xbf16>
    %cst_28 = arith.constant dense<0.000000e+00> : vector<1x256xf32>
    %123 = tpu.matmul %122, %4, %cst_28 {dimension_numbers = #tpu.dot_dimension_numbers<[1], [0], [0], [1], [0, 0, 1, 1], [], []>} : vector<1x256xbf16>, vector<256x256xbf16>, vector<1x256xf32> -> vector<1x256xf32>
    %124 = arith.addf %121, %123 : vector<1x256xf32>
    %125 = math.tanh %124 : vector<1x256xf32>
    %126 = vector.extract_strided_slice %3 {offsets = [24, 0], sizes = [1, 256], strides = [1, 1]} : vector<32x256xf32> to vector<1x256xf32>
    %127 = arith.truncf %125 : vector<1x256xf32> to vector<1x256xbf16>
    %cst_29 = arith.constant dense<0.000000e+00> : vector<1x256xf32>
    %128 = tpu.matmul %127, %4, %cst_29 {dimension_numbers = #tpu.dot_dimension_numbers<[1], [0], [0], [1], [0, 0, 1, 1], [], []>} : vector<1x256xbf16>, vector<256x256xbf16>, vector<1x256xf32> -> vector<1x256xf32>
    %129 = arith.addf %126, %128 : vector<1x256xf32>
    %130 = math.tanh %129 : vector<1x256xf32>
    %131 = vector.extract_strided_slice %3 {offsets = [25, 0], sizes = [1, 256], strides = [1, 1]} : vector<32x256xf32> to vector<1x256xf32>
    %132 = arith.truncf %130 : vector<1x256xf32> to vector<1x256xbf16>
    %cst_30 = arith.constant dense<0.000000e+00> : vector<1x256xf32>
    %133 = tpu.matmul %132, %4, %cst_30 {dimension_numbers = #tpu.dot_dimension_numbers<[1], [0], [0], [1], [0, 0, 1, 1], [], []>} : vector<1x256xbf16>, vector<256x256xbf16>, vector<1x256xf32> -> vector<1x256xf32>
    %134 = arith.addf %131, %133 : vector<1x256xf32>
    %135 = math.tanh %134 : vector<1x256xf32>
    %136 = vector.extract_strided_slice %3 {offsets = [26, 0], sizes = [1, 256], strides = [1, 1]} : vector<32x256xf32> to vector<1x256xf32>
    %137 = arith.truncf %135 : vector<1x256xf32> to vector<1x256xbf16>
    %cst_31 = arith.constant dense<0.000000e+00> : vector<1x256xf32>
    %138 = tpu.matmul %137, %4, %cst_31 {dimension_numbers = #tpu.dot_dimension_numbers<[1], [0], [0], [1], [0, 0, 1, 1], [], []>} : vector<1x256xbf16>, vector<256x256xbf16>, vector<1x256xf32> -> vector<1x256xf32>
    %139 = arith.addf %136, %138 : vector<1x256xf32>
    %140 = math.tanh %139 : vector<1x256xf32>
    %141 = vector.extract_strided_slice %3 {offsets = [27, 0], sizes = [1, 256], strides = [1, 1]} : vector<32x256xf32> to vector<1x256xf32>
    %142 = arith.truncf %140 : vector<1x256xf32> to vector<1x256xbf16>
    %cst_32 = arith.constant dense<0.000000e+00> : vector<1x256xf32>
    %143 = tpu.matmul %142, %4, %cst_32 {dimension_numbers = #tpu.dot_dimension_numbers<[1], [0], [0], [1], [0, 0, 1, 1], [], []>} : vector<1x256xbf16>, vector<256x256xbf16>, vector<1x256xf32> -> vector<1x256xf32>
    %144 = arith.addf %141, %143 : vector<1x256xf32>
    %145 = math.tanh %144 : vector<1x256xf32>
    %146 = vector.extract_strided_slice %3 {offsets = [28, 0], sizes = [1, 256], strides = [1, 1]} : vector<32x256xf32> to vector<1x256xf32>
    %147 = arith.truncf %145 : vector<1x256xf32> to vector<1x256xbf16>
    %cst_33 = arith.constant dense<0.000000e+00> : vector<1x256xf32>
    %148 = tpu.matmul %147, %4, %cst_33 {dimension_numbers = #tpu.dot_dimension_numbers<[1], [0], [0], [1], [0, 0, 1, 1], [], []>} : vector<1x256xbf16>, vector<256x256xbf16>, vector<1x256xf32> -> vector<1x256xf32>
    %149 = arith.addf %146, %148 : vector<1x256xf32>
    %150 = math.tanh %149 : vector<1x256xf32>
    %151 = vector.extract_strided_slice %3 {offsets = [29, 0], sizes = [1, 256], strides = [1, 1]} : vector<32x256xf32> to vector<1x256xf32>
    %152 = arith.truncf %150 : vector<1x256xf32> to vector<1x256xbf16>
    %cst_34 = arith.constant dense<0.000000e+00> : vector<1x256xf32>
    %153 = tpu.matmul %152, %4, %cst_34 {dimension_numbers = #tpu.dot_dimension_numbers<[1], [0], [0], [1], [0, 0, 1, 1], [], []>} : vector<1x256xbf16>, vector<256x256xbf16>, vector<1x256xf32> -> vector<1x256xf32>
    %154 = arith.addf %151, %153 : vector<1x256xf32>
    %155 = math.tanh %154 : vector<1x256xf32>
    %156 = vector.extract_strided_slice %3 {offsets = [30, 0], sizes = [1, 256], strides = [1, 1]} : vector<32x256xf32> to vector<1x256xf32>
    %157 = arith.truncf %155 : vector<1x256xf32> to vector<1x256xbf16>
    %cst_35 = arith.constant dense<0.000000e+00> : vector<1x256xf32>
    %158 = tpu.matmul %157, %4, %cst_35 {dimension_numbers = #tpu.dot_dimension_numbers<[1], [0], [0], [1], [0, 0, 1, 1], [], []>} : vector<1x256xbf16>, vector<256x256xbf16>, vector<1x256xf32> -> vector<1x256xf32>
    %159 = arith.addf %156, %158 : vector<1x256xf32>
    %160 = math.tanh %159 : vector<1x256xf32>
    %161 = vector.extract_strided_slice %3 {offsets = [31, 0], sizes = [1, 256], strides = [1, 1]} : vector<32x256xf32> to vector<1x256xf32>
    %162 = arith.truncf %160 : vector<1x256xf32> to vector<1x256xbf16>
    %cst_36 = arith.constant dense<0.000000e+00> : vector<1x256xf32>
    %163 = tpu.matmul %162, %4, %cst_36 {dimension_numbers = #tpu.dot_dimension_numbers<[1], [0], [0], [1], [0, 0, 1, 1], [], []>} : vector<1x256xbf16>, vector<256x256xbf16>, vector<1x256xf32> -> vector<1x256xf32>
    %164 = arith.addf %161, %163 : vector<1x256xf32>
    %165 = math.tanh %164 : vector<1x256xf32>
    %166 = tpu.concatenate %10, %15, %20, %25, %30, %35, %40, %45, %50, %55, %60, %65, %70, %75, %80, %85 in 0 : vector<1x256xf32>, vector<1x256xf32>, vector<1x256xf32>, vector<1x256xf32>, vector<1x256xf32>, vector<1x256xf32>, vector<1x256xf32>, vector<1x256xf32>, vector<1x256xf32>, vector<1x256xf32>, vector<1x256xf32>, vector<1x256xf32>, vector<1x256xf32>, vector<1x256xf32>, vector<1x256xf32>, vector<1x256xf32> -> vector<16x256xf32>
    %167 = tpu.concatenate %90, %95, %100, %105, %110, %115, %120, %125, %130, %135, %140, %145, %150, %155, %160, %165 in 0 : vector<1x256xf32>, vector<1x256xf32>, vector<1x256xf32>, vector<1x256xf32>, vector<1x256xf32>, vector<1x256xf32>, vector<1x256xf32>, vector<1x256xf32>, vector<1x256xf32>, vector<1x256xf32>, vector<1x256xf32>, vector<1x256xf32>, vector<1x256xf32>, vector<1x256xf32>, vector<1x256xf32>, vector<1x256xf32> -> vector<16x256xf32>
    %168 = tpu.concatenate %166, %167 in 0 : vector<16x256xf32>, vector<16x256xf32> -> vector<32x256xf32>
    %c0_37 = arith.constant 0 : index
    %c0_38 = arith.constant 0 : index
    %169 = vector.load %arg3[%c0_37, %c0_38] : memref<32x256xf32, #tpu.memory_space<vmem>>, vector<32x256xf32>
    tpu.vector_store %arg3[%c0_37, %c0_38], %168 {strides = array<i32>} : memref<32x256xf32, #tpu.memory_space<vmem>>, vector<32x256xf32>,
    %c0_39 = arith.constant 0 : index
    %c0_40 = arith.constant 0 : index
    %170 = vector.load %arg4[%c0_39, %c0_40] : memref<1x256xf32, #tpu.memory_space<vmem>>, vector<1x256xf32>
    tpu.vector_store %arg4[%c0_39, %c0_40], %165 {strides = array<i32>} : memref<1x256xf32, #tpu.memory_space<vmem>>, vector<1x256xf32>,
    return
  }
  func.func @transform_0(%arg0: i32) -> (i32, i32) {
    %c0_i32 = arith.constant 0 : i32
    %c0_i32_0 = arith.constant 0 : i32
    return %arg0, %c0_i32 : i32, i32
  }
  func.func @transform_1(%arg0: i32) -> (i32, i32) {
    %c0_i32 = arith.constant 0 : i32
    %c0_i32_0 = arith.constant 0 : i32
    %c0_i32_1 = arith.constant 0 : i32
    return %c0_i32, %c0_i32_0 : i32, i32
  }
  func.func @transform_2(%arg0: i32) -> (i32, i32) {
    %c0_i32 = arith.constant 0 : i32
    %c0_i32_0 = arith.constant 0 : i32
    return %arg0, %c0_i32 : i32, i32
  }
}

</mosaic_0001>

<llo_original>
// kernel: audio_encoder_forward.6
$region0: #{audio_encoder_forward.6}
  #allocation0 [shape = 'u32[]', space=smem, size = 0x4, offset = 0x4, fixed_abs, tag = 'smem constant byte address 0x4 - core index']
  #allocation1 [shape = 'u32[72,128]{1,0:T(1,128)}', space=vmem, size = 0x9000, scoped, tag = 'internal scratch']
  %s0 = inlined_call_operand.vmem [shape: bf16[32,256], index: 0, kind: input, shape index: {}]
  %s1 = inlined_call_operand.vmem [shape: bf16[256,256], index: 1, kind: input, shape index: {}]
  %s2 = inlined_call_operand.vmem [shape: f32[1,256], index: 2, kind: input, shape index: {}]
  %s3 = inlined_call_operand.vmem [shape: f32[32,256], index: 3, kind: output, shape index: {}]
  %s4 = sld [smem:[#allocation0]]
  $region45: #{audio_encoder_forward.6} parent=0
    _
  %s6 = ssub.s32 1, %s4
  %s7 = scalar_select 0, %s6, %s4
  loop: start=0, step=1, limit=4
  $region2: #{audio_encoder_forward.6} parent=0 // loop_pre_header
    _
  $region3: #{audio_encoder_forward.6} parent=0 // loop_header
    %s9 = sphi 0, %s13
    %p10 = scmp.ge.s32.totalorder %s9, 4
    %s19 = sphi 0, %s21
    %s22 = sphi 0, %s19
    %s23 = sphi 0, %s22
    %s39 = sphi 0, %s23
    %s43 = sphi 0, %s43
    %s45 = sphi 0, %s43
    %s46 = sphi 0, %s45
    %s60 = sphi 0, %s46
    %s64 = sphi 0, %s64
    %s66 = sphi 0, %s64
    %s67 = sphi 0, %s66
    %s81 = sphi 0, %s67
    %s87 = sphi 0, %s89
    %s90 = sphi 0, %s87
    %s91 = sphi 0, %s90
    %s107 = sphi 0, %s91
  $region4: #{audio_encoder_forward.6} parent=0 // loop_header_branch
    %12 = sbr.rel (%p10) target = $region8
  $region5: #{audio_encoder_forward.6} parent=0 // loop_body
    %s14 = ssub.s32 %s9, 1
    %s15 = ssub.s32 %s9, 2
    %s16 = sadd.s32 %s9, 1
    %s17 = ssub.s32 %s9, %s16
    %p18 = scmp.eq.s32.totalorder %s17, 0
    %s20 = sadd.s32 %s19, 1
    %s21 = scalar_select %p18, %s19, %s20
    %p24 = pneg %p18
    %p25 = scmp.eq.s32.totalorder %s9, 1
    %p26 = por %p24, %p25
    %p27 = scmp.ne.s32.totalorder %s19, %s22
    %p28 = scmp.eq.s32.totalorder %s9, 0
    %p29 = por %p27, %p28
    %p30 = scmp.ne.s32.totalorder %s19, %s22
    %p31 = scmp.eq.s32.totalorder %s14, 1
    %p32 = por %p30, %p31
    %p33 = scmp.ne.s32.totalorder %s22, %s23
    %p34 = scmp.eq.s32.totalorder %s14, 0
    %p35 = por %p33, %p34
    %p36 = scmp.ne.s32.totalorder %s22, %s23
    %p37 = scmp.eq.s32.totalorder %s15, 1
    %p38 = por %p36, %p37
    %p40 = scmp.ne.s32.totalorder %s23, %s39
    %p41 = scmp.eq.s32.totalorder %s15, 0
    %p42 = por %p40, %p41
    %s44 = sadd.s32 %s43, 1
    %p47 = scmp.eq.s32.totalorder %s9, 1
    %p48 = scmp.ne.s32.totalorder %s43, %s45
    %p49 = scmp.eq.s32.totalorder %s9, 0
    %p50 = por %p48, %p49
    %p51 = scmp.ne.s32.totalorder %s43, %s45
    %p52 = scmp.eq.s32.totalorder %s14, 1
    %p53 = por %p51, %p52
    %p54 = scmp.ne.s32.totalorder %s45, %s46
    %p55 = scmp.eq.s32.totalorder %s14, 0
    %p56 = por %p54, %p55
    %p57 = scmp.ne.s32.totalorder %s45, %s46
    %p58 = scmp.eq.s32.totalorder %s15, 1
    %p59 = por %p57, %p58
    %p61 = scmp.ne.s32.totalorder %s46, %s60
    %p62 = scmp.eq.s32.totalorder %s15, 0
    %p63 = por %p61, %p62
    %s65 = sadd.s32 %s64, 1
    %p68 = scmp.eq.s32.totalorder %s9, 1
    %p69 = scmp.ne.s32.totalorder %s64, %s66
    %p70 = scmp.eq.s32.totalorder %s9, 0
    %p71 = por %p69, %p70
    %p72 = scmp.ne.s32.totalorder %s64, %s66
    %p73 = scmp.eq.s32.totalorder %s14, 1
    %p74 = por %p72, %p73
    %p75 = scmp.ne.s32.totalorder %s66, %s67
    %p76 = scmp.eq.s32.totalorder %s14, 0
    %p77 = por %p75, %p76
    %p78 = scmp.ne.s32.totalorder %s66, %s67
    %p79 = scmp.eq.s32.totalorder %s15, 1
    %p80 = por %p78, %p79
    %p82 = scmp.ne.s32.totalorder %s67, %s81
    %p83 = scmp.eq.s32.totalorder %s15, 0
    %p84 = por %p82, %p83
    %s85 = ssub.s32 %s9, %s16
    %p86 = scmp.eq.s32.totalorder %s85, 0
    %s88 = sadd.s32 %s87, 1
    %s89 = scalar_select %p86, %s87, %s88
    %p92 = pneg %p86
    %p93 = scmp.eq.s32.totalorder %s9, 1
    %p94 = por %p92, %p93
    %p95 = scmp.ne.s32.totalorder %s87, %s90
    %p96 = scmp.eq.s32.totalorder %s9, 0
    %p97 = por %p95, %p96
    %p98 = scmp.ne.s32.totalorder %s87, %s90
    %p99 = scmp.eq.s32.totalorder %s14, 1
    %p100 = por %p98, %p99
    %p101 = scmp.ne.s32.totalorder %s90, %s91
    %p102 = scmp.eq.s32.totalorder %s14, 0
    %p103 = por %p101, %p102
    %p104 = scmp.ne.s32.totalorder %s90, %s91
    %p105 = scmp.eq.s32.totalorder %s15, 1
    %p106 = por %p104, %p105
    %p108 = scmp.ne.s32.totalorder %s91, %s107
    %p109 = scmp.eq.s32.totalorder %s15, 0
    %p110 = por %p108, %p109
    %p111 = scmp.le.s32.totalorder 1, %s9
    %p112 = scmp.lt.s32.totalorder %s9, 3
    %p113 = pnand %p111, %p112
    %p114 = pneg %p113
    // Predicated region
    $region9: #{audio_encoder_forward.6} parent=5 // pred_check
      _
    $region10: #{audio_encoder_forward.6} parent=5 // pred_check_branch
      %116 = sbr.rel (%p113) target = $region12
    $region11: #{audio_encoder_forward.6} parent=5 // pred_region
      %s117 = ssub.s32 %s9, 1
      // Predicated region
      $region13: #{audio_encoder_forward.6} parent=11 // pred_check
        %p118 = pneg %p56
      $region14: #{audio_encoder_forward.6} parent=11 // pred_check_branch
        %120 = sbr.rel (%p118) target = $region16
      $region15: #{audio_encoder_forward.6} parent=11 // pred_region
        _
      $region16: #{audio_encoder_forward.6} parent=11 // pred_fallthru
        _
      // Predicated region
      $region17: #{audio_encoder_forward.6} parent=11 // pred_check
        %p121 = pneg %p77
      $region18: #{audio_encoder_forward.6} parent=11 // pred_check_branch
        %123 = sbr.rel (%p121) target = $region20
      $region19: #{audio_encoder_forward.6} parent=11 // pred_region
        _
      $region20: #{audio_encoder_forward.6} parent=11 // pred_fallthru
        _
    $region12: #{audio_encoder_forward.6} parent=5 // pred_fallthru
      _
    %p124 = scmp.lt.s32.totalorder %s9, 2
    // Predicated region
    $region21: #{audio_encoder_forward.6} parent=5 // pred_check
      %p125 = pneg %p124
    $region22: #{audio_encoder_forward.6} parent=5 // pred_check_branch
      %127 = sbr.rel (%p125) target = $region24
    $region23: #{audio_encoder_forward.6} parent=5 // pred_region
      // Predicated region
      $region25: #{audio_encoder_forward.6} parent=23 // pred_check
        %p128 = pneg %p29
      $region26: #{audio_encoder_forward.6} parent=23 // pred_check_branch
        %130 = sbr.rel (%p128) target = $region28
      $region27: #{audio_encoder_forward.6} parent=23 // pred_region
        %s131 = smul.u32 2, %s9
        %p132 = scmp.lt.s32.totalorder %s131, 3
        %s133 = scalar_select %p132, %s131, 3
        %s134 = smul.addr %s133, 2
        %s135 = smul.addr %s134, 4
        %s136 = scalar_lea.vmem %s0, %s135
        %s137 = smul.u32 2, %s9
      $region28: #{audio_encoder_forward.6} parent=23 // pred_fallthru
        _
    $region24: #{audio_encoder_forward.6} parent=5 // pred_fallthru
      _
    %p138 = scmp.le.s32.totalorder 1, %s9
    %p139 = scmp.lt.s32.totalorder %s9, 3
    %p140 = pnand %p138, %p139
    %p141 = pneg %p140
    // Predicated region
    $region29: #{audio_encoder_forward.6} parent=5 // pred_check
      _
    $region30: #{audio_encoder_forward.6} parent=5 // pred_check_branch
      %143 = sbr.rel (%p140) target = $region32
    $region31: #{audio_encoder_forward.6} parent=5 // pred_region
      %s144 = ssub.s32 %s9, 1
      %s145 = smul.u32 2, %s14
      %p146 = scmp.lt.s32.totalorder %s145, 3
      %s147 = scalar_select %p146, %s145, 3
      %s148 = smul.addr %s147, 2
      %s149 = smul.addr %s148, 4
      %s150 = scalar_lea.vmem %s0, %s149
      %p151 = pneg %p35
      %p152 = pneg %p32
      %p153 = pneg %p56
      %p154 = pneg %p53
      %p155 = pneg %p77
      %p156 = pneg %p74
      %p157 = pneg %p103
      %p158 = pneg %p100
      %s159 = smul.u32 2, %s14
      %p160 = scmp.lt.s32.totalorder %s159, 3
      %s161 = scalar_select %p160, %s159, 3
      %s162 = smul.addr %s161, 2
      %s163 = smul.addr %s162, 8
      %s164 = scalar_lea.vmem %s3, %s163
      %s165 = smul.u32 2, %s14
      %p166 = scmp.lt.s32.totalorder %s165, 3
      %s167 = scalar_select %p166, %s165, 3
      %s168 = smul.addr %s167, 2
      %s169 = smul.addr %s168, 4
      %s170 = scalar_lea.vmem %s0, %s169
      %s171 = smul.u32 2, %s14
      %s172 = smul.u32 2, %s14
      %p173 = scmp.lt.s32.totalorder %s172, 3
      %s174 = scalar_select %p173, %s172, 3
      %s175 = smul.addr %s174, 2
      %s176 = smul.addr %s175, 8
      %s177 = scalar_lea.vmem %s3, %s176
      %s178 = smul.u32 2, %s14
      %v179 = vld [vmem:[%s170] sm:$0xff]
      %v180 = vld [vmem:[%s170 + $0x8] sm:$0xff]
      %v181 = vld [vmem:[%s1] sm:$0xff]
      %v182 = vld [vmem:[%s1 + $0x8] sm:$0xff]
      %v183 = vld [vmem:[%s1 + $0x10] sm:$0xff]
      %v184 = vld [vmem:[%s1 + $0x18] sm:$0xff]
      %v185 = vld [vmem:[%s1 + $0x20] sm:$0xff]
      %v186 = vld [vmem:[%s1 + $0x28] sm:$0xff]
      %v187 = vld [vmem:[%s1 + $0x30] sm:$0xff]
      %v188 = vld [vmem:[%s1 + $0x38] sm:$0xff]
      %v189 = vld [vmem:[%s1 + $0x40] sm:$0xff]
      %v190 = vld [vmem:[%s1 + $0x48] sm:$0xff]
      %v191 = vld [vmem:[%s1 + $0x50] sm:$0xff]
      %v192 = vld [vmem:[%s1 + $0x58] sm:$0xff]
      %v193 = vld [vmem:[%s1 + $0x60] sm:$0xff]
      %v194 = vld [vmem:[%s1 + $0x68] sm:$0xff]
      %v195 = vld [vmem:[%s1 + $0x70] sm:$0xff]
      %v196 = vld [vmem:[%s1 + $0x78] sm:$0xff]
      %v197 = vld [vmem:[%s1 + $0x80] sm:$0xff]
      %v198 = vld [vmem:[%s1 + $0x88] sm:$0xff]
      %v199 = vld [vmem:[%s1 + $0x90] sm:$0xff]
      %v200 = vld [vmem:[%s1 + $0x98] sm:$0xff]
      %v201 = vld [vmem:[%s1 + $0xa0] sm:$0xff]
      %v202 = vld [vmem:[%s1 + $0xa8] sm:$0xff]
      %v203 = vld [vmem:[%s1 + $0xb0] sm:$0xff]
      %v204 = vld [vmem:[%s1 + $0xb8] sm:$0xff]
      %v205 = vld [vmem:[%s1 + $0xc0] sm:$0xff]
      %v206 = vld [vmem:[%s1 + $0xc8] sm:$0xff]
      %v207 = vld [vmem:[%s1 + $0xd0] sm:$0xff]
      %v208 = vld [vmem:[%s1 + $0xd8] sm:$0xff]
      %v209 = vld [vmem:[%s1 + $0xe0] sm:$0xff]
      %v210 = vld [vmem:[%s1 + $0xe8] sm:$0xff]
      %v211 = vld [vmem:[%s1 + $0xf0] sm:$0xff]
      %v212 = vld [vmem:[%s1 + $0xf8] sm:$0xff]
      %v213 = vld [vmem:[%s2] sm:$0x3]
      %v215 = vperm.slane %v213, 0
      %v216 = vperm.slane %v213, 1
      %v221 = vunpack.c.l.b16 %v179
      %v222 = vunpack.c.h.b16 %v179
      %v223 = vunpack.c.l.b16 %v180
      %v224 = vunpack.c.h.b16 %v180
      %v225 = vpack.c.b16 %v223, %v221
      %v226 = vpack.c.b16 %v224, %v222
      %v261 = vunpack.c.l.b16 %v181
      %v262 = vunpack.c.h.b16 %v181
      %v263 = vunpack.c.l.b16 %v182
      %v264 = vunpack.c.h.b16 %v182
      %v265 = vunpack.c.l.b16 %v183
      %v266 = vunpack.c.h.b16 %v183
      %v267 = vunpack.c.l.b16 %v184
      %v268 = vunpack.c.h.b16 %v184
      %v269 = vunpack.c.l.b16 %v185
      %v270 = vunpack.c.h.b16 %v185
      %v271 = vunpack.c.l.b16 %v186
      %v272 = vunpack.c.h.b16 %v186
      %v273 = vunpack.c.l.b16 %v187
      %v274 = vunpack.c.h.b16 %v187
      %v275 = vunpack.c.l.b16 %v188
      %v276 = vunpack.c.h.b16 %v188
      %v277 = vunpack.c.l.b16 %v189
      %v278 = vunpack.c.h.b16 %v189
      %v279 = vunpack.c.l.b16 %v190
      %v280 = vunpack.c.h.b16 %v190
      %v281 = vunpack.c.l.b16 %v191
      %v282 = vunpack.c.h.b16 %v191
      %v283 = vunpack.c.l.b16 %v192
      %v284 = vunpack.c.h.b16 %v192
      %v285 = vunpack.c.l.b16 %v193
      %v286 = vunpack.c.h.b16 %v193
      %v287 = vunpack.c.l.b16 %v194
      %v288 = vunpack.c.h.b16 %v194
      %v289 = vunpack.c.l.b16 %v195
      %v290 = vunpack.c.h.b16 %v195
      %v291 = vunpack.c.l.b16 %v196
      %v292 = vunpack.c.h.b16 %v196
      %v293 = vunpack.c.l.b16 %v197
      %v294 = vunpack.c.h.b16 %v197
      %v295 = vunpack.c.l.b16 %v198
      %v296 = vunpack.c.h.b16 %v198
      %v297 = vunpack.c.l.b16 %v199
      %v298 = vunpack.c.h.b16 %v199
      %v299 = vunpack.c.l.b16 %v200
      %v300 = vunpack.c.h.b16 %v200
      %v301 = vunpack.c.l.b16 %v201
      %v302 = vunpack.c.h.b16 %v201
      %v303 = vunpack.c.l.b16 %v202
      %v304 = vunpack.c.h.b16 %v202
      %v305 = vunpack.c.l.b16 %v203
      %v306 = vunpack.c.h.b16 %v203
      %v307 = vunpack.c.l.b16 %v204
      %v308 = vunpack.c.h.b16 %v204
      %v309 = vunpack.c.l.b16 %v205
      %v310 = vunpack.c.h.b16 %v205
      %v311 = vunpack.c.l.b16 %v206
      %v312 = vunpack.c.h.b16 %v206
      %v313 = vunpack.c.l.b16 %v207
      %v314 = vunpack.c.h.b16 %v207
      %v315 = vunpack.c.l.b16 %v208
      %v316 = vunpack.c.h.b16 %v208
      %v317 = vunpack.c.l.b16 %v209
      %v318 = vunpack.c.h.b16 %v209
      %v319 = vunpack.c.l.b16 %v210
      %v320 = vunpack.c.h.b16 %v210
      %v321 = vunpack.c.l.b16 %v211
      %v322 = vunpack.c.h.b16 %v211
      %v323 = vunpack.c.l.b16 %v212
      %v324 = vunpack.c.h.b16 %v212
      %v325 = vpack.c.b16 %v263, %v261
      %v326 = vpack.c.b16 %v264, %v262
      %v327 = vpack.c.b16 %v267, %v265
      %v328 = vpack.c.b16 %v268, %v266
      %v329 = vpack.c.b16 %v271, %v269
      %v330 = vpack.c.b16 %v272, %v270
      %v331 = vpack.c.b16 %v275, %v273
      %v332 = vpack.c.b16 %v276, %v274
      %v333 = vpack.c.b16 %v279, %v277
      %v334 = vpack.c.b16 %v280, %v278
      %v335 = vpack.c.b16 %v283, %v281
      %v336 = vpack.c.b16 %v284, %v282
      %v337 = vpack.c.b16 %v287, %v285
      %v338 = vpack.c.b16 %v288, %v286
      %v339 = vpack.c.b16 %v291, %v289
      %v340 = vpack.c.b16 %v292, %v290
      %v341 = vpack.c.b16 %v295, %v293
      %v342 = vpack.c.b16 %v296, %v294
      %v343 = vpack.c.b16 %v299, %v297
      %v344 = vpack.c.b16 %v300, %v298
      %v345 = vpack.c.b16 %v303, %v301
      %v346 = vpack.c.b16 %v304, %v302
      %v347 = vpack.c.b16 %v307, %v305
      %v348 = vpack.c.b16 %v308, %v306
      %v349 = vpack.c.b16 %v311, %v309
      %v350 = vpack.c.b16 %v312, %v310
      %v351 = vpack.c.b16 %v315, %v313
      %v352 = vpack.c.b16 %v316, %v314
      %v353 = vpack.c.b16 %v319, %v317
      %v354 = vpack.c.b16 %v320, %v318
      %v355 = vpack.c.b16 %v323, %v321
      %v356 = vpack.c.b16 %v324, %v322
      %389 = vmatpush.bf16.msra.mxu0 %v339
      %390 = vmatpush.bf16.msra.mxu0 %v337
      %391 = vmatpush.bf16.msra.mxu0 %v335
      %392 = vmatpush.bf16.msra.mxu0 %v333
      %393 = vmatpush.bf16.msra.mxu0 %v331
      %394 = vmatpush.bf16.msra.mxu0 %v329
      %395 = vmatpush.bf16.msra.mxu0 %v327
      %396 = vmatpush.bf16.msra.mxu0 %v325
      %397 = vmatmul.bf16.gmra.mxu0 %v225
      %v398 = vpop.f32.mrf.mxu0
      %v399 = vadd.f32 %v215, %v398
      %v400 = vpop.f32.mrf.mxu0
      %v401 = vadd.f32 %v215, %v400
      %402 = vdwg.mxu0
      %403 = vmatpush.bf16.msra.mxu0 %v355
      %404 = vmatpush.bf16.msra.mxu0 %v353
      %405 = vmatpush.bf16.msra.mxu0 %v351
      %406 = vmatpush.bf16.msra.mxu0 %v349
      %407 = vmatpush.bf16.msra.mxu0 %v347
      %408 = vmatpush.bf16.msra.mxu0 %v345
      %409 = vmatpush.bf16.msra.mxu0 %v343
      %410 = vmatpush.bf16.msra.mxu0 %v341
      %411 = vmatmul.bf16.gmra.mxu0 %v226
      %v412 = vpop.f32.mrf.mxu0
      %v413 = vadd.f32 %v399, %v412
      %v414 = vpop.f32.mrf.mxu0
      %v415 = vadd.f32 %v401, %v414
      %416 = vdwg.mxu0
      %417 = vmatpush.bf16.msra.mxu0 %v340
      %418 = vmatpush.bf16.msra.mxu0 %v338
      %419 = vmatpush.bf16.msra.mxu0 %v336
      %420 = vmatpush.bf16.msra.mxu0 %v334
      %421 = vmatpush.bf16.msra.mxu0 %v332
      %422 = vmatpush.bf16.msra.mxu0 %v330
      %423 = vmatpush.bf16.msra.mxu0 %v328
      %424 = vmatpush.bf16.msra.mxu0 %v326
      %425 = vmatmul.bf16.gmra.mxu0 %v225
      %v426 = vpop.f32.mrf.mxu0
      %v427 = vadd.f32 %v216, %v426
      %v428 = vpop.f32.mrf.mxu0
      %v429 = vadd.f32 %v216, %v428
      %430 = vdwg.mxu0
      %431 = vmatpush.bf16.msra.mxu0 %v356
      %432 = vmatpush.bf16.msra.mxu0 %v354
      %433 = vmatpush.bf16.msra.mxu0 %v352
      %434 = vmatpush.bf16.msra.mxu0 %v350
      %435 = vmatpush.bf16.msra.mxu0 %v348
      %436 = vmatpush.bf16.msra.mxu0 %v346
      %437 = vmatpush.bf16.msra.mxu0 %v344
      %438 = vmatpush.bf16.msra.mxu0 %v342
      %439 = vmatmul.bf16.gmra.mxu0 %v226
      %v440 = vpop.f32.mrf.mxu0
      %v441 = vadd.f32 %v427, %v440
      %v442 = vpop.f32.mrf.mxu0
      %v443 = vadd.f32 %v429, %v442
      %444 = vdwg.mxu0
      %445 = vst [vmem:[%s177] sm:$0xff] %v413
      %446 = vst [vmem:[%s177 + $0x8] sm:$0xff] %v441
      %447 = vst [vmem:[%s177 + $0x10] sm:$0xff] %v415
      %448 = vst [vmem:[%s177 + $0x18] sm:$0xff] %v443
      %s449 = smul.u32 2, %s14
      %p450 = scmp.lt.s32.totalorder %s449, 3
      %s451 = scalar_select %p450, %s449, 3
      %s452 = smul.addr %s451, 2
      %s453 = smul.addr %s452, 8
      %s454 = scalar_lea.vmem %s3, %s453
      // Predicated region
      $region33: #{audio_encoder_forward.6} parent=31 // pred_check
        %p455 = pneg %p100
      $region34: #{audio_encoder_forward.6} parent=31 // pred_check_branch
        %457 = sbr.rel (%p455) target = $region36
      $region35: #{audio_encoder_forward.6} parent=31 // pred_region
        %s458 = smul.u32 2, %s14
      $region36: #{audio_encoder_forward.6} parent=31 // pred_fallthru
        _
    $region32: #{audio_encoder_forward.6} parent=5 // pred_fallthru
      _
    %p459 = scmp.le.s32.totalorder 2, %s9
    // Predicated region
    $region37: #{audio_encoder_forward.6} parent=5 // pred_check
      %p460 = pneg %p459
    $region38: #{audio_encoder_forward.6} parent=5 // pred_check_branch
      %462 = sbr.rel (%p460) target = $region40
    $region39: #{audio_encoder_forward.6} parent=5 // pred_region
      %s463 = ssub.s32 %s9, 2
      // Predicated region
      $region41: #{audio_encoder_forward.6} parent=39 // pred_check
        %p464 = pneg %p106
      $region42: #{audio_encoder_forward.6} parent=39 // pred_check_branch
        %466 = sbr.rel (%p464) target = $region44
      $region43: #{audio_encoder_forward.6} parent=39 // pred_region
        %s467 = smul.u32 2, %s15
        %p468 = scmp.lt.s32.totalorder %s467, 3
        %s469 = scalar_select %p468, %s467, 3
        %s470 = smul.addr %s469, 2
        %s471 = smul.addr %s470, 8
        %s472 = scalar_lea.vmem %s3, %s471
      $region44: #{audio_encoder_forward.6} parent=39 // pred_fallthru
        _
    $region40: #{audio_encoder_forward.6} parent=5 // pred_fallthru
      _
  $region6: #{audio_encoder_forward.6} parent=0 // loop_footer
    %s13 = sadd.s32 1, %s9
  $region7: #{audio_encoder_forward.6} parent=0 // loop_footer_branch
    %8 = sbr.rel target = $region3
  $region8: #{audio_encoder_forward.6} parent=0 // loop_exit
    _

// kernel: audio_encoder_forward.4
$region0: #{audio_encoder_forward.4}
  #allocation0 [shape = 'u32[]', space=smem, size = 0x4, offset = 0x4, fixed_abs, tag = 'smem constant byte address 0x4 - core index']
  #allocation1 [shape = 'u32[72,128]{1,0:T(1,128)}', space=vmem, size = 0x9000, scoped, tag = 'internal scratch']
  %s0 = inlined_call_operand.vmem [shape: bf16[64,640], index: 0, kind: input, shape index: {}]
  %s1 = inlined_call_operand.vmem [shape: bf16[640,1280], index: 1, kind: input, shape index: {}]
  %s2 = inlined_call_operand.vmem [shape: f32[64,1280], index: 2, kind: output, shape index: {}]
  %s3 = sld [smem:[#allocation0]]
  $region41: #{audio_encoder_forward.4} parent=0
    _
  %s5 = ssub.s32 1, %s3
  %s6 = scalar_select 0, %s5, %s3
  loop: start=0, step=1, limit=4
  $region2: #{audio_encoder_forward.4} parent=0 // loop_pre_header
    _
  $region3: #{audio_encoder_forward.4} parent=0 // loop_header
    %s8 = sphi 0, %s12
    %p9 = scmp.ge.s32.totalorder %s8, 4
    %s18 = sphi 0, %s20
    %s21 = sphi 0, %s18
    %s22 = sphi 0, %s21
    %s38 = sphi 0, %s22
    %s42 = sphi 0, %s42
    %s44 = sphi 0, %s42
    %s45 = sphi 0, %s44
    %s59 = sphi 0, %s45
    %s65 = sphi 0, %s67
    %s68 = sphi 0, %s65
    %s69 = sphi 0, %s68
    %s85 = sphi 0, %s69
  $region4: #{audio_encoder_forward.4} parent=0 // loop_header_branch
    %11 = sbr.rel (%p9) target = $region8
  $region5: #{audio_encoder_forward.4} parent=0 // loop_body
    %s13 = ssub.s32 %s8, 1
    %s14 = ssub.s32 %s8, 2
    %s15 = sadd.s32 %s8, 1
    %s16 = ssub.s32 %s8, %s15
    %p17 = scmp.eq.s32.totalorder %s16, 0
    %s19 = sadd.s32 %s18, 1
    %s20 = scalar_select %p17, %s18, %s19
    %p23 = pneg %p17
    %p24 = scmp.eq.s32.totalorder %s8, 1
    %p25 = por %p23, %p24
    %p26 = scmp.ne.s32.totalorder %s18, %s21
    %p27 = scmp.eq.s32.totalorder %s8, 0
    %p28 = por %p26, %p27
    %p29 = scmp.ne.s32.totalorder %s18, %s21
    %p30 = scmp.eq.s32.totalorder %s13, 1
    %p31 = por %p29, %p30
    %p32 = scmp.ne.s32.totalorder %s21, %s22
    %p33 = scmp.eq.s32.totalorder %s13, 0
    %p34 = por %p32, %p33
    %p35 = scmp.ne.s32.totalorder %s21, %s22
    %p36 = scmp.eq.s32.totalorder %s14, 1
    %p37 = por %p35, %p36
    %p39 = scmp.ne.s32.totalorder %s22, %s38
    %p40 = scmp.eq.s32.totalorder %s14, 0
    %p41 = por %p39, %p40
    %s43 = sadd.s32 %s42, 1
    %p46 = scmp.eq.s32.totalorder %s8, 1
    %p47 = scmp.ne.s32.totalorder %s42, %s44
    %p48 = scmp.eq.s32.totalorder %s8, 0
    %p49 = por %p47, %p48
    %p50 = scmp.ne.s32.totalorder %s42, %s44
    %p51 = scmp.eq.s32.totalorder %s13, 1
    %p52 = por %p50, %p51
    %p53 = scmp.ne.s32.totalorder %s44, %s45
    %p54 = scmp.eq.s32.totalorder %s13, 0
    %p55 = por %p53, %p54
    %p56 = scmp.ne.s32.totalorder %s44, %s45
    %p57 = scmp.eq.s32.totalorder %s14, 1
    %p58 = por %p56, %p57
    %p60 = scmp.ne.s32.totalorder %s45, %s59
    %p61 = scmp.eq.s32.totalorder %s14, 0
    %p62 = por %p60, %p61
    %s63 = ssub.s32 %s8, %s15
    %p64 = scmp.eq.s32.totalorder %s63, 0
    %s66 = sadd.s32 %s65, 1
    %s67 = scalar_select %p64, %s65, %s66
    %p70 = pneg %p64
    %p71 = scmp.eq.s32.totalorder %s8, 1
    %p72 = por %p70, %p71
    %p73 = scmp.ne.s32.totalorder %s65, %s68
    %p74 = scmp.eq.s32.totalorder %s8, 0
    %p75 = por %p73, %p74
    %p76 = scmp.ne.s32.totalorder %s65, %s68
    %p77 = scmp.eq.s32.totalorder %s13, 1
    %p78 = por %p76, %p77
    %p79 = scmp.ne.s32.totalorder %s68, %s69
    %p80 = scmp.eq.s32.totalorder %s13, 0
    %p81 = por %p79, %p80
    %p82 = scmp.ne.s32.totalorder %s68, %s69
    %p83 = scmp.eq.s32.totalorder %s14, 1
    %p84 = por %p82, %p83
    %p86 = scmp.ne.s32.totalorder %s69, %s85
    %p87 = scmp.eq.s32.totalorder %s14, 0
    %p88 = por %p86, %p87
    %p89 = scmp.le.s32.totalorder 1, %s8
    %p90 = scmp.lt.s32.totalorder %s8, 3
    %p91 = pnand %p89, %p90
    %p92 = pneg %p91
    // Predicated region
    $region9: #{audio_encoder_forward.4} parent=5 // pred_check
      _
    $region10: #{audio_encoder_forward.4} parent=5 // pred_check_branch
      %94 = sbr.rel (%p91) target = $region12
    $region11: #{audio_encoder_forward.4} parent=5 // pred_region
      %s95 = ssub.s32 %s8, 1
      // Predicated region
      $region13: #{audio_encoder_forward.4} parent=11 // pred_check
        %p96 = pneg %p55
      $region14: #{audio_encoder_forward.4} parent=11 // pred_check_branch
        %98 = sbr.rel (%p96) target = $region16
      $region15: #{audio_encoder_forward.4} parent=11 // pred_region
        _
      $region16: #{audio_encoder_forward.4} parent=11 // pred_fallthru
        _
    $region12: #{audio_encoder_forward.4} parent=5 // pred_fallthru
      _
    %p99 = scmp.lt.s32.totalorder %s8, 2
    // Predicated region
    $region17: #{audio_encoder_forward.4} parent=5 // pred_check
      %p100 = pneg %p99
    $region18: #{audio_encoder_forward.4} parent=5 // pred_check_branch
      %102 = sbr.rel (%p100) target = $region20
    $region19: #{audio_encoder_forward.4} parent=5 // pred_region
      // Predicated region
      $region21: #{audio_encoder_forward.4} parent=19 // pred_check
        %p103 = pneg %p28
      $region22: #{audio_encoder_forward.4} parent=19 // pred_check_branch
        %105 = sbr.rel (%p103) target = $region24
      $region23: #{audio_encoder_forward.4} parent=19 // pred_region
        %s106 = smul.u32 4, %s8
        %p107 = scmp.lt.s32.totalorder %s106, 7
        %s108 = scalar_select %p107, %s106, 7
        %s109 = smul.addr %s108, 5
        %s110 = smul.addr %s109, 4
        %s111 = scalar_lea.vmem %s0, %s110
        %s112 = smul.u32 4, %s8
      $region24: #{audio_encoder_forward.4} parent=19 // pred_fallthru
        _
    $region20: #{audio_encoder_forward.4} parent=5 // pred_fallthru
      _
    %p113 = scmp.le.s32.totalorder 1, %s8
    %p114 = scmp.lt.s32.totalorder %s8, 3
    %p115 = pnand %p113, %p114
    %p116 = pneg %p115
    // Predicated region
    $region25: #{audio_encoder_forward.4} parent=5 // pred_check
      _
    $region26: #{audio_encoder_forward.4} parent=5 // pred_check_branch
      %118 = sbr.rel (%p115) target = $region28
    $region27: #{audio_encoder_forward.4} parent=5 // pred_region
      %s119 = ssub.s32 %s8, 1
      %s120 = smul.u32 4, %s13
      %p121 = scmp.lt.s32.totalorder %s120, 7
      %s122 = scalar_select %p121, %s120, 7
      %s123 = smul.addr %s122, 5
      %s124 = smul.addr %s123, 4
      %s125 = scalar_lea.vmem %s0, %s124
      %p126 = pneg %p34
      %p127 = pneg %p31
      %p128 = pneg %p55
      %p129 = pneg %p52
      %p130 = pneg %p81
      %p131 = pneg %p78
      %s132 = smul.u32 4, %s13
      %p133 = scmp.lt.s32.totalorder %s132, 7
      %s134 = scalar_select %p133, %s132, 7
      %s135 = smul.addr %s134, 10
      %s136 = smul.addr %s135, 8
      %s137 = scalar_lea.vmem %s2, %s136
      %s138 = smul.u32 4, %s13
      %p139 = scmp.lt.s32.totalorder %s138, 7
      %s140 = scalar_select %p139, %s138, 7
      %s141 = smul.addr %s140, 5
      %s142 = smul.addr %s141, 4
      %s143 = scalar_lea.vmem %s0, %s142
      %s144 = smul.u32 4, %s13
      %s145 = smul.u32 4, %s13
      %p146 = scmp.lt.s32.totalorder %s145, 7
      %s147 = scalar_select %p146, %s145, 7
      %s148 = smul.addr %s147, 10
      %s149 = smul.addr %s148, 8
      %s150 = scalar_lea.vmem %s2, %s149
      %s151 = smul.u32 4, %s13
      %v152 = vld [vmem:[%s143] sm:$0xff]
      %v153 = vld [vmem:[%s143 + $0x8] sm:$0xff]
      %v154 = vld [vmem:[%s143 + $0x10] sm:$0xf]
      %v155 = vld [vmem:[%s143 + $0x14] sm:$0xff]
      %v156 = vld [vmem:[%s143 + $0x1c] sm:$0xff]
      %v157 = vld [vmem:[%s143 + $0x24] sm:$0xf]
      %v158 = vld [vmem:[%s143 + $0x28] sm:$0xff]
      %v159 = vld [vmem:[%s143 + $0x30] sm:$0xff]
      %v160 = vld [vmem:[%s143 + $0x38] sm:$0xf]
      %v161 = vld [vmem:[%s143 + $0x3c] sm:$0xff]
      %v162 = vld [vmem:[%s143 + $0x44] sm:$0xff]
      %v163 = vld [vmem:[%s143 + $0x4c] sm:$0xf]
      %v164 = vld [vmem:[%s1] sm:$0xff]
      %v165 = vld [vmem:[%s1 + $0x8] sm:$0xff]
      %v166 = vld [vmem:[%s1 + $0x10] sm:$0xff]
      %v167 = vld [vmem:[%s1 + $0x18] sm:$0xff]
      %v168 = vld [vmem:[%s1 + $0x20] sm:$0xff]
      %v169 = vld [vmem:[%s1 + $0x28] sm:$0xff]
      %v170 = vld [vmem:[%s1 + $0x30] sm:$0xff]
      %v171 = vld [vmem:[%s1 + $0x38] sm:$0xff]
      %v172 = vld [vmem:[%s1 + $0x40] sm:$0xff]
      %v173 = vld [vmem:[%s1 + $0x48] sm:$0xff]
      %v174 = vld [vmem:[%s1 + $0x50] sm:$0xff]
      %v175 = vld [vmem:[%s1 + $0x58] sm:$0xff]
      %v176 = vld [vmem:[%s1 + $0x60] sm:$0xff]
      %v177 = vld [vmem:[%s1 + $0x68] sm:$0xff]
      %v178 = vld [vmem:[%s1 + $0x70] sm:$0xff]
      %v179 = vld [vmem:[%s1 + $0x78] sm:$0xff]
      %v180 = vld [vmem:[%s1 + $0x80] sm:$0xff]
      %v181 = vld [vmem:[%s1 + $0x88] sm:$0xff]
      %v182 = vld [vmem:[%s1 + $0x90] sm:$0xff]
      %v183 = vld [vmem:[%s1 + $0x98] sm:$0xff]
      %v184 = vld [vmem:[%s1 + $0xa0] sm:$0xff]
      %v185 = vld [vmem:[%s1 + $0xa8] sm:$0xff]
      %v186 = vld [vmem:[%s1 + $0xb0] sm:$0xff]
      %v187 = vld [vmem:[%s1 + $0xb8] sm:$0xff]
      %v188 = vld [vmem:[%s1 + $0xc0] sm:$0xff]
      %v189 = vld [vmem:[%s1 + $0xc8] sm:$0xff]
      %v190 = vld [vmem:[%s1 + $0xd0] sm:$0xff]
      %v191 = vld [vmem:[%s1 + $0xd8] sm:$0xff]
      %v192 = vld [vmem:[%s1 + $0xe0] sm:$0xff]
      %v193 = vld [vmem:[%s1 + $0xe8] sm:$0xff]
      %v194 = vld [vmem:[%s1 + $0xf0] sm:$0xff]
      %v195 = vld [vmem:[%s1 + $0xf8] sm:$0xff]
      %v196 = vld [vmem:[%s1 + $0x100] sm:$0xff]
      %v197 = vld [vmem:[%s1 + $0x108] sm:$0xff]
      %v198 = vld [vmem:[%s1 + $0x110] sm:$0xff]
      %v199 = vld [vmem:[%s1 + $0x118] sm:$0xff]
      %v200 = vld [vmem:[%s1 + $0x120] sm:$0xff]
      %v201 = vld [vmem:[%s1 + $0x128] sm:$0xff]
      %v202 = vld [vmem:[%s1 + $0x130] sm:$0xff]
      %v203 = vld [vmem:[%s1 + $0x138] sm:$0xff]
      %v204 = vld [vmem:[%s1 + $0x140] sm:$0xff]
      %v205 = vld [vmem:[%s1 + $0x148] sm:$0xff]
      %v206 = vld [vmem:[%s1 + $0x150] sm:$0xff]
      %v207 = vld [vmem:[%s1 + $0x158] sm:$0xff]
      %v208 = vld [vmem:[%s1 + $0x160] sm:$0xff]
      %v209 = vld [vmem:[%s1 + $0x168] sm:$0xff]
      %v210 = vld [vmem:[%s1 + $0x170] sm:$0xff]
      %v211 = vld [vmem:[%s1 + $0x178] sm:$0xff]
      %v212 = vld [vmem:[%s1 + $0x180] sm:$0xff]
      %v213 = vld [vmem:[%s1 + $0x188] sm:$0xff]
      %v214 = vld [vmem:[%s1 + $0x190] sm:$0xff]
      %v215 = vld [vmem:[%s1 + $0x198] sm:$0xff]
      %v216 = vld [vmem:[%s1 + $0x1a0] sm:$0xff]
      %v217 = vld [vmem:[%s1 + $0x1a8] sm:$0xff]
      %v218 = vld [vmem:[%s1 + $0x1b0] sm:$0xff]
      %v219 = vld [vmem:[%s1 + $0x1b8] sm:$0xff]
      %v220 = vld [vmem:[%s1 + $0x1c0] sm:$0xff]
      %v221 = vld [vmem:[%s1 + $0x1c8] sm:$0xff]
      %v222 = vld [vmem:[%s1 + $0x1d0] sm:$0xff]
      %v223 = vld [vmem:[%s1 + $0x1d8] sm:$0xff]
      %v224 = vld [vmem:[%s1 + $0x1e0] sm:$0xff]
      %v225 = vld [vmem:[%s1 + $0x1e8] sm:$0xff]
      %v226 = vld [vmem:[%s1 + $0x1f0] sm:$0xff]
      %v227 = vld [vmem:[%s1 + $0x1f8] sm:$0xff]
      %v228 = vld [vmem:[%s1 + $0x200] sm:$0xff]
      %v229 = vld [vmem:[%s1 + $0x208] sm:$0xff]
      %v230 = vld [vmem:[%s1 + $0x210] sm:$0xff]
      %v231 = vld [vmem:[%s1 + $0x218] sm:$0xff]
      %v232 = vld [vmem:[%s1 + $0x220] sm:$0xff]
      %v233 = vld [vmem:[%s1 + $0x228] sm:$0xff]
      %v234 = vld [vmem:[%s1 + $0x230] sm:$0xff]
      %v235 = vld [vmem:[%s1 + $0x238] sm:$0xff]
      %v236 = vld [vmem:[%s1 + $0x240] sm:$0xff]
      %v237 = vld [vmem:[%s1 + $0x248] sm:$0xff]
      %v238 = vld [vmem:[%s1 + $0x250] sm:$0xff]
      %v239 = vld [vmem:[%s1 + $0x258] sm:$0xff]
      %v240 = vld [vmem:[%s1 + $0x260] sm:$0xff]
      %v241 = vld [vmem:[%s1 + $0x268] sm:$0xff]
      %v242 = vld [vmem:[%s1 + $0x270] sm:$0xff]
      %v243 = vld [vmem:[%s1 + $0x278] sm:$0xff]
      %v244 = vld [vmem:[%s1 + $0x280] sm:$0xff]
      %v245 = vld [vmem:[%s1 + $0x288] sm:$0xff]
      %v246 = vld [vmem:[%s1 + $0x290] sm:$0xff]
      %v247 = vld [vmem:[%s1 + $0x298] sm:$0xff]
      %v248 = vld [vmem:[%s1 + $0x2a0] sm:$0xff]
      %v249 = vld [vmem:[%s1 + $0x2a8] sm:$0xff]
      %v250 = vld [vmem:[%s1 + $0x2b0] sm:$0xff]
      %v251 = vld [vmem:[%s1 + $0x2b8] sm:$0xff]
      %v252 = vld [vmem:[%s1 + $0x2c0] sm:$0xff]
      %v253 = vld [vmem:[%s1 + $0x2c8] sm:$0xff]
      %v254 = vld [vmem:[%s1 + $0x2d0] sm:$0xff]
      %v255 = vld [vmem:[%s1 + $0x2d8] sm:$0xff]
      %v256 = vld [vmem:[%s1 + $0x2e0] sm:$0xff]
      %v257 = vld [vmem:[%s1 + $0x2e8] sm:$0xff]
      %v258 = vld [vmem:[%s1 + $0x2f0] sm:$0xff]
      %v259 = vld [vmem:[%s1 + $0x2f8] sm:$0xff]
      %v260 = vld [vmem:[%s1 + $0x300] sm:$0xff]
      %v261 = vld [vmem:[%s1 + $0x308] sm:$0xff]
      %v262 = vld [vmem:[%s1 + $0x310] sm:$0xff]
      %v263 = vld [vmem:[%s1 + $0x318] sm:$0xff]
      %v264 = vld [vmem:[%s1 + $0x320] sm:$0xff]
      %v265 = vld [vmem:[%s1 + $0x328] sm:$0xff]
      %v266 = vld [vmem:[%s1 + $0x330] sm:$0xff]
      %v267 = vld [vmem:[%s1 + $0x338] sm:$0xff]
      %v268 = vld [vmem:[%s1 + $0x340] sm:$0xff]
      %v269 = vld [vmem:[%s1 + $0x348] sm:$0xff]
      %v270 = vld [vmem:[%s1 + $0x350] sm:$0xff]
      %v271 = vld [vmem:[%s1 + $0x358] sm:$0xff]
      %v272 = vld [vmem:[%s1 + $0x360] sm:$0xff]
      %v273 = vld [vmem:[%s1 + $0x368] sm:$0xff]
      %v274 = vld [vmem:[%s1 + $0x370] sm:$0xff]
      %v275 = vld [vmem:[%s1 + $0x378] sm:$0xff]
      %v276 = vld [vmem:[%s1 + $0x380] sm:$0xff]
      %v277 = vld [vmem:[%s1 + $0x388] sm:$0xff]
      %v278 = vld [vmem:[%s1 + $0x390] sm:$0xff]
      %v279 = vld [vmem:[%s1 + $0x398] sm:$0xff]
      %v280 = vld [vmem:[%s1 + $0x3a0] sm:$0xff]
      %v281 = vld [vmem:[%s1 + $0x3a8] sm:$0xff]
      %v282 = vld [vmem:[%s1 + $0x3b0] sm:$0xff]
      %v283 = vld [vmem:[%s1 + $0x3b8] sm:$0xff]
      %v284 = vld [vmem:[%s1 + $0x3c0] sm:$0xff]
      %v285 = vld [vmem:[%s1 + $0x3c8] sm:$0xff]
      %v286 = vld [vmem:[%s1 + $0x3d0] sm:$0xff]
      %v287 = vld [vmem:[%s1 + $0x3d8] sm:$0xff]
      %v288 = vld [vmem:[%s1 + $0x3e0] sm:$0xff]
      %v289 = vld [vmem:[%s1 + $0x3e8] sm:$0xff]
      %v290 = vld [vmem:[%s1 + $0x3f0] sm:$0xff]
      %v291 = vld [vmem:[%s1 + $0x3f8] sm:$0xff]
      %v292 = vld [vmem:[%s1 + $0x400] sm:$0xff]
      %v293 = vld [vmem:[%s1 + $0x408] sm:$0xff]
      %v294 = vld [vmem:[%s1 + $0x410] sm:$0xff]
      %v295 = vld [vmem:[%s1 + $0x418] sm:$0xff]
      %v296 = vld [vmem:[%s1 + $0x420] sm:$0xff]
      %v297 = vld [vmem:[%s1 + $0x428] sm:$0xff]
      %v298 = vld [vmem:[%s1 + $0x430] sm:$0xff]
      %v299 = vld [vmem:[%s1 + $0x438] sm:$0xff]
      %v300 = vld [vmem:[%s1 + $0x440] sm:$0xff]
      %v301 = vld [vmem:[%s1 + $0x448] sm:$0xff]
      %v302 = vld [vmem:[%s1 + $0x450] sm:$0xff]
      %v303 = vld [vmem:[%s1 + $0x458] sm:$0xff]
      %v304 = vld [vmem:[%s1 + $0x460] sm:$0xff]
      %v305 = vld [vmem:[%s1 + $0x468] sm:$0xff]
      %v306 = vld [vmem:[%s1 + $0x470] sm:$0xff]
      %v307 = vld [vmem:[%s1 + $0x478] sm:$0xff]
      %v308 = vld [vmem:[%s1 + $0x480] sm:$0xff]
      %v309 = vld [vmem:[%s1 + $0x488] sm:$0xff]
      %v310 = vld [vmem:[%s1 + $0x490] sm:$0xff]
      %v311 = vld [vmem:[%s1 + $0x498] sm:$0xff]
      %v312 = vld [vmem:[%s1 + $0x4a0] sm:$0xff]
      %v313 = vld [vmem:[%s1 + $0x4a8] sm:$0xff]
      %v314 = vld [vmem:[%s1 + $0x4b0] sm:$0xff]
      %v315 = vld [vmem:[%s1 + $0x4b8] sm:$0xff]
      %v316 = vld [vmem:[%s1 + $0x4c0] sm:$0xff]
      %v317 = vld [vmem:[%s1 + $0x4c8] sm:$0xff]
      %v318 = vld [vmem:[%s1 + $0x4d0] sm:$0xff]
      %v319 = vld [vmem:[%s1 + $0x4d8] sm:$0xff]
      %v320 = vld [vmem:[%s1 + $0x4e0] sm:$0xff]
      %v321 = vld [vmem:[%s1 + $0x4e8] sm:$0xff]
      %v322 = vld [vmem:[%s1 + $0x4f0] sm:$0xff]
      %v323 = vld [vmem:[%s1 + $0x4f8] sm:$0xff]
      %v324 = vld [vmem:[%s1 + $0x500] sm:$0xff]
      %v325 = vld [vmem:[%s1 + $0x508] sm:$0xff]
      %v326 = vld [vmem:[%s1 + $0x510] sm:$0xff]
      %v327 = vld [vmem:[%s1 + $0x518] sm:$0xff]
      %v328 = vld [vmem:[%s1 + $0x520] sm:$0xff]
      %v329 = vld [vmem:[%s1 + $0x528] sm:$0xff]
      %v330 = vld [vmem:[%s1 + $0x530] sm:$0xff]
      %v331 = vld [vmem:[%s1 + $0x538] sm:$0xff]
      %v332 = vld [vmem:[%s1 + $0x540] sm:$0xff]
      %v333 = vld [vmem:[%s1 + $0x548] sm:$0xff]
      %v334 = vld [vmem:[%s1 + $0x550] sm:$0xff]
      %v335 = vld [vmem:[%s1 + $0x558] sm:$0xff]
      %v336 = vld [vmem:[%s1 + $0x560] sm:$0xff]
      %v337 = vld [vmem:[%s1 + $0x568] sm:$0xff]
      %v338 = vld [vmem:[%s1 + $0x570] sm:$0xff]
      %v339 = vld [vmem:[%s1 + $0x578] sm:$0xff]
      %v340 = vld [vmem:[%s1 + $0x580] sm:$0xff]
      %v341 = vld [vmem:[%s1 + $0x588] sm:$0xff]
      %v342 = vld [vmem:[%s1 + $0x590] sm:$0xff]
      %v343 = vld [vmem:[%s1 + $0x598] sm:$0xff]
      %v344 = vld [vmem:[%s1 + $0x5a0] sm:$0xff]
      %v345 = vld [vmem:[%s1 + $0x5a8] sm:$0xff]
      %v346 = vld [vmem:[%s1 + $0x5b0] sm:$0xff]
      %v347 = vld [vmem:[%s1 + $0x5b8] sm:$0xff]
      %v348 = vld [vmem:[%s1 + $0x5c0] sm:$0xff]
      %v349 = vld [vmem:[%s1 + $0x5c8] sm:$0xff]
      %v350 = vld [vmem:[%s1 + $0x5d0] sm:$0xff]
      %v351 = vld [vmem:[%s1 + $0x5d8] sm:$0xff]
      %v352 = vld [vmem:[%s1 + $0x5e0] sm:$0xff]
      %v353 = vld [vmem:[%s1 + $0x5e8] sm:$0xff]
      %v354 = vld [vmem:[%s1 + $0x5f0] sm:$0xff]
      %v355 = vld [vmem:[%s1 + $0x5f8] sm:$0xff]
      %v356 = vld [vmem:[%s1 + $0x600] sm:$0xff]
      %v357 = vld [vmem:[%s1 + $0x608] sm:$0xff]
      %v358 = vld [vmem:[%s1 + $0x610] sm:$0xff]
      %v359 = vld [vmem:[%s1 + $0x618] sm:$0xff]
      %v360 = vld [vmem:[%s1 + $0x620] sm:$0xff]
      %v361 = vld [vmem:[%s1 + $0x628] sm:$0xff]
      %v362 = vld [vmem:[%s1 + $0x630] sm:$0xff]
      %v363 = vld [vmem:[%s1 + $0x638] sm:$0xff]
      %v364 = vld [vmem:[%s1 + $0x640] sm:$0xff]
      %v365 = vld [vmem:[%s1 + $0x648] sm:$0xff]
      %v366 = vld [vmem:[%s1 + $0x650] sm:$0xff]
      %v367 = vld [vmem:[%s1 + $0x658] sm:$0xff]
      %v368 = vld [vmem:[%s1 + $0x660] sm:$0xff]
      %v369 = vld [vmem:[%s1 + $0x668] sm:$0xff]
      %v370 = vld [vmem:[%s1 + $0x670] sm:$0xff]
      %v371 = vld [vmem:[%s1 + $0x678] sm:$0xff]
      %v372 = vld [vmem:[%s1 + $0x680] sm:$0xff]
      %v373 = vld [vmem:[%s1 + $0x688] sm:$0xff]
      %v374 = vld [vmem:[%s1 + $0x690] sm:$0xff]
      %v375 = vld [vmem:[%s1 + $0x698] sm:$0xff]
      %v376 = vld [vmem:[%s1 + $0x6a0] sm:$0xff]
      %v377 = vld [vmem:[%s1 + $0x6a8] sm:$0xff]
      %v378 = vld [vmem:[%s1 + $0x6b0] sm:$0xff]
      %v379 = vld [vmem:[%s1 + $0x6b8] sm:$0xff]
      %v380 = vld [vmem:[%s1 + $0x6c0] sm:$0xff]
      %v381 = vld [vmem:[%s1 + $0x6c8] sm:$0xff]
      %v382 = vld [vmem:[%s1 + $0x6d0] sm:$0xff]
      %v383 = vld [vmem:[%s1 + $0x6d8] sm:$0xff]
      %v384 = vld [vmem:[%s1 + $0x6e0] sm:$0xff]
      %v385 = vld [vmem:[%s1 + $0x6e8] sm:$0xff]
      %v386 = vld [vmem:[%s1 + $0x6f0] sm:$0xff]
      %v387 = vld [vmem:[%s1 + $0x6f8] sm:$0xff]
      %v388 = vld [vmem:[%s1 + $0x700] sm:$0xff]
      %v389 = vld [vmem:[%s1 + $0x708] sm:$0xff]
      %v390 = vld [vmem:[%s1 + $0x710] sm:$0xff]
      %v391 = vld [vmem:[%s1 + $0x718] sm:$0xff]
      %v392 = vld [vmem:[%s1 + $0x720] sm:$0xff]
      %v393 = vld [vmem:[%s1 + $0x728] sm:$0xff]
      %v394 = vld [vmem:[%s1 + $0x730] sm:$0xff]
      %v395 = vld [vmem:[%s1 + $0x738] sm:$0xff]
      %v396 = vld [vmem:[%s1 + $0x740] sm:$0xff]
      %v397 = vld [vmem:[%s1 + $0x748] sm:$0xff]
      %v398 = vld [vmem:[%s1 + $0x750] sm:$0xff]
      %v399 = vld [vmem:[%s1 + $0x758] sm:$0xff]
      %v400 = vld [vmem:[%s1 + $0x760] sm:$0xff]
      %v401 = vld [vmem:[%s1 + $0x768] sm:$0xff]
      %v402 = vld [vmem:[%s1 + $0x770] sm:$0xff]
      %v403 = vld [vmem:[%s1 + $0x778] sm:$0xff]
      %v404 = vld [vmem:[%s1 + $0x780] sm:$0xff]
      %v405 = vld [vmem:[%s1 + $0x788] sm:$0xff]
      %v406 = vld [vmem:[%s1 + $0x790] sm:$0xff]
      %v407 = vld [vmem:[%s1 + $0x798] sm:$0xff]
      %v408 = vld [vmem:[%s1 + $0x7a0] sm:$0xff]
      %v409 = vld [vmem:[%s1 + $0x7a8] sm:$0xff]
      %v410 = vld [vmem:[%s1 + $0x7b0] sm:$0xff]
      %v411 = vld [vmem:[%s1 + $0x7b8] sm:$0xff]
      %v412 = vld [vmem:[%s1 + $0x7c0] sm:$0xff]
      %v413 = vld [vmem:[%s1 + $0x7c8] sm:$0xff]
      %v414 = vld [vmem:[%s1 + $0x7d0] sm:$0xff]
      %v415 = vld [vmem:[%s1 + $0x7d8] sm:$0xff]
      %v416 = vld [vmem:[%s1 + $0x7e0] sm:$0xff]
      %v417 = vld [vmem:[%s1 + $0x7e8] sm:$0xff]
      %v418 = vld [vmem:[%s1 + $0x7f0] sm:$0xff]
      %v419 = vld [vmem:[%s1 + $0x7f8] sm:$0xff]
      %v420 = vld [vmem:[%s1 + $0x800] sm:$0xff]
      %v421 = vld [vmem:[%s1 + $0x808] sm:$0xff]
      %v422 = vld [vmem:[%s1 + $0x810] sm:$0xff]
      %v423 = vld [vmem:[%s1 + $0x818] sm:$0xff]
      %v424 = vld [vmem:[%s1 + $0x820] sm:$0xff]
      %v425 = vld [vmem:[%s1 + $0x828] sm:$0xff]
      %v426 = vld [vmem:[%s1 + $0x830] sm:$0xff]
      %v427 = vld [vmem:[%s1 + $0x838] sm:$0xff]
      %v428 = vld [vmem:[%s1 + $0x840] sm:$0xff]
      %v429 = vld [vmem:[%s1 + $0x848] sm:$0xff]
      %v430 = vld [vmem:[%s1 + $0x850] sm:$0xff]
      %v431 = vld [vmem:[%s1 + $0x858] sm:$0xff]
      %v432 = vld [vmem:[%s1 + $0x860] sm:$0xff]
      %v433 = vld [vmem:[%s1 + $0x868] sm:$0xff]
      %v434 = vld [vmem:[%s1 + $0x870] sm:$0xff]
      %v435 = vld [vmem:[%s1 + $0x878] sm:$0xff]
      %v436 = vld [vmem:[%s1 + $0x880] sm:$0xff]
      %v437 = vld [vmem:[%s1 + $0x888] sm:$0xff]
      %v438 = vld [vmem:[%s1 + $0x890] sm:$0xff]
      %v439 = vld [vmem:[%s1 + $0x898] sm:$0xff]
      %v440 = vld [vmem:[%s1 + $0x8a0] sm:$0xff]
      %v441 = vld [vmem:[%s1 + $0x8a8] sm:$0xff]
      %v442 = vld [vmem:[%s1 + $0x8b0] sm:$0xff]
      %v443 = vld [vmem:[%s1 + $0x8b8] sm:$0xff]
      %v444 = vld [vmem:[%s1 + $0x8c0] sm:$0xff]
      %v445 = vld [vmem:[%s1 + $0x8c8] sm:$0xff]
      %v446 = vld [vmem:[%s1 + $0x8d0] sm:$0xff]
      %v447 = vld [vmem:[%s1 + $0x8d8] sm:$0xff]
      %v448 = vld [vmem:[%s1 + $0x8e0] sm:$0xff]
      %v449 = vld [vmem:[%s1 + $0x8e8] sm:$0xff]
      %v450 = vld [vmem:[%s1 + $0x8f0] sm:$0xff]
      %v451 = vld [vmem:[%s1 + $0x8f8] sm:$0xff]
      %v452 = vld [vmem:[%s1 + $0x900] sm:$0xff]
      %v453 = vld [vmem:[%s1 + $0x908] sm:$0xff]
      %v454 = vld [vmem:[%s1 + $0x910] sm:$0xff]
      %v455 = vld [vmem:[%s1 + $0x918] sm:$0xff]
      %v456 = vld [vmem:[%s1 + $0x920] sm:$0xff]
      %v457 = vld [vmem:[%s1 + $0x928] sm:$0xff]
      %v458 = vld [vmem:[%s1 + $0x930] sm:$0xff]
      %v459 = vld [vmem:[%s1 + $0x938] sm:$0xff]
      %v460 = vld [vmem:[%s1 + $0x940] sm:$0xff]
      %v461 = vld [vmem:[%s1 + $0x948] sm:$0xff]
      %v462 = vld [vmem:[%s1 + $0x950] sm:$0xff]
      %v463 = vld [vmem:[%s1 + $0x958] sm:$0xff]
      %v464 = vld [vmem:[%s1 + $0x960] sm:$0xff]
      %v465 = vld [vmem:[%s1 + $0x968] sm:$0xff]
      %v466 = vld [vmem:[%s1 + $0x970] sm:$0xff]
      %v467 = vld [vmem:[%s1 + $0x978] sm:$0xff]
      %v468 = vld [vmem:[%s1 + $0x980] sm:$0xff]
      %v469 = vld [vmem:[%s1 + $0x988] sm:$0xff]
      %v470 = vld [vmem:[%s1 + $0x990] sm:$0xff]
      %v471 = vld [vmem:[%s1 + $0x998] sm:$0xff]
      %v472 = vld [vmem:[%s1 + $0x9a0] sm:$0xff]
      %v473 = vld [vmem:[%s1 + $0x9a8] sm:$0xff]
      %v474 = vld [vmem:[%s1 + $0x9b0] sm:$0xff]
      %v475 = vld [vmem:[%s1 + $0x9b8] sm:$0xff]
      %v476 = vld [vmem:[%s1 + $0x9c0] sm:$0xff]
      %v477 = vld [vmem:[%s1 + $0x9c8] sm:$0xff]
      %v478 = vld [vmem:[%s1 + $0x9d0] sm:$0xff]
      %v479 = vld [vmem:[%s1 + $0x9d8] sm:$0xff]
      %v480 = vld [vmem:[%s1 + $0x9e0] sm:$0xff]
      %v481 = vld [vmem:[%s1 + $0x9e8] sm:$0xff]
      %v482 = vld [vmem:[%s1 + $0x9f0] sm:$0xff]
      %v483 = vld [vmem:[%s1 + $0x9f8] sm:$0xff]
      %v484 = vld [vmem:[%s1 + $0xa00] sm:$0xff]
      %v485 = vld [vmem:[%s1 + $0xa08] sm:$0xff]
      %v486 = vld [vmem:[%s1 + $0xa10] sm:$0xff]
      %v487 = vld [vmem:[%s1 + $0xa18] sm:$0xff]
      %v488 = vld [vmem:[%s1 + $0xa20] sm:$0xff]
      %v489 = vld [vmem:[%s1 + $0xa28] sm:$0xff]
      %v490 = vld [vmem:[%s1 + $0xa30] sm:$0xff]
      %v491 = vld [vmem:[%s1 + $0xa38] sm:$0xff]
      %v492 = vld [vmem:[%s1 + $0xa40] sm:$0xff]
      %v493 = vld [vmem:[%s1 + $0xa48] sm:$0xff]
      %v494 = vld [vmem:[%s1 + $0xa50] sm:$0xff]
      %v495 = vld [vmem:[%s1 + $0xa58] sm:$0xff]
      %v496 = vld [vmem:[%s1 + $0xa60] sm:$0xff]
      %v497 = vld [vmem:[%s1 + $0xa68] sm:$0xff]
      %v498 = vld [vmem:[%s1 + $0xa70] sm:$0xff]
      %v499 = vld [vmem:[%s1 + $0xa78] sm:$0xff]
      %v500 = vld [vmem:[%s1 + $0xa80] sm:$0xff]
      %v501 = vld [vmem:[%s1 + $0xa88] sm:$0xff]
      %v502 = vld [vmem:[%s1 + $0xa90] sm:$0xff]
      %v503 = vld [vmem:[%s1 + $0xa98] sm:$0xff]
      %v504 = vld [vmem:[%s1 + $0xaa0] sm:$0xff]
      %v505 = vld [vmem:[%s1 + $0xaa8] sm:$0xff]
      %v506 = vld [vmem:[%s1 + $0xab0] sm:$0xff]
      %v507 = vld [vmem:[%s1 + $0xab8] sm:$0xff]
      %v508 = vld [vmem:[%s1 + $0xac0] sm:$0xff]
      %v509 = vld [vmem:[%s1 + $0xac8] sm:$0xff]
      %v510 = vld [vmem:[%s1 + $0xad0] sm:$0xff]
      %v511 = vld [vmem:[%s1 + $0xad8] sm:$0xff]
      %v512 = vld [vmem:[%s1 + $0xae0] sm:$0xff]
      %v513 = vld [vmem:[%s1 + $0xae8] sm:$0xff]
      %v514 = vld [vmem:[%s1 + $0xaf0] sm:$0xff]
      %v515 = vld [vmem:[%s1 + $0xaf8] sm:$0xff]
      %v516 = vld [vmem:[%s1 + $0xb00] sm:$0xff]
      %v517 = vld [vmem:[%s1 + $0xb08] sm:$0xff]
      %v518 = vld [vmem:[%s1 + $0xb10] sm:$0xff]
      %v519 = vld [vmem:[%s1 + $0xb18] sm:$0xff]
      %v520 = vld [vmem:[%s1 + $0xb20] sm:$0xff]
      %v521 = vld [vmem:[%s1 + $0xb28] sm:$0xff]
      %v522 = vld [vmem:[%s1 + $0xb30] sm:$0xff]
      %v523 = vld [vmem:[%s1 + $0xb38] sm:$0xff]
      %v524 = vld [vmem:[%s1 + $0xb40] sm:$0xff]
      %v525 = vld [vmem:[%s1 + $0xb48] sm:$0xff]
      %v526 = vld [vmem:[%s1 + $0xb50] sm:$0xff]
      %v527 = vld [vmem:[%s1 + $0xb58] sm:$0xff]
      %v528 = vld [vmem:[%s1 + $0xb60] sm:$0xff]
      %v529 = vld [vmem:[%s1 + $0xb68] sm:$0xff]
      %v530 = vld [vmem:[%s1 + $0xb70] sm:$0xff]
      %v531 = vld [vmem:[%s1 + $0xb78] sm:$0xff]
      %v532 = vld [vmem:[%s1 + $0xb80] sm:$0xff]
      %v533 = vld [vmem:[%s1 + $0xb88] sm:$0xff]
      %v534 = vld [vmem:[%s1 + $0xb90] sm:$0xff]
      %v535 = vld [vmem:[%s1 + $0xb98] sm:$0xff]
      %v536 = vld [vmem:[%s1 + $0xba0] sm:$0xff]
      %v537 = vld [vmem:[%s1 + $0xba8] sm:$0xff]
      %v538 = vld [vmem:[%s1 + $0xbb0] sm:$0xff]
      %v539 = vld [vmem:[%s1 + $0xbb8] sm:$0xff]
      %v540 = vld [vmem:[%s1 + $0xbc0] sm:$0xff]
      %v541 = vld [vmem:[%s1 + $0xbc8] sm:$0xff]
      %v542 = vld [vmem:[%s1 + $0xbd0] sm:$0xff]
      %v543 = vld [vmem:[%s1 + $0xbd8] sm:$0xff]
      %v544 = vld [vmem:[%s1 + $0xbe0] sm:$0xff]
      %v545 = vld [vmem:[%s1 + $0xbe8] sm:$0xff]
      %v546 = vld [vmem:[%s1 + $0xbf0] sm:$0xff]
      %v547 = vld [vmem:[%s1 + $0xbf8] sm:$0xff]
      %v548 = vld [vmem:[%s1 + $0xc00] sm:$0xff]
      %v549 = vld [vmem:[%s1 + $0xc08] sm:$0xff]
      %v550 = vld [vmem:[%s1 + $0xc10] sm:$0xff]
      %v551 = vld [vmem:[%s1 + $0xc18] sm:$0xff]
      %v552 = vld [vmem:[%s1 + $0xc20] sm:$0xff]
      %v553 = vld [vmem:[%s1 + $0xc28] sm:$0xff]
      %v554 = vld [vmem:[%s1 + $0xc30] sm:$0xff]
      %v555 = vld [vmem:[%s1 + $0xc38] sm:$0xff]
      %v556 = vld [vmem:[%s1 + $0xc40] sm:$0xff]
      %v557 = vld [vmem:[%s1 + $0xc48] sm:$0xff]
      %v558 = vld [vmem:[%s1 + $0xc50] sm:$0xff]
      %v559 = vld [vmem:[%s1 + $0xc58] sm:$0xff]
      %v560 = vld [vmem:[%s1 + $0xc60] sm:$0xff]
      %v561 = vld [vmem:[%s1 + $0xc68] sm:$0xff]
      %v562 = vld [vmem:[%s1 + $0xc70] sm:$0xff]
      %v563 = vld [vmem:[%s1 + $0xc78] sm:$0xff]
      %v576 = vunpack.c.l.b16 %v152
      %v577 = vunpack.c.h.b16 %v152
      %v578 = vunpack.c.l.b16 %v153
      %v579 = vunpack.c.h.b16 %v153
      %v580 = vunpack.c.l.b16 %v154
      %v581 = vunpack.c.l.b16 %v155
      %v582 = vunpack.c.h.b16 %v155
      %v583 = vunpack.c.l.b16 %v156
      %v584 = vunpack.c.h.b16 %v156
      %v585 = vunpack.c.l.b16 %v157
      %v586 = vunpack.c.l.b16 %v158
      %v587 = vunpack.c.h.b16 %v158
      %v588 = vunpack.c.l.b16 %v159
      %v589 = vunpack.c.h.b16 %v159
      %v590 = vunpack.c.l.b16 %v160
      %v591 = vunpack.c.l.b16 %v161
      %v592 = vunpack.c.h.b16 %v161
      %v593 = vunpack.c.l.b16 %v162
      %v594 = vunpack.c.h.b16 %v162
      %v595 = vunpack.c.l.b16 %v163
      %v596 = vpack.c.b16 %v581, %v576
      %v597 = vpack.c.b16 %v582, %v577
      %v598 = vpack.c.b16 %v583, %v578
      %v599 = vpack.c.b16 %v584, %v579
      %v600 = vpack.c.b16 %v585, %v580
      %v601 = vpack.c.b16 %v591, %v586
      %v602 = vpack.c.b16 %v592, %v587
      %v603 = vpack.c.b16 %v593, %v588
      %v604 = vpack.c.b16 %v594, %v589
      %v605 = vpack.c.b16 %v595, %v590
      %v1016 = vunpack.c.l.b16 %v164
      %v1017 = vunpack.c.h.b16 %v164
      %v1018 = vunpack.c.l.b16 %v165
      %v1019 = vunpack.c.h.b16 %v165
      %v1020 = vunpack.c.l.b16 %v166
      %v1021 = vunpack.c.h.b16 %v166
      %v1022 = vunpack.c.l.b16 %v167
      %v1023 = vunpack.c.h.b16 %v167
      %v1024 = vunpack.c.l.b16 %v168
      %v1025 = vunpack.c.h.b16 %v168
      %v1026 = vunpack.c.l.b16 %v169
      %v1027 = vunpack.c.h.b16 %v169
      %v1028 = vunpack.c.l.b16 %v170
      %v1029 = vunpack.c.h.b16 %v170
      %v1030 = vunpack.c.l.b16 %v171
      %v1031 = vunpack.c.h.b16 %v171
      %v1032 = vunpack.c.l.b16 %v172
      %v1033 = vunpack.c.h.b16 %v172
      %v1034 = vunpack.c.l.b16 %v173
      %v1035 = vunpack.c.h.b16 %v173
      %v1036 = vunpack.c.l.b16 %v174
      %v1037 = vunpack.c.h.b16 %v174
      %v1038 = vunpack.c.l.b16 %v175
      %v1039 = vunpack.c.h.b16 %v175
      %v1040 = vunpack.c.l.b16 %v176
      %v1041 = vunpack.c.h.b16 %v176
      %v1042 = vunpack.c.l.b16 %v177
      %v1043 = vunpack.c.h.b16 %v177
      %v1044 = vunpack.c.l.b16 %v178
      %v1045 = vunpack.c.h.b16 %v178
      %v1046 = vunpack.c.l.b16 %v179
      %v1047 = vunpack.c.h.b16 %v179
      %v1048 = vunpack.c.l.b16 %v180
      %v1049 = vunpack.c.h.b16 %v180
      %v1050 = vunpack.c.l.b16 %v181
      %v1051 = vunpack.c.h.b16 %v181
      %v1052 = vunpack.c.l.b16 %v182
      %v1053 = vunpack.c.h.b16 %v182
      %v1054 = vunpack.c.l.b16 %v183
      %v1055 = vunpack.c.h.b16 %v183
      %v1056 = vunpack.c.l.b16 %v184
      %v1057 = vunpack.c.h.b16 %v184
      %v1058 = vunpack.c.l.b16 %v185
      %v1059 = vunpack.c.h.b16 %v185
      %v1060 = vunpack.c.l.b16 %v186
      %v1061 = vunpack.c.h.b16 %v186
      %v1062 = vunpack.c.l.b16 %v187
      %v1063 = vunpack.c.h.b16 %v187
      %v1064 = vunpack.c.l.b16 %v188
      %v1065 = vunpack.c.h.b16 %v188
      %v1066 = vunpack.c.l.b16 %v189
      %v1067 = vunpack.c.h.b16 %v189
      %v1068 = vunpack.c.l.b16 %v190
      %v1069 = vunpack.c.h.b16 %v190
      %v1070 = vunpack.c.l.b16 %v191
      %v1071 = vunpack.c.h.b16 %v191
      %v1072 = vunpack.c.l.b16 %v192
      %v1073 = vunpack.c.h.b16 %v192
      %v1074 = vunpack.c.l.b16 %v193
      %v1075 = vunpack.c.h.b16 %v193
      %v1076 = vunpack.c.l.b16 %v194
      %v1077 = vunpack.c.h.b16 %v194
      %v1078 = vunpack.c.l.b16 %v195
      %v1079 = vunpack.c.h.b16 %v195
      %v1080 = vunpack.c.l.b16 %v196
      %v1081 = vunpack.c.h.b16 %v196
      %v1082 = vunpack.c.l.b16 %v197
      %v1083 = vunpack.c.h.b16 %v197
      %v1084 = vunpack.c.l.b16 %v198
      %v1085 = vunpack.c.h.b16 %v198
      %v1086 = vunpack.c.l.b16 %v199
      %v1087 = vunpack.c.h.b16 %v199
      %v1088 = vunpack.c.l.b16 %v200
      %v1089 = vunpack.c.h.b16 %v200
      %v1090 = vunpack.c.l.b16 %v201
      %v1091 = vunpack.c.h.b16 %v201
      %v1092 = vunpack.c.l.b16 %v202
      %v1093 = vunpack.c.h.b16 %v202
      %v1094 = vunpack.c.l.b16 %v203
      %v1095 = vunpack.c.h.b16 %v203
      %v1096 = vunpack.c.l.b16 %v204
      %v1097 = vunpack.c.h.b16 %v204
      %v1098 = vunpack.c.l.b16 %v205
      %v1099 = vunpack.c.h.b16 %v205
      %v1100 = vunpack.c.l.b16 %v206
      %v1101 = vunpack.c.h.b16 %v206
      %v1102 = vunpack.c.l.b16 %v207
      %v1103 = vunpack.c.h.b16 %v207
      %v1104 = vunpack.c.l.b16 %v208
      %v1105 = vunpack.c.h.b16 %v208
      %v1106 = vunpack.c.l.b16 %v209
      %v1107 = vunpack.c.h.b16 %v209
      %v1108 = vunpack.c.l.b16 %v210
      %v1109 = vunpack.c.h.b16 %v210
      %v1110 = vunpack.c.l.b16 %v211
      %v1111 = vunpack.c.h.b16 %v211
      %v1112 = vunpack.c.l.b16 %v212
      %v1113 = vunpack.c.h.b16 %v212
      %v1114 = vunpack.c.l.b16 %v213
      %v1115 = vunpack.c.h.b16 %v213
      %v1116 = vunpack.c.l.b16 %v214
      %v1117 = vunpack.c.h.b16 %v214
      %v1118 = vunpack.c.l.b16 %v215
      %v1119 = vunpack.c.h.b16 %v215
      %v1120 = vunpack.c.l.b16 %v216
      %v1121 = vunpack.c.h.b16 %v216
      %v1122 = vunpack.c.l.b16 %v217
      %v1123 = vunpack.c.h.b16 %v217
      %v1124 = vunpack.c.l.b16 %v218
      %v1125 = vunpack.c.h.b16 %v218
      %v1126 = vunpack.c.l.b16 %v219
      %v1127 = vunpack.c.h.b16 %v219
      %v1128 = vunpack.c.l.b16 %v220
      %v1129 = vunpack.c.h.b16 %v220
      %v1130 = vunpack.c.l.b16 %v221
      %v1131 = vunpack.c.h.b16 %v221
      %v1132 = vunpack.c.l.b16 %v222
      %v1133 = vunpack.c.h.b16 %v222
      %v1134 = vunpack.c.l.b16 %v223
      %v1135 = vunpack.c.h.b16 %v223
      %v1136 = vunpack.c.l.b16 %v224
      %v1137 = vunpack.c.h.b16 %v224
      %v1138 = vunpack.c.l.b16 %v225
      %v1139 = vunpack.c.h.b16 %v225
      %v1140 = vunpack.c.l.b16 %v226
      %v1141 = vunpack.c.h.b16 %v226
      %v1142 = vunpack.c.l.b16 %v227
      %v1143 = vunpack.c.h.b16 %v227
      %v1144 = vunpack.c.l.b16 %v228
      %v1145 = vunpack.c.h.b16 %v228
      %v1146 = vunpack.c.l.b16 %v229
      %v1147 = vunpack.c.h.b16 %v229
      %v1148 = vunpack.c.l.b16 %v230
      %v1149 = vunpack.c.h.b16 %v230
      %v1150 = vunpack.c.l.b16 %v231
      %v1151 = vunpack.c.h.b16 %v231
      %v1152 = vunpack.c.l.b16 %v232
      %v1153 = vunpack.c.h.b16 %v232
      %v1154 = vunpack.c.l.b16 %v233
      %v1155 = vunpack.c.h.b16 %v233
      %v1156 = vunpack.c.l.b16 %v234
      %v1157 = vunpack.c.h.b16 %v234
      %v1158 = vunpack.c.l.b16 %v235
      %v1159 = vunpack.c.h.b16 %v235
      %v1160 = vunpack.c.l.b16 %v236
      %v1161 = vunpack.c.h.b16 %v236
      %v1162 = vunpack.c.l.b16 %v237
      %v1163 = vunpack.c.h.b16 %v237
      %v1164 = vunpack.c.l.b16 %v238
      %v1165 = vunpack.c.h.b16 %v238
      %v1166 = vunpack.c.l.b16 %v239
      %v1167 = vunpack.c.h.b16 %v239
      %v1168 = vunpack.c.l.b16 %v240
      %v1169 = vunpack.c.h.b16 %v240
      %v1170 = vunpack.c.l.b16 %v241
      %v1171 = vunpack.c.h.b16 %v241
      %v1172 = vunpack.c.l.b16 %v242
      %v1173 = vunpack.c.h.b16 %v242
      %v1174 = vunpack.c.l.b16 %v243
      %v1175 = vunpack.c.h.b16 %v243
      %v1176 = vunpack.c.l.b16 %v244
      %v1177 = vunpack.c.h.b16 %v244
      %v1178 = vunpack.c.l.b16 %v245
      %v1179 = vunpack.c.h.b16 %v245
      %v1180 = vunpack.c.l.b16 %v246
      %v1181 = vunpack.c.h.b16 %v246
      %v1182 = vunpack.c.l.b16 %v247
      %v1183 = vunpack.c.h.b16 %v247
      %v1184 = vunpack.c.l.b16 %v248
      %v1185 = vunpack.c.h.b16 %v248
      %v1186 = vunpack.c.l.b16 %v249
      %v1187 = vunpack.c.h.b16 %v249
      %v1188 = vunpack.c.l.b16 %v250
      %v1189 = vunpack.c.h.b16 %v250
      %v1190 = vunpack.c.l.b16 %v251
      %v1191 = vunpack.c.h.b16 %v251
      %v1192 = vunpack.c.l.b16 %v252
      %v1193 = vunpack.c.h.b16 %v252
      %v1194 = vunpack.c.l.b16 %v253
      %v1195 = vunpack.c.h.b16 %v253
      %v1196 = vunpack.c.l.b16 %v254
      %v1197 = vunpack.c.h.b16 %v254
      %v1198 = vunpack.c.l.b16 %v255
      %v1199 = vunpack.c.h.b16 %v255
      %v1200 = vunpack.c.l.b16 %v256
      %v1201 = vunpack.c.h.b16 %v256
      %v1202 = vunpack.c.l.b16 %v257
      %v1203 = vunpack.c.h.b16 %v257
      %v1204 = vunpack.c.l.b16 %v258
      %v1205 = vunpack.c.h.b16 %v258
      %v1206 = vunpack.c.l.b16 %v259
      %v1207 = vunpack.c.h.b16 %v259
      %v1208 = vunpack.c.l.b16 %v260
      %v1209 = vunpack.c.h.b16 %v260
      %v1210 = vunpack.c.l.b16 %v261
      %v1211 = vunpack.c.h.b16 %v261
      %v1212 = vunpack.c.l.b16 %v262
      %v1213 = vunpack.c.h.b16 %v262
      %v1214 = vunpack.c.l.b16 %v263
      %v1215 = vunpack.c.h.b16 %v263
      %v1216 = vunpack.c.l.b16 %v264
      %v1217 = vunpack.c.h.b16 %v264
      %v1218 = vunpack.c.l.b16 %v265
      %v1219 = vunpack.c.h.b16 %v265
      %v1220 = vunpack.c.l.b16 %v266
      %v1221 = vunpack.c.h.b16 %v266
      %v1222 = vunpack.c.l.b16 %v267
      %v1223 = vunpack.c.h.b16 %v267
      %v1224 = vunpack.c.l.b16 %v268
      %v1225 = vunpack.c.h.b16 %v268
      %v1226 = vunpack.c.l.b16 %v269
      %v1227 = vunpack.c.h.b16 %v269
      %v1228 = vunpack.c.l.b16 %v270
      %v1229 = vunpack.c.h.b16 %v270
      %v1230 = vunpack.c.l.b16 %v271
      %v1231 = vunpack.c.h.b16 %v271
      %v1232 = vunpack.c.l.b16 %v272
      %v1233 = vunpack.c.h.b16 %v272
      %v1234 = vunpack.c.l.b16 %v273
      %v1235 = vunpack.c.h.b16 %v273
      %v1236 = vunpack.c.l.b16 %v274
      %v1237 = vunpack.c.h.b16 %v274
      %v1238 = vunpack.c.l.b16 %v275
      %v1239 = vunpack.c.h.b16 %v275
      %v1240 = vunpack.c.l.b16 %v276
      %v1241 = vunpack.c.h.b16 %v276
      %v1242 = vunpack.c.l.b16 %v277
      %v1243 = vunpack.c.h.b16 %v277
      %v1244 = vunpack.c.l.b16 %v278
      %v1245 = vunpack.c.h.b16 %v278
      %v1246 = vunpack.c.l.b16 %v279
      %v1247 = vunpack.c.h.b16 %v279
      %v1248 = vunpack.c.l.b16 %v280
      %v1249 = vunpack.c.h.b16 %v280
      %v1250 = vunpack.c.l.b16 %v281
      %v1251 = vunpack.c.h.b16 %v281
      %v1252 = vunpack.c.l.b16 %v282
      %v1253 = vunpack.c.h.b16 %v282
      %v1254 = vunpack.c.l.b16 %v283
      %v1255 = vunpack.c.h.b16 %v283
      %v1256 = vunpack.c.l.b16 %v284
      %v1257 = vunpack.c.h.b16 %v284
      %v1258 = vunpack.c.l.b16 %v285
      %v1259 = vunpack.c.h.b16 %v285
      %v1260 = vunpack.c.l.b16 %v286
      %v1261 = vunpack.c.h.b16 %v286
      %v1262 = vunpack.c.l.b16 %v287
      %v1263 = vunpack.c.h.b16 %v287
      %v1264 = vunpack.c.l.b16 %v288
      %v1265 = vunpack.c.h.b16 %v288
      %v1266 = vunpack.c.l.b16 %v289
      %v1267 = vunpack.c.h.b16 %v289
      %v1268 = vunpack.c.l.b16 %v290
      %v1269 = vunpack.c.h.b16 %v290
      %v1270 = vunpack.c.l.b16 %v291
      %v1271 = vunpack.c.h.b16 %v291
      %v1272 = vunpack.c.l.b16 %v292
      %v1273 = vunpack.c.h.b16 %v292
      %v1274 = vunpack.c.l.b16 %v293
      %v1275 = vunpack.c.h.b16 %v293
      %v1276 = vunpack.c.l.b16 %v294
      %v1277 = vunpack.c.h.b16 %v294
      %v1278 = vunpack.c.l.b16 %v295
      %v1279 = vunpack.c.h.b16 %v295
      %v1280 = vunpack.c.l.b16 %v296
      %v1281 = vunpack.c.h.b16 %v296
      %v1282 = vunpack.c.l.b16 %v297
      %v1283 = vunpack.c.h.b16 %v297
      %v1284 = vunpack.c.l.b16 %v298
      %v1285 = vunpack.c.h.b16 %v298
      %v1286 = vunpack.c.l.b16 %v299
      %v1287 = vunpack.c.h.b16 %v299
      %v1288 = vunpack.c.l.b16 %v300
      %v1289 = vunpack.c.h.b16 %v300
      %v1290 = vunpack.c.l.b16 %v301
      %v1291 = vunpack.c.h.b16 %v301
      %v1292 = vunpack.c.l.b16 %v302
      %v1293 = vunpack.c.h.b16 %v302
      %v1294 = vunpack.c.l.b16 %v303
      %v1295 = vunpack.c.h.b16 %v303
      %v1296 = vunpack.c.l.b16 %v304
      %v1297 = vunpack.c.h.b16 %v304
      %v1298 = vunpack.c.l.b16 %v305
      %v1299 = vunpack.c.h.b16 %v305
      %v1300 = vunpack.c.l.b16 %v306
      %v1301 = vunpack.c.h.b16 %v306
      %v1302 = vunpack.c.l.b16 %v307
      %v1303 = vunpack.c.h.b16 %v307
      %v1304 = vunpack.c.l.b16 %v308
      %v1305 = vunpack.c.h.b16 %v308
      %v1306 = vunpack.c.l.b16 %v309
      %v1307 = vunpack.c.h.b16 %v309
      %v1308 = vunpack.c.l.b16 %v310
      %v1309 = vunpack.c.h.b16 %v310
      %v1310 = vunpack.c.l.b16 %v311
      %v1311 = vunpack.c.h.b16 %v311
      %v1312 = vunpack.c.l.b16 %v312
      %v1313 = vunpack.c.h.b16 %v312
      %v1314 = vunpack.c.l.b16 %v313
      %v1315 = vunpack.c.h.b16 %v313
      %v1316 = vunpack.c.l.b16 %v314
      %v1317 = vunpack.c.h.b16 %v314
      %v1318 = vunpack.c.l.b16 %v315
      %v1319 = vunpack.c.h.b16 %v315
      %v1320 = vunpack.c.l.b16 %v316
      %v1321 = vunpack.c.h.b16 %v316
      %v1322 = vunpack.c.l.b16 %v317
      %v1323 = vunpack.c.h.b16 %v317
      %v1324 = vunpack.c.l.b16 %v318
      %v1325 = vunpack.c.h.b16 %v318
      %v1326 = vunpack.c.l.b16 %v319
      %v1327 = vunpack.c.h.b16 %v319
      %v1328 = vunpack.c.l.b16 %v320
      %v1329 = vunpack.c.h.b16 %v320
      %v1330 = vunpack.c.l.b16 %v321
      %v1331 = vunpack.c.h.b16 %v321
      %v1332 = vunpack.c.l.b16 %v322
      %v1333 = vunpack.c.h.b16 %v322
      %v1334 = vunpack.c.l.b16 %v323
      %v1335 = vunpack.c.h.b16 %v323
      %v1336 = vunpack.c.l.b16 %v324
      %v1337 = vunpack.c.h.b16 %v324
      %v1338 = vunpack.c.l.b16 %v325
      %v1339 = vunpack.c.h.b16 %v325
      %v1340 = vunpack.c.l.b16 %v326
      %v1341 = vunpack.c.h.b16 %v326
      %v1342 = vunpack.c.l.b16 %v327
      %v1343 = vunpack.c.h.b16 %v327
      %v1344 = vunpack.c.l.b16 %v328
      %v1345 = vunpack.c.h.b16 %v328
      %v1346 = vunpack.c.l.b16 %v329
      %v1347 = vunpack.c.h.b16 %v329
      %v1348 = vunpack.c.l.b16 %v330
      %v1349 = vunpack.c.h.b16 %v330
      %v1350 = vunpack.c.l.b16 %v331
      %v1351 = vunpack.c.h.b16 %v331
      %v1352 = vunpack.c.l.b16 %v332
      %v1353 = vunpack.c.h.b16 %v332
      %v1354 = vunpack.c.l.b16 %v333
      %v1355 = vunpack.c.h.b16 %v333
      %v1356 = vunpack.c.l.b16 %v334
      %v1357 = vunpack.c.h.b16 %v334
      %v1358 = vunpack.c.l.b16 %v335
      %v1359 = vunpack.c.h.b16 %v335
      %v1360 = vunpack.c.l.b16 %v336
      %v1361 = vunpack.c.h.b16 %v336
      %v1362 = vunpack.c.l.b16 %v337
      %v1363 = vunpack.c.h.b16 %v337
      %v1364 = vunpack.c.l.b16 %v338
      %v1365 = vunpack.c.h.b16 %v338
      %v1366 = vunpack.c.l.b16 %v339
      %v1367 = vunpack.c.h.b16 %v339
      %v1368 = vunpack.c.l.b16 %v340
      %v1369 = vunpack.c.h.b16 %v340
      %v1370 = vunpack.c.l.b16 %v341
      %v1371 = vunpack.c.h.b16 %v341
      %v1372 = vunpack.c.l.b16 %v342
      %v1373 = vunpack.c.h.b16 %v342
      %v1374 = vunpack.c.l.b16 %v343
      %v1375 = vunpack.c.h.b16 %v343
      %v1376 = vunpack.c.l.b16 %v344
      %v1377 = vunpack.c.h.b16 %v344
      %v1378 = vunpack.c.l.b16 %v345
      %v1379 = vunpack.c.h.b16 %v345
      %v1380 = vunpack.c.l.b16 %v346
      %v1381 = vunpack.c.h.b16 %v346
      %v1382 = vunpack.c.l.b16 %v347
      %v1383 = vunpack.c.h.b16 %v347
      %v1384 = vunpack.c.l.b16 %v348
      %v1385 = vunpack.c.h.b16 %v348
      %v1386 = vunpack.c.l.b16 %v349
      %v1387 = vunpack.c.h.b16 %v349
      %v1388 = vunpack.c.l.b16 %v350
      %v1389 = vunpack.c.h.b16 %v350
      %v1390 = vunpack.c.l.b16 %v351
      %v1391 = vunpack.c.h.b16 %v351
      %v1392 = vunpack.c.l.b16 %v352
      %v1393 = vunpack.c.h.b16 %v352
      %v1394 = vunpack.c.l.b16 %v353
      %v1395 = vunpack.c.h.b16 %v353
      %v1396 = vunpack.c.l.b16 %v354
      %v1397 = vunpack.c.h.b16 %v354
      %v1398 = vunpack.c.l.b16 %v355
      %v1399 = vunpack.c.h.b16 %v355
      %v1400 = vunpack.c.l.b16 %v356
      %v1401 = vunpack.c.h.b16 %v356
      %v1402 = vunpack.c.l.b16 %v357
      %v1403 = vunpack.c.h.b16 %v357
      %v1404 = vunpack.c.l.b16 %v358
      %v1405 = vunpack.c.h.b16 %v358
      %v1406 = vunpack.c.l.b16 %v359
      %v1407 = vunpack.c.h.b16 %v359
      %v1408 = vunpack.c.l.b16 %v360
      %v1409 = vunpack.c.h.b16 %v360
      %v1410 = vunpack.c.l.b16 %v361
      %v1411 = vunpack.c.h.b16 %v361
      %v1412 = vunpack.c.l.b16 %v362
      %v1413 = vunpack.c.h.b16 %v362
      %v1414 = vunpack.c.l.b16 %v363
      %v1415 = vunpack.c.h.b16 %v363
      %v1416 = vunpack.c.l.b16 %v364
      %v1417 = vunpack.c.h.b16 %v364
      %v1418 = vunpack.c.l.b16 %v365
      %v1419 = vunpack.c.h.b16 %v365
      %v1420 = vunpack.c.l.b16 %v366
      %v1421 = vunpack.c.h.b16 %v366
      %v1422 = vunpack.c.l.b16 %v367
      %v1423 = vunpack.c.h.b16 %v367
      %v1424 = vunpack.c.l.b16 %v368
      %v1425 = vunpack.c.h.b16 %v368
      %v1426 = vunpack.c.l.b16 %v369
      %v1427 = vunpack.c.h.b16 %v369
      %v1428 = vunpack.c.l.b16 %v370
      %v1429 = vunpack.c.h.b16 %v370
      %v1430 = vunpack.c.l.b16 %v371
      %v1431 = vunpack.c.h.b16 %v371
      %v1432 = vunpack.c.l.b16 %v372
      %v1433 = vunpack.c.h.b16 %v372
      %v1434 = vunpack.c.l.b16 %v373
      %v1435 = vunpack.c.h.b16 %v373
      %v1436 = vunpack.c.l.b16 %v374
      %v1437 = vunpack.c.h.b16 %v374
      %v1438 = vunpack.c.l.b16 %v375
      %v1439 = vunpack.c.h.b16 %v375
      %v1440 = vunpack.c.l.b16 %v376
      %v1441 = vunpack.c.h.b16 %v376
      %v1442 = vunpack.c.l.b16 %v377
      %v1443 = vunpack.c.h.b16 %v377
      %v1444 = vunpack.c.l.b16 %v378
      %v1445 = vunpack.c.h.b16 %v378
      %v1446 = vunpack.c.l.b16 %v379
      %v1447 = vunpack.c.h.b16 %v379
      %v1448 = vunpack.c.l.b16 %v380
      %v1449 = vunpack.c.h.b16 %v380
      %v1450 = vunpack.c.l.b16 %v381
      %v1451 = vunpack.c.h.b16 %v381
      %v1452 = vunpack.c.l.b16 %v382
      %v1453 = vunpack.c.h.b16 %v382
      %v1454 = vunpack.c.l.b16 %v383
      %v1455 = vunpack.c.h.b16 %v383
      %v1456 = vunpack.c.l.b16 %v384
      %v1457 = vunpack.c.h.b16 %v384
      %v1458 = vunpack.c.l.b16 %v385
      %v1459 = vunpack.c.h.b16 %v385
      %v1460 = vunpack.c.l.b16 %v386
      %v1461 = vunpack.c.h.b16 %v386
      %v1462 = vunpack.c.l.b16 %v387
      %v1463 = vunpack.c.h.b16 %v387
      %v1464 = vunpack.c.l.b16 %v388
      %v1465 = vunpack.c.h.b16 %v388
      %v1466 = vunpack.c.l.b16 %v389
      %v1467 = vunpack.c.h.b16 %v389
      %v1468 = vunpack.c.l.b16 %v390
      %v1469 = vunpack.c.h.b16 %v390
      %v1470 = vunpack.c.l.b16 %v391
      %v1471 = vunpack.c.h.b16 %v391
      %v1472 = vunpack.c.l.b16 %v392
      %v1473 = vunpack.c.h.b16 %v392
      %v1474 = vunpack.c.l.b16 %v393
      %v1475 = vunpack.c.h.b16 %v393
      %v1476 = vunpack.c.l.b16 %v394
      %v1477 = vunpack.c.h.b16 %v394
      %v1478 = vunpack.c.l.b16 %v395
      %v1479 = vunpack.c.h.b16 %v395
      %v1480 = vunpack.c.l.b16 %v396
      %v1481 = vunpack.c.h.b16 %v396
      %v1482 = vunpack.c.l.b16 %v397
      %v1483 = vunpack.c.h.b16 %v397
      %v1484 = vunpack.c.l.b16 %v398
      %v1485 = vunpack.c.h.b16 %v398
      %v1486 = vunpack.c.l.b16 %v399
      %v1487 = vunpack.c.h.b16 %v399
      %v1488 = vunpack.c.l.b16 %v400
      %v1489 = vunpack.c.h.b16 %v400
      %v1490 = vunpack.c.l.b16 %v401
      %v1491 = vunpack.c.h.b16 %v401
      %v1492 = vunpack.c.l.b16 %v402
      %v1493 = vunpack.c.h.b16 %v402
      %v1494 = vunpack.c.l.b16 %v403
      %v1495 = vunpack.c.h.b16 %v403
      %v1496 = vunpack.c.l.b16 %v404
      %v1497 = vunpack.c.h.b16 %v404
      %v1498 = vunpack.c.l.b16 %v405
      %v1499 = vunpack.c.h.b16 %v405
      %v1500 = vunpack.c.l.b16 %v406
      %v1501 = vunpack.c.h.b16 %v406
      %v1502 = vunpack.c.l.b16 %v407
      %v1503 = vunpack.c.h.b16 %v407
      %v1504 = vunpack.c.l.b16 %v408
      %v1505 = vunpack.c.h.b16 %v408
      %v1506 = vunpack.c.l.b16 %v409
      %v1507 = vunpack.c.h.b16 %v409
      %v1508 = vunpack.c.l.b16 %v410
      %v1509 = vunpack.c.h.b16 %v410
      %v1510 = vunpack.c.l.b16 %v411
      %v1511 = vunpack.c.h.b16 %v411
      %v1512 = vunpack.c.l.b16 %v412
      %v1513 = vunpack.c.h.b16 %v412
      %v1514 = vunpack.c.l.b16 %v413
      %v1515 = vunpack.c.h.b16 %v413
      %v1516 = vunpack.c.l.b16 %v414
      %v1517 = vunpack.c.h.b16 %v414
      %v1518 = vunpack.c.l.b16 %v415
      %v1519 = vunpack.c.h.b16 %v415
      %v1520 = vunpack.c.l.b16 %v416
      %v1521 = vunpack.c.h.b16 %v416
      %v1522 = vunpack.c.l.b16 %v417
      %v1523 = vunpack.c.h.b16 %v417
      %v1524 = vunpack.c.l.b16 %v418
      %v1525 = vunpack.c.h.b16 %v418
      %v1526 = vunpack.c.l.b16 %v419
      %v1527 = vunpack.c.h.b16 %v419
      %v1528 = vunpack.c.l.b16 %v420
      %v1529 = vunpack.c.h.b16 %v420
      %v1530 = vunpack.c.l.b16 %v421
      %v1531 = vunpack.c.h.b16 %v421
      %v1532 = vunpack.c.l.b16 %v422
      %v1533 = vunpack.c.h.b16 %v422
      %v1534 = vunpack.c.l.b16 %v423
      %v1535 = vunpack.c.h.b16 %v423
      %v1536 = vunpack.c.l.b16 %v424
      %v1537 = vunpack.c.h.b16 %v424
      %v1538 = vunpack.c.l.b16 %v425
      %v1539 = vunpack.c.h.b16 %v425
      %v1540 = vunpack.c.l.b16 %v426
      %v1541 = vunpack.c.h.b16 %v426
      %v1542 = vunpack.c.l.b16 %v427
      %v1543 = vunpack.c.h.b16 %v427
      %v1544 = vunpack.c.l.b16 %v428
      %v1545 = vunpack.c.h.b16 %v428
      %v1546 = vunpack.c.l.b16 %v429
      %v1547 = vunpack.c.h.b16 %v429
      %v1548 = vunpack.c.l.b16 %v430
      %v1549 = vunpack.c.h.b16 %v430
      %v1550 = vunpack.c.l.b16 %v431
      %v1551 = vunpack.c.h.b16 %v431
      %v1552 = vunpack.c.l.b16 %v432
      %v1553 = vunpack.c.h.b16 %v432
      %v1554 = vunpack.c.l.b16 %v433
      %v1555 = vunpack.c.h.b16 %v433
      %v1556 = vunpack.c.l.b16 %v434
      %v1557 = vunpack.c.h.b16 %v434
      %v1558 = vunpack.c.l.b16 %v435
      %v1559 = vunpack.c.h.b16 %v435
      %v1560 = vunpack.c.l.b16 %v436
      %v1561 = vunpack.c.h.b16 %v436
      %v1562 = vunpack.c.l.b16 %v437
      %v1563 = vunpack.c.h.b16 %v437
      %v1564 = vunpack.c.l.b16 %v438
      %v1565 = vunpack.c.h.b16 %v438
      %v1566 = vunpack.c.l.b16 %v439
      %v1567 = vunpack.c.h.b16 %v439
      %v1568 = vunpack.c.l.b16 %v440
      %v1569 = vunpack.c.h.b16 %v440
      %v1570 = vunpack.c.l.b16 %v441
      %v1571 = vunpack.c.h.b16 %v441
      %v1572 = vunpack.c.l.b16 %v442
      %v1573 = vunpack.c.h.b16 %v442
      %v1574 = vunpack.c.l.b16 %v443
      %v1575 = vunpack.c.h.b16 %v443
      %v1576 = vunpack.c.l.b16 %v444
      %v1577 = vunpack.c.h.b16 %v444
      %v1578 = vunpack.c.l.b16 %v445
      %v1579 = vunpack.c.h.b16 %v445
      %v1580 = vunpack.c.l.b16 %v446
      %v1581 = vunpack.c.h.b16 %v446
      %v1582 = vunpack.c.l.b16 %v447
      %v1583 = vunpack.c.h.b16 %v447
      %v1584 = vunpack.c.l.b16 %v448
      %v1585 = vunpack.c.h.b16 %v448
      %v1586 = vunpack.c.l.b16 %v449
      %v1587 = vunpack.c.h.b16 %v449
      %v1588 = vunpack.c.l.b16 %v450
      %v1589 = vunpack.c.h.b16 %v450
      %v1590 = vunpack.c.l.b16 %v451
      %v1591 = vunpack.c.h.b16 %v451
      %v1592 = vunpack.c.l.b16 %v452
      %v1593 = vunpack.c.h.b16 %v452
      %v1594 = vunpack.c.l.b16 %v453
      %v1595 = vunpack.c.h.b16 %v453
      %v1596 = vunpack.c.l.b16 %v454
      %v1597 = vunpack.c.h.b16 %v454
      %v1598 = vunpack.c.l.b16 %v455
      %v1599 = vunpack.c.h.b16 %v455
      %v1600 = vunpack.c.l.b16 %v456
      %v1601 = vunpack.c.h.b16 %v456
      %v1602 = vunpack.c.l.b16 %v457
      %v1603 = vunpack.c.h.b16 %v457
      %v1604 = vunpack.c.l.b16 %v458
      %v1605 = vunpack.c.h.b16 %v458
      %v1606 = vunpack.c.l.b16 %v459
      %v1607 = vunpack.c.h.b16 %v459
      %v1608 = vunpack.c.l.b16 %v460
      %v1609 = vunpack.c.h.b16 %v460
      %v1610 = vunpack.c.l.b16 %v461
      %v1611 = vunpack.c.h.b16 %v461
      %v1612 = vunpack.c.l.b16 %v462
      %v1613 = vunpack.c.h.b16 %v462
      %v1614 = vunpack.c.l.b16 %v463
      %v1615 = vunpack.c.h.b16 %v463
      %v1616 = vunpack.c.l.b16 %v464
      %v1617 = vunpack.c.h.b16 %v464
      %v1618 = vunpack.c.l.b16 %v465
      %v1619 = vunpack.c.h.b16 %v465
      %v1620 = vunpack.c.l.b16 %v466
      %v1621 = vunpack.c.h.b16 %v466
      %v1622 = vunpack.c.l.b16 %v467
      %v1623 = vunpack.c.h.b16 %v467
      %v1624 = vunpack.c.l.b16 %v468
      %v1625 = vunpack.c.h.b16 %v468
      %v1626 = vunpack.c.l.b16 %v469
      %v1627 = vunpack.c.h.b16 %v469
      %v1628 = vunpack.c.l.b16 %v470
      %v1629 = vunpack.c.h.b16 %v470
      %v1630 = vunpack.c.l.b16 %v471
      %v1631 = vunpack.c.h.b16 %v471
      %v1632 = vunpack.c.l.b16 %v472
      %v1633 = vunpack.c.h.b16 %v472
      %v1634 = vunpack.c.l.b16 %v473
      %v1635 = vunpack.c.h.b16 %v473
      %v1636 = vunpack.c.l.b16 %v474
      %v1637 = vunpack.c.h.b16 %v474
      %v1638 = vunpack.c.l.b16 %v475
      %v1639 = vunpack.c.h.b16 %v475
      %v1640 = vunpack.c.l.b16 %v476
      %v1641 = vunpack.c.h.b16 %v476
      %v1642 = vunpack.c.l.b16 %v477
      %v1643 = vunpack.c.h.b16 %v477
      %v1644 = vunpack.c.l.b16 %v478
      %v1645 = vunpack.c.h.b16 %v478
      %v1646 = vunpack.c.l.b16 %v479
      %v1647 = vunpack.c.h.b16 %v479
      %v1648 = vunpack.c.l.b16 %v480
      %v1649 = vunpack.c.h.b16 %v480
      %v1650 = vunpack.c.l.b16 %v481
      %v1651 = vunpack.c.h.b16 %v481
      %v1652 = vunpack.c.l.b16 %v482
      %v1653 = vunpack.c.h.b16 %v482
      %v1654 = vunpack.c.l.b16 %v483
      %v1655 = vunpack.c.h.b16 %v483
      %v1656 = vunpack.c.l.b16 %v484
      %v1657 = vunpack.c.h.b16 %v484
      %v1658 = vunpack.c.l.b16 %v485
      %v1659 = vunpack.c.h.b16 %v485
      %v1660 = vunpack.c.l.b16 %v486
      %v1661 = vunpack.c.h.b16 %v486
      %v1662 = vunpack.c.l.b16 %v487
      %v1663 = vunpack.c.h.b16 %v487
      %v1664 = vunpack.c.l.b16 %v488
      %v1665 = vunpack.c.h.b16 %v488
      %v1666 = vunpack.c.l.b16 %v489
      %v1667 = vunpack.c.h.b16 %v489
      %v1668 = vunpack.c.l.b16 %v490
      %v1669 = vunpack.c.h.b16 %v490
      %v1670 = vunpack.c.l.b16 %v491
      %v1671 = vunpack.c.h.b16 %v491
      %v1672 = vunpack.c.l.b16 %v492
      %v1673 = vunpack.c.h.b16 %v492
      %v1674 = vunpack.c.l.b16 %v493
      %v1675 = vunpack.c.h.b16 %v493
      %v1676 = vunpack.c.l.b16 %v494
      %v1677 = vunpack.c.h.b16 %v494
      %v1678 = vunpack.c.l.b16 %v495
      %v1679 = vunpack.c.h.b16 %v495
      %v1680 = vunpack.c.l.b16 %v496
      %v1681 = vunpack.c.h.b16 %v496
      %v1682 = vunpack.c.l.b16 %v497
      %v1683 = vunpack.c.h.b16 %v497
      %v1684 = vunpack.c.l.b16 %v498
      %v1685 = vunpack.c.h.b16 %v498
      %v1686 = vunpack.c.l.b16 %v499
      %v1687 = vunpack.c.h.b16 %v499
      %v1688 = vunpack.c.l.b16 %v500
      %v1689 = vunpack.c.h.b16 %v500
      %v1690 = vunpack.c.l.b16 %v501
      %v1691 = vunpack.c.h.b16 %v501
      %v1692 = vunpack.c.l.b16 %v502
      %v1693 = vunpack.c.h.b16 %v502
      %v1694 = vunpack.c.l.b16 %v503
      %v1695 = vunpack.c.h.b16 %v503
      %v1696 = vunpack.c.l.b16 %v504
      %v1697 = vunpack.c.h.b16 %v504
      %v1698 = vunpack.c.l.b16 %v505
      %v1699 = vunpack.c.h.b16 %v505
      %v1700 = vunpack.c.l.b16 %v506
      %v1701 = vunpack.c.h.b16 %v506
      %v1702 = vunpack.c.l.b16 %v507
      %v1703 = vunpack.c.h.b16 %v507
      %v1704 = vunpack.c.l.b16 %v508
      %v1705 = vunpack.c.h.b16 %v508
      %v1706 = vunpack.c.l.b16 %v509
      %v1707 = vunpack.c.h.b16 %v509
      %v1708 = vunpack.c.l.b16 %v510
      %v1709 = vunpack.c.h.b16 %v510
      %v1710 = vunpack.c.l.b16 %v511
      %v1711 = vunpack.c.h.b16 %v511
      %v1712 = vunpack.c.l.b16 %v512
      %v1713 = vunpack.c.h.b16 %v512
      %v1714 = vunpack.c.l.b16 %v513
      %v1715 = vunpack.c.h.b16 %v513
      %v1716 = vunpack.c.l.b16 %v514
      %v1717 = vunpack.c.h.b16 %v514
      %v1718 = vunpack.c.l.b16 %v515
      %v1719 = vunpack.c.h.b16 %v515
      %v1720 = vunpack.c.l.b16 %v516
      %v1721 = vunpack.c.h.b16 %v516
      %v1722 = vunpack.c.l.b16 %v517
      %v1723 = vunpack.c.h.b16 %v517
      %v1724 = vunpack.c.l.b16 %v518
      %v1725 = vunpack.c.h.b16 %v518
      %v1726 = vunpack.c.l.b16 %v519
      %v1727 = vunpack.c.h.b16 %v519
      %v1728 = vunpack.c.l.b16 %v520
      %v1729 = vunpack.c.h.b16 %v520
      %v1730 = vunpack.c.l.b16 %v521
      %v1731 = vunpack.c.h.b16 %v521
      %v1732 = vunpack.c.l.b16 %v522
      %v1733 = vunpack.c.h.b16 %v522
      %v1734 = vunpack.c.l.b16 %v523
      %v1735 = vunpack.c.h.b16 %v523
      %v1736 = vunpack.c.l.b16 %v524
      %v1737 = vunpack.c.h.b16 %v524
      %v1738 = vunpack.c.l.b16 %v525
      %v1739 = vunpack.c.h.b16 %v525
      %v1740 = vunpack.c.l.b16 %v526
      %v1741 = vunpack.c.h.b16 %v526
      %v1742 = vunpack.c.l.b16 %v527
      %v1743 = vunpack.c.h.b16 %v527
      %v1744 = vunpack.c.l.b16 %v528
      %v1745 = vunpack.c.h.b16 %v528
      %v1746 = vunpack.c.l.b16 %v529
      %v1747 = vunpack.c.h.b16 %v529
      %v1748 = vunpack.c.l.b16 %v530
      %v1749 = vunpack.c.h.b16 %v530
      %v1750 = vunpack.c.l.b16 %v531
      %v1751 = vunpack.c.h.b16 %v531
      %v1752 = vunpack.c.l.b16 %v532
      %v1753 = vunpack.c.h.b16 %v532
      %v1754 = vunpack.c.l.b16 %v533
      %v1755 = vunpack.c.h.b16 %v533
      %v1756 = vunpack.c.l.b16 %v534
      %v1757 = vunpack.c.h.b16 %v534
      %v1758 = vunpack.c.l.b16 %v535
      %v1759 = vunpack.c.h.b16 %v535
      %v1760 = vunpack.c.l.b16 %v536
      %v1761 = vunpack.c.h.b16 %v536
      %v1762 = vunpack.c.l.b16 %v537
      %v1763 = vunpack.c.h.b16 %v537
      %v1764 = vunpack.c.l.b16 %v538
      %v1765 = vunpack.c.h.b16 %v538
      %v1766 = vunpack.c.l.b16 %v539
      %v1767 = vunpack.c.h.b16 %v539
      %v1768 = vunpack.c.l.b16 %v540
      %v1769 = vunpack.c.h.b16 %v540
      %v1770 = vunpack.c.l.b16 %v541
      %v1771 = vunpack.c.h.b16 %v541
      %v1772 = vunpack.c.l.b16 %v542
      %v1773 = vunpack.c.h.b16 %v542
      %v1774 = vunpack.c.l.b16 %v543
      %v1775 = vunpack.c.h.b16 %v543
      %v1776 = vunpack.c.l.b16 %v544
      %v1777 = vunpack.c.h.b16 %v544
      %v1778 = vunpack.c.l.b16 %v545
      %v1779 = vunpack.c.h.b16 %v545
      %v1780 = vunpack.c.l.b16 %v546
      %v1781 = vunpack.c.h.b16 %v546
      %v1782 = vunpack.c.l.b16 %v547
      %v1783 = vunpack.c.h.b16 %v547
      %v1784 = vunpack.c.l.b16 %v548
      %v1785 = vunpack.c.h.b16 %v548
      %v1786 = vunpack.c.l.b16 %v549
      %v1787 = vunpack.c.h.b16 %v549
      %v1788 = vunpack.c.l.b16 %v550
      %v1789 = vunpack.c.h.b16 %v550
      %v1790 = vunpack.c.l.b16 %v551
      %v1791 = vunpack.c.h.b16 %v551
      %v1792 = vunpack.c.l.b16 %v552
      %v1793 = vunpack.c.h.b16 %v552
      %v1794 = vunpack.c.l.b16 %v553
      %v1795 = vunpack.c.h.b16 %v553
      %v1796 = vunpack.c.l.b16 %v554
      %v1797 = vunpack.c.h.b16 %v554
      %v1798 = vunpack.c.l.b16 %v555
      %v1799 = vunpack.c.h.b16 %v555
      %v1800 = vunpack.c.l.b16 %v556
      %v1801 = vunpack.c.h.b16 %v556
      %v1802 = vunpack.c.l.b16 %v557
      %v1803 = vunpack.c.h.b16 %v557
      %v1804 = vunpack.c.l.b16 %v558
      %v1805 = vunpack.c.h.b16 %v558
      %v1806 = vunpack.c.l.b16 %v559
      %v1807 = vunpack.c.h.b16 %v559
      %v1808 = vunpack.c.l.b16 %v560
      %v1809 = vunpack.c.h.b16 %v560
      %v1810 = vunpack.c.l.b16 %v561
      %v1811 = vunpack.c.h.b16 %v561
      %v1812 = vunpack.c.l.b16 %v562
      %v1813 = vunpack.c.h.b16 %v562
      %v1814 = vunpack.c.l.b16 %v563
      %v1815 = vunpack.c.h.b16 %v563
      %v1816 = vpack.c.b16 %v1026, %v1016
      %v1817 = vpack.c.b16 %v1027, %v1017
      %v1818 = vpack.c.b16 %v1028, %v1018
      %v1819 = vpack.c.b16 %v1029, %v1019
      %v1820 = vpack.c.b16 %v1030, %v1020
      %v1821 = vpack.c.b16 %v1031, %v1021
      %v1822 = vpack.c.b16 %v1032, %v1022
      %v1823 = vpack.c.b16 %v1033, %v1023
      %v1824 = vpack.c.b16 %v1034, %v1024
      %v1825 = vpack.c.b16 %v1035, %v1025
      %v1826 = vpack.c.b16 %v1046, %v1036
      %v1827 = vpack.c.b16 %v1047, %v1037
      %v1828 = vpack.c.b16 %v1048, %v1038
      %v1829 = vpack.c.b16 %v1049, %v1039
      %v1830 = vpack.c.b16 %v1050, %v1040
      %v1831 = vpack.c.b16 %v1051, %v1041
      %v1832 = vpack.c.b16 %v1052, %v1042
      %v1833 = vpack.c.b16 %v1053, %v1043
      %v1834 = vpack.c.b16 %v1054, %v1044
      %v1835 = vpack.c.b16 %v1055, %v1045
      %v1836 = vpack.c.b16 %v1066, %v1056
      %v1837 = vpack.c.b16 %v1067, %v1057
      %v1838 = vpack.c.b16 %v1068, %v1058
      %v1839 = vpack.c.b16 %v1069, %v1059
      %v1840 = vpack.c.b16 %v1070, %v1060
      %v1841 = vpack.c.b16 %v1071, %v1061
      %v1842 = vpack.c.b16 %v1072, %v1062
      %v1843 = vpack.c.b16 %v1073, %v1063
      %v1844 = vpack.c.b16 %v1074, %v1064
      %v1845 = vpack.c.b16 %v1075, %v1065
      %v1846 = vpack.c.b16 %v1086, %v1076
      %v1847 = vpack.c.b16 %v1087, %v1077
      %v1848 = vpack.c.b16 %v1088, %v1078
      %v1849 = vpack.c.b16 %v1089, %v1079
      %v1850 = vpack.c.b16 %v1090, %v1080
      %v1851 = vpack.c.b16 %v1091, %v1081
      %v1852 = vpack.c.b16 %v1092, %v1082
      %v1853 = vpack.c.b16 %v1093, %v1083
      %v1854 = vpack.c.b16 %v1094, %v1084
      %v1855 = vpack.c.b16 %v1095, %v1085
      %v1856 = vpack.c.b16 %v1106, %v1096
      %v1857 = vpack.c.b16 %v1107, %v1097
      %v1858 = vpack.c.b16 %v1108, %v1098
      %v1859 = vpack.c.b16 %v1109, %v1099
      %v1860 = vpack.c.b16 %v1110, %v1100
      %v1861 = vpack.c.b16 %v1111, %v1101
      %v1862 = vpack.c.b16 %v1112, %v1102
      %v1863 = vpack.c.b16 %v1113, %v1103
      %v1864 = vpack.c.b16 %v1114, %v1104
      %v1865 = vpack.c.b16 %v1115, %v1105
      %v1866 = vpack.c.b16 %v1126, %v1116
      %v1867 = vpack.c.b16 %v1127, %v1117
      %v1868 = vpack.c.b16 %v1128, %v1118
      %v1869 = vpack.c.b16 %v1129, %v1119
      %v1870 = vpack.c.b16 %v1130, %v1120
      %v1871 = vpack.c.b16 %v1131, %v1121
      %v1872 = vpack.c.b16 %v1132, %v1122
      %v1873 = vpack.c.b16 %v1133, %v1123
      %v1874 = vpack.c.b16 %v1134, %v1124
      %v1875 = vpack.c.b16 %v1135, %v1125
      %v1876 = vpack.c.b16 %v1146, %v1136
      %v1877 = vpack.c.b16 %v1147, %v1137
      %v1878 = vpack.c.b16 %v1148, %v1138
      %v1879 = vpack.c.b16 %v1149, %v1139
      %v1880 = vpack.c.b16 %v1150, %v1140
      %v1881 = vpack.c.b16 %v1151, %v1141
      %v1882 = vpack.c.b16 %v1152, %v1142
      %v1883 = vpack.c.b16 %v1153, %v1143
      %v1884 = vpack.c.b16 %v1154, %v1144
      %v1885 = vpack.c.b16 %v1155, %v1145
      %v1886 = vpack.c.b16 %v1166, %v1156
      %v1887 = vpack.c.b16 %v1167, %v1157
      %v1888 = vpack.c.b16 %v1168, %v1158
      %v1889 = vpack.c.b16 %v1169, %v1159
      %v1890 = vpack.c.b16 %v1170, %v1160
      %v1891 = vpack.c.b16 %v1171, %v1161
      %v1892 = vpack.c.b16 %v1172, %v1162
      %v1893 = vpack.c.b16 %v1173, %v1163
      %v1894 = vpack.c.b16 %v1174, %v1164
      %v1895 = vpack.c.b16 %v1175, %v1165
      %v1896 = vpack.c.b16 %v1186, %v1176
      %v1897 = vpack.c.b16 %v1187, %v1177
      %v1898 = vpack.c.b16 %v1188, %v1178
      %v1899 = vpack.c.b16 %v1189, %v1179
      %v1900 = vpack.c.b16 %v1190, %v1180
      %v1901 = vpack.c.b16 %v1191, %v1181
      %v1902 = vpack.c.b16 %v1192, %v1182
      %v1903 = vpack.c.b16 %v1193, %v1183
      %v1904 = vpack.c.b16 %v1194, %v1184
      %v1905 = vpack.c.b16 %v1195, %v1185
      %v1906 = vpack.c.b16 %v1206, %v1196
      %v1907 = vpack.c.b16 %v1207, %v1197
      %v1908 = vpack.c.b16 %v1208, %v1198
      %v1909 = vpack.c.b16 %v1209, %v1199
      %v1910 = vpack.c.b16 %v1210, %v1200
      %v1911 = vpack.c.b16 %v1211, %v1201
      %v1912 = vpack.c.b16 %v1212, %v1202
      %v1913 = vpack.c.b16 %v1213, %v1203
      %v1914 = vpack.c.b16 %v1214, %v1204
      %v1915 = vpack.c.b16 %v1215, %v1205
      %v1916 = vpack.c.b16 %v1226, %v1216
      %v1917 = vpack.c.b16 %v1227, %v1217
      %v1918 = vpack.c.b16 %v1228, %v1218
      %v1919 = vpack.c.b16 %v1229, %v1219
      %v1920 = vpack.c.b16 %v1230, %v1220
      %v1921 = vpack.c.b16 %v1231, %v1221
      %v1922 = vpack.c.b16 %v1232, %v1222
      %v1923 = vpack.c.b16 %v1233, %v1223
      %v1924 = vpack.c.b16 %v1234, %v1224
      %v1925 = vpack.c.b16 %v1235, %v1225
      %v1926 = vpack.c.b16 %v1246, %v1236
      %v1927 = vpack.c.b16 %v1247, %v1237
      %v1928 = vpack.c.b16 %v1248, %v1238
      %v1929 = vpack.c.b16 %v1249, %v1239
      %v1930 = vpack.c.b16 %v1250, %v1240
      %v1931 = vpack.c.b16 %v1251, %v1241
      %v1932 = vpack.c.b16 %v1252, %v1242
      %v1933 = vpack.c.b16 %v1253, %v1243
      %v1934 = vpack.c.b16 %v1254, %v1244
      %v1935 = vpack.c.b16 %v1255, %v1245
      %v1936 = vpack.c.b16 %v1266, %v1256
      %v1937 = vpack.c.b16 %v1267, %v1257
      %v1938 = vpack.c.b16 %v1268, %v1258
      %v1939 = vpack.c.b16 %v1269, %v1259
      %v1940 = vpack.c.b16 %v1270, %v1260
      %v1941 = vpack.c.b16 %v1271, %v1261
      %v1942 = vpack.c.b16 %v1272, %v1262
      %v1943 = vpack.c.b16 %v1273, %v1263
      %v1944 = vpack.c.b16 %v1274, %v1264
      %v1945 = vpack.c.b16 %v1275, %v1265
      %v1946 = vpack.c.b16 %v1286, %v1276
      %v1947 = vpack.c.b16 %v1287, %v1277
      %v1948 = vpack.c.b16 %v1288, %v1278
      %v1949 = vpack.c.b16 %v1289, %v1279
      %v1950 = vpack.c.b16 %v1290, %v1280
      %v1951 = vpack.c.b16 %v1291, %v1281
      %v1952 = vpack.c.b16 %v1292, %v1282
      %v1953 = vpack.c.b16 %v1293, %v1283
      %v1954 = vpack.c.b16 %v1294, %v1284
      %v1955 = vpack.c.b16 %v1295, %v1285
      %v1956 = vpack.c.b16 %v1306, %v1296
      %v1957 = vpack.c.b16 %v1307, %v1297
      %v1958 = vpack.c.b16 %v1308, %v1298
      %v1959 = vpack.c.b16 %v1309, %v1299
      %v1960 = vpack.c.b16 %v1310, %v1300
      %v1961 = vpack.c.b16 %v1311, %v1301
      %v1962 = vpack.c.b16 %v1312, %v1302
      %v1963 = vpack.c.b16 %v1313, %v1303
      %v1964 = vpack.c.b16 %v1314, %v1304
      %v1965 = vpack.c.b16 %v1315, %v1305
      %v1966 = vpack.c.b16 %v1326, %v1316
      %v1967 = vpack.c.b16 %v1327, %v1317
      %v1968 = vpack.c.b16 %v1328, %v1318
      %v1969 = vpack.c.b16 %v1329, %v1319
      %v1970 = vpack.c.b16 %v1330, %v1320
      %v1971 = vpack.c.b16 %v1331, %v1321
      %v1972 = vpack.c.b16 %v1332, %v1322
      %v1973 = vpack.c.b16 %v1333, %v1323
      %v1974 = vpack.c.b16 %v1334, %v1324
      %v1975 = vpack.c.b16 %v1335, %v1325
      %v1976 = vpack.c.b16 %v1346, %v1336
      %v1977 = vpack.c.b16 %v1347, %v1337
      %v1978 = vpack.c.b16 %v1348, %v1338
      %v1979 = vpack.c.b16 %v1349, %v1339
      %v1980 = vpack.c.b16 %v1350, %v1340
      %v1981 = vpack.c.b16 %v1351, %v1341
      %v1982 = vpack.c.b16 %v1352, %v1342
      %v1983 = vpack.c.b16 %v1353, %v1343
      %v1984 = vpack.c.b16 %v1354, %v1344
      %v1985 = vpack.c.b16 %v1355, %v1345
      %v1986 = vpack.c.b16 %v1366, %v1356
      %v1987 = vpack.c.b16 %v1367, %v1357
      %v1988 = vpack.c.b16 %v1368, %v1358
      %v1989 = vpack.c.b16 %v1369, %v1359
      %v1990 = vpack.c.b16 %v1370, %v1360
      %v1991 = vpack.c.b16 %v1371, %v1361
      %v1992 = vpack.c.b16 %v1372, %v1362
      %v1993 = vpack.c.b16 %v1373, %v1363
      %v1994 = vpack.c.b16 %v1374, %v1364
      %v1995 = vpack.c.b16 %v1375, %v1365
      %v1996 = vpack.c.b16 %v1386, %v1376
      %v1997 = vpack.c.b16 %v1387, %v1377
      %v1998 = vpack.c.b16 %v1388, %v1378
      %v1999 = vpack.c.b16 %v1389, %v1379
      %v2000 = vpack.c.b16 %v1390, %v1380
      %v2001 = vpack.c.b16 %v1391, %v1381
      %v2002 = vpack.c.b16 %v1392, %v1382
      %v2003 = vpack.c.b16 %v1393, %v1383
      %v2004 = vpack.c.b16 %v1394, %v1384
      %v2005 = vpack.c.b16 %v1395, %v1385
      %v2006 = vpack.c.b16 %v1406, %v1396
      %v2007 = vpack.c.b16 %v1407, %v1397
      %v2008 = vpack.c.b16 %v1408, %v1398
      %v2009 = vpack.c.b16 %v1409, %v1399
      %v2010 = vpack.c.b16 %v1410, %v1400
      %v2011 = vpack.c.b16 %v1411, %v1401
      %v2012 = vpack.c.b16 %v1412, %v1402
      %v2013 = vpack.c.b16 %v1413, %v1403
      %v2014 = vpack.c.b16 %v1414, %v1404
      %v2015 = vpack.c.b16 %v1415, %v1405
      %v2016 = vpack.c.b16 %v1426, %v1416
      %v2017 = vpack.c.b16 %v1427, %v1417
      %v2018 = vpack.c.b16 %v1428, %v1418
      %v2019 = vpack.c.b16 %v1429, %v1419
      %v2020 = vpack.c.b16 %v1430, %v1420
      %v2021 = vpack.c.b16 %v1431, %v1421
      %v2022 = vpack.c.b16 %v1432, %v1422
      %v2023 = vpack.c.b16 %v1433, %v1423
      %v2024 = vpack.c.b16 %v1434, %v1424
      %v2025 = vpack.c.b16 %v1435, %v1425
      %v2026 = vpack.c.b16 %v1446, %v1436
      %v2027 = vpack.c.b16 %v1447, %v1437
      %v2028 = vpack.c.b16 %v1448, %v1438
      %v2029 = vpack.c.b16 %v1449, %v1439
      %v2030 = vpack.c.b16 %v1450, %v1440
      %v2031 = vpack.c.b16 %v1451, %v1441
      %v2032 = vpack.c.b16 %v1452, %v1442
      %v2033 = vpack.c.b16 %v1453, %v1443
      %v2034 = vpack.c.b16 %v1454, %v1444
      %v2035 = vpack.c.b16 %v1455, %v1445
      %v2036 = vpack.c.b16 %v1466, %v1456
      %v2037 = vpack.c.b16 %v1467, %v1457
      %v2038 = vpack.c.b16 %v1468, %v1458
      %v2039 = vpack.c.b16 %v1469, %v1459
      %v2040 = vpack.c.b16 %v1470, %v1460
      %v2041 = vpack.c.b16 %v1471, %v1461
      %v2042 = vpack.c.b16 %v1472, %v1462
      %v2043 = vpack.c.b16 %v1473, %v1463
      %v2044 = vpack.c.b16 %v1474, %v1464
      %v2045 = vpack.c.b16 %v1475, %v1465
      %v2046 = vpack.c.b16 %v1486, %v1476
      %v2047 = vpack.c.b16 %v1487, %v1477
      %v2048 = vpack.c.b16 %v1488, %v1478
      %v2049 = vpack.c.b16 %v1489, %v1479
      %v2050 = vpack.c.b16 %v1490, %v1480
      %v2051 = vpack.c.b16 %v1491, %v1481
      %v2052 = vpack.c.b16 %v1492, %v1482
      %v2053 = vpack.c.b16 %v1493, %v1483
      %v2054 = vpack.c.b16 %v1494, %v1484
      %v2055 = vpack.c.b16 %v1495, %v1485
      %v2056 = vpack.c.b16 %v1506, %v1496
      %v2057 = vpack.c.b16 %v1507, %v1497
      %v2058 = vpack.c.b16 %v1508, %v1498
      %v2059 = vpack.c.b16 %v1509, %v1499
      %v2060 = vpack.c.b16 %v1510, %v1500
      %v2061 = vpack.c.b16 %v1511, %v1501
      %v2062 = vpack.c.b16 %v1512, %v1502
      %v2063 = vpack.c.b16 %v1513, %v1503
      %v2064 = vpack.c.b16 %v1514, %v1504
      %v2065 = vpack.c.b16 %v1515, %v1505
      %v2066 = vpack.c.b16 %v1526, %v1516
      %v2067 = vpack.c.b16 %v1527, %v1517
      %v2068 = vpack.c.b16 %v1528, %v1518
      %v2069 = vpack.c.b16 %v1529, %v1519
      %v2070 = vpack.c.b16 %v1530, %v1520
      %v2071 = vpack.c.b16 %v1531, %v1521
      %v2072 = vpack.c.b16 %v1532, %v1522
      %v2073 = vpack.c.b16 %v1533, %v1523
      %v2074 = vpack.c.b16 %v1534, %v1524
      %v2075 = vpack.c.b16 %v1535, %v1525
      %v2076 = vpack.c.b16 %v1546, %v1536
      %v2077 = vpack.c.b16 %v1547, %v1537
      %v2078 = vpack.c.b16 %v1548, %v1538
      %v2079 = vpack.c.b16 %v1549, %v1539
      %v2080 = vpack.c.b16 %v1550, %v1540
      %v2081 = vpack.c.b16 %v1551, %v1541
      %v2082 = vpack.c.b16 %v1552, %v1542
      %v2083 = vpack.c.b16 %v1553, %v1543
      %v2084 = vpack.c.b16 %v1554, %v1544
      %v2085 = vpack.c.b16 %v1555, %v1545
      %v2086 = vpack.c.b16 %v1566, %v1556
      %v2087 = vpack.c.b16 %v1567, %v1557
      %v2088 = vpack.c.b16 %v1568, %v1558
      %v2089 = vpack.c.b16 %v1569, %v1559
      %v2090 = vpack.c.b16 %v1570, %v1560
      %v2091 = vpack.c.b16 %v1571, %v1561
      %v2092 = vpack.c.b16 %v1572, %v1562
      %v2093 = vpack.c.b16 %v1573, %v1563
      %v2094 = vpack.c.b16 %v1574, %v1564
      %v2095 = vpack.c.b16 %v1575, %v1565
      %v2096 = vpack.c.b16 %v1586, %v1576
      %v2097 = vpack.c.b16 %v1587, %v1577
      %v2098 = vpack.c.b16 %v1588, %v1578
      %v2099 = vpack.c.b16 %v1589, %v1579
      %v2100 = vpack.c.b16 %v1590, %v1580
      %v2101 = vpack.c.b16 %v1591, %v1581
      %v2102 = vpack.c.b16 %v1592, %v1582
      %v2103 = vpack.c.b16 %v1593, %v1583
      %v2104 = vpack.c.b16 %v1594, %v1584
      %v2105 = vpack.c.b16 %v1595, %v1585
      %v2106 = vpack.c.b16 %v1606, %v1596
      %v2107 = vpack.c.b16 %v1607, %v1597
      %v2108 = vpack.c.b16 %v1608, %v1598
      %v2109 = vpack.c.b16 %v1609, %v1599
      %v2110 = vpack.c.b16 %v1610, %v1600
      %v2111 = vpack.c.b16 %v1611, %v1601
      %v2112 = vpack.c.b16 %v1612, %v1602
      %v2113 = vpack.c.b16 %v1613, %v1603
      %v2114 = vpack.c.b16 %v1614, %v1604
      %v2115 = vpack.c.b16 %v1615, %v1605
      %v2116 = vpack.c.b16 %v1626, %v1616
      %v2117 = vpack.c.b16 %v1627, %v1617
      %v2118 = vpack.c.b16 %v1628, %v1618
      %v2119 = vpack.c.b16 %v1629, %v1619
      %v2120 = vpack.c.b16 %v1630, %v1620
      %v2121 = vpack.c.b16 %v1631, %v1621
      %v2122 = vpack.c.b16 %v1632, %v1622
      %v2123 = vpack.c.b16 %v1633, %v1623
      %v2124 = vpack.c.b16 %v1634, %v1624
      %v2125 = vpack.c.b16 %v1635, %v1625
      %v2126 = vpack.c.b16 %v1646, %v1636
      %v2127 = vpack.c.b16 %v1647, %v1637
      %v2128 = vpack.c.b16 %v1648, %v1638
      %v2129 = vpack.c.b16 %v1649, %v1639
      %v2130 = vpack.c.b16 %v1650, %v1640
      %v2131 = vpack.c.b16 %v1651, %v1641
      %v2132 = vpack.c.b16 %v1652, %v1642
      %v2133 = vpack.c.b16 %v1653, %v1643
      %v2134 = vpack.c.b16 %v1654, %v1644
      %v2135 = vpack.c.b16 %v1655, %v1645
      %v2136 = vpack.c.b16 %v1666, %v1656
      %v2137 = vpack.c.b16 %v1667, %v1657
      %v2138 = vpack.c.b16 %v1668, %v1658
      %v2139 = vpack.c.b16 %v1669, %v1659
      %v2140 = vpack.c.b16 %v1670, %v1660
      %v2141 = vpack.c.b16 %v1671, %v1661
      %v2142 = vpack.c.b16 %v1672, %v1662
      %v2143 = vpack.c.b16 %v1673, %v1663
      %v2144 = vpack.c.b16 %v1674, %v1664
      %v2145 = vpack.c.b16 %v1675, %v1665
      %v2146 = vpack.c.b16 %v1686, %v1676
      %v2147 = vpack.c.b16 %v1687, %v1677
      %v2148 = vpack.c.b16 %v1688, %v1678
      %v2149 = vpack.c.b16 %v1689, %v1679
      %v2150 = vpack.c.b16 %v1690, %v1680
      %v2151 = vpack.c.b16 %v1691, %v1681
      %v2152 = vpack.c.b16 %v1692, %v1682
      %v2153 = vpack.c.b16 %v1693, %v1683
      %v2154 = vpack.c.b16 %v1694, %v1684
      %v2155 = vpack.c.b16 %v1695, %v1685
      %v2156 = vpack.c.b16 %v1706, %v1696
      %v2157 = vpack.c.b16 %v1707, %v1697
      %v2158 = vpack.c.b16 %v1708, %v1698
      %v2159 = vpack.c.b16 %v1709, %v1699
      %v2160 = vpack.c.b16 %v1710, %v1700
      %v2161 = vpack.c.b16 %v1711, %v1701
      %v2162 = vpack.c.b16 %v1712, %v1702
      %v2163 = vpack.c.b16 %v1713, %v1703
      %v2164 = vpack.c.b16 %v1714, %v1704
      %v2165 = vpack.c.b16 %v1715, %v1705
      %v2166 = vpack.c.b16 %v1726, %v1716
      %v2167 = vpack.c.b16 %v1727, %v1717
      %v2168 = vpack.c.b16 %v1728, %v1718
      %v2169 = vpack.c.b16 %v1729, %v1719
      %v2170 = vpack.c.b16 %v1730, %v1720
      %v2171 = vpack.c.b16 %v1731, %v1721
      %v2172 = vpack.c.b16 %v1732, %v1722
      %v2173 = vpack.c.b16 %v1733, %v1723
      %v2174 = vpack.c.b16 %v1734, %v1724
      %v2175 = vpack.c.b16 %v1735, %v1725
      %v2176 = vpack.c.b16 %v1746, %v1736
      %v2177 = vpack.c.b16 %v1747, %v1737
      %v2178 = vpack.c.b16 %v1748, %v1738
      %v2179 = vpack.c.b16 %v1749, %v1739
      %v2180 = vpack.c.b16 %v1750, %v1740
      %v2181 = vpack.c.b16 %v1751, %v1741
      %v2182 = vpack.c.b16 %v1752, %v1742
      %v2183 = vpack.c.b16 %v1753, %v1743
      %v2184 = vpack.c.b16 %v1754, %v1744
      %v2185 = vpack.c.b16 %v1755, %v1745
      %v2186 = vpack.c.b16 %v1766, %v1756
      %v2187 = vpack.c.b16 %v1767, %v1757
      %v2188 = vpack.c.b16 %v1768, %v1758
      %v2189 = vpack.c.b16 %v1769, %v1759
      %v2190 = vpack.c.b16 %v1770, %v1760
      %v2191 = vpack.c.b16 %v1771, %v1761
      %v2192 = vpack.c.b16 %v1772, %v1762
      %v2193 = vpack.c.b16 %v1773, %v1763
      %v2194 = vpack.c.b16 %v1774, %v1764
      %v2195 = vpack.c.b16 %v1775, %v1765
      %v2196 = vpack.c.b16 %v1786, %v1776
      %v2197 = vpack.c.b16 %v1787, %v1777
      %v2198 = vpack.c.b16 %v1788, %v1778
      %v2199 = vpack.c.b16 %v1789, %v1779
      %v2200 = vpack.c.b16 %v1790, %v1780
      %v2201 = vpack.c.b16 %v1791, %v1781
      %v2202 = vpack.c.b16 %v1792, %v1782
      %v2203 = vpack.c.b16 %v1793, %v1783
      %v2204 = vpack.c.b16 %v1794, %v1784
      %v2205 = vpack.c.b16 %v1795, %v1785
      %v2206 = vpack.c.b16 %v1806, %v1796
      %v2207 = vpack.c.b16 %v1807, %v1797
      %v2208 = vpack.c.b16 %v1808, %v1798
      %v2209 = vpack.c.b16 %v1809, %v1799
      %v2210 = vpack.c.b16 %v1810, %v1800
      %v2211 = vpack.c.b16 %v1811, %v1801
      %v2212 = vpack.c.b16 %v1812, %v1802
      %v2213 = vpack.c.b16 %v1813, %v1803
      %v2214 = vpack.c.b16 %v1814, %v1804
      %v2215 = vpack.c.b16 %v1815, %v1805
      %2616 = vmatpush.bf16.msra.mxu0 %v1886
      %2617 = vmatpush.bf16.msra.mxu0 %v1876
      %2618 = vmatpush.bf16.msra.mxu0 %v1866
      %2619 = vmatpush.bf16.msra.mxu0 %v1856
      %2620 = vmatpush.bf16.msra.mxu0 %v1846
      %2621 = vmatpush.bf16.msra.mxu0 %v1836
      %2622 = vmatpush.bf16.msra.mxu0 %v1826
      %2623 = vmatpush.bf16.msra.mxu0 %v1816
      %2624 = vmatmul.bf16.gmra.mxu0 %v596
      %v2625 = vpop.f32.mrf.mxu0
      %v2626 = vadd.f32 0.0, %v2625
      %v2627 = vpop.f32.mrf.mxu0
      %v2628 = vadd.f32 0.0, %v2627
      %2629 = vmatmul.bf16.gmra.mxu0 %v601
      %v2630 = vpop.f32.mrf.mxu0
      %v2631 = vadd.f32 0.0, %v2630
      %v2632 = vpop.f32.mrf.mxu0
      %v2633 = vadd.f32 0.0, %v2632
      %2634 = vdwg.mxu0
      %2635 = vmatpush.bf16.msra.mxu0 %v1966
      %2636 = vmatpush.bf16.msra.mxu0 %v1956
      %2637 = vmatpush.bf16.msra.mxu0 %v1946
      %2638 = vmatpush.bf16.msra.mxu0 %v1936
      %2639 = vmatpush.bf16.msra.mxu0 %v1926
      %2640 = vmatpush.bf16.msra.mxu0 %v1916
      %2641 = vmatpush.bf16.msra.mxu0 %v1906
      %2642 = vmatpush.bf16.msra.mxu0 %v1896
      %2643 = vmatmul.bf16.gmra.mxu0 %v597
      %v2644 = vpop.f32.mrf.mxu0
      %v2645 = vadd.f32 %v2626, %v2644
      %v2646 = vpop.f32.mrf.mxu0
      %v2647 = vadd.f32 %v2628, %v2646
      %2648 = vmatmul.bf16.gmra.mxu0 %v602
      %v2649 = vpop.f32.mrf.mxu0
      %v2650 = vadd.f32 %v2631, %v2649
      %v2651 = vpop.f32.mrf.mxu0
      %v2652 = vadd.f32 %v2633, %v2651
      %2653 = vdwg.mxu0
      %2654 = vmatpush.bf16.msra.mxu0 %v2046
      %2655 = vmatpush.bf16.msra.mxu0 %v2036
      %2656 = vmatpush.bf16.msra.mxu0 %v2026
      %2657 = vmatpush.bf16.msra.mxu0 %v2016
      %2658 = vmatpush.bf16.msra.mxu0 %v2006
      %2659 = vmatpush.bf16.msra.mxu0 %v1996
      %2660 = vmatpush.bf16.msra.mxu0 %v1986
      %2661 = vmatpush.bf16.msra.mxu0 %v1976
      %2662 = vmatmul.bf16.gmra.mxu0 %v598
      %v2663 = vpop.f32.mrf.mxu0
      %v2664 = vadd.f32 %v2645, %v2663
      %v2665 = vpop.f32.mrf.mxu0
      %v2666 = vadd.f32 %v2647, %v2665
      %2667 = vmatmul.bf16.gmra.mxu0 %v603
      %v2668 = vpop.f32.mrf.mxu0
      %v2669 = vadd.f32 %v2650, %v2668
      %v2670 = vpop.f32.mrf.mxu0
      %v2671 = vadd.f32 %v2652, %v2670
      %2672 = vdwg.mxu0
      %2673 = vmatpush.bf16.msra.mxu0 %v2126
      %2674 = vmatpush.bf16.msra.mxu0 %v2116
      %2675 = vmatpush.bf16.msra.mxu0 %v2106
      %2676 = vmatpush.bf16.msra.mxu0 %v2096
      %2677 = vmatpush.bf16.msra.mxu0 %v2086
      %2678 = vmatpush.bf16.msra.mxu0 %v2076
      %2679 = vmatpush.bf16.msra.mxu0 %v2066
      %2680 = vmatpush.bf16.msra.mxu0 %v2056
      %2681 = vmatmul.bf16.gmra.mxu0 %v599
      %v2682 = vpop.f32.mrf.mxu0
      %v2683 = vadd.f32 %v2664, %v2682
      %v2684 = vpop.f32.mrf.mxu0
      %v2685 = vadd.f32 %v2666, %v2684
      %2686 = vmatmul.bf16.gmra.mxu0 %v604
      %v2687 = vpop.f32.mrf.mxu0
      %v2688 = vadd.f32 %v2669, %v2687
      %v2689 = vpop.f32.mrf.mxu0
      %v2690 = vadd.f32 %v2671, %v2689
      %2691 = vdwg.mxu0
      %2692 = vmatpush.bf16.msra.mxu0 %v2206
      %2693 = vmatpush.bf16.msra.mxu0 %v2196
      %2694 = vmatpush.bf16.msra.mxu0 %v2186
      %2695 = vmatpush.bf16.msra.mxu0 %v2176
      %2696 = vmatpush.bf16.msra.mxu0 %v2166
      %2697 = vmatpush.bf16.msra.mxu0 %v2156
      %2698 = vmatpush.bf16.msra.mxu0 %v2146
      %2699 = vmatpush.bf16.msra.mxu0 %v2136
      %2700 = vmatmul.bf16.gmra.mxu0 %v600
      %v2701 = vpop.f32.mrf.mxu0
      %v2702 = vadd.f32 %v2683, %v2701
      %v2703 = vpop.f32.mrf.mxu0
      %v2704 = vadd.f32 %v2685, %v2703
      %2705 = vmatmul.bf16.gmra.mxu0 %v605
      %v2706 = vpop.f32.mrf.mxu0
      %v2707 = vadd.f32 %v2688, %v2706
      %v2708 = vpop.f32.mrf.mxu0
      %v2709 = vadd.f32 %v2690, %v2708
      %2710 = vdwg.mxu0
      %2711 = vmatpush.bf16.msra.mxu0 %v1887
      %2712 = vmatpush.bf16.msra.mxu0 %v1877
      %2713 = vmatpush.bf16.msra.mxu0 %v1867
      %2714 = vmatpush.bf16.msra.mxu0 %v1857
      %2715 = vmatpush.bf16.msra.mxu0 %v1847
      %2716 = vmatpush.bf16.msra.mxu0 %v1837
      %2717 = vmatpush.bf16.msra.mxu0 %v1827
      %2718 = vmatpush.bf16.msra.mxu0 %v1817
      %2719 = vmatmul.bf16.gmra.mxu0 %v596
      %v2720 = vpop.f32.mrf.mxu0
      %v2721 = vadd.f32 0.0, %v2720
      %v2722 = vpop.f32.mrf.mxu0
      %v2723 = vadd.f32 0.0, %v2722
      %2724 = vmatmul.bf16.gmra.mxu0 %v601
      %v2725 = vpop.f32.mrf.mxu0
      %v2726 = vadd.f32 0.0, %v2725
      %v2727 = vpop.f32.mrf.mxu0
      %v2728 = vadd.f32 0.0, %v2727
      %2729 = vdwg.mxu0
      %2730 = vmatpush.bf16.msra.mxu0 %v1967
      %2731 = vmatpush.bf16.msra.mxu0 %v1957
      %2732 = vmatpush.bf16.msra.mxu0 %v1947
      %2733 = vmatpush.bf16.msra.mxu0 %v1937
      %2734 = vmatpush.bf16.msra.mxu0 %v1927
      %2735 = vmatpush.bf16.msra.mxu0 %v1917
      %2736 = vmatpush.bf16.msra.mxu0 %v1907
      %2737 = vmatpush.bf16.msra.mxu0 %v1897
      %2738 = vmatmul.bf16.gmra.mxu0 %v597
      %v2739 = vpop.f32.mrf.mxu0
      %v2740 = vadd.f32 %v2721, %v2739
      %v2741 = vpop.f32.mrf.mxu0
      %v2742 = vadd.f32 %v2723, %v2741
      %2743 = vmatmul.bf16.gmra.mxu0 %v602
      %v2744 = vpop.f32.mrf.mxu0
      %v2745 = vadd.f32 %v2726, %v2744
      %v2746 = vpop.f32.mrf.mxu0
      %v2747 = vadd.f32 %v2728, %v2746
      %2748 = vdwg.mxu0
      %2749 = vmatpush.bf16.msra.mxu0 %v2047
      %2750 = vmatpush.bf16.msra.mxu0 %v2037
      %2751 = vmatpush.bf16.msra.mxu0 %v2027
      %2752 = vmatpush.bf16.msra.mxu0 %v2017
      %2753 = vmatpush.bf16.msra.mxu0 %v2007
      %2754 = vmatpush.bf16.msra.mxu0 %v1997
      %2755 = vmatpush.bf16.msra.mxu0 %v1987
      %2756 = vmatpush.bf16.msra.mxu0 %v1977
      %2757 = vmatmul.bf16.gmra.mxu0 %v598
      %v2758 = vpop.f32.mrf.mxu0
      %v2759 = vadd.f32 %v2740, %v2758
      %v2760 = vpop.f32.mrf.mxu0
      %v2761 = vadd.f32 %v2742, %v2760
      %2762 = vmatmul.bf16.gmra.mxu0 %v603
      %v2763 = vpop.f32.mrf.mxu0
      %v2764 = vadd.f32 %v2745, %v2763
      %v2765 = vpop.f32.mrf.mxu0
      %v2766 = vadd.f32 %v2747, %v2765
      %2767 = vdwg.mxu0
      %2768 = vmatpush.bf16.msra.mxu0 %v2127
      %2769 = vmatpush.bf16.msra.mxu0 %v2117
      %2770 = vmatpush.bf16.msra.mxu0 %v2107
      %2771 = vmatpush.bf16.msra.mxu0 %v2097
      %2772 = vmatpush.bf16.msra.mxu0 %v2087
      %2773 = vmatpush.bf16.msra.mxu0 %v2077
      %2774 = vmatpush.bf16.msra.mxu0 %v2067
      %2775 = vmatpush.bf16.msra.mxu0 %v2057
      %2776 = vmatmul.bf16.gmra.mxu0 %v599
      %v2777 = vpop.f32.mrf.mxu0
      %v2778 = vadd.f32 %v2759, %v2777
      %v2779 = vpop.f32.mrf.mxu0
      %v2780 = vadd.f32 %v2761, %v2779
      %2781 = vmatmul.bf16.gmra.mxu0 %v604
      %v2782 = vpop.f32.mrf.mxu0
      %v2783 = vadd.f32 %v2764, %v2782
      %v2784 = vpop.f32.mrf.mxu0
      %v2785 = vadd.f32 %v2766, %v2784
      %2786 = vdwg.mxu0
      %2787 = vmatpush.bf16.msra.mxu0 %v2207
      %2788 = vmatpush.bf16.msra.mxu0 %v2197
      %2789 = vmatpush.bf16.msra.mxu0 %v2187
      %2790 = vmatpush.bf16.msra.mxu0 %v2177
      %2791 = vmatpush.bf16.msra.mxu0 %v2167
      %2792 = vmatpush.bf16.msra.mxu0 %v2157
      %2793 = vmatpush.bf16.msra.mxu0 %v2147
      %2794 = vmatpush.bf16.msra.mxu0 %v2137
      %2795 = vmatmul.bf16.gmra.mxu0 %v600
      %v2796 = vpop.f32.mrf.mxu0
      %v2797 = vadd.f32 %v2778, %v2796
      %v2798 = vpop.f32.mrf.mxu0
      %v2799 = vadd.f32 %v2780, %v2798
      %2800 = vmatmul.bf16.gmra.mxu0 %v605
      %v2801 = vpop.f32.mrf.mxu0
      %v2802 = vadd.f32 %v2783, %v2801
      %v2803 = vpop.f32.mrf.mxu0
      %v2804 = vadd.f32 %v2785, %v2803
      %2805 = vdwg.mxu0
      %2806 = vmatpush.bf16.msra.mxu0 %v1888
      %2807 = vmatpush.bf16.msra.mxu0 %v1878
      %2808 = vmatpush.bf16.msra.mxu0 %v1868
      %2809 = vmatpush.bf16.msra.mxu0 %v1858
      %2810 = vmatpush.bf16.msra.mxu0 %v1848
      %2811 = vmatpush.bf16.msra.mxu0 %v1838
      %2812 = vmatpush.bf16.msra.mxu0 %v1828
      %2813 = vmatpush.bf16.msra.mxu0 %v1818
      %2814 = vmatmul.bf16.gmra.mxu0 %v596
      %v2815 = vpop.f32.mrf.mxu0
      %v2816 = vadd.f32 0.0, %v2815
      %v2817 = vpop.f32.mrf.mxu0
      %v2818 = vadd.f32 0.0, %v2817
      %2819 = vmatmul.bf16.gmra.mxu0 %v601
      %v2820 = vpop.f32.mrf.mxu0
      %v2821 = vadd.f32 0.0, %v2820
      %v2822 = vpop.f32.mrf.mxu0
      %v2823 = vadd.f32 0.0, %v2822
      %2824 = vdwg.mxu0
      %2825 = vmatpush.bf16.msra.mxu0 %v1968
      %2826 = vmatpush.bf16.msra.mxu0 %v1958
      %2827 = vmatpush.bf16.msra.mxu0 %v1948
      %2828 = vmatpush.bf16.msra.mxu0 %v1938
      %2829 = vmatpush.bf16.msra.mxu0 %v1928
      %2830 = vmatpush.bf16.msra.mxu0 %v1918
      %2831 = vmatpush.bf16.msra.mxu0 %v1908
      %2832 = vmatpush.bf16.msra.mxu0 %v1898
      %2833 = vmatmul.bf16.gmra.mxu0 %v597
      %v2834 = vpop.f32.mrf.mxu0
      %v2835 = vadd.f32 %v2816, %v2834
      %v2836 = vpop.f32.mrf.mxu0
      %v2837 = vadd.f32 %v2818, %v2836
      %2838 = vmatmul.bf16.gmra.mxu0 %v602
      %v2839 = vpop.f32.mrf.mxu0
      %v2840 = vadd.f32 %v2821, %v2839
      %v2841 = vpop.f32.mrf.mxu0
      %v2842 = vadd.f32 %v2823, %v2841
      %2843 = vdwg.mxu0
      %2844 = vmatpush.bf16.msra.mxu0 %v2048
      %2845 = vmatpush.bf16.msra.mxu0 %v2038
      %2846 = vmatpush.bf16.msra.mxu0 %v2028
      %2847 = vmatpush.bf16.msra.mxu0 %v2018
      %2848 = vmatpush.bf16.msra.mxu0 %v2008
      %2849 = vmatpush.bf16.msra.mxu0 %v1998
      %2850 = vmatpush.bf16.msra.mxu0 %v1988
      %2851 = vmatpush.bf16.msra.mxu0 %v1978
      %2852 = vmatmul.bf16.gmra.mxu0 %v598
      %v2853 = vpop.f32.mrf.mxu0
      %v2854 = vadd.f32 %v2835, %v2853
      %v2855 = vpop.f32.mrf.mxu0
      %v2856 = vadd.f32 %v2837, %v2855
      %2857 = vmatmul.bf16.gmra.mxu0 %v603
      %v2858 = vpop.f32.mrf.mxu0
      %v2859 = vadd.f32 %v2840, %v2858
      %v2860 = vpop.f32.mrf.mxu0
      %v2861 = vadd.f32 %v2842, %v2860
      %2862 = vdwg.mxu0
      %2863 = vmatpush.bf16.msra.mxu0 %v2128
      %2864 = vmatpush.bf16.msra.mxu0 %v2118
      %2865 = vmatpush.bf16.msra.mxu0 %v2108
      %2866 = vmatpush.bf16.msra.mxu0 %v2098
      %2867 = vmatpush.bf16.msra.mxu0 %v2088
      %2868 = vmatpush.bf16.msra.mxu0 %v2078
      %2869 = vmatpush.bf16.msra.mxu0 %v2068
      %2870 = vmatpush.bf16.msra.mxu0 %v2058
      %2871 = vmatmul.bf16.gmra.mxu0 %v599
      %v2872 = vpop.f32.mrf.mxu0
      %v2873 = vadd.f32 %v2854, %v2872
      %v2874 = vpop.f32.mrf.mxu0
      %v2875 = vadd.f32 %v2856, %v2874
      %2876 = vmatmul.bf16.gmra.mxu0 %v604
      %v2877 = vpop.f32.mrf.mxu0
      %v2878 = vadd.f32 %v2859, %v2877
      %v2879 = vpop.f32.mrf.mxu0
      %v2880 = vadd.f32 %v2861, %v2879
      %2881 = vdwg.mxu0
      %2882 = vmatpush.bf16.msra.mxu0 %v2208
      %2883 = vmatpush.bf16.msra.mxu0 %v2198
      %2884 = vmatpush.bf16.msra.mxu0 %v2188
      %2885 = vmatpush.bf16.msra.mxu0 %v2178
      %2886 = vmatpush.bf16.msra.mxu0 %v2168
      %2887 = vmatpush.bf16.msra.mxu0 %v2158
      %2888 = vmatpush.bf16.msra.mxu0 %v2148
      %2889 = vmatpush.bf16.msra.mxu0 %v2138
      %2890 = vmatmul.bf16.gmra.mxu0 %v600
      %v2891 = vpop.f32.mrf.mxu0
      %v2892 = vadd.f32 %v2873, %v2891
      %v2893 = vpop.f32.mrf.mxu0
      %v2894 = vadd.f32 %v2875, %v2893
      %2895 = vmatmul.bf16.gmra.mxu0 %v605
      %v2896 = vpop.f32.mrf.mxu0
      %v2897 = vadd.f32 %v2878, %v2896
      %v2898 = vpop.f32.mrf.mxu0
      %v2899 = vadd.f32 %v2880, %v2898
      %2900 = vdwg.mxu0
      %2901 = vmatpush.bf16.msra.mxu0 %v1889
      %2902 = vmatpush.bf16.msra.mxu0 %v1879
      %2903 = vmatpush.bf16.msra.mxu0 %v1869
      %2904 = vmatpush.bf16.msra.mxu0 %v1859
      %2905 = vmatpush.bf16.msra.mxu0 %v1849
      %2906 = vmatpush.bf16.msra.mxu0 %v1839
      %2907 = vmatpush.bf16.msra.mxu0 %v1829
      %2908 = vmatpush.bf16.msra.mxu0 %v1819
      %2909 = vmatmul.bf16.gmra.mxu0 %v596
      %v2910 = vpop.f32.mrf.mxu0
      %v2911 = vadd.f32 0.0, %v2910
      %v2912 = vpop.f32.mrf.mxu0
      %v2913 = vadd.f32 0.0, %v2912
      %2914 = vmatmul.bf16.gmra.mxu0 %v601
      %v2915 = vpop.f32.mrf.mxu0
      %v2916 = vadd.f32 0.0, %v2915
      %v2917 = vpop.f32.mrf.mxu0
      %v2918 = vadd.f32 0.0, %v2917
      %2919 = vdwg.mxu0
      %2920 = vmatpush.bf16.msra.mxu0 %v1969
      %2921 = vmatpush.bf16.msra.mxu0 %v1959
      %2922 = vmatpush.bf16.msra.mxu0 %v1949
      %2923 = vmatpush.bf16.msra.mxu0 %v1939
      %2924 = vmatpush.bf16.msra.mxu0 %v1929
      %2925 = vmatpush.bf16.msra.mxu0 %v1919
      %2926 = vmatpush.bf16.msra.mxu0 %v1909
      %2927 = vmatpush.bf16.msra.mxu0 %v1899
      %2928 = vmatmul.bf16.gmra.mxu0 %v597
      %v2929 = vpop.f32.mrf.mxu0
      %v2930 = vadd.f32 %v2911, %v2929
      %v2931 = vpop.f32.mrf.mxu0
      %v2932 = vadd.f32 %v2913, %v2931
      %2933 = vmatmul.bf16.gmra.mxu0 %v602
      %v2934 = vpop.f32.mrf.mxu0
      %v2935 = vadd.f32 %v2916, %v2934
      %v2936 = vpop.f32.mrf.mxu0
      %v2937 = vadd.f32 %v2918, %v2936
      %2938 = vdwg.mxu0
      %2939 = vmatpush.bf16.msra.mxu0 %v2049
      %2940 = vmatpush.bf16.msra.mxu0 %v2039
      %2941 = vmatpush.bf16.msra.mxu0 %v2029
      %2942 = vmatpush.bf16.msra.mxu0 %v2019
      %2943 = vmatpush.bf16.msra.mxu0 %v2009
      %2944 = vmatpush.bf16.msra.mxu0 %v1999
      %2945 = vmatpush.bf16.msra.mxu0 %v1989
      %2946 = vmatpush.bf16.msra.mxu0 %v1979
      %2947 = vmatmul.bf16.gmra.mxu0 %v598
      %v2948 = vpop.f32.mrf.mxu0
      %v2949 = vadd.f32 %v2930, %v2948
      %v2950 = vpop.f32.mrf.mxu0
      %v2951 = vadd.f32 %v2932, %v2950
      %2952 = vmatmul.bf16.gmra.mxu0 %v603
      %v2953 = vpop.f32.mrf.mxu0
      %v2954 = vadd.f32 %v2935, %v2953
      %v2955 = vpop.f32.mrf.mxu0
      %v2956 = vadd.f32 %v2937, %v2955
      %2957 = vdwg.mxu0
      %2958 = vmatpush.bf16.msra.mxu0 %v2129
      %2959 = vmatpush.bf16.msra.mxu0 %v2119
      %2960 = vmatpush.bf16.msra.mxu0 %v2109
      %2961 = vmatpush.bf16.msra.mxu0 %v2099
      %2962 = vmatpush.bf16.msra.mxu0 %v2089
      %2963 = vmatpush.bf16.msra.mxu0 %v2079
      %2964 = vmatpush.bf16.msra.mxu0 %v2069
      %2965 = vmatpush.bf16.msra.mxu0 %v2059
      %2966 = vmatmul.bf16.gmra.mxu0 %v599
      %v2967 = vpop.f32.mrf.mxu0
      %v2968 = vadd.f32 %v2949, %v2967
      %v2969 = vpop.f32.mrf.mxu0
      %v2970 = vadd.f32 %v2951, %v2969
      %2971 = vmatmul.bf16.gmra.mxu0 %v604
      %v2972 = vpop.f32.mrf.mxu0
      %v2973 = vadd.f32 %v2954, %v2972
      %v2974 = vpop.f32.mrf.mxu0
      %v2975 = vadd.f32 %v2956, %v2974
      %2976 = vdwg.mxu0
      %2977 = vmatpush.bf16.msra.mxu0 %v2209
      %2978 = vmatpush.bf16.msra.mxu0 %v2199
      %2979 = vmatpush.bf16.msra.mxu0 %v2189
      %2980 = vmatpush.bf16.msra.mxu0 %v2179
      %2981 = vmatpush.bf16.msra.mxu0 %v2169
      %2982 = vmatpush.bf16.msra.mxu0 %v2159
      %2983 = vmatpush.bf16.msra.mxu0 %v2149
      %2984 = vmatpush.bf16.msra.mxu0 %v2139
      %2985 = vmatmul.bf16.gmra.mxu0 %v600
      %v2986 = vpop.f32.mrf.mxu0
      %v2987 = vadd.f32 %v2968, %v2986
      %v2988 = vpop.f32.mrf.mxu0
      %v2989 = vadd.f32 %v2970, %v2988
      %2990 = vmatmul.bf16.gmra.mxu0 %v605
      %v2991 = vpop.f32.mrf.mxu0
      %v2992 = vadd.f32 %v2973, %v2991
      %v2993 = vpop.f32.mrf.mxu0
      %v2994 = vadd.f32 %v2975, %v2993
      %2995 = vdwg.mxu0
      %2996 = vmatpush.bf16.msra.mxu0 %v1890
      %2997 = vmatpush.bf16.msra.mxu0 %v1880
      %2998 = vmatpush.bf16.msra.mxu0 %v1870
      %2999 = vmatpush.bf16.msra.mxu0 %v1860
      %3000 = vmatpush.bf16.msra.mxu0 %v1850
      %3001 = vmatpush.bf16.msra.mxu0 %v1840
      %3002 = vmatpush.bf16.msra.mxu0 %v1830
      %3003 = vmatpush.bf16.msra.mxu0 %v1820
      %3004 = vmatmul.bf16.gmra.mxu0 %v596
      %v3005 = vpop.f32.mrf.mxu0
      %v3006 = vadd.f32 0.0, %v3005
      %v3007 = vpop.f32.mrf.mxu0
      %v3008 = vadd.f32 0.0, %v3007
      %3009 = vmatmul.bf16.gmra.mxu0 %v601
      %v3010 = vpop.f32.mrf.mxu0
      %v3011 = vadd.f32 0.0, %v3010
      %v3012 = vpop.f32.mrf.mxu0
      %v3013 = vadd.f32 0.0, %v3012
      %3014 = vdwg.mxu0
      %3015 = vmatpush.bf16.msra.mxu0 %v1970
      %3016 = vmatpush.bf16.msra.mxu0 %v1960
      %3017 = vmatpush.bf16.msra.mxu0 %v1950
      %3018 = vmatpush.bf16.msra.mxu0 %v1940
      %3019 = vmatpush.bf16.msra.mxu0 %v1930
      %3020 = vmatpush.bf16.msra.mxu0 %v1920
      %3021 = vmatpush.bf16.msra.mxu0 %v1910
      %3022 = vmatpush.bf16.msra.mxu0 %v1900
      %3023 = vmatmul.bf16.gmra.mxu0 %v597
      %v3024 = vpop.f32.mrf.mxu0
      %v3025 = vadd.f32 %v3006, %v3024
      %v3026 = vpop.f32.mrf.mxu0
      %v3027 = vadd.f32 %v3008, %v3026
      %3028 = vmatmul.bf16.gmra.mxu0 %v602
      %v3029 = vpop.f32.mrf.mxu0
      %v3030 = vadd.f32 %v3011, %v3029
      %v3031 = vpop.f32.mrf.mxu0
      %v3032 = vadd.f32 %v3013, %v3031
      %3033 = vdwg.mxu0
      %3034 = vmatpush.bf16.msra.mxu0 %v2050
      %3035 = vmatpush.bf16.msra.mxu0 %v2040
      %3036 = vmatpush.bf16.msra.mxu0 %v2030
      %3037 = vmatpush.bf16.msra.mxu0 %v2020
      %3038 = vmatpush.bf16.msra.mxu0 %v2010
      %3039 = vmatpush.bf16.msra.mxu0 %v2000
      %3040 = vmatpush.bf16.msra.mxu0 %v1990
      %3041 = vmatpush.bf16.msra.mxu0 %v1980
      %3042 = vmatmul.bf16.gmra.mxu0 %v598
      %v3043 = vpop.f32.mrf.mxu0
      %v3044 = vadd.f32 %v3025, %v3043
      %v3045 = vpop.f32.mrf.mxu0
      %v3046 = vadd.f32 %v3027, %v3045
      %3047 = vmatmul.bf16.gmra.mxu0 %v603
      %v3048 = vpop.f32.mrf.mxu0
      %v3049 = vadd.f32 %v3030, %v3048
      %v3050 = vpop.f32.mrf.mxu0
      %v3051 = vadd.f32 %v3032, %v3050
      %3052 = vdwg.mxu0
      %3053 = vmatpush.bf16.msra.mxu0 %v2130
      %3054 = vmatpush.bf16.msra.mxu0 %v2120
      %3055 = vmatpush.bf16.msra.mxu0 %v2110
      %3056 = vmatpush.bf16.msra.mxu0 %v2100
      %3057 = vmatpush.bf16.msra.mxu0 %v2090
      %3058 = vmatpush.bf16.msra.mxu0 %v2080
      %3059 = vmatpush.bf16.msra.mxu0 %v2070
      %3060 = vmatpush.bf16.msra.mxu0 %v2060
      %3061 = vmatmul.bf16.gmra.mxu0 %v599
      %v3062 = vpop.f32.mrf.mxu0
      %v3063 = vadd.f32 %v3044, %v3062
      %v3064 = vpop.f32.mrf.mxu0
      %v3065 = vadd.f32 %v3046, %v3064
      %3066 = vmatmul.bf16.gmra.mxu0 %v604
      %v3067 = vpop.f32.mrf.mxu0
      %v3068 = vadd.f32 %v3049, %v3067
      %v3069 = vpop.f32.mrf.mxu0
      %v3070 = vadd.f32 %v3051, %v3069
      %3071 = vdwg.mxu0
      %3072 = vmatpush.bf16.msra.mxu0 %v2210
      %3073 = vmatpush.bf16.msra.mxu0 %v2200
      %3074 = vmatpush.bf16.msra.mxu0 %v2190
      %3075 = vmatpush.bf16.msra.mxu0 %v2180
      %3076 = vmatpush.bf16.msra.mxu0 %v2170
      %3077 = vmatpush.bf16.msra.mxu0 %v2160
      %3078 = vmatpush.bf16.msra.mxu0 %v2150
      %3079 = vmatpush.bf16.msra.mxu0 %v2140
      %3080 = vmatmul.bf16.gmra.mxu0 %v600
      %v3081 = vpop.f32.mrf.mxu0
      %v3082 = vadd.f32 %v3063, %v3081
      %v3083 = vpop.f32.mrf.mxu0
      %v3084 = vadd.f32 %v3065, %v3083
      %3085 = vmatmul.bf16.gmra.mxu0 %v605
      %v3086 = vpop.f32.mrf.mxu0
      %v3087 = vadd.f32 %v3068, %v3086
      %v3088 = vpop.f32.mrf.mxu0
      %v3089 = vadd.f32 %v3070, %v3088
      %3090 = vdwg.mxu0
      %3091 = vmatpush.bf16.msra.mxu0 %v1891
      %3092 = vmatpush.bf16.msra.mxu0 %v1881
      %3093 = vmatpush.bf16.msra.mxu0 %v1871
      %3094 = vmatpush.bf16.msra.mxu0 %v1861
      %3095 = vmatpush.bf16.msra.mxu0 %v1851
      %3096 = vmatpush.bf16.msra.mxu0 %v1841
      %3097 = vmatpush.bf16.msra.mxu0 %v1831
      %3098 = vmatpush.bf16.msra.mxu0 %v1821
      %3099 = vmatmul.bf16.gmra.mxu0 %v596
      %v3100 = vpop.f32.mrf.mxu0
      %v3101 = vadd.f32 0.0, %v3100
      %v3102 = vpop.f32.mrf.mxu0
      %v3103 = vadd.f32 0.0, %v3102
      %3104 = vmatmul.bf16.gmra.mxu0 %v601
      %v3105 = vpop.f32.mrf.mxu0
      %v3106 = vadd.f32 0.0, %v3105
      %v3107 = vpop.f32.mrf.mxu0
      %v3108 = vadd.f32 0.0, %v3107
      %3109 = vdwg.mxu0
      %3110 = vmatpush.bf16.msra.mxu0 %v1971
      %3111 = vmatpush.bf16.msra.mxu0 %v1961
      %3112 = vmatpush.bf16.msra.mxu0 %v1951
      %3113 = vmatpush.bf16.msra.mxu0 %v1941
      %3114 = vmatpush.bf16.msra.mxu0 %v1931
      %3115 = vmatpush.bf16.msra.mxu0 %v1921
      %3116 = vmatpush.bf16.msra.mxu0 %v1911
      %3117 = vmatpush.bf16.msra.mxu0 %v1901
      %3118 = vmatmul.bf16.gmra.mxu0 %v597
      %v3119 = vpop.f32.mrf.mxu0
      %v3120 = vadd.f32 %v3101, %v3119
      %v3121 = vpop.f32.mrf.mxu0
      %v3122 = vadd.f32 %v3103, %v3121
      %3123 = vmatmul.bf16.gmra.mxu0 %v602
      %v3124 = vpop.f32.mrf.mxu0
      %v3125 = vadd.f32 %v3106, %v3124
      %v3126 = vpop.f32.mrf.mxu0
      %v3127 = vadd.f32 %v3108, %v3126
      %3128 = vdwg.mxu0
      %3129 = vmatpush.bf16.msra.mxu0 %v2051
      %3130 = vmatpush.bf16.msra.mxu0 %v2041
      %3131 = vmatpush.bf16.msra.mxu0 %v2031
      %3132 = vmatpush.bf16.msra.mxu0 %v2021
      %3133 = vmatpush.bf16.msra.mxu0 %v2011
      %3134 = vmatpush.bf16.msra.mxu0 %v2001
      %3135 = vmatpush.bf16.msra.mxu0 %v1991
      %3136 = vmatpush.bf16.msra.mxu0 %v1981
      %3137 = vmatmul.bf16.gmra.mxu0 %v598
      %v3138 = vpop.f32.mrf.mxu0
      %v3139 = vadd.f32 %v3120, %v3138
      %v3140 = vpop.f32.mrf.mxu0
      %v3141 = vadd.f32 %v3122, %v3140
      %3142 = vmatmul.bf16.gmra.mxu0 %v603
      %v3143 = vpop.f32.mrf.mxu0
      %v3144 = vadd.f32 %v3125, %v3143
      %v3145 = vpop.f32.mrf.mxu0
      %v3146 = vadd.f32 %v3127, %v3145
      %3147 = vdwg.mxu0
      %3148 = vmatpush.bf16.msra.mxu0 %v2131
      %3149 = vmatpush.bf16.msra.mxu0 %v2121
      %3150 = vmatpush.bf16.msra.mxu0 %v2111
      %3151 = vmatpush.bf16.msra.mxu0 %v2101
      %3152 = vmatpush.bf16.msra.mxu0 %v2091
      %3153 = vmatpush.bf16.msra.mxu0 %v2081
      %3154 = vmatpush.bf16.msra.mxu0 %v2071
      %3155 = vmatpush.bf16.msra.mxu0 %v2061
      %3156 = vmatmul.bf16.gmra.mxu0 %v599
      %v3157 = vpop.f32.mrf.mxu0
      %v3158 = vadd.f32 %v3139, %v3157
      %v3159 = vpop.f32.mrf.mxu0
      %v3160 = vadd.f32 %v3141, %v3159
      %3161 = vmatmul.bf16.gmra.mxu0 %v604
      %v3162 = vpop.f32.mrf.mxu0
      %v3163 = vadd.f32 %v3144, %v3162
      %v3164 = vpop.f32.mrf.mxu0
      %v3165 = vadd.f32 %v3146, %v3164
      %3166 = vdwg.mxu0
      %3167 = vmatpush.bf16.msra.mxu0 %v2211
      %3168 = vmatpush.bf16.msra.mxu0 %v2201
      %3169 = vmatpush.bf16.msra.mxu0 %v2191
      %3170 = vmatpush.bf16.msra.mxu0 %v2181
      %3171 = vmatpush.bf16.msra.mxu0 %v2171
      %3172 = vmatpush.bf16.msra.mxu0 %v2161
      %3173 = vmatpush.bf16.msra.mxu0 %v2151
      %3174 = vmatpush.bf16.msra.mxu0 %v2141
      %3175 = vmatmul.bf16.gmra.mxu0 %v600
      %v3176 = vpop.f32.mrf.mxu0
      %v3177 = vadd.f32 %v3158, %v3176
      %v3178 = vpop.f32.mrf.mxu0
      %v3179 = vadd.f32 %v3160, %v3178
      %3180 = vmatmul.bf16.gmra.mxu0 %v605
      %v3181 = vpop.f32.mrf.mxu0
      %v3182 = vadd.f32 %v3163, %v3181
      %v3183 = vpop.f32.mrf.mxu0
      %v3184 = vadd.f32 %v3165, %v3183
      %3185 = vdwg.mxu0
      %3186 = vmatpush.bf16.msra.mxu0 %v1892
      %3187 = vmatpush.bf16.msra.mxu0 %v1882
      %3188 = vmatpush.bf16.msra.mxu0 %v1872
      %3189 = vmatpush.bf16.msra.mxu0 %v1862
      %3190 = vmatpush.bf16.msra.mxu0 %v1852
      %3191 = vmatpush.bf16.msra.mxu0 %v1842
      %3192 = vmatpush.bf16.msra.mxu0 %v1832
      %3193 = vmatpush.bf16.msra.mxu0 %v1822
      %3194 = vmatmul.bf16.gmra.mxu0 %v596
      %v3195 = vpop.f32.mrf.mxu0
      %v3196 = vadd.f32 0.0, %v3195
      %v3197 = vpop.f32.mrf.mxu0
      %v3198 = vadd.f32 0.0, %v3197
      %3199 = vmatmul.bf16.gmra.mxu0 %v601
      %v3200 = vpop.f32.mrf.mxu0
      %v3201 = vadd.f32 0.0, %v3200
      %v3202 = vpop.f32.mrf.mxu0
      %v3203 = vadd.f32 0.0, %v3202
      %3204 = vdwg.mxu0
      %3205 = vmatpush.bf16.msra.mxu0 %v1972
      %3206 = vmatpush.bf16.msra.mxu0 %v1962
      %3207 = vmatpush.bf16.msra.mxu0 %v1952
      %3208 = vmatpush.bf16.msra.mxu0 %v1942
      %3209 = vmatpush.bf16.msra.mxu0 %v1932
      %3210 = vmatpush.bf16.msra.mxu0 %v1922
      %3211 = vmatpush.bf16.msra.mxu0 %v1912
      %3212 = vmatpush.bf16.msra.mxu0 %v1902
      %3213 = vmatmul.bf16.gmra.mxu0 %v597
      %v3214 = vpop.f32.mrf.mxu0
      %v3215 = vadd.f32 %v3196, %v3214
      %v3216 = vpop.f32.mrf.mxu0
      %v3217 = vadd.f32 %v3198, %v3216
      %3218 = vmatmul.bf16.gmra.mxu0 %v602
      %v3219 = vpop.f32.mrf.mxu0
      %v3220 = vadd.f32 %v3201, %v3219
      %v3221 = vpop.f32.mrf.mxu0
      %v3222 = vadd.f32 %v3203, %v3221
      %3223 = vdwg.mxu0
      %3224 = vmatpush.bf16.msra.mxu0 %v2052
      %3225 = vmatpush.bf16.msra.mxu0 %v2042
      %3226 = vmatpush.bf16.msra.mxu0 %v2032
      %3227 = vmatpush.bf16.msra.mxu0 %v2022
      %3228 = vmatpush.bf16.msra.mxu0 %v2012
      %3229 = vmatpush.bf16.msra.mxu0 %v2002
      %3230 = vmatpush.bf16.msra.mxu0 %v1992
      %3231 = vmatpush.bf16.msra.mxu0 %v1982
      %3232 = vmatmul.bf16.gmra.mxu0 %v598
      %v3233 = vpop.f32.mrf.mxu0
      %v3234 = vadd.f32 %v3215, %v3233
      %v3235 = vpop.f32.mrf.mxu0
      %v3236 = vadd.f32 %v3217, %v3235
      %3237 = vmatmul.bf16.gmra.mxu0 %v603
      %v3238 = vpop.f32.mrf.mxu0
      %v3239 = vadd.f32 %v3220, %v3238
      %v3240 = vpop.f32.mrf.mxu0
      %v3241 = vadd.f32 %v3222, %v3240
      %3242 = vdwg.mxu0
      %3243 = vmatpush.bf16.msra.mxu0 %v2132
      %3244 = vmatpush.bf16.msra.mxu0 %v2122
      %3245 = vmatpush.bf16.msra.mxu0 %v2112
      %3246 = vmatpush.bf16.msra.mxu0 %v2102
      %3247 = vmatpush.bf16.msra.mxu0 %v2092
      %3248 = vmatpush.bf16.msra.mxu0 %v2082
      %3249 = vmatpush.bf16.msra.mxu0 %v2072
      %3250 = vmatpush.bf16.msra.mxu0 %v2062
      %3251 = vmatmul.bf16.gmra.mxu0 %v599
      %v3252 = vpop.f32.mrf.mxu0
      %v3253 = vadd.f32 %v3234, %v3252
      %v3254 = vpop.f32.mrf.mxu0
      %v3255 = vadd.f32 %v3236, %v3254
      %3256 = vmatmul.bf16.gmra.mxu0 %v604
      %v3257 = vpop.f32.mrf.mxu0
      %v3258 = vadd.f32 %v3239, %v3257
      %v3259 = vpop.f32.mrf.mxu0
      %v3260 = vadd.f32 %v3241, %v3259
      %3261 = vdwg.mxu0
      %3262 = vmatpush.bf16.msra.mxu0 %v2212
      %3263 = vmatpush.bf16.msra.mxu0 %v2202
      %3264 = vmatpush.bf16.msra.mxu0 %v2192
      %3265 = vmatpush.bf16.msra.mxu0 %v2182
      %3266 = vmatpush.bf16.msra.mxu0 %v2172
      %3267 = vmatpush.bf16.msra.mxu0 %v2162
      %3268 = vmatpush.bf16.msra.mxu0 %v2152
      %3269 = vmatpush.bf16.msra.mxu0 %v2142
      %3270 = vmatmul.bf16.gmra.mxu0 %v600
      %v3271 = vpop.f32.mrf.mxu0
      %v3272 = vadd.f32 %v3253, %v3271
      %v3273 = vpop.f32.mrf.mxu0
      %v3274 = vadd.f32 %v3255, %v3273
      %3275 = vmatmul.bf16.gmra.mxu0 %v605
      %v3276 = vpop.f32.mrf.mxu0
      %v3277 = vadd.f32 %v3258, %v3276
      %v3278 = vpop.f32.mrf.mxu0
      %v3279 = vadd.f32 %v3260, %v3278
      %3280 = vdwg.mxu0
      %3281 = vmatpush.bf16.msra.mxu0 %v1893
      %3282 = vmatpush.bf16.msra.mxu0 %v1883
      %3283 = vmatpush.bf16.msra.mxu0 %v1873
      %3284 = vmatpush.bf16.msra.mxu0 %v1863
      %3285 = vmatpush.bf16.msra.mxu0 %v1853
      %3286 = vmatpush.bf16.msra.mxu0 %v1843
      %3287 = vmatpush.bf16.msra.mxu0 %v1833
      %3288 = vmatpush.bf16.msra.mxu0 %v1823
      %3289 = vmatmul.bf16.gmra.mxu0 %v596
      %v3290 = vpop.f32.mrf.mxu0
      %v3291 = vadd.f32 0.0, %v3290
      %v3292 = vpop.f32.mrf.mxu0
      %v3293 = vadd.f32 0.0, %v3292
      %3294 = vmatmul.bf16.gmra.mxu0 %v601
      %v3295 = vpop.f32.mrf.mxu0
      %v3296 = vadd.f32 0.0, %v3295
      %v3297 = vpop.f32.mrf.mxu0
      %v3298 = vadd.f32 0.0, %v3297
      %3299 = vdwg.mxu0
      %3300 = vmatpush.bf16.msra.mxu0 %v1973
      %3301 = vmatpush.bf16.msra.mxu0 %v1963
      %3302 = vmatpush.bf16.msra.mxu0 %v1953
      %3303 = vmatpush.bf16.msra.mxu0 %v1943
      %3304 = vmatpush.bf16.msra.mxu0 %v1933
      %3305 = vmatpush.bf16.msra.mxu0 %v1923
      %3306 = vmatpush.bf16.msra.mxu0 %v1913
      %3307 = vmatpush.bf16.msra.mxu0 %v1903
      %3308 = vmatmul.bf16.gmra.mxu0 %v597
      %v3309 = vpop.f32.mrf.mxu0
      %v3310 = vadd.f32 %v3291, %v3309
      %v3311 = vpop.f32.mrf.mxu0
      %v3312 = vadd.f32 %v3293, %v3311
      %3313 = vmatmul.bf16.gmra.mxu0 %v602
      %v3314 = vpop.f32.mrf.mxu0
      %v3315 = vadd.f32 %v3296, %v3314
      %v3316 = vpop.f32.mrf.mxu0
      %v3317 = vadd.f32 %v3298, %v3316
      %3318 = vdwg.mxu0
      %3319 = vmatpush.bf16.msra.mxu0 %v2053
      %3320 = vmatpush.bf16.msra.mxu0 %v2043
      %3321 = vmatpush.bf16.msra.mxu0 %v2033
      %3322 = vmatpush.bf16.msra.mxu0 %v2023
      %3323 = vmatpush.bf16.msra.mxu0 %v2013
      %3324 = vmatpush.bf16.msra.mxu0 %v2003
      %3325 = vmatpush.bf16.msra.mxu0 %v1993
      %3326 = vmatpush.bf16.msra.mxu0 %v1983
      %3327 = vmatmul.bf16.gmra.mxu0 %v598
      %v3328 = vpop.f32.mrf.mxu0
      %v3329 = vadd.f32 %v3310, %v3328
      %v3330 = vpop.f32.mrf.mxu0
      %v3331 = vadd.f32 %v3312, %v3330
      %3332 = vmatmul.bf16.gmra.mxu0 %v603
      %v3333 = vpop.f32.mrf.mxu0
      %v3334 = vadd.f32 %v3315, %v3333
      %v3335 = vpop.f32.mrf.mxu0
      %v3336 = vadd.f32 %v3317, %v3335
      %3337 = vdwg.mxu0
      %3338 = vmatpush.bf16.msra.mxu0 %v2133
      %3339 = vmatpush.bf16.msra.mxu0 %v2123
      %3340 = vmatpush.bf16.msra.mxu0 %v2113
      %3341 = vmatpush.bf16.msra.mxu0 %v2103
      %3342 = vmatpush.bf16.msra.mxu0 %v2093
      %3343 = vmatpush.bf16.msra.mxu0 %v2083
      %3344 = vmatpush.bf16.msra.mxu0 %v2073
      %3345 = vmatpush.bf16.msra.mxu0 %v2063
      %3346 = vmatmul.bf16.gmra.mxu0 %v599
      %v3347 = vpop.f32.mrf.mxu0
      %v3348 = vadd.f32 %v3329, %v3347
      %v3349 = vpop.f32.mrf.mxu0
      %v3350 = vadd.f32 %v3331, %v3349
      %3351 = vmatmul.bf16.gmra.mxu0 %v604
      %v3352 = vpop.f32.mrf.mxu0
      %v3353 = vadd.f32 %v3334, %v3352
      %v3354 = vpop.f32.mrf.mxu0
      %v3355 = vadd.f32 %v3336, %v3354
      %3356 = vdwg.mxu0
      %3357 = vmatpush.bf16.msra.mxu0 %v2213
      %3358 = vmatpush.bf16.msra.mxu0 %v2203
      %3359 = vmatpush.bf16.msra.mxu0 %v2193
      %3360 = vmatpush.bf16.msra.mxu0 %v2183
      %3361 = vmatpush.bf16.msra.mxu0 %v2173
      %3362 = vmatpush.bf16.msra.mxu0 %v2163
      %3363 = vmatpush.bf16.msra.mxu0 %v2153
      %3364 = vmatpush.bf16.msra.mxu0 %v2143
      %3365 = vmatmul.bf16.gmra.mxu0 %v600
      %v3366 = vpop.f32.mrf.mxu0
      %v3367 = vadd.f32 %v3348, %v3366
      %v3368 = vpop.f32.mrf.mxu0
      %v3369 = vadd.f32 %v3350, %v3368
      %3370 = vmatmul.bf16.gmra.mxu0 %v605
      %v3371 = vpop.f32.mrf.mxu0
      %v3372 = vadd.f32 %v3353, %v3371
      %v3373 = vpop.f32.mrf.mxu0
      %v3374 = vadd.f32 %v3355, %v3373
      %3375 = vdwg.mxu0
      %3376 = vmatpush.bf16.msra.mxu0 %v1894
      %3377 = vmatpush.bf16.msra.mxu0 %v1884
      %3378 = vmatpush.bf16.msra.mxu0 %v1874
      %3379 = vmatpush.bf16.msra.mxu0 %v1864
      %3380 = vmatpush.bf16.msra.mxu0 %v1854
      %3381 = vmatpush.bf16.msra.mxu0 %v1844
      %3382 = vmatpush.bf16.msra.mxu0 %v1834
      %3383 = vmatpush.bf16.msra.mxu0 %v1824
      %3384 = vmatmul.bf16.gmra.mxu0 %v596
      %v3385 = vpop.f32.mrf.mxu0
      %v3386 = vadd.f32 0.0, %v3385
      %v3387 = vpop.f32.mrf.mxu0
      %v3388 = vadd.f32 0.0, %v3387
      %3389 = vmatmul.bf16.gmra.mxu0 %v601
      %v3390 = vpop.f32.mrf.mxu0
      %v3391 = vadd.f32 0.0, %v3390
      %v3392 = vpop.f32.mrf.mxu0
      %v3393 = vadd.f32 0.0, %v3392
      %3394 = vdwg.mxu0
      %3395 = vmatpush.bf16.msra.mxu0 %v1974
      %3396 = vmatpush.bf16.msra.mxu0 %v1964
      %3397 = vmatpush.bf16.msra.mxu0 %v1954
      %3398 = vmatpush.bf16.msra.mxu0 %v1944
      %3399 = vmatpush.bf16.msra.mxu0 %v1934
      %3400 = vmatpush.bf16.msra.mxu0 %v1924
      %3401 = vmatpush.bf16.msra.mxu0 %v1914
      %3402 = vmatpush.bf16.msra.mxu0 %v1904
      %3403 = vmatmul.bf16.gmra.mxu0 %v597
      %v3404 = vpop.f32.mrf.mxu0
      %v3405 = vadd.f32 %v3386, %v3404
      %v3406 = vpop.f32.mrf.mxu0
      %v3407 = vadd.f32 %v3388, %v3406
      %3408 = vmatmul.bf16.gmra.mxu0 %v602
      %v3409 = vpop.f32.mrf.mxu0
      %v3410 = vadd.f32 %v3391, %v3409
      %v3411 = vpop.f32.mrf.mxu0
      %v3412 = vadd.f32 %v3393, %v3411
      %3413 = vdwg.mxu0
      %3414 = vmatpush.bf16.msra.mxu0 %v2054
      %3415 = vmatpush.bf16.msra.mxu0 %v2044
      %3416 = vmatpush.bf16.msra.mxu0 %v2034
      %3417 = vmatpush.bf16.msra.mxu0 %v2024
      %3418 = vmatpush.bf16.msra.mxu0 %v2014
      %3419 = vmatpush.bf16.msra.mxu0 %v2004
      %3420 = vmatpush.bf16.msra.mxu0 %v1994
      %3421 = vmatpush.bf16.msra.mxu0 %v1984
      %3422 = vmatmul.bf16.gmra.mxu0 %v598
      %v3423 = vpop.f32.mrf.mxu0
      %v3424 = vadd.f32 %v3405, %v3423
      %v3425 = vpop.f32.mrf.mxu0
      %v3426 = vadd.f32 %v3407, %v3425
      %3427 = vmatmul.bf16.gmra.mxu0 %v603
      %v3428 = vpop.f32.mrf.mxu0
      %v3429 = vadd.f32 %v3410, %v3428
      %v3430 = vpop.f32.mrf.mxu0
      %v3431 = vadd.f32 %v3412, %v3430
      %3432 = vdwg.mxu0
      %3433 = vmatpush.bf16.msra.mxu0 %v2134
      %3434 = vmatpush.bf16.msra.mxu0 %v2124
      %3435 = vmatpush.bf16.msra.mxu0 %v2114
      %3436 = vmatpush.bf16.msra.mxu0 %v2104
      %3437 = vmatpush.bf16.msra.mxu0 %v2094
      %3438 = vmatpush.bf16.msra.mxu0 %v2084
      %3439 = vmatpush.bf16.msra.mxu0 %v2074
      %3440 = vmatpush.bf16.msra.mxu0 %v2064
      %3441 = vmatmul.bf16.gmra.mxu0 %v599
      %v3442 = vpop.f32.mrf.mxu0
      %v3443 = vadd.f32 %v3424, %v3442
      %v3444 = vpop.f32.mrf.mxu0
      %v3445 = vadd.f32 %v3426, %v3444
      %3446 = vmatmul.bf16.gmra.mxu0 %v604
      %v3447 = vpop.f32.mrf.mxu0
      %v3448 = vadd.f32 %v3429, %v3447
      %v3449 = vpop.f32.mrf.mxu0
      %v3450 = vadd.f32 %v3431, %v3449
      %3451 = vdwg.mxu0
      %3452 = vmatpush.bf16.msra.mxu0 %v2214
      %3453 = vmatpush.bf16.msra.mxu0 %v2204
      %3454 = vmatpush.bf16.msra.mxu0 %v2194
      %3455 = vmatpush.bf16.msra.mxu0 %v2184
      %3456 = vmatpush.bf16.msra.mxu0 %v2174
      %3457 = vmatpush.bf16.msra.mxu0 %v2164
      %3458 = vmatpush.bf16.msra.mxu0 %v2154
      %3459 = vmatpush.bf16.msra.mxu0 %v2144
      %3460 = vmatmul.bf16.gmra.mxu0 %v600
      %v3461 = vpop.f32.mrf.mxu0
      %v3462 = vadd.f32 %v3443, %v3461
      %v3463 = vpop.f32.mrf.mxu0
      %v3464 = vadd.f32 %v3445, %v3463
      %3465 = vmatmul.bf16.gmra.mxu0 %v605
      %v3466 = vpop.f32.mrf.mxu0
      %v3467 = vadd.f32 %v3448, %v3466
      %v3468 = vpop.f32.mrf.mxu0
      %v3469 = vadd.f32 %v3450, %v3468
      %3470 = vdwg.mxu0
      %3471 = vmatpush.bf16.msra.mxu0 %v1895
      %3472 = vmatpush.bf16.msra.mxu0 %v1885
      %3473 = vmatpush.bf16.msra.mxu0 %v1875
      %3474 = vmatpush.bf16.msra.mxu0 %v1865
      %3475 = vmatpush.bf16.msra.mxu0 %v1855
      %3476 = vmatpush.bf16.msra.mxu0 %v1845
      %3477 = vmatpush.bf16.msra.mxu0 %v1835
      %3478 = vmatpush.bf16.msra.mxu0 %v1825
      %3479 = vmatmul.bf16.gmra.mxu0 %v596
      %v3480 = vpop.f32.mrf.mxu0
      %v3481 = vadd.f32 0.0, %v3480
      %v3482 = vpop.f32.mrf.mxu0
      %v3483 = vadd.f32 0.0, %v3482
      %3484 = vmatmul.bf16.gmra.mxu0 %v601
      %v3485 = vpop.f32.mrf.mxu0
      %v3486 = vadd.f32 0.0, %v3485
      %v3487 = vpop.f32.mrf.mxu0
      %v3488 = vadd.f32 0.0, %v3487
      %3489 = vdwg.mxu0
      %3490 = vmatpush.bf16.msra.mxu0 %v1975
      %3491 = vmatpush.bf16.msra.mxu0 %v1965
      %3492 = vmatpush.bf16.msra.mxu0 %v1955
      %3493 = vmatpush.bf16.msra.mxu0 %v1945
      %3494 = vmatpush.bf16.msra.mxu0 %v1935
      %3495 = vmatpush.bf16.msra.mxu0 %v1925
      %3496 = vmatpush.bf16.msra.mxu0 %v1915
      %3497 = vmatpush.bf16.msra.mxu0 %v1905
      %3498 = vmatmul.bf16.gmra.mxu0 %v597
      %v3499 = vpop.f32.mrf.mxu0
      %v3500 = vadd.f32 %v3481, %v3499
      %v3501 = vpop.f32.mrf.mxu0
      %v3502 = vadd.f32 %v3483, %v3501
      %3503 = vmatmul.bf16.gmra.mxu0 %v602
      %v3504 = vpop.f32.mrf.mxu0
      %v3505 = vadd.f32 %v3486, %v3504
      %v3506 = vpop.f32.mrf.mxu0
      %v3507 = vadd.f32 %v3488, %v3506
      %3508 = vdwg.mxu0
      %3509 = vmatpush.bf16.msra.mxu0 %v2055
      %3510 = vmatpush.bf16.msra.mxu0 %v2045
      %3511 = vmatpush.bf16.msra.mxu0 %v2035
      %3512 = vmatpush.bf16.msra.mxu0 %v2025
      %3513 = vmatpush.bf16.msra.mxu0 %v2015
      %3514 = vmatpush.bf16.msra.mxu0 %v2005
      %3515 = vmatpush.bf16.msra.mxu0 %v1995
      %3516 = vmatpush.bf16.msra.mxu0 %v1985
      %3517 = vmatmul.bf16.gmra.mxu0 %v598
      %v3518 = vpop.f32.mrf.mxu0
      %v3519 = vadd.f32 %v3500, %v3518
      %v3520 = vpop.f32.mrf.mxu0
      %v3521 = vadd.f32 %v3502, %v3520
      %3522 = vmatmul.bf16.gmra.mxu0 %v603
      %v3523 = vpop.f32.mrf.mxu0
      %v3524 = vadd.f32 %v3505, %v3523
      %v3525 = vpop.f32.mrf.mxu0
      %v3526 = vadd.f32 %v3507, %v3525
      %3527 = vdwg.mxu0
      %3528 = vmatpush.bf16.msra.mxu0 %v2135
      %3529 = vmatpush.bf16.msra.mxu0 %v2125
      %3530 = vmatpush.bf16.msra.mxu0 %v2115
      %3531 = vmatpush.bf16.msra.mxu0 %v2105
      %3532 = vmatpush.bf16.msra.mxu0 %v2095
      %3533 = vmatpush.bf16.msra.mxu0 %v2085
      %3534 = vmatpush.bf16.msra.mxu0 %v2075
      %3535 = vmatpush.bf16.msra.mxu0 %v2065
      %3536 = vmatmul.bf16.gmra.mxu0 %v599
      %v3537 = vpop.f32.mrf.mxu0
      %v3538 = vadd.f32 %v3519, %v3537
      %v3539 = vpop.f32.mrf.mxu0
      %v3540 = vadd.f32 %v3521, %v3539
      %3541 = vmatmul.bf16.gmra.mxu0 %v604
      %v3542 = vpop.f32.mrf.mxu0
      %v3543 = vadd.f32 %v3524, %v3542
      %v3544 = vpop.f32.mrf.mxu0
      %v3545 = vadd.f32 %v3526, %v3544
      %3546 = vdwg.mxu0
      %3547 = vmatpush.bf16.msra.mxu0 %v2215
      %3548 = vmatpush.bf16.msra.mxu0 %v2205
      %3549 = vmatpush.bf16.msra.mxu0 %v2195
      %3550 = vmatpush.bf16.msra.mxu0 %v2185
      %3551 = vmatpush.bf16.msra.mxu0 %v2175
      %3552 = vmatpush.bf16.msra.mxu0 %v2165
      %3553 = vmatpush.bf16.msra.mxu0 %v2155
      %3554 = vmatpush.bf16.msra.mxu0 %v2145
      %3555 = vmatmul.bf16.gmra.mxu0 %v600
      %v3556 = vpop.f32.mrf.mxu0
      %v3557 = vadd.f32 %v3538, %v3556
      %v3558 = vpop.f32.mrf.mxu0
      %v3559 = vadd.f32 %v3540, %v3558
      %3560 = vmatmul.bf16.gmra.mxu0 %v605
      %v3561 = vpop.f32.mrf.mxu0
      %v3562 = vadd.f32 %v3543, %v3561
      %v3563 = vpop.f32.mrf.mxu0
      %v3564 = vadd.f32 %v3545, %v3563
      %3565 = vdwg.mxu0
      %3566 = vst [vmem:[%s150] sm:$0xff] %v2702
      %3567 = vst [vmem:[%s150 + $0x8] sm:$0xff] %v2797
      %3568 = vst [vmem:[%s150 + $0x10] sm:$0xff] %v2892
      %3569 = vst [vmem:[%s150 + $0x18] sm:$0xff] %v2987
      %3570 = vst [vmem:[%s150 + $0x20] sm:$0xff] %v3082
      %3571 = vst [vmem:[%s150 + $0x28] sm:$0xff] %v3177
      %3572 = vst [vmem:[%s150 + $0x30] sm:$0xff] %v3272
      %3573 = vst [vmem:[%s150 + $0x38] sm:$0xff] %v3367
      %3574 = vst [vmem:[%s150 + $0x40] sm:$0xff] %v3462
      %3575 = vst [vmem:[%s150 + $0x48] sm:$0xff] %v3557
      %3576 = vst [vmem:[%s150 + $0x50] sm:$0xff] %v2704
      %3577 = vst [vmem:[%s150 + $0x58] sm:$0xff] %v2799
      %3578 = vst [vmem:[%s150 + $0x60] sm:$0xff] %v2894
      %3579 = vst [vmem:[%s150 + $0x68] sm:$0xff] %v2989
      %3580 = vst [vmem:[%s150 + $0x70] sm:$0xff] %v3084
      %3581 = vst [vmem:[%s150 + $0x78] sm:$0xff] %v3179
      %3582 = vst [vmem:[%s150 + $0x80] sm:$0xff] %v3274
      %3583 = vst [vmem:[%s150 + $0x88] sm:$0xff] %v3369
      %3584 = vst [vmem:[%s150 + $0x90] sm:$0xff] %v3464
      %3585 = vst [vmem:[%s150 + $0x98] sm:$0xff] %v3559
      %3586 = vst [vmem:[%s150 + $0xa0] sm:$0xff] %v2707
      %3587 = vst [vmem:[%s150 + $0xa8] sm:$0xff] %v2802
      %3588 = vst [vmem:[%s150 + $0xb0] sm:$0xff] %v2897
      %3589 = vst [vmem:[%s150 + $0xb8] sm:$0xff] %v2992
      %3590 = vst [vmem:[%s150 + $0xc0] sm:$0xff] %v3087
      %3591 = vst [vmem:[%s150 + $0xc8] sm:$0xff] %v3182
      %3592 = vst [vmem:[%s150 + $0xd0] sm:$0xff] %v3277
      %3593 = vst [vmem:[%s150 + $0xd8] sm:$0xff] %v3372
      %3594 = vst [vmem:[%s150 + $0xe0] sm:$0xff] %v3467
      %3595 = vst [vmem:[%s150 + $0xe8] sm:$0xff] %v3562
      %3596 = vst [vmem:[%s150 + $0xf0] sm:$0xff] %v2709
      %3597 = vst [vmem:[%s150 + $0xf8] sm:$0xff] %v2804
      %3598 = vst [vmem:[%s150 + $0x100] sm:$0xff] %v2899
      %3599 = vst [vmem:[%s150 + $0x108] sm:$0xff] %v2994
      %3600 = vst [vmem:[%s150 + $0x110] sm:$0xff] %v3089
      %3601 = vst [vmem:[%s150 + $0x118] sm:$0xff] %v3184
      %3602 = vst [vmem:[%s150 + $0x120] sm:$0xff] %v3279
      %3603 = vst [vmem:[%s150 + $0x128] sm:$0xff] %v3374
      %3604 = vst [vmem:[%s150 + $0x130] sm:$0xff] %v3469
      %3605 = vst [vmem:[%s150 + $0x138] sm:$0xff] %v3564
      %s3606 = smul.u32 4, %s13
      %p3607 = scmp.lt.s32.totalorder %s3606, 7
      %s3608 = scalar_select %p3607, %s3606, 7
      %s3609 = smul.addr %s3608, 10
      %s3610 = smul.addr %s3609, 8
      %s3611 = scalar_lea.vmem %s2, %s3610
      // Predicated region
      $region29: #{audio_encoder_forward.4} parent=27 // pred_check
        %p3612 = pneg %p78
      $region30: #{audio_encoder_forward.4} parent=27 // pred_check_branch
        %3614 = sbr.rel (%p3612) target = $region32
      $region31: #{audio_encoder_forward.4} parent=27 // pred_region
        %s3615 = smul.u32 4, %s13
      $region32: #{audio_encoder_forward.4} parent=27 // pred_fallthru
        _
    $region28: #{audio_encoder_forward.4} parent=5 // pred_fallthru
      _
    %p3616 = scmp.le.s32.totalorder 2, %s8
    // Predicated region
    $region33: #{audio_encoder_forward.4} parent=5 // pred_check
      %p3617 = pneg %p3616
    $region34: #{audio_encoder_forward.4} parent=5 // pred_check_branch
      %3619 = sbr.rel (%p3617) target = $region36
    $region35: #{audio_encoder_forward.4} parent=5 // pred_region
      %s3620 = ssub.s32 %s8, 2
      // Predicated region
      $region37: #{audio_encoder_forward.4} parent=35 // pred_check
        %p3621 = pneg %p84
      $region38: #{audio_encoder_forward.4} parent=35 // pred_check_branch
        %3623 = sbr.rel (%p3621) target = $region40
      $region39: #{audio_encoder_forward.4} parent=35 // pred_region
        %s3624 = smul.u32 4, %s14
        %p3625 = scmp.lt.s32.totalorder %s3624, 7
        %s3626 = scalar_select %p3625, %s3624, 7
        %s3627 = smul.addr %s3626, 10
        %s3628 = smul.addr %s3627, 8
        %s3629 = scalar_lea.vmem %s2, %s3628
      $region40: #{audio_encoder_forward.4} parent=35 // pred_fallthru
        _
    $region36: #{audio_encoder_forward.4} parent=5 // pred_fallthru
      _
  $region6: #{audio_encoder_forward.4} parent=0 // loop_footer
    %s12 = sadd.s32 1, %s8
  $region7: #{audio_encoder_forward.4} parent=0 // loop_footer_branch
    %7 = sbr.rel target = $region3
  $region8: #{audio_encoder_forward.4} parent=0 // loop_exit
    _

// kernel: audio_encoder_forward.5
$region0: #{audio_encoder_forward.5}
  #allocation0 [shape = 'u32[]', space=smem, size = 0x4, offset = 0x4, fixed_abs, tag = 'smem constant byte address 0x4 - core index']
  #allocation1 [shape = 'u32[72,128]{1,0:T(1,128)}', space=vmem, size = 0x9000, scoped, tag = 'internal scratch']
  #allocation2 [shape = 'f32[1,256]{1,0:T(1,128)}', space=vmem, size = 0x400, scoped, tag = 'scratch operand']
  %s0 = inlined_call_operand.vmem [shape: f32[64,1280], index: 0, kind: input, shape index: {}, may-alias: {0,1}]
  %s1 = inlined_call_operand.vmem [shape: f32[64,1280], index: 1, kind: input, shape index: {}, may-alias: {0,1}]
  %s2 = inlined_call_operand.vmem [shape: f32[1,256], index: 2, kind: input, shape index: {}]
  %s3 = inlined_call_operand.vmem [shape: bf16[256,256], index: 3, kind: input, shape index: {}]
  %s4 = inlined_call_operand.vmem [shape: bf16[32,256], index: 4, kind: output, shape index: {}]
  %s5 = sld [smem:[#allocation0]]
  $region30: #{audio_encoder_forward.5} parent=0
    _
  %s7 = ssub.s32 1, %s5
  %s8 = scalar_select 0, %s7, %s5
  // Predicated region
  $region2: #{audio_encoder_forward.5} parent=0 // pred_check
    _
  $region3: #{audio_encoder_forward.5} parent=0 // pred_check_branch
    %10 = sbr.rel (0) target = $region5
  $region4: #{audio_encoder_forward.5} parent=0 // pred_region
    _
  $region5: #{audio_encoder_forward.5} parent=0 // pred_fallthru
    _
  // Predicated region
  $region6: #{audio_encoder_forward.5} parent=0 // pred_check
    _
  $region7: #{audio_encoder_forward.5} parent=0 // pred_check_branch
    %12 = sbr.rel (0) target = $region9
  $region8: #{audio_encoder_forward.5} parent=0 // pred_region
    %s13 = sadd.s32 0, 1
    %s14 = smul.u32 4, %s13
    %p15 = scmp.lt.s32.totalorder %s14, 7
    %s16 = scalar_select %p15, %s14, 7
    %s17 = smul.addr %s16, 10
    %s18 = smul.addr %s17, 8
    %s19 = scalar_lea.vmem %s1, %s18
    %s20 = sadd.s32 0, 1
    %s21 = smul.u32 4, %s20
  $region9: #{audio_encoder_forward.5} parent=0 // pred_fallthru
    _
  // Predicated region
  $region10: #{audio_encoder_forward.5} parent=0 // pred_check
    _
  $region11: #{audio_encoder_forward.5} parent=0 // pred_check_branch
    %23 = sbr.rel (0) target = $region13
  $region12: #{audio_encoder_forward.5} parent=0 // pred_region
    _
  $region13: #{audio_encoder_forward.5} parent=0 // pred_fallthru
    _
  // Predicated region
  $region14: #{audio_encoder_forward.5} parent=0 // pred_check
    _
  $region15: #{audio_encoder_forward.5} parent=0 // pred_check_branch
    %25 = sbr.rel (0) target = $region17
  $region16: #{audio_encoder_forward.5} parent=0 // pred_region
    _
  $region17: #{audio_encoder_forward.5} parent=0 // pred_fallthru
    _
  %s26 = sadd.s32 0, 1
  %s27 = smul.u32 4, %s26
  %p28 = scmp.lt.s32.totalorder %s27, 7
  %s29 = scalar_select %p28, %s27, 7
  %s30 = smul.addr %s29, 10
  %s31 = smul.addr %s30, 8
  %s32 = scalar_lea.vmem %s1, %s31
  %s33 = sadd.s32 0, 1
  %s34 = smul.u32 4, %s33
  %p35 = scmp.lt.s32.totalorder %s34, 7
  %s36 = scalar_select %p35, %s34, 7
  %s37 = smul.addr %s36, 10
  %s38 = smul.addr %s37, 8
  %s39 = scalar_lea.vmem %s1, %s38
  %s40 = sadd.s32 0, 1
  %s41 = smul.u32 4, %s40
  %p42 = scmp.eq.s32.totalorder 0, 0
  // Predicated region
  $region18: #{audio_encoder_forward.5} parent=0 // pred_check
    %p43 = pneg %p42
  $region19: #{audio_encoder_forward.5} parent=0 // pred_check_branch
    %45 = sbr.rel (%p43) target = $region21
  $region20: #{audio_encoder_forward.5} parent=0 // pred_region
    %v46 = vlaneseq
    %vm47 = vcmp.ge.s32.totalorder %v46, 0
    %vm48 = vcmp.lt.s32.totalorder %v46, 256
    %vm49 = vmand %vm47, %vm48
    %50 = vst.msk [vmem:[#allocation2] sm:$0x3] %vm49, 0.0
  $region21: #{audio_encoder_forward.5} parent=0 // pred_fallthru
    _
  %v51 = vld [vmem:[%s0] sm:$0xff]
  %v52 = vld [vmem:[%s0 + $0x8] sm:$0xff]
  %v53 = vld [vmem:[%s0 + $0x50] sm:$0xff]
  %v54 = vld [vmem:[%s0 + $0x58] sm:$0xff]
  %v55 = vld [vmem:[%s0 + $0xa0] sm:$0xff]
  %v56 = vld [vmem:[%s0 + $0xa8] sm:$0xff]
  %v57 = vld [vmem:[%s0 + $0xf0] sm:$0xff]
  %v58 = vld [vmem:[%s0 + $0xf8] sm:$0xff]
  %v59 = vld [vmem:[%s2] sm:$0x3]
  %v61 = vperm.slane %v59, 0
  %v62 = vperm.slane %v59, 1
  %v65 = vadd.f32 %v51, %v61
  %v66 = vadd.f32 %v52, %v62
  %v67 = vadd.f32 %v53, %v61
  %v68 = vadd.f32 %v54, %v62
  %v69 = vadd.f32 %v55, %v61
  %v70 = vadd.f32 %v56, %v62
  %v71 = vadd.f32 %v57, %v61
  %v72 = vadd.f32 %v58, %v62
  %v73 = vld [vmem:[%s0 + $0x10] sm:$0xfe]
  %v74 = vld [vmem:[%s0 + $0x18] sm:$0xfe]
  %v75 = vld [vmem:[%s0 + $0x60] sm:$0xff]
  %v76 = vld [vmem:[%s0 + $0x68] sm:$0xff]
  %v77 = vld [vmem:[%s0 + $0xb0] sm:$0xff]
  %v78 = vld [vmem:[%s0 + $0xb8] sm:$0xff]
  %v79 = vld [vmem:[%s0 + $0x100] sm:$0xff]
  %v80 = vld [vmem:[%s0 + $0x108] sm:$0xff]
  %s81 = scalar_lea.vmem %s39, 16
  %v82 = vld [vmem:[%s81] ss:$8 sm:$0x3]
  %vm91 = vcmask 1046528
  %v92 = vrot.slane %v73, 1
  %v93 = vrot.slane %v75, 1
  %v94 = vsel %vm91, %v92, %v93
  %v95 = vrot.slane %v74, 1
  %v96 = vrot.slane %v76, 1
  %v97 = vsel %vm91, %v95, %v96
  %v98 = vrot.slane %v77, 1
  %v99 = vsel %vm91, %v93, %v98
  %v100 = vrot.slane %v78, 1
  %v101 = vsel %vm91, %v96, %v100
  %v102 = vrot.slane %v79, 1
  %v103 = vsel %vm91, %v98, %v102
  %v104 = vrot.slane %v80, 1
  %v105 = vsel %vm91, %v100, %v104
  %v115 = vperm.slane %v82, 0
  %v116 = vperm.slane %v82, 1
  %v119 = vsel %vm91, %v102, %v115
  %v120 = vsel %vm91, %v104, %v116
  %v121 = vadd.f32 %v65, %v94
  %v122 = vadd.f32 %v66, %v97
  %v123 = vadd.f32 %v67, %v99
  %v124 = vadd.f32 %v68, %v101
  %v125 = vadd.f32 %v69, %v103
  %v126 = vadd.f32 %v70, %v105
  %v127 = vadd.f32 %v71, %v119
  %v128 = vadd.f32 %v72, %v120
  %v129 = vld [vmem:[%s0 + $0x20] sm:$0xfc]
  %v130 = vld [vmem:[%s0 + $0x28] sm:$0xfc]
  %v131 = vld [vmem:[%s0 + $0x70] sm:$0xff]
  %v132 = vld [vmem:[%s0 + $0x78] sm:$0xff]
  %v133 = vld [vmem:[%s0 + $0xc0] sm:$0xff]
  %v134 = vld [vmem:[%s0 + $0xc8] sm:$0xff]
  %v135 = vld [vmem:[%s0 + $0x110] sm:$0xff]
  %v136 = vld [vmem:[%s0 + $0x118] sm:$0xff]
  %v137 = vld [vmem:[%s39 + $0x20] sm:$0x3]
  %v138 = vld [vmem:[%s39 + $0x28] sm:$0x3]
  %vm147 = vcmask 1045504
  %v148 = vrot.slane %v129, 2
  %v149 = vrot.slane %v131, 2
  %v150 = vsel %vm147, %v148, %v149
  %v151 = vrot.slane %v130, 2
  %v152 = vrot.slane %v132, 2
  %v153 = vsel %vm147, %v151, %v152
  %v154 = vrot.slane %v133, 2
  %v155 = vsel %vm147, %v149, %v154
  %v156 = vrot.slane %v134, 2
  %v157 = vsel %vm147, %v152, %v156
  %v158 = vrot.slane %v135, 2
  %v159 = vsel %vm147, %v154, %v158
  %v160 = vrot.slane %v136, 2
  %v161 = vsel %vm147, %v156, %v160
  %v172 = vrot.slane %v137, 2
  %v173 = vrot.slane %v138, 2
  %v176 = vsel %vm147, %v158, %v172
  %v177 = vsel %vm147, %v160, %v173
  %v178 = vadd.f32 %v121, %v150
  %v179 = vadd.f32 %v122, %v153
  %v180 = vadd.f32 %v123, %v155
  %v181 = vadd.f32 %v124, %v157
  %v182 = vadd.f32 %v125, %v159
  %v183 = vadd.f32 %v126, %v161
  %v184 = vadd.f32 %v127, %v176
  %v185 = vadd.f32 %v128, %v177
  %v186 = vld [vmem:[%s0 + $0x30] sm:$0xf8]
  %v187 = vld [vmem:[%s0 + $0x38] sm:$0xf8]
  %v188 = vld [vmem:[%s0 + $0x80] sm:$0xff]
  %v189 = vld [vmem:[%s0 + $0x88] sm:$0xff]
  %v190 = vld [vmem:[%s0 + $0xd0] sm:$0xff]
  %v191 = vld [vmem:[%s0 + $0xd8] sm:$0xff]
  %v192 = vld [vmem:[%s0 + $0x120] sm:$0xff]
  %v193 = vld [vmem:[%s0 + $0x128] sm:$0xff]
  %v194 = vld [vmem:[%s39 + $0x30] sm:$0x7]
  %v195 = vld [vmem:[%s39 + $0x38] sm:$0x7]
  %vm204 = vcmask 1044480
  %v205 = vrot.slane %v186, 3
  %v206 = vrot.slane %v188, 3
  %v207 = vsel %vm204, %v205, %v206
  %v208 = vrot.slane %v187, 3
  %v209 = vrot.slane %v189, 3
  %v210 = vsel %vm204, %v208, %v209
  %v211 = vrot.slane %v190, 3
  %v212 = vsel %vm204, %v206, %v211
  %v213 = vrot.slane %v191, 3
  %v214 = vsel %vm204, %v209, %v213
  %v215 = vrot.slane %v192, 3
  %v216 = vsel %vm204, %v211, %v215
  %v217 = vrot.slane %v193, 3
  %v218 = vsel %vm204, %v213, %v217
  %v229 = vrot.slane %v194, 3
  %v230 = vrot.slane %v195, 3
  %v233 = vsel %vm204, %v215, %v229
  %v234 = vsel %vm204, %v217, %v230
  %v235 = vadd.f32 %v178, %v207
  %v236 = vadd.f32 %v179, %v210
  %v237 = vadd.f32 %v180, %v212
  %v238 = vadd.f32 %v181, %v214
  %v239 = vadd.f32 %v182, %v216
  %v240 = vadd.f32 %v183, %v218
  %v241 = vadd.f32 %v184, %v233
  %v242 = vadd.f32 %v185, %v234
  %v243 = vld [vmem:[%s0 + $0x40] sm:$0xf0]
  %v244 = vld [vmem:[%s0 + $0x48] sm:$0xf0]
  %v245 = vld [vmem:[%s0 + $0x90] sm:$0xff]
  %v246 = vld [vmem:[%s0 + $0x98] sm:$0xff]
  %v247 = vld [vmem:[%s0 + $0xe0] sm:$0xff]
  %v248 = vld [vmem:[%s0 + $0xe8] sm:$0xff]
  %v249 = vld [vmem:[%s0 + $0x130] sm:$0xff]
  %v250 = vld [vmem:[%s0 + $0x138] sm:$0xff]
  %v251 = vld [vmem:[%s39 + $0x40] sm:$0xf]
  %v252 = vld [vmem:[%s39 + $0x48] sm:$0xf]
  %vm261 = vcmask 1043456
  %v262 = vrot.slane %v243, 4
  %v263 = vrot.slane %v245, 4
  %v264 = vsel %vm261, %v262, %v263
  %v265 = vrot.slane %v244, 4
  %v266 = vrot.slane %v246, 4
  %v267 = vsel %vm261, %v265, %v266
  %v268 = vrot.slane %v247, 4
  %v269 = vsel %vm261, %v263, %v268
  %v270 = vrot.slane %v248, 4
  %v271 = vsel %vm261, %v266, %v270
  %v272 = vrot.slane %v249, 4
  %v273 = vsel %vm261, %v268, %v272
  %v274 = vrot.slane %v250, 4
  %v275 = vsel %vm261, %v270, %v274
  %v286 = vrot.slane %v251, 4
  %v287 = vrot.slane %v252, 4
  %v290 = vsel %vm261, %v272, %v286
  %v291 = vsel %vm261, %v274, %v287
  %v292 = vadd.f32 %v235, %v264
  %v293 = vadd.f32 %v236, %v267
  %v294 = vadd.f32 %v237, %v269
  %v295 = vadd.f32 %v238, %v271
  %v296 = vadd.f32 %v239, %v273
  %v297 = vadd.f32 %v240, %v275
  %v298 = vadd.f32 %v241, %v290
  %v299 = vadd.f32 %v242, %v291
  %v300 = vld [vmem:[%s3] sm:$0xff]
  %v301 = vld [vmem:[%s3 + $0x8] sm:$0xff]
  %v302 = vld [vmem:[%s3 + $0x10] sm:$0xff]
  %v303 = vld [vmem:[%s3 + $0x18] sm:$0xff]
  %v304 = vld [vmem:[%s3 + $0x20] sm:$0xff]
  %v305 = vld [vmem:[%s3 + $0x28] sm:$0xff]
  %v306 = vld [vmem:[%s3 + $0x30] sm:$0xff]
  %v307 = vld [vmem:[%s3 + $0x38] sm:$0xff]
  %v308 = vld [vmem:[%s3 + $0x40] sm:$0xff]
  %v309 = vld [vmem:[%s3 + $0x48] sm:$0xff]
  %v310 = vld [vmem:[%s3 + $0x50] sm:$0xff]
  %v311 = vld [vmem:[%s3 + $0x58] sm:$0xff]
  %v312 = vld [vmem:[%s3 + $0x60] sm:$0xff]
  %v313 = vld [vmem:[%s3 + $0x68] sm:$0xff]
  %v314 = vld [vmem:[%s3 + $0x70] sm:$0xff]
  %v315 = vld [vmem:[%s3 + $0x78] sm:$0xff]
  %v316 = vld [vmem:[%s3 + $0x80] sm:$0xff]
  %v317 = vld [vmem:[%s3 + $0x88] sm:$0xff]
  %v318 = vld [vmem:[%s3 + $0x90] sm:$0xff]
  %v319 = vld [vmem:[%s3 + $0x98] sm:$0xff]
  %v320 = vld [vmem:[%s3 + $0xa0] sm:$0xff]
  %v321 = vld [vmem:[%s3 + $0xa8] sm:$0xff]
  %v322 = vld [vmem:[%s3 + $0xb0] sm:$0xff]
  %v323 = vld [vmem:[%s3 + $0xb8] sm:$0xff]
  %v324 = vld [vmem:[%s3 + $0xc0] sm:$0xff]
  %v325 = vld [vmem:[%s3 + $0xc8] sm:$0xff]
  %v326 = vld [vmem:[%s3 + $0xd0] sm:$0xff]
  %v327 = vld [vmem:[%s3 + $0xd8] sm:$0xff]
  %v328 = vld [vmem:[%s3 + $0xe0] sm:$0xff]
  %v329 = vld [vmem:[%s3 + $0xe8] sm:$0xff]
  %v330 = vld [vmem:[%s3 + $0xf0] sm:$0xff]
  %v331 = vld [vmem:[%s3 + $0xf8] sm:$0xff]
  %v332 = vld [vmem:[#allocation2] sm:$0x3]
  %v334 = vperm.slane %v332, 0
  %v335 = vperm.slane %v332, 1
  %v338 = vpack.c.bf16 %v334, %v334
  %v339 = vpack.c.bf16 %v335, %v335
  %v372 = vunpack.c.l.b16 %v300
  %v373 = vunpack.c.h.b16 %v300
  %v374 = vunpack.c.l.b16 %v301
  %v375 = vunpack.c.h.b16 %v301
  %v376 = vunpack.c.l.b16 %v302
  %v377 = vunpack.c.h.b16 %v302
  %v378 = vunpack.c.l.b16 %v303
  %v379 = vunpack.c.h.b16 %v303
  %v380 = vunpack.c.l.b16 %v304
  %v381 = vunpack.c.h.b16 %v304
  %v382 = vunpack.c.l.b16 %v305
  %v383 = vunpack.c.h.b16 %v305
  %v384 = vunpack.c.l.b16 %v306
  %v385 = vunpack.c.h.b16 %v306
  %v386 = vunpack.c.l.b16 %v307
  %v387 = vunpack.c.h.b16 %v307
  %v388 = vunpack.c.l.b16 %v308
  %v389 = vunpack.c.h.b16 %v308
  %v390 = vunpack.c.l.b16 %v309
  %v391 = vunpack.c.h.b16 %v309
  %v392 = vunpack.c.l.b16 %v310
  %v393 = vunpack.c.h.b16 %v310
  %v394 = vunpack.c.l.b16 %v311
  %v395 = vunpack.c.h.b16 %v311
  %v396 = vunpack.c.l.b16 %v312
  %v397 = vunpack.c.h.b16 %v312
  %v398 = vunpack.c.l.b16 %v313
  %v399 = vunpack.c.h.b16 %v313
  %v400 = vunpack.c.l.b16 %v314
  %v401 = vunpack.c.h.b16 %v314
  %v402 = vunpack.c.l.b16 %v315
  %v403 = vunpack.c.h.b16 %v315
  %v404 = vunpack.c.l.b16 %v316
  %v405 = vunpack.c.h.b16 %v316
  %v406 = vunpack.c.l.b16 %v317
  %v407 = vunpack.c.h.b16 %v317
  %v408 = vunpack.c.l.b16 %v318
  %v409 = vunpack.c.h.b16 %v318
  %v410 = vunpack.c.l.b16 %v319
  %v411 = vunpack.c.h.b16 %v319
  %v412 = vunpack.c.l.b16 %v320
  %v413 = vunpack.c.h.b16 %v320
  %v414 = vunpack.c.l.b16 %v321
  %v415 = vunpack.c.h.b16 %v321
  %v416 = vunpack.c.l.b16 %v322
  %v417 = vunpack.c.h.b16 %v322
  %v418 = vunpack.c.l.b16 %v323
  %v419 = vunpack.c.h.b16 %v323
  %v420 = vunpack.c.l.b16 %v324
  %v421 = vunpack.c.h.b16 %v324
  %v422 = vunpack.c.l.b16 %v325
  %v423 = vunpack.c.h.b16 %v325
  %v424 = vunpack.c.l.b16 %v326
  %v425 = vunpack.c.h.b16 %v326
  %v426 = vunpack.c.l.b16 %v327
  %v427 = vunpack.c.h.b16 %v327
  %v428 = vunpack.c.l.b16 %v328
  %v429 = vunpack.c.h.b16 %v328
  %v430 = vunpack.c.l.b16 %v329
  %v431 = vunpack.c.h.b16 %v329
  %v432 = vunpack.c.l.b16 %v330
  %v433 = vunpack.c.h.b16 %v330
  %v434 = vunpack.c.l.b16 %v331
  %v435 = vunpack.c.h.b16 %v331
  %v436 = vpack.c.b16 %v374, %v372
  %v437 = vpack.c.b16 %v375, %v373
  %v438 = vpack.c.b16 %v378, %v376
  %v439 = vpack.c.b16 %v379, %v377
  %v440 = vpack.c.b16 %v382, %v380
  %v441 = vpack.c.b16 %v383, %v381
  %v442 = vpack.c.b16 %v386, %v384
  %v443 = vpack.c.b16 %v387, %v385
  %v444 = vpack.c.b16 %v390, %v388
  %v445 = vpack.c.b16 %v391, %v389
  %v446 = vpack.c.b16 %v394, %v392
  %v447 = vpack.c.b16 %v395, %v393
  %v448 = vpack.c.b16 %v398, %v396
  %v449 = vpack.c.b16 %v399, %v397
  %v450 = vpack.c.b16 %v402, %v400
  %v451 = vpack.c.b16 %v403, %v401
  %v452 = vpack.c.b16 %v406, %v404
  %v453 = vpack.c.b16 %v407, %v405
  %v454 = vpack.c.b16 %v410, %v408
  %v455 = vpack.c.b16 %v411, %v409
  %v456 = vpack.c.b16 %v414, %v412
  %v457 = vpack.c.b16 %v415, %v413
  %v458 = vpack.c.b16 %v418, %v416
  %v459 = vpack.c.b16 %v419, %v417
  %v460 = vpack.c.b16 %v422, %v420
  %v461 = vpack.c.b16 %v423, %v421
  %v462 = vpack.c.b16 %v426, %v424
  %v463 = vpack.c.b16 %v427, %v425
  %v464 = vpack.c.b16 %v430, %v428
  %v465 = vpack.c.b16 %v431, %v429
  %v466 = vpack.c.b16 %v434, %v432
  %v467 = vpack.c.b16 %v435, %v433
  %500 = vmatpush.bf16.msra.mxu0 %v450
  %501 = vmatpush.bf16.msra.mxu0 %v448
  %502 = vmatpush.bf16.msra.mxu0 %v446
  %503 = vmatpush.bf16.msra.mxu0 %v444
  %504 = vmatpush.bf16.msra.mxu0 %v442
  %505 = vmatpush.bf16.msra.mxu0 %v440
  %506 = vmatpush.bf16.msra.mxu0 %v438
  %507 = vmatpush.bf16.msra.mxu0 %v436
  %508 = vmatmul.bf16.gmra.mxu0 %v338
  %v509 = vpop.f32.mrf.mxu0
  %v510 = vadd.f32 0.0, %v509
  %v511 = vpop.f32.mrf.mxu0
  %512 = vdwg.mxu0
  %513 = vmatpush.bf16.msra.mxu0 %v466
  %514 = vmatpush.bf16.msra.mxu0 %v464
  %515 = vmatpush.bf16.msra.mxu0 %v462
  %516 = vmatpush.bf16.msra.mxu0 %v460
  %517 = vmatpush.bf16.msra.mxu0 %v458
  %518 = vmatpush.bf16.msra.mxu0 %v456
  %519 = vmatpush.bf16.msra.mxu0 %v454
  %520 = vmatpush.bf16.msra.mxu0 %v452
  %521 = vmatmul.bf16.gmra.mxu0 %v339
  %v522 = vpop.f32.mrf.mxu0
  %v523 = vadd.f32 %v510, %v522
  %v524 = vpop.f32.mrf.mxu0
  %525 = vdwg.mxu0
  %526 = vmatpush.bf16.msra.mxu0 %v451
  %527 = vmatpush.bf16.msra.mxu0 %v449
  %528 = vmatpush.bf16.msra.mxu0 %v447
  %529 = vmatpush.bf16.msra.mxu0 %v445
  %530 = vmatpush.bf16.msra.mxu0 %v443
  %531 = vmatpush.bf16.msra.mxu0 %v441
  %532 = vmatpush.bf16.msra.mxu0 %v439
  %533 = vmatpush.bf16.msra.mxu0 %v437
  %534 = vmatmul.bf16.gmra.mxu0 %v338
  %v535 = vpop.f32.mrf.mxu0
  %v536 = vadd.f32 0.0, %v535
  %v537 = vpop.f32.mrf.mxu0
  %538 = vdwg.mxu0
  %539 = vmatpush.bf16.msra.mxu0 %v467
  %540 = vmatpush.bf16.msra.mxu0 %v465
  %541 = vmatpush.bf16.msra.mxu0 %v463
  %542 = vmatpush.bf16.msra.mxu0 %v461
  %543 = vmatpush.bf16.msra.mxu0 %v459
  %544 = vmatpush.bf16.msra.mxu0 %v457
  %545 = vmatpush.bf16.msra.mxu0 %v455
  %546 = vmatpush.bf16.msra.mxu0 %v453
  %547 = vmatmul.bf16.gmra.mxu0 %v339
  %v548 = vpop.f32.mrf.mxu0
  %v549 = vadd.f32 %v536, %v548
  %v550 = vpop.f32.mrf.mxu0
  %551 = vdwg.mxu0
  %v552 = vadd.f32 %v292, %v523
  %v553 = vadd.f32 %v293, %v549
  %v554 = vtanh.pop %v552
  %v555 = vtanh.pop %v553
  %v556 = vpack.c.bf16 %v555, %v554
  %v558 = vunpack.c.l.b16 %v556
  %v559 = vunpack.c.h.b16 %v556
  %v560 = vpack.c.b16 %v558, %v558
  %v561 = vpack.c.b16 %v559, %v559
  %564 = vmatpush.bf16.msra.mxu0 %v450
  %565 = vmatpush.bf16.msra.mxu0 %v448
  %566 = vmatpush.bf16.msra.mxu0 %v446
  %567 = vmatpush.bf16.msra.mxu0 %v444
  %568 = vmatpush.bf16.msra.mxu0 %v442
  %569 = vmatpush.bf16.msra.mxu0 %v440
  %570 = vmatpush.bf16.msra.mxu0 %v438
  %571 = vmatpush.bf16.msra.mxu0 %v436
  %572 = vmatmul.bf16.gmra.mxu0 %v560
  %v573 = vpop.f32.mrf.mxu0
  %v574 = vadd.f32 0.0, %v573
  %v575 = vpop.f32.mrf.mxu0
  %576 = vdwg.mxu0
  %577 = vmatpush.bf16.msra.mxu0 %v466
  %578 = vmatpush.bf16.msra.mxu0 %v464
  %579 = vmatpush.bf16.msra.mxu0 %v462
  %580 = vmatpush.bf16.msra.mxu0 %v460
  %581 = vmatpush.bf16.msra.mxu0 %v458
  %582 = vmatpush.bf16.msra.mxu0 %v456
  %583 = vmatpush.bf16.msra.mxu0 %v454
  %584 = vmatpush.bf16.msra.mxu0 %v452
  %585 = vmatmul.bf16.gmra.mxu0 %v561
  %v586 = vpop.f32.mrf.mxu0
  %v587 = vadd.f32 %v574, %v586
  %v588 = vpop.f32.mrf.mxu0
  %589 = vdwg.mxu0
  %590 = vmatpush.bf16.msra.mxu0 %v451
  %591 = vmatpush.bf16.msra.mxu0 %v449
  %592 = vmatpush.bf16.msra.mxu0 %v447
  %593 = vmatpush.bf16.msra.mxu0 %v445
  %594 = vmatpush.bf16.msra.mxu0 %v443
  %595 = vmatpush.bf16.msra.mxu0 %v441
  %596 = vmatpush.bf16.msra.mxu0 %v439
  %597 = vmatpush.bf16.msra.mxu0 %v437
  %598 = vmatmul.bf16.gmra.mxu0 %v560
  %v599 = vpop.f32.mrf.mxu0
  %v600 = vadd.f32 0.0, %v599
  %v601 = vpop.f32.mrf.mxu0
  %602 = vdwg.mxu0
  %603 = vmatpush.bf16.msra.mxu0 %v467
  %604 = vmatpush.bf16.msra.mxu0 %v465
  %605 = vmatpush.bf16.msra.mxu0 %v463
  %606 = vmatpush.bf16.msra.mxu0 %v461
  %607 = vmatpush.bf16.msra.mxu0 %v459
  %608 = vmatpush.bf16.msra.mxu0 %v457
  %609 = vmatpush.bf16.msra.mxu0 %v455
  %610 = vmatpush.bf16.msra.mxu0 %v453
  %611 = vmatmul.bf16.gmra.mxu0 %v561
  %v612 = vpop.f32.mrf.mxu0
  %v613 = vadd.f32 %v600, %v612
  %v614 = vpop.f32.mrf.mxu0
  %615 = vdwg.mxu0
  %v618 = vrot.slane %v587, 7
  %v619 = vrot.slane %v613, 7
  %v622 = vadd.f32 %v292, %v618
  %v623 = vadd.f32 %v293, %v619
  %v624 = vtanh.pop %v622
  %v625 = vtanh.pop %v623
  %v626 = vpack.c.bf16 %v625, %v624
  %v628 = vunpack.c.l.b16 %v626
  %v629 = vunpack.c.h.b16 %v626
  %v630 = vpack.c.b16 %v628, %v628
  %v631 = vpack.c.b16 %v629, %v629
  %v633 = vshrl.u32 %v630, 16
  %v636 = vshrl.u32 %v631, 16
  %640 = vmatpush.bf16.msra.mxu0 %v450
  %641 = vmatpush.bf16.msra.mxu0 %v448
  %642 = vmatpush.bf16.msra.mxu0 %v446
  %643 = vmatpush.bf16.msra.mxu0 %v444
  %644 = vmatpush.bf16.msra.mxu0 %v442
  %645 = vmatpush.bf16.msra.mxu0 %v440
  %646 = vmatpush.bf16.msra.mxu0 %v438
  %647 = vmatpush.bf16.msra.mxu0 %v436
  %648 = vmatmul.bf16.gmra.mxu0 %v633
  %v649 = vpop.f32.mrf.mxu0
  %v650 = vadd.f32 0.0, %v649
  %v651 = vpop.f32.mrf.mxu0
  %652 = vdwg.mxu0
  %653 = vmatpush.bf16.msra.mxu0 %v466
  %654 = vmatpush.bf16.msra.mxu0 %v464
  %655 = vmatpush.bf16.msra.mxu0 %v462
  %656 = vmatpush.bf16.msra.mxu0 %v460
  %657 = vmatpush.bf16.msra.mxu0 %v458
  %658 = vmatpush.bf16.msra.mxu0 %v456
  %659 = vmatpush.bf16.msra.mxu0 %v454
  %660 = vmatpush.bf16.msra.mxu0 %v452
  %661 = vmatmul.bf16.gmra.mxu0 %v636
  %v662 = vpop.f32.mrf.mxu0
  %v663 = vadd.f32 %v650, %v662
  %v664 = vpop.f32.mrf.mxu0
  %665 = vdwg.mxu0
  %666 = vmatpush.bf16.msra.mxu0 %v451
  %667 = vmatpush.bf16.msra.mxu0 %v449
  %668 = vmatpush.bf16.msra.mxu0 %v447
  %669 = vmatpush.bf16.msra.mxu0 %v445
  %670 = vmatpush.bf16.msra.mxu0 %v443
  %671 = vmatpush.bf16.msra.mxu0 %v441
  %672 = vmatpush.bf16.msra.mxu0 %v439
  %673 = vmatpush.bf16.msra.mxu0 %v437
  %674 = vmatmul.bf16.gmra.mxu0 %v633
  %v675 = vpop.f32.mrf.mxu0
  %v676 = vadd.f32 0.0, %v675
  %v677 = vpop.f32.mrf.mxu0
  %678 = vdwg.mxu0
  %679 = vmatpush.bf16.msra.mxu0 %v467
  %680 = vmatpush.bf16.msra.mxu0 %v465
  %681 = vmatpush.bf16.msra.mxu0 %v463
  %682 = vmatpush.bf16.msra.mxu0 %v461
  %683 = vmatpush.bf16.msra.mxu0 %v459
  %684 = vmatpush.bf16.msra.mxu0 %v457
  %685 = vmatpush.bf16.msra.mxu0 %v455
  %686 = vmatpush.bf16.msra.mxu0 %v453
  %687 = vmatmul.bf16.gmra.mxu0 %v636
  %v688 = vpop.f32.mrf.mxu0
  %v689 = vadd.f32 %v676, %v688
  %v690 = vpop.f32.mrf.mxu0
  %691 = vdwg.mxu0
  %v694 = vrot.slane %v663, 6
  %v695 = vrot.slane %v689, 6
  %v698 = vadd.f32 %v292, %v694
  %v699 = vadd.f32 %v293, %v695
  %v700 = vtanh.pop %v698
  %v701 = vtanh.pop %v699
  %v702 = vpack.c.bf16 %v701, %v700
  %v704 = vunpack.c.l.b16 %v702
  %v705 = vunpack.c.h.b16 %v702
  %v706 = vpack.c.b16 %v704, %v704
  %v707 = vpack.c.b16 %v705, %v705
  %v708 = vrot.slane %v706, 1
  %v709 = vrot.slane %v707, 1
  %712 = vmatpush.bf16.msra.mxu0 %v450
  %713 = vmatpush.bf16.msra.mxu0 %v448
  %714 = vmatpush.bf16.msra.mxu0 %v446
  %715 = vmatpush.bf16.msra.mxu0 %v444
  %716 = vmatpush.bf16.msra.mxu0 %v442
  %717 = vmatpush.bf16.msra.mxu0 %v440
  %718 = vmatpush.bf16.msra.mxu0 %v438
  %719 = vmatpush.bf16.msra.mxu0 %v436
  %720 = vmatmul.bf16.gmra.mxu0 %v708
  %v721 = vpop.f32.mrf.mxu0
  %v722 = vadd.f32 0.0, %v721
  %v723 = vpop.f32.mrf.mxu0
  %724 = vdwg.mxu0
  %725 = vmatpush.bf16.msra.mxu0 %v466
  %726 = vmatpush.bf16.msra.mxu0 %v464
  %727 = vmatpush.bf16.msra.mxu0 %v462
  %728 = vmatpush.bf16.msra.mxu0 %v460
  %729 = vmatpush.bf16.msra.mxu0 %v458
  %730 = vmatpush.bf16.msra.mxu0 %v456
  %731 = vmatpush.bf16.msra.mxu0 %v454
  %732 = vmatpush.bf16.msra.mxu0 %v452
  %733 = vmatmul.bf16.gmra.mxu0 %v709
  %v734 = vpop.f32.mrf.mxu0
  %v735 = vadd.f32 %v722, %v734
  %v736 = vpop.f32.mrf.mxu0
  %737 = vdwg.mxu0
  %738 = vmatpush.bf16.msra.mxu0 %v451
  %739 = vmatpush.bf16.msra.mxu0 %v449
  %740 = vmatpush.bf16.msra.mxu0 %v447
  %741 = vmatpush.bf16.msra.mxu0 %v445
  %742 = vmatpush.bf16.msra.mxu0 %v443
  %743 = vmatpush.bf16.msra.mxu0 %v441
  %744 = vmatpush.bf16.msra.mxu0 %v439
  %745 = vmatpush.bf16.msra.mxu0 %v437
  %746 = vmatmul.bf16.gmra.mxu0 %v708
  %v747 = vpop.f32.mrf.mxu0
  %v748 = vadd.f32 0.0, %v747
  %v749 = vpop.f32.mrf.mxu0
  %750 = vdwg.mxu0
  %751 = vmatpush.bf16.msra.mxu0 %v467
  %752 = vmatpush.bf16.msra.mxu0 %v465
  %753 = vmatpush.bf16.msra.mxu0 %v463
  %754 = vmatpush.bf16.msra.mxu0 %v461
  %755 = vmatpush.bf16.msra.mxu0 %v459
  %756 = vmatpush.bf16.msra.mxu0 %v457
  %757 = vmatpush.bf16.msra.mxu0 %v455
  %758 = vmatpush.bf16.msra.mxu0 %v453
  %759 = vmatmul.bf16.gmra.mxu0 %v709
  %v760 = vpop.f32.mrf.mxu0
  %v761 = vadd.f32 %v748, %v760
  %v762 = vpop.f32.mrf.mxu0
  %763 = vdwg.mxu0
  %v766 = vrot.slane %v735, 5
  %v767 = vrot.slane %v761, 5
  %v770 = vadd.f32 %v292, %v766
  %v771 = vadd.f32 %v293, %v767
  %v772 = vtanh.pop %v770
  %v773 = vtanh.pop %v771
  %v774 = vpack.c.bf16 %v773, %v772
  %v776 = vunpack.c.l.b16 %v774
  %v777 = vunpack.c.h.b16 %v774
  %v778 = vpack.c.b16 %v776, %v776
  %v779 = vpack.c.b16 %v777, %v777
  %v781 = vshrl.u32 %v778, 16
  %v783 = vrot.slane %v781, 1
  %v785 = vshrl.u32 %v779, 16
  %v787 = vrot.slane %v785, 1
  %790 = vmatpush.bf16.msra.mxu0 %v450
  %791 = vmatpush.bf16.msra.mxu0 %v448
  %792 = vmatpush.bf16.msra.mxu0 %v446
  %793 = vmatpush.bf16.msra.mxu0 %v444
  %794 = vmatpush.bf16.msra.mxu0 %v442
  %795 = vmatpush.bf16.msra.mxu0 %v440
  %796 = vmatpush.bf16.msra.mxu0 %v438
  %797 = vmatpush.bf16.msra.mxu0 %v436
  %798 = vmatmul.bf16.gmra.mxu0 %v783
  %v799 = vpop.f32.mrf.mxu0
  %v800 = vadd.f32 0.0, %v799
  %v801 = vpop.f32.mrf.mxu0
  %802 = vdwg.mxu0
  %803 = vmatpush.bf16.msra.mxu0 %v466
  %804 = vmatpush.bf16.msra.mxu0 %v464
  %805 = vmatpush.bf16.msra.mxu0 %v462
  %806 = vmatpush.bf16.msra.mxu0 %v460
  %807 = vmatpush.bf16.msra.mxu0 %v458
  %808 = vmatpush.bf16.msra.mxu0 %v456
  %809 = vmatpush.bf16.msra.mxu0 %v454
  %810 = vmatpush.bf16.msra.mxu0 %v452
  %811 = vmatmul.bf16.gmra.mxu0 %v787
  %v812 = vpop.f32.mrf.mxu0
  %v813 = vadd.f32 %v800, %v812
  %v814 = vpop.f32.mrf.mxu0
  %815 = vdwg.mxu0
  %816 = vmatpush.bf16.msra.mxu0 %v451
  %817 = vmatpush.bf16.msra.mxu0 %v449
  %818 = vmatpush.bf16.msra.mxu0 %v447
  %819 = vmatpush.bf16.msra.mxu0 %v445
  %820 = vmatpush.bf16.msra.mxu0 %v443
  %821 = vmatpush.bf16.msra.mxu0 %v441
  %822 = vmatpush.bf16.msra.mxu0 %v439
  %823 = vmatpush.bf16.msra.mxu0 %v437
  %824 = vmatmul.bf16.gmra.mxu0 %v783
  %v825 = vpop.f32.mrf.mxu0
  %v826 = vadd.f32 0.0, %v825
  %v827 = vpop.f32.mrf.mxu0
  %828 = vdwg.mxu0
  %829 = vmatpush.bf16.msra.mxu0 %v467
  %830 = vmatpush.bf16.msra.mxu0 %v465
  %831 = vmatpush.bf16.msra.mxu0 %v463
  %832 = vmatpush.bf16.msra.mxu0 %v461
  %833 = vmatpush.bf16.msra.mxu0 %v459
  %834 = vmatpush.bf16.msra.mxu0 %v457
  %835 = vmatpush.bf16.msra.mxu0 %v455
  %836 = vmatpush.bf16.msra.mxu0 %v453
  %837 = vmatmul.bf16.gmra.mxu0 %v787
  %v838 = vpop.f32.mrf.mxu0
  %v839 = vadd.f32 %v826, %v838
  %v840 = vpop.f32.mrf.mxu0
  %841 = vdwg.mxu0
  %v844 = vrot.slane %v813, 4
  %v845 = vrot.slane %v839, 4
  %v848 = vadd.f32 %v292, %v844
  %v849 = vadd.f32 %v293, %v845
  %v850 = vtanh.pop %v848
  %v851 = vtanh.pop %v849
  %v852 = vpack.c.bf16 %v851, %v850
  %v854 = vunpack.c.l.b16 %v852
  %v855 = vunpack.c.h.b16 %v852
  %v856 = vpack.c.b16 %v854, %v854
  %v857 = vpack.c.b16 %v855, %v855
  %v858 = vrot.slane %v856, 2
  %v859 = vrot.slane %v857, 2
  %862 = vmatpush.bf16.msra.mxu0 %v450
  %863 = vmatpush.bf16.msra.mxu0 %v448
  %864 = vmatpush.bf16.msra.mxu0 %v446
  %865 = vmatpush.bf16.msra.mxu0 %v444
  %866 = vmatpush.bf16.msra.mxu0 %v442
  %867 = vmatpush.bf16.msra.mxu0 %v440
  %868 = vmatpush.bf16.msra.mxu0 %v438
  %869 = vmatpush.bf16.msra.mxu0 %v436
  %870 = vmatmul.bf16.gmra.mxu0 %v858
  %v871 = vpop.f32.mrf.mxu0
  %v872 = vadd.f32 0.0, %v871
  %v873 = vpop.f32.mrf.mxu0
  %874 = vdwg.mxu0
  %875 = vmatpush.bf16.msra.mxu0 %v466
  %876 = vmatpush.bf16.msra.mxu0 %v464
  %877 = vmatpush.bf16.msra.mxu0 %v462
  %878 = vmatpush.bf16.msra.mxu0 %v460
  %879 = vmatpush.bf16.msra.mxu0 %v458
  %880 = vmatpush.bf16.msra.mxu0 %v456
  %881 = vmatpush.bf16.msra.mxu0 %v454
  %882 = vmatpush.bf16.msra.mxu0 %v452
  %883 = vmatmul.bf16.gmra.mxu0 %v859
  %v884 = vpop.f32.mrf.mxu0
  %v885 = vadd.f32 %v872, %v884
  %v886 = vpop.f32.mrf.mxu0
  %887 = vdwg.mxu0
  %888 = vmatpush.bf16.msra.mxu0 %v451
  %889 = vmatpush.bf16.msra.mxu0 %v449
  %890 = vmatpush.bf16.msra.mxu0 %v447
  %891 = vmatpush.bf16.msra.mxu0 %v445
  %892 = vmatpush.bf16.msra.mxu0 %v443
  %893 = vmatpush.bf16.msra.mxu0 %v441
  %894 = vmatpush.bf16.msra.mxu0 %v439
  %895 = vmatpush.bf16.msra.mxu0 %v437
  %896 = vmatmul.bf16.gmra.mxu0 %v858
  %v897 = vpop.f32.mrf.mxu0
  %v898 = vadd.f32 0.0, %v897
  %v899 = vpop.f32.mrf.mxu0
  %900 = vdwg.mxu0
  %901 = vmatpush.bf16.msra.mxu0 %v467
  %902 = vmatpush.bf16.msra.mxu0 %v465
  %903 = vmatpush.bf16.msra.mxu0 %v463
  %904 = vmatpush.bf16.msra.mxu0 %v461
  %905 = vmatpush.bf16.msra.mxu0 %v459
  %906 = vmatpush.bf16.msra.mxu0 %v457
  %907 = vmatpush.bf16.msra.mxu0 %v455
  %908 = vmatpush.bf16.msra.mxu0 %v453
  %909 = vmatmul.bf16.gmra.mxu0 %v859
  %v910 = vpop.f32.mrf.mxu0
  %v911 = vadd.f32 %v898, %v910
  %v912 = vpop.f32.mrf.mxu0
  %913 = vdwg.mxu0
  %v916 = vrot.slane %v885, 3
  %v917 = vrot.slane %v911, 3
  %v920 = vadd.f32 %v292, %v916
  %v921 = vadd.f32 %v293, %v917
  %v922 = vtanh.pop %v920
  %v923 = vtanh.pop %v921
  %v924 = vpack.c.bf16 %v923, %v922
  %v926 = vunpack.c.l.b16 %v924
  %v927 = vunpack.c.h.b16 %v924
  %v928 = vpack.c.b16 %v926, %v926
  %v929 = vpack.c.b16 %v927, %v927
  %v931 = vshrl.u32 %v928, 16
  %v933 = vrot.slane %v931, 2
  %v935 = vshrl.u32 %v929, 16
  %v937 = vrot.slane %v935, 2
  %940 = vmatpush.bf16.msra.mxu0 %v450
  %941 = vmatpush.bf16.msra.mxu0 %v448
  %942 = vmatpush.bf16.msra.mxu0 %v446
  %943 = vmatpush.bf16.msra.mxu0 %v444
  %944 = vmatpush.bf16.msra.mxu0 %v442
  %945 = vmatpush.bf16.msra.mxu0 %v440
  %946 = vmatpush.bf16.msra.mxu0 %v438
  %947 = vmatpush.bf16.msra.mxu0 %v436
  %948 = vmatmul.bf16.gmra.mxu0 %v933
  %v949 = vpop.f32.mrf.mxu0
  %v950 = vadd.f32 0.0, %v949
  %v951 = vpop.f32.mrf.mxu0
  %952 = vdwg.mxu0
  %953 = vmatpush.bf16.msra.mxu0 %v466
  %954 = vmatpush.bf16.msra.mxu0 %v464
  %955 = vmatpush.bf16.msra.mxu0 %v462
  %956 = vmatpush.bf16.msra.mxu0 %v460
  %957 = vmatpush.bf16.msra.mxu0 %v458
  %958 = vmatpush.bf16.msra.mxu0 %v456
  %959 = vmatpush.bf16.msra.mxu0 %v454
  %960 = vmatpush.bf16.msra.mxu0 %v452
  %961 = vmatmul.bf16.gmra.mxu0 %v937
  %v962 = vpop.f32.mrf.mxu0
  %v963 = vadd.f32 %v950, %v962
  %v964 = vpop.f32.mrf.mxu0
  %965 = vdwg.mxu0
  %966 = vmatpush.bf16.msra.mxu0 %v451
  %967 = vmatpush.bf16.msra.mxu0 %v449
  %968 = vmatpush.bf16.msra.mxu0 %v447
  %969 = vmatpush.bf16.msra.mxu0 %v445
  %970 = vmatpush.bf16.msra.mxu0 %v443
  %971 = vmatpush.bf16.msra.mxu0 %v441
  %972 = vmatpush.bf16.msra.mxu0 %v439
  %973 = vmatpush.bf16.msra.mxu0 %v437
  %974 = vmatmul.bf16.gmra.mxu0 %v933
  %v975 = vpop.f32.mrf.mxu0
  %v976 = vadd.f32 0.0, %v975
  %v977 = vpop.f32.mrf.mxu0
  %978 = vdwg.mxu0
  %979 = vmatpush.bf16.msra.mxu0 %v467
  %980 = vmatpush.bf16.msra.mxu0 %v465
  %981 = vmatpush.bf16.msra.mxu0 %v463
  %982 = vmatpush.bf16.msra.mxu0 %v461
  %983 = vmatpush.bf16.msra.mxu0 %v459
  %984 = vmatpush.bf16.msra.mxu0 %v457
  %985 = vmatpush.bf16.msra.mxu0 %v455
  %986 = vmatpush.bf16.msra.mxu0 %v453
  %987 = vmatmul.bf16.gmra.mxu0 %v937
  %v988 = vpop.f32.mrf.mxu0
  %v989 = vadd.f32 %v976, %v988
  %v990 = vpop.f32.mrf.mxu0
  %991 = vdwg.mxu0
  %v994 = vrot.slane %v963, 2
  %v995 = vrot.slane %v989, 2
  %v998 = vadd.f32 %v292, %v994
  %v999 = vadd.f32 %v293, %v995
  %v1000 = vtanh.pop %v998
  %v1001 = vtanh.pop %v999
  %v1002 = vpack.c.bf16 %v1001, %v1000
  %v1004 = vunpack.c.l.b16 %v1002
  %v1005 = vunpack.c.h.b16 %v1002
  %v1006 = vpack.c.b16 %v1004, %v1004
  %v1007 = vpack.c.b16 %v1005, %v1005
  %v1008 = vrot.slane %v1006, 3
  %v1009 = vrot.slane %v1007, 3
  %1012 = vmatpush.bf16.msra.mxu0 %v450
  %1013 = vmatpush.bf16.msra.mxu0 %v448
  %1014 = vmatpush.bf16.msra.mxu0 %v446
  %1015 = vmatpush.bf16.msra.mxu0 %v444
  %1016 = vmatpush.bf16.msra.mxu0 %v442
  %1017 = vmatpush.bf16.msra.mxu0 %v440
  %1018 = vmatpush.bf16.msra.mxu0 %v438
  %1019 = vmatpush.bf16.msra.mxu0 %v436
  %1020 = vmatmul.bf16.gmra.mxu0 %v1008
  %v1021 = vpop.f32.mrf.mxu0
  %v1022 = vadd.f32 0.0, %v1021
  %v1023 = vpop.f32.mrf.mxu0
  %1024 = vdwg.mxu0
  %1025 = vmatpush.bf16.msra.mxu0 %v466
  %1026 = vmatpush.bf16.msra.mxu0 %v464
  %1027 = vmatpush.bf16.msra.mxu0 %v462
  %1028 = vmatpush.bf16.msra.mxu0 %v460
  %1029 = vmatpush.bf16.msra.mxu0 %v458
  %1030 = vmatpush.bf16.msra.mxu0 %v456
  %1031 = vmatpush.bf16.msra.mxu0 %v454
  %1032 = vmatpush.bf16.msra.mxu0 %v452
  %1033 = vmatmul.bf16.gmra.mxu0 %v1009
  %v1034 = vpop.f32.mrf.mxu0
  %v1035 = vadd.f32 %v1022, %v1034
  %v1036 = vpop.f32.mrf.mxu0
  %1037 = vdwg.mxu0
  %1038 = vmatpush.bf16.msra.mxu0 %v451
  %1039 = vmatpush.bf16.msra.mxu0 %v449
  %1040 = vmatpush.bf16.msra.mxu0 %v447
  %1041 = vmatpush.bf16.msra.mxu0 %v445
  %1042 = vmatpush.bf16.msra.mxu0 %v443
  %1043 = vmatpush.bf16.msra.mxu0 %v441
  %1044 = vmatpush.bf16.msra.mxu0 %v439
  %1045 = vmatpush.bf16.msra.mxu0 %v437
  %1046 = vmatmul.bf16.gmra.mxu0 %v1008
  %v1047 = vpop.f32.mrf.mxu0
  %v1048 = vadd.f32 0.0, %v1047
  %v1049 = vpop.f32.mrf.mxu0
  %1050 = vdwg.mxu0
  %1051 = vmatpush.bf16.msra.mxu0 %v467
  %1052 = vmatpush.bf16.msra.mxu0 %v465
  %1053 = vmatpush.bf16.msra.mxu0 %v463
  %1054 = vmatpush.bf16.msra.mxu0 %v461
  %1055 = vmatpush.bf16.msra.mxu0 %v459
  %1056 = vmatpush.bf16.msra.mxu0 %v457
  %1057 = vmatpush.bf16.msra.mxu0 %v455
  %1058 = vmatpush.bf16.msra.mxu0 %v453
  %1059 = vmatmul.bf16.gmra.mxu0 %v1009
  %v1060 = vpop.f32.mrf.mxu0
  %v1061 = vadd.f32 %v1048, %v1060
  %v1062 = vpop.f32.mrf.mxu0
  %1063 = vdwg.mxu0
  %v1066 = vrot.slane %v1035, 1
  %v1067 = vrot.slane %v1061, 1
  %v1070 = vadd.f32 %v292, %v1066
  %v1071 = vadd.f32 %v293, %v1067
  %v1072 = vtanh.pop %v1070
  %v1073 = vtanh.pop %v1071
  %v1074 = vpack.c.bf16 %v1073, %v1072
  %v1076 = vunpack.c.l.b16 %v1074
  %v1077 = vunpack.c.h.b16 %v1074
  %v1078 = vpack.c.b16 %v1076, %v1076
  %v1079 = vpack.c.b16 %v1077, %v1077
  %v1081 = vshrl.u32 %v1078, 16
  %v1083 = vrot.slane %v1081, 3
  %v1085 = vshrl.u32 %v1079, 16
  %v1087 = vrot.slane %v1085, 3
  %1090 = vmatpush.bf16.msra.mxu0 %v450
  %1091 = vmatpush.bf16.msra.mxu0 %v448
  %1092 = vmatpush.bf16.msra.mxu0 %v446
  %1093 = vmatpush.bf16.msra.mxu0 %v444
  %1094 = vmatpush.bf16.msra.mxu0 %v442
  %1095 = vmatpush.bf16.msra.mxu0 %v440
  %1096 = vmatpush.bf16.msra.mxu0 %v438
  %1097 = vmatpush.bf16.msra.mxu0 %v436
  %1098 = vmatmul.bf16.gmra.mxu0 %v1083
  %v1099 = vpop.f32.mrf.mxu0
  %v1100 = vadd.f32 0.0, %v1099
  %v1101 = vpop.f32.mrf.mxu0
  %1102 = vdwg.mxu0
  %1103 = vmatpush.bf16.msra.mxu0 %v466
  %1104 = vmatpush.bf16.msra.mxu0 %v464
  %1105 = vmatpush.bf16.msra.mxu0 %v462
  %1106 = vmatpush.bf16.msra.mxu0 %v460
  %1107 = vmatpush.bf16.msra.mxu0 %v458
  %1108 = vmatpush.bf16.msra.mxu0 %v456
  %1109 = vmatpush.bf16.msra.mxu0 %v454
  %1110 = vmatpush.bf16.msra.mxu0 %v452
  %1111 = vmatmul.bf16.gmra.mxu0 %v1087
  %v1112 = vpop.f32.mrf.mxu0
  %v1113 = vadd.f32 %v1100, %v1112
  %v1114 = vpop.f32.mrf.mxu0
  %1115 = vdwg.mxu0
  %1116 = vmatpush.bf16.msra.mxu0 %v451
  %1117 = vmatpush.bf16.msra.mxu0 %v449
  %1118 = vmatpush.bf16.msra.mxu0 %v447
  %1119 = vmatpush.bf16.msra.mxu0 %v445
  %1120 = vmatpush.bf16.msra.mxu0 %v443
  %1121 = vmatpush.bf16.msra.mxu0 %v441
  %1122 = vmatpush.bf16.msra.mxu0 %v439
  %1123 = vmatpush.bf16.msra.mxu0 %v437
  %1124 = vmatmul.bf16.gmra.mxu0 %v1083
  %v1125 = vpop.f32.mrf.mxu0
  %v1126 = vadd.f32 0.0, %v1125
  %v1127 = vpop.f32.mrf.mxu0
  %1128 = vdwg.mxu0
  %1129 = vmatpush.bf16.msra.mxu0 %v467
  %1130 = vmatpush.bf16.msra.mxu0 %v465
  %1131 = vmatpush.bf16.msra.mxu0 %v463
  %1132 = vmatpush.bf16.msra.mxu0 %v461
  %1133 = vmatpush.bf16.msra.mxu0 %v459
  %1134 = vmatpush.bf16.msra.mxu0 %v457
  %1135 = vmatpush.bf16.msra.mxu0 %v455
  %1136 = vmatpush.bf16.msra.mxu0 %v453
  %1137 = vmatmul.bf16.gmra.mxu0 %v1087
  %v1138 = vpop.f32.mrf.mxu0
  %v1139 = vadd.f32 %v1126, %v1138
  %v1140 = vpop.f32.mrf.mxu0
  %1141 = vdwg.mxu0
  %v1142 = vadd.f32 %v294, %v1113
  %v1143 = vadd.f32 %v295, %v1139
  %v1144 = vtanh.pop %v1142
  %v1145 = vtanh.pop %v1143
  %v1146 = vpack.c.bf16 %v1145, %v1144
  %v1148 = vunpack.c.l.b16 %v1146
  %v1149 = vunpack.c.h.b16 %v1146
  %v1150 = vpack.c.b16 %v1148, %v1148
  %v1151 = vpack.c.b16 %v1149, %v1149
  %1154 = vmatpush.bf16.msra.mxu0 %v450
  %1155 = vmatpush.bf16.msra.mxu0 %v448
  %1156 = vmatpush.bf16.msra.mxu0 %v446
  %1157 = vmatpush.bf16.msra.mxu0 %v444
  %1158 = vmatpush.bf16.msra.mxu0 %v442
  %1159 = vmatpush.bf16.msra.mxu0 %v440
  %1160 = vmatpush.bf16.msra.mxu0 %v438
  %1161 = vmatpush.bf16.msra.mxu0 %v436
  %1162 = vmatmul.bf16.gmra.mxu0 %v1150
  %v1163 = vpop.f32.mrf.mxu0
  %v1164 = vadd.f32 0.0, %v1163
  %v1165 = vpop.f32.mrf.mxu0
  %1166 = vdwg.mxu0
  %1167 = vmatpush.bf16.msra.mxu0 %v466
  %1168 = vmatpush.bf16.msra.mxu0 %v464
  %1169 = vmatpush.bf16.msra.mxu0 %v462
  %1170 = vmatpush.bf16.msra.mxu0 %v460
  %1171 = vmatpush.bf16.msra.mxu0 %v458
  %1172 = vmatpush.bf16.msra.mxu0 %v456
  %1173 = vmatpush.bf16.msra.mxu0 %v454
  %1174 = vmatpush.bf16.msra.mxu0 %v452
  %1175 = vmatmul.bf16.gmra.mxu0 %v1151
  %v1176 = vpop.f32.mrf.mxu0
  %v1177 = vadd.f32 %v1164, %v1176
  %v1178 = vpop.f32.mrf.mxu0
  %1179 = vdwg.mxu0
  %1180 = vmatpush.bf16.msra.mxu0 %v451
  %1181 = vmatpush.bf16.msra.mxu0 %v449
  %1182 = vmatpush.bf16.msra.mxu0 %v447
  %1183 = vmatpush.bf16.msra.mxu0 %v445
  %1184 = vmatpush.bf16.msra.mxu0 %v443
  %1185 = vmatpush.bf16.msra.mxu0 %v441
  %1186 = vmatpush.bf16.msra.mxu0 %v439
  %1187 = vmatpush.bf16.msra.mxu0 %v437
  %1188 = vmatmul.bf16.gmra.mxu0 %v1150
  %v1189 = vpop.f32.mrf.mxu0
  %v1190 = vadd.f32 0.0, %v1189
  %v1191 = vpop.f32.mrf.mxu0
  %1192 = vdwg.mxu0
  %1193 = vmatpush.bf16.msra.mxu0 %v467
  %1194 = vmatpush.bf16.msra.mxu0 %v465
  %1195 = vmatpush.bf16.msra.mxu0 %v463
  %1196 = vmatpush.bf16.msra.mxu0 %v461
  %1197 = vmatpush.bf16.msra.mxu0 %v459
  %1198 = vmatpush.bf16.msra.mxu0 %v457
  %1199 = vmatpush.bf16.msra.mxu0 %v455
  %1200 = vmatpush.bf16.msra.mxu0 %v453
  %1201 = vmatmul.bf16.gmra.mxu0 %v1151
  %v1202 = vpop.f32.mrf.mxu0
  %v1203 = vadd.f32 %v1190, %v1202
  %v1204 = vpop.f32.mrf.mxu0
  %1205 = vdwg.mxu0
  %v1208 = vrot.slane %v1177, 7
  %v1209 = vrot.slane %v1203, 7
  %v1212 = vadd.f32 %v294, %v1208
  %v1213 = vadd.f32 %v295, %v1209
  %v1214 = vtanh.pop %v1212
  %v1215 = vtanh.pop %v1213
  %v1216 = vpack.c.bf16 %v1215, %v1214
  %v1218 = vunpack.c.l.b16 %v1216
  %v1219 = vunpack.c.h.b16 %v1216
  %v1220 = vpack.c.b16 %v1218, %v1218
  %v1221 = vpack.c.b16 %v1219, %v1219
  %v1223 = vshrl.u32 %v1220, 16
  %v1226 = vshrl.u32 %v1221, 16
  %1230 = vmatpush.bf16.msra.mxu0 %v450
  %1231 = vmatpush.bf16.msra.mxu0 %v448
  %1232 = vmatpush.bf16.msra.mxu0 %v446
  %1233 = vmatpush.bf16.msra.mxu0 %v444
  %1234 = vmatpush.bf16.msra.mxu0 %v442
  %1235 = vmatpush.bf16.msra.mxu0 %v440
  %1236 = vmatpush.bf16.msra.mxu0 %v438
  %1237 = vmatpush.bf16.msra.mxu0 %v436
  %1238 = vmatmul.bf16.gmra.mxu0 %v1223
  %v1239 = vpop.f32.mrf.mxu0
  %v1240 = vadd.f32 0.0, %v1239
  %v1241 = vpop.f32.mrf.mxu0
  %1242 = vdwg.mxu0
  %1243 = vmatpush.bf16.msra.mxu0 %v466
  %1244 = vmatpush.bf16.msra.mxu0 %v464
  %1245 = vmatpush.bf16.msra.mxu0 %v462
  %1246 = vmatpush.bf16.msra.mxu0 %v460
  %1247 = vmatpush.bf16.msra.mxu0 %v458
  %1248 = vmatpush.bf16.msra.mxu0 %v456
  %1249 = vmatpush.bf16.msra.mxu0 %v454
  %1250 = vmatpush.bf16.msra.mxu0 %v452
  %1251 = vmatmul.bf16.gmra.mxu0 %v1226
  %v1252 = vpop.f32.mrf.mxu0
  %v1253 = vadd.f32 %v1240, %v1252
  %v1254 = vpop.f32.mrf.mxu0
  %1255 = vdwg.mxu0
  %1256 = vmatpush.bf16.msra.mxu0 %v451
  %1257 = vmatpush.bf16.msra.mxu0 %v449
  %1258 = vmatpush.bf16.msra.mxu0 %v447
  %1259 = vmatpush.bf16.msra.mxu0 %v445
  %1260 = vmatpush.bf16.msra.mxu0 %v443
  %1261 = vmatpush.bf16.msra.mxu0 %v441
  %1262 = vmatpush.bf16.msra.mxu0 %v439
  %1263 = vmatpush.bf16.msra.mxu0 %v437
  %1264 = vmatmul.bf16.gmra.mxu0 %v1223
  %v1265 = vpop.f32.mrf.mxu0
  %v1266 = vadd.f32 0.0, %v1265
  %v1267 = vpop.f32.mrf.mxu0
  %1268 = vdwg.mxu0
  %1269 = vmatpush.bf16.msra.mxu0 %v467
  %1270 = vmatpush.bf16.msra.mxu0 %v465
  %1271 = vmatpush.bf16.msra.mxu0 %v463
  %1272 = vmatpush.bf16.msra.mxu0 %v461
  %1273 = vmatpush.bf16.msra.mxu0 %v459
  %1274 = vmatpush.bf16.msra.mxu0 %v457
  %1275 = vmatpush.bf16.msra.mxu0 %v455
  %1276 = vmatpush.bf16.msra.mxu0 %v453
  %1277 = vmatmul.bf16.gmra.mxu0 %v1226
  %v1278 = vpop.f32.mrf.mxu0
  %v1279 = vadd.f32 %v1266, %v1278
  %v1280 = vpop.f32.mrf.mxu0
  %1281 = vdwg.mxu0
  %v1284 = vrot.slane %v1253, 6
  %v1285 = vrot.slane %v1279, 6
  %v1288 = vadd.f32 %v294, %v1284
  %v1289 = vadd.f32 %v295, %v1285
  %v1290 = vtanh.pop %v1288
  %v1291 = vtanh.pop %v1289
  %v1292 = vpack.c.bf16 %v1291, %v1290
  %v1294 = vunpack.c.l.b16 %v1292
  %v1295 = vunpack.c.h.b16 %v1292
  %v1296 = vpack.c.b16 %v1294, %v1294
  %v1297 = vpack.c.b16 %v1295, %v1295
  %v1298 = vrot.slane %v1296, 1
  %v1299 = vrot.slane %v1297, 1
  %1302 = vmatpush.bf16.msra.mxu0 %v450
  %1303 = vmatpush.bf16.msra.mxu0 %v448
  %1304 = vmatpush.bf16.msra.mxu0 %v446
  %1305 = vmatpush.bf16.msra.mxu0 %v444
  %1306 = vmatpush.bf16.msra.mxu0 %v442
  %1307 = vmatpush.bf16.msra.mxu0 %v440
  %1308 = vmatpush.bf16.msra.mxu0 %v438
  %1309 = vmatpush.bf16.msra.mxu0 %v436
  %1310 = vmatmul.bf16.gmra.mxu0 %v1298
  %v1311 = vpop.f32.mrf.mxu0
  %v1312 = vadd.f32 0.0, %v1311
  %v1313 = vpop.f32.mrf.mxu0
  %1314 = vdwg.mxu0
  %1315 = vmatpush.bf16.msra.mxu0 %v466
  %1316 = vmatpush.bf16.msra.mxu0 %v464
  %1317 = vmatpush.bf16.msra.mxu0 %v462
  %1318 = vmatpush.bf16.msra.mxu0 %v460
  %1319 = vmatpush.bf16.msra.mxu0 %v458
  %1320 = vmatpush.bf16.msra.mxu0 %v456
  %1321 = vmatpush.bf16.msra.mxu0 %v454
  %1322 = vmatpush.bf16.msra.mxu0 %v452
  %1323 = vmatmul.bf16.gmra.mxu0 %v1299
  %v1324 = vpop.f32.mrf.mxu0
  %v1325 = vadd.f32 %v1312, %v1324
  %v1326 = vpop.f32.mrf.mxu0
  %1327 = vdwg.mxu0
  %1328 = vmatpush.bf16.msra.mxu0 %v451
  %1329 = vmatpush.bf16.msra.mxu0 %v449
  %1330 = vmatpush.bf16.msra.mxu0 %v447
  %1331 = vmatpush.bf16.msra.mxu0 %v445
  %1332 = vmatpush.bf16.msra.mxu0 %v443
  %1333 = vmatpush.bf16.msra.mxu0 %v441
  %1334 = vmatpush.bf16.msra.mxu0 %v439
  %1335 = vmatpush.bf16.msra.mxu0 %v437
  %1336 = vmatmul.bf16.gmra.mxu0 %v1298
  %v1337 = vpop.f32.mrf.mxu0
  %v1338 = vadd.f32 0.0, %v1337
  %v1339 = vpop.f32.mrf.mxu0
  %1340 = vdwg.mxu0
  %1341 = vmatpush.bf16.msra.mxu0 %v467
  %1342 = vmatpush.bf16.msra.mxu0 %v465
  %1343 = vmatpush.bf16.msra.mxu0 %v463
  %1344 = vmatpush.bf16.msra.mxu0 %v461
  %1345 = vmatpush.bf16.msra.mxu0 %v459
  %1346 = vmatpush.bf16.msra.mxu0 %v457
  %1347 = vmatpush.bf16.msra.mxu0 %v455
  %1348 = vmatpush.bf16.msra.mxu0 %v453
  %1349 = vmatmul.bf16.gmra.mxu0 %v1299
  %v1350 = vpop.f32.mrf.mxu0
  %v1351 = vadd.f32 %v1338, %v1350
  %v1352 = vpop.f32.mrf.mxu0
  %1353 = vdwg.mxu0
  %v1356 = vrot.slane %v1325, 5
  %v1357 = vrot.slane %v1351, 5
  %v1360 = vadd.f32 %v294, %v1356
  %v1361 = vadd.f32 %v295, %v1357
  %v1362 = vtanh.pop %v1360
  %v1363 = vtanh.pop %v1361
  %v1364 = vpack.c.bf16 %v1363, %v1362
  %v1366 = vunpack.c.l.b16 %v1364
  %v1367 = vunpack.c.h.b16 %v1364
  %v1368 = vpack.c.b16 %v1366, %v1366
  %v1369 = vpack.c.b16 %v1367, %v1367
  %v1371 = vshrl.u32 %v1368, 16
  %v1373 = vrot.slane %v1371, 1
  %v1375 = vshrl.u32 %v1369, 16
  %v1377 = vrot.slane %v1375, 1
  %1380 = vmatpush.bf16.msra.mxu0 %v450
  %1381 = vmatpush.bf16.msra.mxu0 %v448
  %1382 = vmatpush.bf16.msra.mxu0 %v446
  %1383 = vmatpush.bf16.msra.mxu0 %v444
  %1384 = vmatpush.bf16.msra.mxu0 %v442
  %1385 = vmatpush.bf16.msra.mxu0 %v440
  %1386 = vmatpush.bf16.msra.mxu0 %v438
  %1387 = vmatpush.bf16.msra.mxu0 %v436
  %1388 = vmatmul.bf16.gmra.mxu0 %v1373
  %v1389 = vpop.f32.mrf.mxu0
  %v1390 = vadd.f32 0.0, %v1389
  %v1391 = vpop.f32.mrf.mxu0
  %1392 = vdwg.mxu0
  %1393 = vmatpush.bf16.msra.mxu0 %v466
  %1394 = vmatpush.bf16.msra.mxu0 %v464
  %1395 = vmatpush.bf16.msra.mxu0 %v462
  %1396 = vmatpush.bf16.msra.mxu0 %v460
  %1397 = vmatpush.bf16.msra.mxu0 %v458
  %1398 = vmatpush.bf16.msra.mxu0 %v456
  %1399 = vmatpush.bf16.msra.mxu0 %v454
  %1400 = vmatpush.bf16.msra.mxu0 %v452
  %1401 = vmatmul.bf16.gmra.mxu0 %v1377
  %v1402 = vpop.f32.mrf.mxu0
  %v1403 = vadd.f32 %v1390, %v1402
  %v1404 = vpop.f32.mrf.mxu0
  %1405 = vdwg.mxu0
  %1406 = vmatpush.bf16.msra.mxu0 %v451
  %1407 = vmatpush.bf16.msra.mxu0 %v449
  %1408 = vmatpush.bf16.msra.mxu0 %v447
  %1409 = vmatpush.bf16.msra.mxu0 %v445
  %1410 = vmatpush.bf16.msra.mxu0 %v443
  %1411 = vmatpush.bf16.msra.mxu0 %v441
  %1412 = vmatpush.bf16.msra.mxu0 %v439
  %1413 = vmatpush.bf16.msra.mxu0 %v437
  %1414 = vmatmul.bf16.gmra.mxu0 %v1373
  %v1415 = vpop.f32.mrf.mxu0
  %v1416 = vadd.f32 0.0, %v1415
  %v1417 = vpop.f32.mrf.mxu0
  %1418 = vdwg.mxu0
  %1419 = vmatpush.bf16.msra.mxu0 %v467
  %1420 = vmatpush.bf16.msra.mxu0 %v465
  %1421 = vmatpush.bf16.msra.mxu0 %v463
  %1422 = vmatpush.bf16.msra.mxu0 %v461
  %1423 = vmatpush.bf16.msra.mxu0 %v459
  %1424 = vmatpush.bf16.msra.mxu0 %v457
  %1425 = vmatpush.bf16.msra.mxu0 %v455
  %1426 = vmatpush.bf16.msra.mxu0 %v453
  %1427 = vmatmul.bf16.gmra.mxu0 %v1377
  %v1428 = vpop.f32.mrf.mxu0
  %v1429 = vadd.f32 %v1416, %v1428
  %v1430 = vpop.f32.mrf.mxu0
  %1431 = vdwg.mxu0
  %v1434 = vrot.slane %v1403, 4
  %v1435 = vrot.slane %v1429, 4
  %v1438 = vadd.f32 %v294, %v1434
  %v1439 = vadd.f32 %v295, %v1435
  %v1440 = vtanh.pop %v1438
  %v1441 = vtanh.pop %v1439
  %v1442 = vpack.c.bf16 %v1441, %v1440
  %v1444 = vunpack.c.l.b16 %v1442
  %v1445 = vunpack.c.h.b16 %v1442
  %v1446 = vpack.c.b16 %v1444, %v1444
  %v1447 = vpack.c.b16 %v1445, %v1445
  %v1448 = vrot.slane %v1446, 2
  %v1449 = vrot.slane %v1447, 2
  %1452 = vmatpush.bf16.msra.mxu0 %v450
  %1453 = vmatpush.bf16.msra.mxu0 %v448
  %1454 = vmatpush.bf16.msra.mxu0 %v446
  %1455 = vmatpush.bf16.msra.mxu0 %v444
  %1456 = vmatpush.bf16.msra.mxu0 %v442
  %1457 = vmatpush.bf16.msra.mxu0 %v440
  %1458 = vmatpush.bf16.msra.mxu0 %v438
  %1459 = vmatpush.bf16.msra.mxu0 %v436
  %1460 = vmatmul.bf16.gmra.mxu0 %v1448
  %v1461 = vpop.f32.mrf.mxu0
  %v1462 = vadd.f32 0.0, %v1461
  %v1463 = vpop.f32.mrf.mxu0
  %1464 = vdwg.mxu0
  %1465 = vmatpush.bf16.msra.mxu0 %v466
  %1466 = vmatpush.bf16.msra.mxu0 %v464
  %1467 = vmatpush.bf16.msra.mxu0 %v462
  %1468 = vmatpush.bf16.msra.mxu0 %v460
  %1469 = vmatpush.bf16.msra.mxu0 %v458
  %1470 = vmatpush.bf16.msra.mxu0 %v456
  %1471 = vmatpush.bf16.msra.mxu0 %v454
  %1472 = vmatpush.bf16.msra.mxu0 %v452
  %1473 = vmatmul.bf16.gmra.mxu0 %v1449
  %v1474 = vpop.f32.mrf.mxu0
  %v1475 = vadd.f32 %v1462, %v1474
  %v1476 = vpop.f32.mrf.mxu0
  %1477 = vdwg.mxu0
  %1478 = vmatpush.bf16.msra.mxu0 %v451
  %1479 = vmatpush.bf16.msra.mxu0 %v449
  %1480 = vmatpush.bf16.msra.mxu0 %v447
  %1481 = vmatpush.bf16.msra.mxu0 %v445
  %1482 = vmatpush.bf16.msra.mxu0 %v443
  %1483 = vmatpush.bf16.msra.mxu0 %v441
  %1484 = vmatpush.bf16.msra.mxu0 %v439
  %1485 = vmatpush.bf16.msra.mxu0 %v437
  %1486 = vmatmul.bf16.gmra.mxu0 %v1448
  %v1487 = vpop.f32.mrf.mxu0
  %v1488 = vadd.f32 0.0, %v1487
  %v1489 = vpop.f32.mrf.mxu0
  %1490 = vdwg.mxu0
  %1491 = vmatpush.bf16.msra.mxu0 %v467
  %1492 = vmatpush.bf16.msra.mxu0 %v465
  %1493 = vmatpush.bf16.msra.mxu0 %v463
  %1494 = vmatpush.bf16.msra.mxu0 %v461
  %1495 = vmatpush.bf16.msra.mxu0 %v459
  %1496 = vmatpush.bf16.msra.mxu0 %v457
  %1497 = vmatpush.bf16.msra.mxu0 %v455
  %1498 = vmatpush.bf16.msra.mxu0 %v453
  %1499 = vmatmul.bf16.gmra.mxu0 %v1449
  %v1500 = vpop.f32.mrf.mxu0
  %v1501 = vadd.f32 %v1488, %v1500
  %v1502 = vpop.f32.mrf.mxu0
  %1503 = vdwg.mxu0
  %v1506 = vrot.slane %v1475, 3
  %v1507 = vrot.slane %v1501, 3
  %v1510 = vadd.f32 %v294, %v1506
  %v1511 = vadd.f32 %v295, %v1507
  %v1512 = vtanh.pop %v1510
  %v1513 = vtanh.pop %v1511
  %v1514 = vpack.c.bf16 %v1513, %v1512
  %v1516 = vunpack.c.l.b16 %v1514
  %v1517 = vunpack.c.h.b16 %v1514
  %v1518 = vpack.c.b16 %v1516, %v1516
  %v1519 = vpack.c.b16 %v1517, %v1517
  %v1521 = vshrl.u32 %v1518, 16
  %v1523 = vrot.slane %v1521, 2
  %v1525 = vshrl.u32 %v1519, 16
  %v1527 = vrot.slane %v1525, 2
  %1530 = vmatpush.bf16.msra.mxu0 %v450
  %1531 = vmatpush.bf16.msra.mxu0 %v448
  %1532 = vmatpush.bf16.msra.mxu0 %v446
  %1533 = vmatpush.bf16.msra.mxu0 %v444
  %1534 = vmatpush.bf16.msra.mxu0 %v442
  %1535 = vmatpush.bf16.msra.mxu0 %v440
  %1536 = vmatpush.bf16.msra.mxu0 %v438
  %1537 = vmatpush.bf16.msra.mxu0 %v436
  %1538 = vmatmul.bf16.gmra.mxu0 %v1523
  %v1539 = vpop.f32.mrf.mxu0
  %v1540 = vadd.f32 0.0, %v1539
  %v1541 = vpop.f32.mrf.mxu0
  %1542 = vdwg.mxu0
  %1543 = vmatpush.bf16.msra.mxu0 %v466
  %1544 = vmatpush.bf16.msra.mxu0 %v464
  %1545 = vmatpush.bf16.msra.mxu0 %v462
  %1546 = vmatpush.bf16.msra.mxu0 %v460
  %1547 = vmatpush.bf16.msra.mxu0 %v458
  %1548 = vmatpush.bf16.msra.mxu0 %v456
  %1549 = vmatpush.bf16.msra.mxu0 %v454
  %1550 = vmatpush.bf16.msra.mxu0 %v452
  %1551 = vmatmul.bf16.gmra.mxu0 %v1527
  %v1552 = vpop.f32.mrf.mxu0
  %v1553 = vadd.f32 %v1540, %v1552
  %v1554 = vpop.f32.mrf.mxu0
  %1555 = vdwg.mxu0
  %1556 = vmatpush.bf16.msra.mxu0 %v451
  %1557 = vmatpush.bf16.msra.mxu0 %v449
  %1558 = vmatpush.bf16.msra.mxu0 %v447
  %1559 = vmatpush.bf16.msra.mxu0 %v445
  %1560 = vmatpush.bf16.msra.mxu0 %v443
  %1561 = vmatpush.bf16.msra.mxu0 %v441
  %1562 = vmatpush.bf16.msra.mxu0 %v439
  %1563 = vmatpush.bf16.msra.mxu0 %v437
  %1564 = vmatmul.bf16.gmra.mxu0 %v1523
  %v1565 = vpop.f32.mrf.mxu0
  %v1566 = vadd.f32 0.0, %v1565
  %v1567 = vpop.f32.mrf.mxu0
  %1568 = vdwg.mxu0
  %1569 = vmatpush.bf16.msra.mxu0 %v467
  %1570 = vmatpush.bf16.msra.mxu0 %v465
  %1571 = vmatpush.bf16.msra.mxu0 %v463
  %1572 = vmatpush.bf16.msra.mxu0 %v461
  %1573 = vmatpush.bf16.msra.mxu0 %v459
  %1574 = vmatpush.bf16.msra.mxu0 %v457
  %1575 = vmatpush.bf16.msra.mxu0 %v455
  %1576 = vmatpush.bf16.msra.mxu0 %v453
  %1577 = vmatmul.bf16.gmra.mxu0 %v1527
  %v1578 = vpop.f32.mrf.mxu0
  %v1579 = vadd.f32 %v1566, %v1578
  %v1580 = vpop.f32.mrf.mxu0
  %1581 = vdwg.mxu0
  %v1584 = vrot.slane %v1553, 2
  %v1585 = vrot.slane %v1579, 2
  %v1588 = vadd.f32 %v294, %v1584
  %v1589 = vadd.f32 %v295, %v1585
  %v1590 = vtanh.pop %v1588
  %v1591 = vtanh.pop %v1589
  %v1592 = vpack.c.bf16 %v1591, %v1590
  %v1594 = vunpack.c.l.b16 %v1592
  %v1595 = vunpack.c.h.b16 %v1592
  %v1596 = vpack.c.b16 %v1594, %v1594
  %v1597 = vpack.c.b16 %v1595, %v1595
  %v1598 = vrot.slane %v1596, 3
  %v1599 = vrot.slane %v1597, 3
  %1602 = vmatpush.bf16.msra.mxu0 %v450
  %1603 = vmatpush.bf16.msra.mxu0 %v448
  %1604 = vmatpush.bf16.msra.mxu0 %v446
  %1605 = vmatpush.bf16.msra.mxu0 %v444
  %1606 = vmatpush.bf16.msra.mxu0 %v442
  %1607 = vmatpush.bf16.msra.mxu0 %v440
  %1608 = vmatpush.bf16.msra.mxu0 %v438
  %1609 = vmatpush.bf16.msra.mxu0 %v436
  %1610 = vmatmul.bf16.gmra.mxu0 %v1598
  %v1611 = vpop.f32.mrf.mxu0
  %v1612 = vadd.f32 0.0, %v1611
  %v1613 = vpop.f32.mrf.mxu0
  %1614 = vdwg.mxu0
  %1615 = vmatpush.bf16.msra.mxu0 %v466
  %1616 = vmatpush.bf16.msra.mxu0 %v464
  %1617 = vmatpush.bf16.msra.mxu0 %v462
  %1618 = vmatpush.bf16.msra.mxu0 %v460
  %1619 = vmatpush.bf16.msra.mxu0 %v458
  %1620 = vmatpush.bf16.msra.mxu0 %v456
  %1621 = vmatpush.bf16.msra.mxu0 %v454
  %1622 = vmatpush.bf16.msra.mxu0 %v452
  %1623 = vmatmul.bf16.gmra.mxu0 %v1599
  %v1624 = vpop.f32.mrf.mxu0
  %v1625 = vadd.f32 %v1612, %v1624
  %v1626 = vpop.f32.mrf.mxu0
  %1627 = vdwg.mxu0
  %1628 = vmatpush.bf16.msra.mxu0 %v451
  %1629 = vmatpush.bf16.msra.mxu0 %v449
  %1630 = vmatpush.bf16.msra.mxu0 %v447
  %1631 = vmatpush.bf16.msra.mxu0 %v445
  %1632 = vmatpush.bf16.msra.mxu0 %v443
  %1633 = vmatpush.bf16.msra.mxu0 %v441
  %1634 = vmatpush.bf16.msra.mxu0 %v439
  %1635 = vmatpush.bf16.msra.mxu0 %v437
  %1636 = vmatmul.bf16.gmra.mxu0 %v1598
  %v1637 = vpop.f32.mrf.mxu0
  %v1638 = vadd.f32 0.0, %v1637
  %v1639 = vpop.f32.mrf.mxu0
  %1640 = vdwg.mxu0
  %1641 = vmatpush.bf16.msra.mxu0 %v467
  %1642 = vmatpush.bf16.msra.mxu0 %v465
  %1643 = vmatpush.bf16.msra.mxu0 %v463
  %1644 = vmatpush.bf16.msra.mxu0 %v461
  %1645 = vmatpush.bf16.msra.mxu0 %v459
  %1646 = vmatpush.bf16.msra.mxu0 %v457
  %1647 = vmatpush.bf16.msra.mxu0 %v455
  %1648 = vmatpush.bf16.msra.mxu0 %v453
  %1649 = vmatmul.bf16.gmra.mxu0 %v1599
  %v1650 = vpop.f32.mrf.mxu0
  %v1651 = vadd.f32 %v1638, %v1650
  %v1652 = vpop.f32.mrf.mxu0
  %1653 = vdwg.mxu0
  %v1656 = vrot.slane %v1625, 1
  %v1657 = vrot.slane %v1651, 1
  %v1660 = vadd.f32 %v294, %v1656
  %v1661 = vadd.f32 %v295, %v1657
  %v1662 = vtanh.pop %v1660
  %v1663 = vtanh.pop %v1661
  %v1664 = vpack.c.bf16 %v1663, %v1662
  %v1666 = vunpack.c.l.b16 %v1664
  %v1667 = vunpack.c.h.b16 %v1664
  %v1668 = vpack.c.b16 %v1666, %v1666
  %v1669 = vpack.c.b16 %v1667, %v1667
  %v1671 = vshrl.u32 %v1668, 16
  %v1673 = vrot.slane %v1671, 3
  %v1675 = vshrl.u32 %v1669, 16
  %v1677 = vrot.slane %v1675, 3
  %1680 = vmatpush.bf16.msra.mxu0 %v450
  %1681 = vmatpush.bf16.msra.mxu0 %v448
  %1682 = vmatpush.bf16.msra.mxu0 %v446
  %1683 = vmatpush.bf16.msra.mxu0 %v444
  %1684 = vmatpush.bf16.msra.mxu0 %v442
  %1685 = vmatpush.bf16.msra.mxu0 %v440
  %1686 = vmatpush.bf16.msra.mxu0 %v438
  %1687 = vmatpush.bf16.msra.mxu0 %v436
  %1688 = vmatmul.bf16.gmra.mxu0 %v1673
  %v1689 = vpop.f32.mrf.mxu0
  %v1690 = vadd.f32 0.0, %v1689
  %v1691 = vpop.f32.mrf.mxu0
  %1692 = vdwg.mxu0
  %1693 = vmatpush.bf16.msra.mxu0 %v466
  %1694 = vmatpush.bf16.msra.mxu0 %v464
  %1695 = vmatpush.bf16.msra.mxu0 %v462
  %1696 = vmatpush.bf16.msra.mxu0 %v460
  %1697 = vmatpush.bf16.msra.mxu0 %v458
  %1698 = vmatpush.bf16.msra.mxu0 %v456
  %1699 = vmatpush.bf16.msra.mxu0 %v454
  %1700 = vmatpush.bf16.msra.mxu0 %v452
  %1701 = vmatmul.bf16.gmra.mxu0 %v1677
  %v1702 = vpop.f32.mrf.mxu0
  %v1703 = vadd.f32 %v1690, %v1702
  %v1704 = vpop.f32.mrf.mxu0
  %1705 = vdwg.mxu0
  %1706 = vmatpush.bf16.msra.mxu0 %v451
  %1707 = vmatpush.bf16.msra.mxu0 %v449
  %1708 = vmatpush.bf16.msra.mxu0 %v447
  %1709 = vmatpush.bf16.msra.mxu0 %v445
  %1710 = vmatpush.bf16.msra.mxu0 %v443
  %1711 = vmatpush.bf16.msra.mxu0 %v441
  %1712 = vmatpush.bf16.msra.mxu0 %v439
  %1713 = vmatpush.bf16.msra.mxu0 %v437
  %1714 = vmatmul.bf16.gmra.mxu0 %v1673
  %v1715 = vpop.f32.mrf.mxu0
  %v1716 = vadd.f32 0.0, %v1715
  %v1717 = vpop.f32.mrf.mxu0
  %1718 = vdwg.mxu0
  %1719 = vmatpush.bf16.msra.mxu0 %v467
  %1720 = vmatpush.bf16.msra.mxu0 %v465
  %1721 = vmatpush.bf16.msra.mxu0 %v463
  %1722 = vmatpush.bf16.msra.mxu0 %v461
  %1723 = vmatpush.bf16.msra.mxu0 %v459
  %1724 = vmatpush.bf16.msra.mxu0 %v457
  %1725 = vmatpush.bf16.msra.mxu0 %v455
  %1726 = vmatpush.bf16.msra.mxu0 %v453
  %1727 = vmatmul.bf16.gmra.mxu0 %v1677
  %v1728 = vpop.f32.mrf.mxu0
  %v1729 = vadd.f32 %v1716, %v1728
  %v1730 = vpop.f32.mrf.mxu0
  %1731 = vdwg.mxu0
  %v1732 = vadd.f32 %v296, %v1703
  %v1733 = vadd.f32 %v297, %v1729
  %v1734 = vtanh.pop %v1732
  %v1735 = vtanh.pop %v1733
  %v1736 = vpack.c.bf16 %v1735, %v1734
  %v1738 = vunpack.c.l.b16 %v1736
  %v1739 = vunpack.c.h.b16 %v1736
  %v1740 = vpack.c.b16 %v1738, %v1738
  %v1741 = vpack.c.b16 %v1739, %v1739
  %1744 = vmatpush.bf16.msra.mxu0 %v450
  %1745 = vmatpush.bf16.msra.mxu0 %v448
  %1746 = vmatpush.bf16.msra.mxu0 %v446
  %1747 = vmatpush.bf16.msra.mxu0 %v444
  %1748 = vmatpush.bf16.msra.mxu0 %v442
  %1749 = vmatpush.bf16.msra.mxu0 %v440
  %1750 = vmatpush.bf16.msra.mxu0 %v438
  %1751 = vmatpush.bf16.msra.mxu0 %v436
  %1752 = vmatmul.bf16.gmra.mxu0 %v1740
  %v1753 = vpop.f32.mrf.mxu0
  %v1754 = vadd.f32 0.0, %v1753
  %v1755 = vpop.f32.mrf.mxu0
  %1756 = vdwg.mxu0
  %1757 = vmatpush.bf16.msra.mxu0 %v466
  %1758 = vmatpush.bf16.msra.mxu0 %v464
  %1759 = vmatpush.bf16.msra.mxu0 %v462
  %1760 = vmatpush.bf16.msra.mxu0 %v460
  %1761 = vmatpush.bf16.msra.mxu0 %v458
  %1762 = vmatpush.bf16.msra.mxu0 %v456
  %1763 = vmatpush.bf16.msra.mxu0 %v454
  %1764 = vmatpush.bf16.msra.mxu0 %v452
  %1765 = vmatmul.bf16.gmra.mxu0 %v1741
  %v1766 = vpop.f32.mrf.mxu0
  %v1767 = vadd.f32 %v1754, %v1766
  %v1768 = vpop.f32.mrf.mxu0
  %1769 = vdwg.mxu0
  %1770 = vmatpush.bf16.msra.mxu0 %v451
  %1771 = vmatpush.bf16.msra.mxu0 %v449
  %1772 = vmatpush.bf16.msra.mxu0 %v447
  %1773 = vmatpush.bf16.msra.mxu0 %v445
  %1774 = vmatpush.bf16.msra.mxu0 %v443
  %1775 = vmatpush.bf16.msra.mxu0 %v441
  %1776 = vmatpush.bf16.msra.mxu0 %v439
  %1777 = vmatpush.bf16.msra.mxu0 %v437
  %1778 = vmatmul.bf16.gmra.mxu0 %v1740
  %v1779 = vpop.f32.mrf.mxu0
  %v1780 = vadd.f32 0.0, %v1779
  %v1781 = vpop.f32.mrf.mxu0
  %1782 = vdwg.mxu0
  %1783 = vmatpush.bf16.msra.mxu0 %v467
  %1784 = vmatpush.bf16.msra.mxu0 %v465
  %1785 = vmatpush.bf16.msra.mxu0 %v463
  %1786 = vmatpush.bf16.msra.mxu0 %v461
  %1787 = vmatpush.bf16.msra.mxu0 %v459
  %1788 = vmatpush.bf16.msra.mxu0 %v457
  %1789 = vmatpush.bf16.msra.mxu0 %v455
  %1790 = vmatpush.bf16.msra.mxu0 %v453
  %1791 = vmatmul.bf16.gmra.mxu0 %v1741
  %v1792 = vpop.f32.mrf.mxu0
  %v1793 = vadd.f32 %v1780, %v1792
  %v1794 = vpop.f32.mrf.mxu0
  %1795 = vdwg.mxu0
  %v1798 = vrot.slane %v1767, 7
  %v1799 = vrot.slane %v1793, 7
  %v1802 = vadd.f32 %v296, %v1798
  %v1803 = vadd.f32 %v297, %v1799
  %v1804 = vtanh.pop %v1802
  %v1805 = vtanh.pop %v1803
  %v1806 = vpack.c.bf16 %v1805, %v1804
  %v1808 = vunpack.c.l.b16 %v1806
  %v1809 = vunpack.c.h.b16 %v1806
  %v1810 = vpack.c.b16 %v1808, %v1808
  %v1811 = vpack.c.b16 %v1809, %v1809
  %v1813 = vshrl.u32 %v1810, 16
  %v1816 = vshrl.u32 %v1811, 16
  %1820 = vmatpush.bf16.msra.mxu0 %v450
  %1821 = vmatpush.bf16.msra.mxu0 %v448
  %1822 = vmatpush.bf16.msra.mxu0 %v446
  %1823 = vmatpush.bf16.msra.mxu0 %v444
  %1824 = vmatpush.bf16.msra.mxu0 %v442
  %1825 = vmatpush.bf16.msra.mxu0 %v440
  %1826 = vmatpush.bf16.msra.mxu0 %v438
  %1827 = vmatpush.bf16.msra.mxu0 %v436
  %1828 = vmatmul.bf16.gmra.mxu0 %v1813
  %v1829 = vpop.f32.mrf.mxu0
  %v1830 = vadd.f32 0.0, %v1829
  %v1831 = vpop.f32.mrf.mxu0
  %1832 = vdwg.mxu0
  %1833 = vmatpush.bf16.msra.mxu0 %v466
  %1834 = vmatpush.bf16.msra.mxu0 %v464
  %1835 = vmatpush.bf16.msra.mxu0 %v462
  %1836 = vmatpush.bf16.msra.mxu0 %v460
  %1837 = vmatpush.bf16.msra.mxu0 %v458
  %1838 = vmatpush.bf16.msra.mxu0 %v456
  %1839 = vmatpush.bf16.msra.mxu0 %v454
  %1840 = vmatpush.bf16.msra.mxu0 %v452
  %1841 = vmatmul.bf16.gmra.mxu0 %v1816
  %v1842 = vpop.f32.mrf.mxu0
  %v1843 = vadd.f32 %v1830, %v1842
  %v1844 = vpop.f32.mrf.mxu0
  %1845 = vdwg.mxu0
  %1846 = vmatpush.bf16.msra.mxu0 %v451
  %1847 = vmatpush.bf16.msra.mxu0 %v449
  %1848 = vmatpush.bf16.msra.mxu0 %v447
  %1849 = vmatpush.bf16.msra.mxu0 %v445
  %1850 = vmatpush.bf16.msra.mxu0 %v443
  %1851 = vmatpush.bf16.msra.mxu0 %v441
  %1852 = vmatpush.bf16.msra.mxu0 %v439
  %1853 = vmatpush.bf16.msra.mxu0 %v437
  %1854 = vmatmul.bf16.gmra.mxu0 %v1813
  %v1855 = vpop.f32.mrf.mxu0
  %v1856 = vadd.f32 0.0, %v1855
  %v1857 = vpop.f32.mrf.mxu0
  %1858 = vdwg.mxu0
  %1859 = vmatpush.bf16.msra.mxu0 %v467
  %1860 = vmatpush.bf16.msra.mxu0 %v465
  %1861 = vmatpush.bf16.msra.mxu0 %v463
  %1862 = vmatpush.bf16.msra.mxu0 %v461
  %1863 = vmatpush.bf16.msra.mxu0 %v459
  %1864 = vmatpush.bf16.msra.mxu0 %v457
  %1865 = vmatpush.bf16.msra.mxu0 %v455
  %1866 = vmatpush.bf16.msra.mxu0 %v453
  %1867 = vmatmul.bf16.gmra.mxu0 %v1816
  %v1868 = vpop.f32.mrf.mxu0
  %v1869 = vadd.f32 %v1856, %v1868
  %v1870 = vpop.f32.mrf.mxu0
  %1871 = vdwg.mxu0
  %v1874 = vrot.slane %v1843, 6
  %v1875 = vrot.slane %v1869, 6
  %v1878 = vadd.f32 %v296, %v1874
  %v1879 = vadd.f32 %v297, %v1875
  %v1880 = vtanh.pop %v1878
  %v1881 = vtanh.pop %v1879
  %v1882 = vpack.c.bf16 %v1881, %v1880
  %v1884 = vunpack.c.l.b16 %v1882
  %v1885 = vunpack.c.h.b16 %v1882
  %v1886 = vpack.c.b16 %v1884, %v1884
  %v1887 = vpack.c.b16 %v1885, %v1885
  %v1888 = vrot.slane %v1886, 1
  %v1889 = vrot.slane %v1887, 1
  %1892 = vmatpush.bf16.msra.mxu0 %v450
  %1893 = vmatpush.bf16.msra.mxu0 %v448
  %1894 = vmatpush.bf16.msra.mxu0 %v446
  %1895 = vmatpush.bf16.msra.mxu0 %v444
  %1896 = vmatpush.bf16.msra.mxu0 %v442
  %1897 = vmatpush.bf16.msra.mxu0 %v440
  %1898 = vmatpush.bf16.msra.mxu0 %v438
  %1899 = vmatpush.bf16.msra.mxu0 %v436
  %1900 = vmatmul.bf16.gmra.mxu0 %v1888
  %v1901 = vpop.f32.mrf.mxu0
  %v1902 = vadd.f32 0.0, %v1901
  %v1903 = vpop.f32.mrf.mxu0
  %1904 = vdwg.mxu0
  %1905 = vmatpush.bf16.msra.mxu0 %v466
  %1906 = vmatpush.bf16.msra.mxu0 %v464
  %1907 = vmatpush.bf16.msra.mxu0 %v462
  %1908 = vmatpush.bf16.msra.mxu0 %v460
  %1909 = vmatpush.bf16.msra.mxu0 %v458
  %1910 = vmatpush.bf16.msra.mxu0 %v456
  %1911 = vmatpush.bf16.msra.mxu0 %v454
  %1912 = vmatpush.bf16.msra.mxu0 %v452
  %1913 = vmatmul.bf16.gmra.mxu0 %v1889
  %v1914 = vpop.f32.mrf.mxu0
  %v1915 = vadd.f32 %v1902, %v1914
  %v1916 = vpop.f32.mrf.mxu0
  %1917 = vdwg.mxu0
  %1918 = vmatpush.bf16.msra.mxu0 %v451
  %1919 = vmatpush.bf16.msra.mxu0 %v449
  %1920 = vmatpush.bf16.msra.mxu0 %v447
  %1921 = vmatpush.bf16.msra.mxu0 %v445
  %1922 = vmatpush.bf16.msra.mxu0 %v443
  %1923 = vmatpush.bf16.msra.mxu0 %v441
  %1924 = vmatpush.bf16.msra.mxu0 %v439
  %1925 = vmatpush.bf16.msra.mxu0 %v437
  %1926 = vmatmul.bf16.gmra.mxu0 %v1888
  %v1927 = vpop.f32.mrf.mxu0
  %v1928 = vadd.f32 0.0, %v1927
  %v1929 = vpop.f32.mrf.mxu0
  %1930 = vdwg.mxu0
  %1931 = vmatpush.bf16.msra.mxu0 %v467
  %1932 = vmatpush.bf16.msra.mxu0 %v465
  %1933 = vmatpush.bf16.msra.mxu0 %v463
  %1934 = vmatpush.bf16.msra.mxu0 %v461
  %1935 = vmatpush.bf16.msra.mxu0 %v459
  %1936 = vmatpush.bf16.msra.mxu0 %v457
  %1937 = vmatpush.bf16.msra.mxu0 %v455
  %1938 = vmatpush.bf16.msra.mxu0 %v453
  %1939 = vmatmul.bf16.gmra.mxu0 %v1889
  %v1940 = vpop.f32.mrf.mxu0
  %v1941 = vadd.f32 %v1928, %v1940
  %v1942 = vpop.f32.mrf.mxu0
  %1943 = vdwg.mxu0
  %v1946 = vrot.slane %v1915, 5
  %v1947 = vrot.slane %v1941, 5
  %v1950 = vadd.f32 %v296, %v1946
  %v1951 = vadd.f32 %v297, %v1947
  %v1952 = vtanh.pop %v1950
  %v1953 = vtanh.pop %v1951
  %v1954 = vpack.c.bf16 %v1953, %v1952
  %v1956 = vunpack.c.l.b16 %v1954
  %v1957 = vunpack.c.h.b16 %v1954
  %v1958 = vpack.c.b16 %v1956, %v1956
  %v1959 = vpack.c.b16 %v1957, %v1957
  %v1961 = vshrl.u32 %v1958, 16
  %v1963 = vrot.slane %v1961, 1
  %v1965 = vshrl.u32 %v1959, 16
  %v1967 = vrot.slane %v1965, 1
  %1970 = vmatpush.bf16.msra.mxu0 %v450
  %1971 = vmatpush.bf16.msra.mxu0 %v448
  %1972 = vmatpush.bf16.msra.mxu0 %v446
  %1973 = vmatpush.bf16.msra.mxu0 %v444
  %1974 = vmatpush.bf16.msra.mxu0 %v442
  %1975 = vmatpush.bf16.msra.mxu0 %v440
  %1976 = vmatpush.bf16.msra.mxu0 %v438
  %1977 = vmatpush.bf16.msra.mxu0 %v436
  %1978 = vmatmul.bf16.gmra.mxu0 %v1963
  %v1979 = vpop.f32.mrf.mxu0
  %v1980 = vadd.f32 0.0, %v1979
  %v1981 = vpop.f32.mrf.mxu0
  %1982 = vdwg.mxu0
  %1983 = vmatpush.bf16.msra.mxu0 %v466
  %1984 = vmatpush.bf16.msra.mxu0 %v464
  %1985 = vmatpush.bf16.msra.mxu0 %v462
  %1986 = vmatpush.bf16.msra.mxu0 %v460
  %1987 = vmatpush.bf16.msra.mxu0 %v458
  %1988 = vmatpush.bf16.msra.mxu0 %v456
  %1989 = vmatpush.bf16.msra.mxu0 %v454
  %1990 = vmatpush.bf16.msra.mxu0 %v452
  %1991 = vmatmul.bf16.gmra.mxu0 %v1967
  %v1992 = vpop.f32.mrf.mxu0
  %v1993 = vadd.f32 %v1980, %v1992
  %v1994 = vpop.f32.mrf.mxu0
  %1995 = vdwg.mxu0
  %1996 = vmatpush.bf16.msra.mxu0 %v451
  %1997 = vmatpush.bf16.msra.mxu0 %v449
  %1998 = vmatpush.bf16.msra.mxu0 %v447
  %1999 = vmatpush.bf16.msra.mxu0 %v445
  %2000 = vmatpush.bf16.msra.mxu0 %v443
  %2001 = vmatpush.bf16.msra.mxu0 %v441
  %2002 = vmatpush.bf16.msra.mxu0 %v439
  %2003 = vmatpush.bf16.msra.mxu0 %v437
  %2004 = vmatmul.bf16.gmra.mxu0 %v1963
  %v2005 = vpop.f32.mrf.mxu0
  %v2006 = vadd.f32 0.0, %v2005
  %v2007 = vpop.f32.mrf.mxu0
  %2008 = vdwg.mxu0
  %2009 = vmatpush.bf16.msra.mxu0 %v467
  %2010 = vmatpush.bf16.msra.mxu0 %v465
  %2011 = vmatpush.bf16.msra.mxu0 %v463
  %2012 = vmatpush.bf16.msra.mxu0 %v461
  %2013 = vmatpush.bf16.msra.mxu0 %v459
  %2014 = vmatpush.bf16.msra.mxu0 %v457
  %2015 = vmatpush.bf16.msra.mxu0 %v455
  %2016 = vmatpush.bf16.msra.mxu0 %v453
  %2017 = vmatmul.bf16.gmra.mxu0 %v1967
  %v2018 = vpop.f32.mrf.mxu0
  %v2019 = vadd.f32 %v2006, %v2018
  %v2020 = vpop.f32.mrf.mxu0
  %2021 = vdwg.mxu0
  %v2024 = vrot.slane %v1993, 4
  %v2025 = vrot.slane %v2019, 4
  %v2028 = vadd.f32 %v296, %v2024
  %v2029 = vadd.f32 %v297, %v2025
  %v2030 = vtanh.pop %v2028
  %v2031 = vtanh.pop %v2029
  %v2032 = vpack.c.bf16 %v2031, %v2030
  %v2034 = vunpack.c.l.b16 %v2032
  %v2035 = vunpack.c.h.b16 %v2032
  %v2036 = vpack.c.b16 %v2034, %v2034
  %v2037 = vpack.c.b16 %v2035, %v2035
  %v2038 = vrot.slane %v2036, 2
  %v2039 = vrot.slane %v2037, 2
  %2042 = vmatpush.bf16.msra.mxu0 %v450
  %2043 = vmatpush.bf16.msra.mxu0 %v448
  %2044 = vmatpush.bf16.msra.mxu0 %v446
  %2045 = vmatpush.bf16.msra.mxu0 %v444
  %2046 = vmatpush.bf16.msra.mxu0 %v442
  %2047 = vmatpush.bf16.msra.mxu0 %v440
  %2048 = vmatpush.bf16.msra.mxu0 %v438
  %2049 = vmatpush.bf16.msra.mxu0 %v436
  %2050 = vmatmul.bf16.gmra.mxu0 %v2038
  %v2051 = vpop.f32.mrf.mxu0
  %v2052 = vadd.f32 0.0, %v2051
  %v2053 = vpop.f32.mrf.mxu0
  %2054 = vdwg.mxu0
  %2055 = vmatpush.bf16.msra.mxu0 %v466
  %2056 = vmatpush.bf16.msra.mxu0 %v464
  %2057 = vmatpush.bf16.msra.mxu0 %v462
  %2058 = vmatpush.bf16.msra.mxu0 %v460
  %2059 = vmatpush.bf16.msra.mxu0 %v458
  %2060 = vmatpush.bf16.msra.mxu0 %v456
  %2061 = vmatpush.bf16.msra.mxu0 %v454
  %2062 = vmatpush.bf16.msra.mxu0 %v452
  %2063 = vmatmul.bf16.gmra.mxu0 %v2039
  %v2064 = vpop.f32.mrf.mxu0
  %v2065 = vadd.f32 %v2052, %v2064
  %v2066 = vpop.f32.mrf.mxu0
  %2067 = vdwg.mxu0
  %2068 = vmatpush.bf16.msra.mxu0 %v451
  %2069 = vmatpush.bf16.msra.mxu0 %v449
  %2070 = vmatpush.bf16.msra.mxu0 %v447
  %2071 = vmatpush.bf16.msra.mxu0 %v445
  %2072 = vmatpush.bf16.msra.mxu0 %v443
  %2073 = vmatpush.bf16.msra.mxu0 %v441
  %2074 = vmatpush.bf16.msra.mxu0 %v439
  %2075 = vmatpush.bf16.msra.mxu0 %v437
  %2076 = vmatmul.bf16.gmra.mxu0 %v2038
  %v2077 = vpop.f32.mrf.mxu0
  %v2078 = vadd.f32 0.0, %v2077
  %v2079 = vpop.f32.mrf.mxu0
  %2080 = vdwg.mxu0
  %2081 = vmatpush.bf16.msra.mxu0 %v467
  %2082 = vmatpush.bf16.msra.mxu0 %v465
  %2083 = vmatpush.bf16.msra.mxu0 %v463
  %2084 = vmatpush.bf16.msra.mxu0 %v461
  %2085 = vmatpush.bf16.msra.mxu0 %v459
  %2086 = vmatpush.bf16.msra.mxu0 %v457
  %2087 = vmatpush.bf16.msra.mxu0 %v455
  %2088 = vmatpush.bf16.msra.mxu0 %v453
  %2089 = vmatmul.bf16.gmra.mxu0 %v2039
  %v2090 = vpop.f32.mrf.mxu0
  %v2091 = vadd.f32 %v2078, %v2090
  %v2092 = vpop.f32.mrf.mxu0
  %2093 = vdwg.mxu0
  %v2096 = vrot.slane %v2065, 3
  %v2097 = vrot.slane %v2091, 3
  %v2100 = vadd.f32 %v296, %v2096
  %v2101 = vadd.f32 %v297, %v2097
  %v2102 = vtanh.pop %v2100
  %v2103 = vtanh.pop %v2101
  %v2104 = vpack.c.bf16 %v2103, %v2102
  %v2106 = vunpack.c.l.b16 %v2104
  %v2107 = vunpack.c.h.b16 %v2104
  %v2108 = vpack.c.b16 %v2106, %v2106
  %v2109 = vpack.c.b16 %v2107, %v2107
  %v2111 = vshrl.u32 %v2108, 16
  %v2113 = vrot.slane %v2111, 2
  %v2115 = vshrl.u32 %v2109, 16
  %v2117 = vrot.slane %v2115, 2
  %2120 = vmatpush.bf16.msra.mxu0 %v450
  %2121 = vmatpush.bf16.msra.mxu0 %v448
  %2122 = vmatpush.bf16.msra.mxu0 %v446
  %2123 = vmatpush.bf16.msra.mxu0 %v444
  %2124 = vmatpush.bf16.msra.mxu0 %v442
  %2125 = vmatpush.bf16.msra.mxu0 %v440
  %2126 = vmatpush.bf16.msra.mxu0 %v438
  %2127 = vmatpush.bf16.msra.mxu0 %v436
  %2128 = vmatmul.bf16.gmra.mxu0 %v2113
  %v2129 = vpop.f32.mrf.mxu0
  %v2130 = vadd.f32 0.0, %v2129
  %v2131 = vpop.f32.mrf.mxu0
  %2132 = vdwg.mxu0
  %2133 = vmatpush.bf16.msra.mxu0 %v466
  %2134 = vmatpush.bf16.msra.mxu0 %v464
  %2135 = vmatpush.bf16.msra.mxu0 %v462
  %2136 = vmatpush.bf16.msra.mxu0 %v460
  %2137 = vmatpush.bf16.msra.mxu0 %v458
  %2138 = vmatpush.bf16.msra.mxu0 %v456
  %2139 = vmatpush.bf16.msra.mxu0 %v454
  %2140 = vmatpush.bf16.msra.mxu0 %v452
  %2141 = vmatmul.bf16.gmra.mxu0 %v2117
  %v2142 = vpop.f32.mrf.mxu0
  %v2143 = vadd.f32 %v2130, %v2142
  %v2144 = vpop.f32.mrf.mxu0
  %2145 = vdwg.mxu0
  %2146 = vmatpush.bf16.msra.mxu0 %v451
  %2147 = vmatpush.bf16.msra.mxu0 %v449
  %2148 = vmatpush.bf16.msra.mxu0 %v447
  %2149 = vmatpush.bf16.msra.mxu0 %v445
  %2150 = vmatpush.bf16.msra.mxu0 %v443
  %2151 = vmatpush.bf16.msra.mxu0 %v441
  %2152 = vmatpush.bf16.msra.mxu0 %v439
  %2153 = vmatpush.bf16.msra.mxu0 %v437
  %2154 = vmatmul.bf16.gmra.mxu0 %v2113
  %v2155 = vpop.f32.mrf.mxu0
  %v2156 = vadd.f32 0.0, %v2155
  %v2157 = vpop.f32.mrf.mxu0
  %2158 = vdwg.mxu0
  %2159 = vmatpush.bf16.msra.mxu0 %v467
  %2160 = vmatpush.bf16.msra.mxu0 %v465
  %2161 = vmatpush.bf16.msra.mxu0 %v463
  %2162 = vmatpush.bf16.msra.mxu0 %v461
  %2163 = vmatpush.bf16.msra.mxu0 %v459
  %2164 = vmatpush.bf16.msra.mxu0 %v457
  %2165 = vmatpush.bf16.msra.mxu0 %v455
  %2166 = vmatpush.bf16.msra.mxu0 %v453
  %2167 = vmatmul.bf16.gmra.mxu0 %v2117
  %v2168 = vpop.f32.mrf.mxu0
  %v2169 = vadd.f32 %v2156, %v2168
  %v2170 = vpop.f32.mrf.mxu0
  %2171 = vdwg.mxu0
  %v2174 = vrot.slane %v2143, 2
  %v2175 = vrot.slane %v2169, 2
  %v2178 = vadd.f32 %v296, %v2174
  %v2179 = vadd.f32 %v297, %v2175
  %v2180 = vtanh.pop %v2178
  %v2181 = vtanh.pop %v2179
  %v2182 = vpack.c.bf16 %v2181, %v2180
  %v2184 = vunpack.c.l.b16 %v2182
  %v2185 = vunpack.c.h.b16 %v2182
  %v2186 = vpack.c.b16 %v2184, %v2184
  %v2187 = vpack.c.b16 %v2185, %v2185
  %v2188 = vrot.slane %v2186, 3
  %v2189 = vrot.slane %v2187, 3
  %2192 = vmatpush.bf16.msra.mxu0 %v450
  %2193 = vmatpush.bf16.msra.mxu0 %v448
  %2194 = vmatpush.bf16.msra.mxu0 %v446
  %2195 = vmatpush.bf16.msra.mxu0 %v444
  %2196 = vmatpush.bf16.msra.mxu0 %v442
  %2197 = vmatpush.bf16.msra.mxu0 %v440
  %2198 = vmatpush.bf16.msra.mxu0 %v438
  %2199 = vmatpush.bf16.msra.mxu0 %v436
  %2200 = vmatmul.bf16.gmra.mxu0 %v2188
  %v2201 = vpop.f32.mrf.mxu0
  %v2202 = vadd.f32 0.0, %v2201
  %v2203 = vpop.f32.mrf.mxu0
  %2204 = vdwg.mxu0
  %2205 = vmatpush.bf16.msra.mxu0 %v466
  %2206 = vmatpush.bf16.msra.mxu0 %v464
  %2207 = vmatpush.bf16.msra.mxu0 %v462
  %2208 = vmatpush.bf16.msra.mxu0 %v460
  %2209 = vmatpush.bf16.msra.mxu0 %v458
  %2210 = vmatpush.bf16.msra.mxu0 %v456
  %2211 = vmatpush.bf16.msra.mxu0 %v454
  %2212 = vmatpush.bf16.msra.mxu0 %v452
  %2213 = vmatmul.bf16.gmra.mxu0 %v2189
  %v2214 = vpop.f32.mrf.mxu0
  %v2215 = vadd.f32 %v2202, %v2214
  %v2216 = vpop.f32.mrf.mxu0
  %2217 = vdwg.mxu0
  %2218 = vmatpush.bf16.msra.mxu0 %v451
  %2219 = vmatpush.bf16.msra.mxu0 %v449
  %2220 = vmatpush.bf16.msra.mxu0 %v447
  %2221 = vmatpush.bf16.msra.mxu0 %v445
  %2222 = vmatpush.bf16.msra.mxu0 %v443
  %2223 = vmatpush.bf16.msra.mxu0 %v441
  %2224 = vmatpush.bf16.msra.mxu0 %v439
  %2225 = vmatpush.bf16.msra.mxu0 %v437
  %2226 = vmatmul.bf16.gmra.mxu0 %v2188
  %v2227 = vpop.f32.mrf.mxu0
  %v2228 = vadd.f32 0.0, %v2227
  %v2229 = vpop.f32.mrf.mxu0
  %2230 = vdwg.mxu0
  %2231 = vmatpush.bf16.msra.mxu0 %v467
  %2232 = vmatpush.bf16.msra.mxu0 %v465
  %2233 = vmatpush.bf16.msra.mxu0 %v463
  %2234 = vmatpush.bf16.msra.mxu0 %v461
  %2235 = vmatpush.bf16.msra.mxu0 %v459
  %2236 = vmatpush.bf16.msra.mxu0 %v457
  %2237 = vmatpush.bf16.msra.mxu0 %v455
  %2238 = vmatpush.bf16.msra.mxu0 %v453
  %2239 = vmatmul.bf16.gmra.mxu0 %v2189
  %v2240 = vpop.f32.mrf.mxu0
  %v2241 = vadd.f32 %v2228, %v2240
  %v2242 = vpop.f32.mrf.mxu0
  %2243 = vdwg.mxu0
  %v2246 = vrot.slane %v2215, 1
  %v2247 = vrot.slane %v2241, 1
  %v2250 = vadd.f32 %v296, %v2246
  %v2251 = vadd.f32 %v297, %v2247
  %v2252 = vtanh.pop %v2250
  %v2253 = vtanh.pop %v2251
  %v2254 = vpack.c.bf16 %v2253, %v2252
  %v2256 = vunpack.c.l.b16 %v2254
  %v2257 = vunpack.c.h.b16 %v2254
  %v2258 = vpack.c.b16 %v2256, %v2256
  %v2259 = vpack.c.b16 %v2257, %v2257
  %v2261 = vshrl.u32 %v2258, 16
  %v2263 = vrot.slane %v2261, 3
  %v2265 = vshrl.u32 %v2259, 16
  %v2267 = vrot.slane %v2265, 3
  %2270 = vmatpush.bf16.msra.mxu0 %v450
  %2271 = vmatpush.bf16.msra.mxu0 %v448
  %2272 = vmatpush.bf16.msra.mxu0 %v446
  %2273 = vmatpush.bf16.msra.mxu0 %v444
  %2274 = vmatpush.bf16.msra.mxu0 %v442
  %2275 = vmatpush.bf16.msra.mxu0 %v440
  %2276 = vmatpush.bf16.msra.mxu0 %v438
  %2277 = vmatpush.bf16.msra.mxu0 %v436
  %2278 = vmatmul.bf16.gmra.mxu0 %v2263
  %v2279 = vpop.f32.mrf.mxu0
  %v2280 = vadd.f32 0.0, %v2279
  %v2281 = vpop.f32.mrf.mxu0
  %2282 = vdwg.mxu0
  %2283 = vmatpush.bf16.msra.mxu0 %v466
  %2284 = vmatpush.bf16.msra.mxu0 %v464
  %2285 = vmatpush.bf16.msra.mxu0 %v462
  %2286 = vmatpush.bf16.msra.mxu0 %v460
  %2287 = vmatpush.bf16.msra.mxu0 %v458
  %2288 = vmatpush.bf16.msra.mxu0 %v456
  %2289 = vmatpush.bf16.msra.mxu0 %v454
  %2290 = vmatpush.bf16.msra.mxu0 %v452
  %2291 = vmatmul.bf16.gmra.mxu0 %v2267
  %v2292 = vpop.f32.mrf.mxu0
  %v2293 = vadd.f32 %v2280, %v2292
  %v2294 = vpop.f32.mrf.mxu0
  %2295 = vdwg.mxu0
  %2296 = vmatpush.bf16.msra.mxu0 %v451
  %2297 = vmatpush.bf16.msra.mxu0 %v449
  %2298 = vmatpush.bf16.msra.mxu0 %v447
  %2299 = vmatpush.bf16.msra.mxu0 %v445
  %2300 = vmatpush.bf16.msra.mxu0 %v443
  %2301 = vmatpush.bf16.msra.mxu0 %v441
  %2302 = vmatpush.bf16.msra.mxu0 %v439
  %2303 = vmatpush.bf16.msra.mxu0 %v437
  %2304 = vmatmul.bf16.gmra.mxu0 %v2263
  %v2305 = vpop.f32.mrf.mxu0
  %v2306 = vadd.f32 0.0, %v2305
  %v2307 = vpop.f32.mrf.mxu0
  %2308 = vdwg.mxu0
  %2309 = vmatpush.bf16.msra.mxu0 %v467
  %2310 = vmatpush.bf16.msra.mxu0 %v465
  %2311 = vmatpush.bf16.msra.mxu0 %v463
  %2312 = vmatpush.bf16.msra.mxu0 %v461
  %2313 = vmatpush.bf16.msra.mxu0 %v459
  %2314 = vmatpush.bf16.msra.mxu0 %v457
  %2315 = vmatpush.bf16.msra.mxu0 %v455
  %2316 = vmatpush.bf16.msra.mxu0 %v453
  %2317 = vmatmul.bf16.gmra.mxu0 %v2267
  %v2318 = vpop.f32.mrf.mxu0
  %v2319 = vadd.f32 %v2306, %v2318
  %v2320 = vpop.f32.mrf.mxu0
  %2321 = vdwg.mxu0
  %v2322 = vadd.f32 %v298, %v2293
  %v2323 = vadd.f32 %v299, %v2319
  %v2324 = vtanh.pop %v2322
  %v2325 = vtanh.pop %v2323
  %v2326 = vpack.c.bf16 %v2325, %v2324
  %v2328 = vunpack.c.l.b16 %v2326
  %v2329 = vunpack.c.h.b16 %v2326
  %v2330 = vpack.c.b16 %v2328, %v2328
  %v2331 = vpack.c.b16 %v2329, %v2329
  %2334 = vmatpush.bf16.msra.mxu0 %v450
  %2335 = vmatpush.bf16.msra.mxu0 %v448
  %2336 = vmatpush.bf16.msra.mxu0 %v446
  %2337 = vmatpush.bf16.msra.mxu0 %v444
  %2338 = vmatpush.bf16.msra.mxu0 %v442
  %2339 = vmatpush.bf16.msra.mxu0 %v440
  %2340 = vmatpush.bf16.msra.mxu0 %v438
  %2341 = vmatpush.bf16.msra.mxu0 %v436
  %2342 = vmatmul.bf16.gmra.mxu0 %v2330
  %v2343 = vpop.f32.mrf.mxu0
  %v2344 = vadd.f32 0.0, %v2343
  %v2345 = vpop.f32.mrf.mxu0
  %2346 = vdwg.mxu0
  %2347 = vmatpush.bf16.msra.mxu0 %v466
  %2348 = vmatpush.bf16.msra.mxu0 %v464
  %2349 = vmatpush.bf16.msra.mxu0 %v462
  %2350 = vmatpush.bf16.msra.mxu0 %v460
  %2351 = vmatpush.bf16.msra.mxu0 %v458
  %2352 = vmatpush.bf16.msra.mxu0 %v456
  %2353 = vmatpush.bf16.msra.mxu0 %v454
  %2354 = vmatpush.bf16.msra.mxu0 %v452
  %2355 = vmatmul.bf16.gmra.mxu0 %v2331
  %v2356 = vpop.f32.mrf.mxu0
  %v2357 = vadd.f32 %v2344, %v2356
  %v2358 = vpop.f32.mrf.mxu0
  %2359 = vdwg.mxu0
  %2360 = vmatpush.bf16.msra.mxu0 %v451
  %2361 = vmatpush.bf16.msra.mxu0 %v449
  %2362 = vmatpush.bf16.msra.mxu0 %v447
  %2363 = vmatpush.bf16.msra.mxu0 %v445
  %2364 = vmatpush.bf16.msra.mxu0 %v443
  %2365 = vmatpush.bf16.msra.mxu0 %v441
  %2366 = vmatpush.bf16.msra.mxu0 %v439
  %2367 = vmatpush.bf16.msra.mxu0 %v437
  %2368 = vmatmul.bf16.gmra.mxu0 %v2330
  %v2369 = vpop.f32.mrf.mxu0
  %v2370 = vadd.f32 0.0, %v2369
  %v2371 = vpop.f32.mrf.mxu0
  %2372 = vdwg.mxu0
  %2373 = vmatpush.bf16.msra.mxu0 %v467
  %2374 = vmatpush.bf16.msra.mxu0 %v465
  %2375 = vmatpush.bf16.msra.mxu0 %v463
  %2376 = vmatpush.bf16.msra.mxu0 %v461
  %2377 = vmatpush.bf16.msra.mxu0 %v459
  %2378 = vmatpush.bf16.msra.mxu0 %v457
  %2379 = vmatpush.bf16.msra.mxu0 %v455
  %2380 = vmatpush.bf16.msra.mxu0 %v453
  %2381 = vmatmul.bf16.gmra.mxu0 %v2331
  %v2382 = vpop.f32.mrf.mxu0
  %v2383 = vadd.f32 %v2370, %v2382
  %v2384 = vpop.f32.mrf.mxu0
  %2385 = vdwg.mxu0
  %v2388 = vrot.slane %v2357, 7
  %v2389 = vrot.slane %v2383, 7
  %v2392 = vadd.f32 %v298, %v2388
  %v2393 = vadd.f32 %v299, %v2389
  %v2394 = vtanh.pop %v2392
  %v2395 = vtanh.pop %v2393
  %v2396 = vpack.c.bf16 %v2395, %v2394
  %v2398 = vunpack.c.l.b16 %v2396
  %v2399 = vunpack.c.h.b16 %v2396
  %v2400 = vpack.c.b16 %v2398, %v2398
  %v2401 = vpack.c.b16 %v2399, %v2399
  %v2403 = vshrl.u32 %v2400, 16
  %v2406 = vshrl.u32 %v2401, 16
  %2410 = vmatpush.bf16.msra.mxu0 %v450
  %2411 = vmatpush.bf16.msra.mxu0 %v448
  %2412 = vmatpush.bf16.msra.mxu0 %v446
  %2413 = vmatpush.bf16.msra.mxu0 %v444
  %2414 = vmatpush.bf16.msra.mxu0 %v442
  %2415 = vmatpush.bf16.msra.mxu0 %v440
  %2416 = vmatpush.bf16.msra.mxu0 %v438
  %2417 = vmatpush.bf16.msra.mxu0 %v436
  %2418 = vmatmul.bf16.gmra.mxu0 %v2403
  %v2419 = vpop.f32.mrf.mxu0
  %v2420 = vadd.f32 0.0, %v2419
  %v2421 = vpop.f32.mrf.mxu0
  %2422 = vdwg.mxu0
  %2423 = vmatpush.bf16.msra.mxu0 %v466
  %2424 = vmatpush.bf16.msra.mxu0 %v464
  %2425 = vmatpush.bf16.msra.mxu0 %v462
  %2426 = vmatpush.bf16.msra.mxu0 %v460
  %2427 = vmatpush.bf16.msra.mxu0 %v458
  %2428 = vmatpush.bf16.msra.mxu0 %v456
  %2429 = vmatpush.bf16.msra.mxu0 %v454
  %2430 = vmatpush.bf16.msra.mxu0 %v452
  %2431 = vmatmul.bf16.gmra.mxu0 %v2406
  %v2432 = vpop.f32.mrf.mxu0
  %v2433 = vadd.f32 %v2420, %v2432
  %v2434 = vpop.f32.mrf.mxu0
  %2435 = vdwg.mxu0
  %2436 = vmatpush.bf16.msra.mxu0 %v451
  %2437 = vmatpush.bf16.msra.mxu0 %v449
  %2438 = vmatpush.bf16.msra.mxu0 %v447
  %2439 = vmatpush.bf16.msra.mxu0 %v445
  %2440 = vmatpush.bf16.msra.mxu0 %v443
  %2441 = vmatpush.bf16.msra.mxu0 %v441
  %2442 = vmatpush.bf16.msra.mxu0 %v439
  %2443 = vmatpush.bf16.msra.mxu0 %v437
  %2444 = vmatmul.bf16.gmra.mxu0 %v2403
  %v2445 = vpop.f32.mrf.mxu0
  %v2446 = vadd.f32 0.0, %v2445
  %v2447 = vpop.f32.mrf.mxu0
  %2448 = vdwg.mxu0
  %2449 = vmatpush.bf16.msra.mxu0 %v467
  %2450 = vmatpush.bf16.msra.mxu0 %v465
  %2451 = vmatpush.bf16.msra.mxu0 %v463
  %2452 = vmatpush.bf16.msra.mxu0 %v461
  %2453 = vmatpush.bf16.msra.mxu0 %v459
  %2454 = vmatpush.bf16.msra.mxu0 %v457
  %2455 = vmatpush.bf16.msra.mxu0 %v455
  %2456 = vmatpush.bf16.msra.mxu0 %v453
  %2457 = vmatmul.bf16.gmra.mxu0 %v2406
  %v2458 = vpop.f32.mrf.mxu0
  %v2459 = vadd.f32 %v2446, %v2458
  %v2460 = vpop.f32.mrf.mxu0
  %2461 = vdwg.mxu0
  %v2464 = vrot.slane %v2433, 6
  %v2465 = vrot.slane %v2459, 6
  %v2468 = vadd.f32 %v298, %v2464
  %v2469 = vadd.f32 %v299, %v2465
  %v2470 = vtanh.pop %v2468
  %v2471 = vtanh.pop %v2469
  %v2472 = vpack.c.bf16 %v2471, %v2470
  %v2474 = vunpack.c.l.b16 %v2472
  %v2475 = vunpack.c.h.b16 %v2472
  %v2476 = vpack.c.b16 %v2474, %v2474
  %v2477 = vpack.c.b16 %v2475, %v2475
  %v2478 = vrot.slane %v2476, 1
  %v2479 = vrot.slane %v2477, 1
  %2482 = vmatpush.bf16.msra.mxu0 %v450
  %2483 = vmatpush.bf16.msra.mxu0 %v448
  %2484 = vmatpush.bf16.msra.mxu0 %v446
  %2485 = vmatpush.bf16.msra.mxu0 %v444
  %2486 = vmatpush.bf16.msra.mxu0 %v442
  %2487 = vmatpush.bf16.msra.mxu0 %v440
  %2488 = vmatpush.bf16.msra.mxu0 %v438
  %2489 = vmatpush.bf16.msra.mxu0 %v436
  %2490 = vmatmul.bf16.gmra.mxu0 %v2478
  %v2491 = vpop.f32.mrf.mxu0
  %v2492 = vadd.f32 0.0, %v2491
  %v2493 = vpop.f32.mrf.mxu0
  %2494 = vdwg.mxu0
  %2495 = vmatpush.bf16.msra.mxu0 %v466
  %2496 = vmatpush.bf16.msra.mxu0 %v464
  %2497 = vmatpush.bf16.msra.mxu0 %v462
  %2498 = vmatpush.bf16.msra.mxu0 %v460
  %2499 = vmatpush.bf16.msra.mxu0 %v458
  %2500 = vmatpush.bf16.msra.mxu0 %v456
  %2501 = vmatpush.bf16.msra.mxu0 %v454
  %2502 = vmatpush.bf16.msra.mxu0 %v452
  %2503 = vmatmul.bf16.gmra.mxu0 %v2479
  %v2504 = vpop.f32.mrf.mxu0
  %v2505 = vadd.f32 %v2492, %v2504
  %v2506 = vpop.f32.mrf.mxu0
  %2507 = vdwg.mxu0
  %2508 = vmatpush.bf16.msra.mxu0 %v451
  %2509 = vmatpush.bf16.msra.mxu0 %v449
  %2510 = vmatpush.bf16.msra.mxu0 %v447
  %2511 = vmatpush.bf16.msra.mxu0 %v445
  %2512 = vmatpush.bf16.msra.mxu0 %v443
  %2513 = vmatpush.bf16.msra.mxu0 %v441
  %2514 = vmatpush.bf16.msra.mxu0 %v439
  %2515 = vmatpush.bf16.msra.mxu0 %v437
  %2516 = vmatmul.bf16.gmra.mxu0 %v2478
  %v2517 = vpop.f32.mrf.mxu0
  %v2518 = vadd.f32 0.0, %v2517
  %v2519 = vpop.f32.mrf.mxu0
  %2520 = vdwg.mxu0
  %2521 = vmatpush.bf16.msra.mxu0 %v467
  %2522 = vmatpush.bf16.msra.mxu0 %v465
  %2523 = vmatpush.bf16.msra.mxu0 %v463
  %2524 = vmatpush.bf16.msra.mxu0 %v461
  %2525 = vmatpush.bf16.msra.mxu0 %v459
  %2526 = vmatpush.bf16.msra.mxu0 %v457
  %2527 = vmatpush.bf16.msra.mxu0 %v455
  %2528 = vmatpush.bf16.msra.mxu0 %v453
  %2529 = vmatmul.bf16.gmra.mxu0 %v2479
  %v2530 = vpop.f32.mrf.mxu0
  %v2531 = vadd.f32 %v2518, %v2530
  %v2532 = vpop.f32.mrf.mxu0
  %2533 = vdwg.mxu0
  %v2536 = vrot.slane %v2505, 5
  %v2537 = vrot.slane %v2531, 5
  %v2540 = vadd.f32 %v298, %v2536
  %v2541 = vadd.f32 %v299, %v2537
  %v2542 = vtanh.pop %v2540
  %v2543 = vtanh.pop %v2541
  %v2544 = vpack.c.bf16 %v2543, %v2542
  %v2546 = vunpack.c.l.b16 %v2544
  %v2547 = vunpack.c.h.b16 %v2544
  %v2548 = vpack.c.b16 %v2546, %v2546
  %v2549 = vpack.c.b16 %v2547, %v2547
  %v2551 = vshrl.u32 %v2548, 16
  %v2553 = vrot.slane %v2551, 1
  %v2555 = vshrl.u32 %v2549, 16
  %v2557 = vrot.slane %v2555, 1
  %2560 = vmatpush.bf16.msra.mxu0 %v450
  %2561 = vmatpush.bf16.msra.mxu0 %v448
  %2562 = vmatpush.bf16.msra.mxu0 %v446
  %2563 = vmatpush.bf16.msra.mxu0 %v444
  %2564 = vmatpush.bf16.msra.mxu0 %v442
  %2565 = vmatpush.bf16.msra.mxu0 %v440
  %2566 = vmatpush.bf16.msra.mxu0 %v438
  %2567 = vmatpush.bf16.msra.mxu0 %v436
  %2568 = vmatmul.bf16.gmra.mxu0 %v2553
  %v2569 = vpop.f32.mrf.mxu0
  %v2570 = vadd.f32 0.0, %v2569
  %v2571 = vpop.f32.mrf.mxu0
  %2572 = vdwg.mxu0
  %2573 = vmatpush.bf16.msra.mxu0 %v466
  %2574 = vmatpush.bf16.msra.mxu0 %v464
  %2575 = vmatpush.bf16.msra.mxu0 %v462
  %2576 = vmatpush.bf16.msra.mxu0 %v460
  %2577 = vmatpush.bf16.msra.mxu0 %v458
  %2578 = vmatpush.bf16.msra.mxu0 %v456
  %2579 = vmatpush.bf16.msra.mxu0 %v454
  %2580 = vmatpush.bf16.msra.mxu0 %v452
  %2581 = vmatmul.bf16.gmra.mxu0 %v2557
  %v2582 = vpop.f32.mrf.mxu0
  %v2583 = vadd.f32 %v2570, %v2582
  %v2584 = vpop.f32.mrf.mxu0
  %2585 = vdwg.mxu0
  %2586 = vmatpush.bf16.msra.mxu0 %v451
  %2587 = vmatpush.bf16.msra.mxu0 %v449
  %2588 = vmatpush.bf16.msra.mxu0 %v447
  %2589 = vmatpush.bf16.msra.mxu0 %v445
  %2590 = vmatpush.bf16.msra.mxu0 %v443
  %2591 = vmatpush.bf16.msra.mxu0 %v441
  %2592 = vmatpush.bf16.msra.mxu0 %v439
  %2593 = vmatpush.bf16.msra.mxu0 %v437
  %2594 = vmatmul.bf16.gmra.mxu0 %v2553
  %v2595 = vpop.f32.mrf.mxu0
  %v2596 = vadd.f32 0.0, %v2595
  %v2597 = vpop.f32.mrf.mxu0
  %2598 = vdwg.mxu0
  %2599 = vmatpush.bf16.msra.mxu0 %v467
  %2600 = vmatpush.bf16.msra.mxu0 %v465
  %2601 = vmatpush.bf16.msra.mxu0 %v463
  %2602 = vmatpush.bf16.msra.mxu0 %v461
  %2603 = vmatpush.bf16.msra.mxu0 %v459
  %2604 = vmatpush.bf16.msra.mxu0 %v457
  %2605 = vmatpush.bf16.msra.mxu0 %v455
  %2606 = vmatpush.bf16.msra.mxu0 %v453
  %2607 = vmatmul.bf16.gmra.mxu0 %v2557
  %v2608 = vpop.f32.mrf.mxu0
  %v2609 = vadd.f32 %v2596, %v2608
  %v2610 = vpop.f32.mrf.mxu0
  %2611 = vdwg.mxu0
  %v2614 = vrot.slane %v2583, 4
  %v2615 = vrot.slane %v2609, 4
  %v2618 = vadd.f32 %v298, %v2614
  %v2619 = vadd.f32 %v299, %v2615
  %v2620 = vtanh.pop %v2618
  %v2621 = vtanh.pop %v2619
  %v2622 = vpack.c.bf16 %v2621, %v2620
  %v2624 = vunpack.c.l.b16 %v2622
  %v2625 = vunpack.c.h.b16 %v2622
  %v2626 = vpack.c.b16 %v2624, %v2624
  %v2627 = vpack.c.b16 %v2625, %v2625
  %v2628 = vrot.slane %v2626, 2
  %v2629 = vrot.slane %v2627, 2
  %2632 = vmatpush.bf16.msra.mxu0 %v450
  %2633 = vmatpush.bf16.msra.mxu0 %v448
  %2634 = vmatpush.bf16.msra.mxu0 %v446
  %2635 = vmatpush.bf16.msra.mxu0 %v444
  %2636 = vmatpush.bf16.msra.mxu0 %v442
  %2637 = vmatpush.bf16.msra.mxu0 %v440
  %2638 = vmatpush.bf16.msra.mxu0 %v438
  %2639 = vmatpush.bf16.msra.mxu0 %v436
  %2640 = vmatmul.bf16.gmra.mxu0 %v2628
  %v2641 = vpop.f32.mrf.mxu0
  %v2642 = vadd.f32 0.0, %v2641
  %v2643 = vpop.f32.mrf.mxu0
  %2644 = vdwg.mxu0
  %2645 = vmatpush.bf16.msra.mxu0 %v466
  %2646 = vmatpush.bf16.msra.mxu0 %v464
  %2647 = vmatpush.bf16.msra.mxu0 %v462
  %2648 = vmatpush.bf16.msra.mxu0 %v460
  %2649 = vmatpush.bf16.msra.mxu0 %v458
  %2650 = vmatpush.bf16.msra.mxu0 %v456
  %2651 = vmatpush.bf16.msra.mxu0 %v454
  %2652 = vmatpush.bf16.msra.mxu0 %v452
  %2653 = vmatmul.bf16.gmra.mxu0 %v2629
  %v2654 = vpop.f32.mrf.mxu0
  %v2655 = vadd.f32 %v2642, %v2654
  %v2656 = vpop.f32.mrf.mxu0
  %2657 = vdwg.mxu0
  %2658 = vmatpush.bf16.msra.mxu0 %v451
  %2659 = vmatpush.bf16.msra.mxu0 %v449
  %2660 = vmatpush.bf16.msra.mxu0 %v447
  %2661 = vmatpush.bf16.msra.mxu0 %v445
  %2662 = vmatpush.bf16.msra.mxu0 %v443
  %2663 = vmatpush.bf16.msra.mxu0 %v441
  %2664 = vmatpush.bf16.msra.mxu0 %v439
  %2665 = vmatpush.bf16.msra.mxu0 %v437
  %2666 = vmatmul.bf16.gmra.mxu0 %v2628
  %v2667 = vpop.f32.mrf.mxu0
  %v2668 = vadd.f32 0.0, %v2667
  %v2669 = vpop.f32.mrf.mxu0
  %2670 = vdwg.mxu0
  %2671 = vmatpush.bf16.msra.mxu0 %v467
  %2672 = vmatpush.bf16.msra.mxu0 %v465
  %2673 = vmatpush.bf16.msra.mxu0 %v463
  %2674 = vmatpush.bf16.msra.mxu0 %v461
  %2675 = vmatpush.bf16.msra.mxu0 %v459
  %2676 = vmatpush.bf16.msra.mxu0 %v457
  %2677 = vmatpush.bf16.msra.mxu0 %v455
  %2678 = vmatpush.bf16.msra.mxu0 %v453
  %2679 = vmatmul.bf16.gmra.mxu0 %v2629
  %v2680 = vpop.f32.mrf.mxu0
  %v2681 = vadd.f32 %v2668, %v2680
  %v2682 = vpop.f32.mrf.mxu0
  %2683 = vdwg.mxu0
  %v2686 = vrot.slane %v2655, 3
  %v2687 = vrot.slane %v2681, 3
  %v2690 = vadd.f32 %v298, %v2686
  %v2691 = vadd.f32 %v299, %v2687
  %v2692 = vtanh.pop %v2690
  %v2693 = vtanh.pop %v2691
  %v2694 = vpack.c.bf16 %v2693, %v2692
  %v2696 = vunpack.c.l.b16 %v2694
  %v2697 = vunpack.c.h.b16 %v2694
  %v2698 = vpack.c.b16 %v2696, %v2696
  %v2699 = vpack.c.b16 %v2697, %v2697
  %v2701 = vshrl.u32 %v2698, 16
  %v2703 = vrot.slane %v2701, 2
  %v2705 = vshrl.u32 %v2699, 16
  %v2707 = vrot.slane %v2705, 2
  %2710 = vmatpush.bf16.msra.mxu0 %v450
  %2711 = vmatpush.bf16.msra.mxu0 %v448
  %2712 = vmatpush.bf16.msra.mxu0 %v446
  %2713 = vmatpush.bf16.msra.mxu0 %v444
  %2714 = vmatpush.bf16.msra.mxu0 %v442
  %2715 = vmatpush.bf16.msra.mxu0 %v440
  %2716 = vmatpush.bf16.msra.mxu0 %v438
  %2717 = vmatpush.bf16.msra.mxu0 %v436
  %2718 = vmatmul.bf16.gmra.mxu0 %v2703
  %v2719 = vpop.f32.mrf.mxu0
  %v2720 = vadd.f32 0.0, %v2719
  %v2721 = vpop.f32.mrf.mxu0
  %2722 = vdwg.mxu0
  %2723 = vmatpush.bf16.msra.mxu0 %v466
  %2724 = vmatpush.bf16.msra.mxu0 %v464
  %2725 = vmatpush.bf16.msra.mxu0 %v462
  %2726 = vmatpush.bf16.msra.mxu0 %v460
  %2727 = vmatpush.bf16.msra.mxu0 %v458
  %2728 = vmatpush.bf16.msra.mxu0 %v456
  %2729 = vmatpush.bf16.msra.mxu0 %v454
  %2730 = vmatpush.bf16.msra.mxu0 %v452
  %2731 = vmatmul.bf16.gmra.mxu0 %v2707
  %v2732 = vpop.f32.mrf.mxu0
  %v2733 = vadd.f32 %v2720, %v2732
  %v2734 = vpop.f32.mrf.mxu0
  %2735 = vdwg.mxu0
  %2736 = vmatpush.bf16.msra.mxu0 %v451
  %2737 = vmatpush.bf16.msra.mxu0 %v449
  %2738 = vmatpush.bf16.msra.mxu0 %v447
  %2739 = vmatpush.bf16.msra.mxu0 %v445
  %2740 = vmatpush.bf16.msra.mxu0 %v443
  %2741 = vmatpush.bf16.msra.mxu0 %v441
  %2742 = vmatpush.bf16.msra.mxu0 %v439
  %2743 = vmatpush.bf16.msra.mxu0 %v437
  %2744 = vmatmul.bf16.gmra.mxu0 %v2703
  %v2745 = vpop.f32.mrf.mxu0
  %v2746 = vadd.f32 0.0, %v2745
  %v2747 = vpop.f32.mrf.mxu0
  %2748 = vdwg.mxu0
  %2749 = vmatpush.bf16.msra.mxu0 %v467
  %2750 = vmatpush.bf16.msra.mxu0 %v465
  %2751 = vmatpush.bf16.msra.mxu0 %v463
  %2752 = vmatpush.bf16.msra.mxu0 %v461
  %2753 = vmatpush.bf16.msra.mxu0 %v459
  %2754 = vmatpush.bf16.msra.mxu0 %v457
  %2755 = vmatpush.bf16.msra.mxu0 %v455
  %2756 = vmatpush.bf16.msra.mxu0 %v453
  %2757 = vmatmul.bf16.gmra.mxu0 %v2707
  %v2758 = vpop.f32.mrf.mxu0
  %v2759 = vadd.f32 %v2746, %v2758
  %v2760 = vpop.f32.mrf.mxu0
  %2761 = vdwg.mxu0
  %v2764 = vrot.slane %v2733, 2
  %v2765 = vrot.slane %v2759, 2
  %v2768 = vadd.f32 %v298, %v2764
  %v2769 = vadd.f32 %v299, %v2765
  %v2770 = vtanh.pop %v2768
  %v2771 = vtanh.pop %v2769
  %v2772 = vpack.c.bf16 %v2771, %v2770
  %v2774 = vunpack.c.l.b16 %v2772
  %v2775 = vunpack.c.h.b16 %v2772
  %v2776 = vpack.c.b16 %v2774, %v2774
  %v2777 = vpack.c.b16 %v2775, %v2775
  %v2778 = vrot.slane %v2776, 3
  %v2779 = vrot.slane %v2777, 3
  %2782 = vmatpush.bf16.msra.mxu0 %v450
  %2783 = vmatpush.bf16.msra.mxu0 %v448
  %2784 = vmatpush.bf16.msra.mxu0 %v446
  %2785 = vmatpush.bf16.msra.mxu0 %v444
  %2786 = vmatpush.bf16.msra.mxu0 %v442
  %2787 = vmatpush.bf16.msra.mxu0 %v440
  %2788 = vmatpush.bf16.msra.mxu0 %v438
  %2789 = vmatpush.bf16.msra.mxu0 %v436
  %2790 = vmatmul.bf16.gmra.mxu0 %v2778
  %v2791 = vpop.f32.mrf.mxu0
  %v2792 = vadd.f32 0.0, %v2791
  %v2793 = vpop.f32.mrf.mxu0
  %2794 = vdwg.mxu0
  %2795 = vmatpush.bf16.msra.mxu0 %v466
  %2796 = vmatpush.bf16.msra.mxu0 %v464
  %2797 = vmatpush.bf16.msra.mxu0 %v462
  %2798 = vmatpush.bf16.msra.mxu0 %v460
  %2799 = vmatpush.bf16.msra.mxu0 %v458
  %2800 = vmatpush.bf16.msra.mxu0 %v456
  %2801 = vmatpush.bf16.msra.mxu0 %v454
  %2802 = vmatpush.bf16.msra.mxu0 %v452
  %2803 = vmatmul.bf16.gmra.mxu0 %v2779
  %v2804 = vpop.f32.mrf.mxu0
  %v2805 = vadd.f32 %v2792, %v2804
  %v2806 = vpop.f32.mrf.mxu0
  %2807 = vdwg.mxu0
  %2808 = vmatpush.bf16.msra.mxu0 %v451
  %2809 = vmatpush.bf16.msra.mxu0 %v449
  %2810 = vmatpush.bf16.msra.mxu0 %v447
  %2811 = vmatpush.bf16.msra.mxu0 %v445
  %2812 = vmatpush.bf16.msra.mxu0 %v443
  %2813 = vmatpush.bf16.msra.mxu0 %v441
  %2814 = vmatpush.bf16.msra.mxu0 %v439
  %2815 = vmatpush.bf16.msra.mxu0 %v437
  %2816 = vmatmul.bf16.gmra.mxu0 %v2778
  %v2817 = vpop.f32.mrf.mxu0
  %v2818 = vadd.f32 0.0, %v2817
  %v2819 = vpop.f32.mrf.mxu0
  %2820 = vdwg.mxu0
  %2821 = vmatpush.bf16.msra.mxu0 %v467
  %2822 = vmatpush.bf16.msra.mxu0 %v465
  %2823 = vmatpush.bf16.msra.mxu0 %v463
  %2824 = vmatpush.bf16.msra.mxu0 %v461
  %2825 = vmatpush.bf16.msra.mxu0 %v459
  %2826 = vmatpush.bf16.msra.mxu0 %v457
  %2827 = vmatpush.bf16.msra.mxu0 %v455
  %2828 = vmatpush.bf16.msra.mxu0 %v453
  %2829 = vmatmul.bf16.gmra.mxu0 %v2779
  %v2830 = vpop.f32.mrf.mxu0
  %v2831 = vadd.f32 %v2818, %v2830
  %v2832 = vpop.f32.mrf.mxu0
  %2833 = vdwg.mxu0
  %v2836 = vrot.slane %v2805, 1
  %v2837 = vrot.slane %v2831, 1
  %v2840 = vadd.f32 %v298, %v2836
  %v2841 = vadd.f32 %v299, %v2837
  %v2842 = vtanh.pop %v2840
  %v2843 = vtanh.pop %v2841
  %v2844 = vpack.c.bf16 %v2843, %v2842
  %vm2861 = vcmask 1040384
  %vm2862 = vsmask.f32 256
  %vm2863 = vmand %vm2861, %vm2862
  %v2864 = vsel %vm2863, %v560, %v630
  %v2865 = vsel %vm2863, %v561, %v631
  %vm2866 = vcmask 1040384
  %v2869 = vsel %vm2866, %v2864, %v706
  %v2873 = vsel %vm2866, %v2865, %v707
  %vm2875 = vcmask 1041408
  %vm2876 = vsmask.f32 1280
  %vm2877 = vmand %vm2875, %vm2876
  %v2878 = vsel %vm2877, %v2869, %v778
  %v2879 = vsel %vm2877, %v2873, %v779
  %vm2880 = vcmask 1041408
  %v2883 = vsel %vm2880, %v2878, %v856
  %v2887 = vsel %vm2880, %v2879, %v857
  %vm2889 = vcmask 1042432
  %vm2890 = vsmask.f32 2304
  %vm2891 = vmand %vm2889, %vm2890
  %v2892 = vsel %vm2891, %v2883, %v928
  %v2893 = vsel %vm2891, %v2887, %v929
  %vm2894 = vcmask 1042432
  %v2897 = vsel %vm2894, %v2892, %v1006
  %v2901 = vsel %vm2894, %v2893, %v1007
  %vm2903 = vcmask 1043456
  %vm2904 = vsmask.f32 3328
  %vm2905 = vmand %vm2903, %vm2904
  %v2906 = vsel %vm2905, %v2897, %v1078
  %v2907 = vsel %vm2905, %v2901, %v1079
  %v2910 = vsel %vm261, %v2906, %v1150
  %v2914 = vsel %vm261, %v2907, %v1151
  %vm2916 = vcmask 1044480
  %vm2917 = vsmask.f32 4352
  %vm2918 = vmand %vm2916, %vm2917
  %v2919 = vsel %vm2918, %v2910, %v1220
  %v2920 = vsel %vm2918, %v2914, %v1221
  %v2923 = vsel %vm204, %v2919, %v1296
  %v2927 = vsel %vm204, %v2920, %v1297
  %vm2929 = vcmask 1045504
  %vm2930 = vsmask.f32 5376
  %vm2931 = vmand %vm2929, %vm2930
  %v2932 = vsel %vm2931, %v2923, %v1368
  %v2933 = vsel %vm2931, %v2927, %v1369
  %v2936 = vsel %vm147, %v2932, %v1446
  %v2940 = vsel %vm147, %v2933, %v1447
  %vm2942 = vcmask 1046528
  %vm2943 = vsmask.f32 6400
  %vm2944 = vmand %vm2942, %vm2943
  %v2945 = vsel %vm2944, %v2936, %v1518
  %v2946 = vsel %vm2944, %v2940, %v1519
  %v2949 = vsel %vm91, %v2945, %v1596
  %v2953 = vsel %vm91, %v2946, %v1597
  %vm2955 = vcmask 1047552
  %vm2956 = vsmask.f32 7424
  %vm2957 = vmand %vm2955, %vm2956
  %v2958 = vsel %vm2957, %v2949, %v1668
  %v2959 = vsel %vm2957, %v2953, %v1669
  %v2975 = vunpack.c.l.b16 %v2844
  %v2976 = vunpack.c.h.b16 %v2844
  %v2977 = vpack.c.b16 %v2975, %v2975
  %v2978 = vpack.c.b16 %v2976, %v2976
  %v2981 = vsel %vm2863, %v1740, %v1810
  %v2982 = vsel %vm2863, %v1741, %v1811
  %v2985 = vsel %vm2866, %v2981, %v1886
  %v2989 = vsel %vm2866, %v2982, %v1887
  %v2991 = vsel %vm2877, %v2985, %v1958
  %v2992 = vsel %vm2877, %v2989, %v1959
  %v2995 = vsel %vm2880, %v2991, %v2036
  %v2999 = vsel %vm2880, %v2992, %v2037
  %v3001 = vsel %vm2891, %v2995, %v2108
  %v3002 = vsel %vm2891, %v2999, %v2109
  %v3005 = vsel %vm2894, %v3001, %v2186
  %v3009 = vsel %vm2894, %v3002, %v2187
  %v3011 = vsel %vm2905, %v3005, %v2258
  %v3012 = vsel %vm2905, %v3009, %v2259
  %v3015 = vsel %vm261, %v3011, %v2330
  %v3019 = vsel %vm261, %v3012, %v2331
  %v3021 = vsel %vm2918, %v3015, %v2400
  %v3022 = vsel %vm2918, %v3019, %v2401
  %v3025 = vsel %vm204, %v3021, %v2476
  %v3029 = vsel %vm204, %v3022, %v2477
  %v3031 = vsel %vm2931, %v3025, %v2548
  %v3032 = vsel %vm2931, %v3029, %v2549
  %v3035 = vsel %vm147, %v3031, %v2626
  %v3039 = vsel %vm147, %v3032, %v2627
  %v3041 = vsel %vm2944, %v3035, %v2698
  %v3042 = vsel %vm2944, %v3039, %v2699
  %v3045 = vsel %vm91, %v3041, %v2776
  %v3049 = vsel %vm91, %v3042, %v2777
  %v3051 = vsel %vm2957, %v3045, %v2977
  %v3052 = vsel %vm2957, %v3049, %v2978
  %v3057 = vunpack.c.l.b16 %v2958
  %v3058 = vunpack.c.l.b16 %v2959
  %v3059 = vunpack.c.h.b16 %v2958
  %v3060 = vunpack.c.h.b16 %v2959
  %v3061 = vunpack.c.l.b16 %v3051
  %v3062 = vunpack.c.l.b16 %v3052
  %v3063 = vunpack.c.h.b16 %v3051
  %v3064 = vunpack.c.h.b16 %v3052
  %v3065 = vpack.c.b16 %v3058, %v3057
  %v3066 = vpack.c.b16 %v3060, %v3059
  %v3067 = vpack.c.b16 %v3062, %v3061
  %v3068 = vpack.c.b16 %v3064, %v3063
  %3073 = vst [vmem:[%s4] sm:$0xff] %v3065
  %3074 = vst [vmem:[%s4 + $0x8] sm:$0xff] %v3066
  %3075 = vst [vmem:[%s4 + $0x10] sm:$0xff] %v3067
  %3076 = vst [vmem:[%s4 + $0x18] sm:$0xff] %v3068
  %3079 = vst [vmem:[#allocation1] sm:$0xff] %v2842
  %3080 = vst [vmem:[#allocation1 + $0x9] sm:$0xff] %v2843
  %s3081 = scalar_lea.vmem [#allocation1], 7
  %v3082 = vld [vmem:[%s3081] ss:$9 sm:$0xff]
  %v3084 = vlaneseq
  %vm3085 = vcmp.ge.s32.totalorder %v3084, 0
  %vm3086 = vcmp.lt.s32.totalorder %v3084, 256
  %vm3087 = vmand %vm3085, %vm3086
  %3088 = vst.msk [vmem:[#allocation2] sm:$0x3] %vm3087, %v3082
  // Predicated region
  $region22: #{audio_encoder_forward.5} parent=0 // pred_check
    _
  $region23: #{audio_encoder_forward.5} parent=0 // pred_check_branch
    %3090 = sbr.rel (0) target = $region25
  $region24: #{audio_encoder_forward.5} parent=0 // pred_region
    _
  $region25: #{audio_encoder_forward.5} parent=0 // pred_fallthru
    _
  // Predicated region
  $region26: #{audio_encoder_forward.5} parent=0 // pred_check
    _
  $region27: #{audio_encoder_forward.5} parent=0 // pred_check_branch
    %3092 = sbr.rel (0) target = $region29
  $region28: #{audio_encoder_forward.5} parent=0 // pred_region
    _
  $region29: #{audio_encoder_forward.5} parent=0 // pred_fallthru
    _

// kernel: audio_encoder_forward.7
$region0: #{audio_encoder_forward.7}
  #allocation0 [shape = 'u32[]', space=smem, size = 0x4, offset = 0x4, fixed_abs, tag = 'smem constant byte address 0x4 - core index']
  #allocation1 [shape = 'u32[72,128]{1,0:T(1,128)}', space=vmem, size = 0x9000, scoped, tag = 'internal scratch']
  #allocation2 [shape = 'f32[1,256]{1,0:T(1,128)}', space=vmem, size = 0x400, scoped, tag = 'scratch operand']
  %s0 = inlined_call_operand.vmem [shape: f32[32,256], index: 0, kind: input, shape index: {}]
  %s1 = inlined_call_operand.vmem [shape: bf16[256,256], index: 1, kind: input, shape index: {}]
  %s2 = inlined_call_operand.vmem [shape: f32[32,256], index: 2, kind: output, shape index: {}]
  %s3 = sld [smem:[#allocation0]]
  $region22: #{audio_encoder_forward.7} parent=0
    _
  %s5 = ssub.s32 1, %s3
  %s6 = scalar_select 0, %s5, %s3
  // Predicated region
  $region2: #{audio_encoder_forward.7} parent=0 // pred_check
    _
  $region3: #{audio_encoder_forward.7} parent=0 // pred_check_branch
    %8 = sbr.rel (0) target = $region5
  $region4: #{audio_encoder_forward.7} parent=0 // pred_region
    _
  $region5: #{audio_encoder_forward.7} parent=0 // pred_fallthru
    _
  // Predicated region
  $region6: #{audio_encoder_forward.7} parent=0 // pred_check
    _
  $region7: #{audio_encoder_forward.7} parent=0 // pred_check_branch
    %10 = sbr.rel (0) target = $region9
  $region8: #{audio_encoder_forward.7} parent=0 // pred_region
    _
  $region9: #{audio_encoder_forward.7} parent=0 // pred_fallthru
    _
  %p11 = scmp.eq.s32.totalorder 0, 0
  // Predicated region
  $region10: #{audio_encoder_forward.7} parent=0 // pred_check
    %p12 = pneg %p11
  $region11: #{audio_encoder_forward.7} parent=0 // pred_check_branch
    %14 = sbr.rel (%p12) target = $region13
  $region12: #{audio_encoder_forward.7} parent=0 // pred_region
    %v15 = vlaneseq
    %vm16 = vcmp.ge.s32.totalorder %v15, 0
    %vm17 = vcmp.lt.s32.totalorder %v15, 256
    %vm18 = vmand %vm16, %vm17
    %19 = vst.msk [vmem:[#allocation2] sm:$0x3] %vm18, 0.0
  $region13: #{audio_encoder_forward.7} parent=0 // pred_fallthru
    _
  %v20 = vld [vmem:[%s0] sm:$0xff]
  %v21 = vld [vmem:[%s0 + $0x8] sm:$0xff]
  %v22 = vld [vmem:[%s0 + $0x10] sm:$0xff]
  %v23 = vld [vmem:[%s0 + $0x18] sm:$0xff]
  %v24 = vld [vmem:[%s0 + $0x20] sm:$0xff]
  %v25 = vld [vmem:[%s0 + $0x28] sm:$0xff]
  %v26 = vld [vmem:[%s0 + $0x30] sm:$0xff]
  %v27 = vld [vmem:[%s0 + $0x38] sm:$0xff]
  %v28 = vld [vmem:[%s1] sm:$0xff]
  %v29 = vld [vmem:[%s1 + $0x8] sm:$0xff]
  %v30 = vld [vmem:[%s1 + $0x10] sm:$0xff]
  %v31 = vld [vmem:[%s1 + $0x18] sm:$0xff]
  %v32 = vld [vmem:[%s1 + $0x20] sm:$0xff]
  %v33 = vld [vmem:[%s1 + $0x28] sm:$0xff]
  %v34 = vld [vmem:[%s1 + $0x30] sm:$0xff]
  %v35 = vld [vmem:[%s1 + $0x38] sm:$0xff]
  %v36 = vld [vmem:[%s1 + $0x40] sm:$0xff]
  %v37 = vld [vmem:[%s1 + $0x48] sm:$0xff]
  %v38 = vld [vmem:[%s1 + $0x50] sm:$0xff]
  %v39 = vld [vmem:[%s1 + $0x58] sm:$0xff]
  %v40 = vld [vmem:[%s1 + $0x60] sm:$0xff]
  %v41 = vld [vmem:[%s1 + $0x68] sm:$0xff]
  %v42 = vld [vmem:[%s1 + $0x70] sm:$0xff]
  %v43 = vld [vmem:[%s1 + $0x78] sm:$0xff]
  %v44 = vld [vmem:[%s1 + $0x80] sm:$0xff]
  %v45 = vld [vmem:[%s1 + $0x88] sm:$0xff]
  %v46 = vld [vmem:[%s1 + $0x90] sm:$0xff]
  %v47 = vld [vmem:[%s1 + $0x98] sm:$0xff]
  %v48 = vld [vmem:[%s1 + $0xa0] sm:$0xff]
  %v49 = vld [vmem:[%s1 + $0xa8] sm:$0xff]
  %v50 = vld [vmem:[%s1 + $0xb0] sm:$0xff]
  %v51 = vld [vmem:[%s1 + $0xb8] sm:$0xff]
  %v52 = vld [vmem:[%s1 + $0xc0] sm:$0xff]
  %v53 = vld [vmem:[%s1 + $0xc8] sm:$0xff]
  %v54 = vld [vmem:[%s1 + $0xd0] sm:$0xff]
  %v55 = vld [vmem:[%s1 + $0xd8] sm:$0xff]
  %v56 = vld [vmem:[%s1 + $0xe0] sm:$0xff]
  %v57 = vld [vmem:[%s1 + $0xe8] sm:$0xff]
  %v58 = vld [vmem:[%s1 + $0xf0] sm:$0xff]
  %v59 = vld [vmem:[%s1 + $0xf8] sm:$0xff]
  %v60 = vld [vmem:[#allocation2] sm:$0x3]
  %v62 = vperm.slane %v60, 0
  %v63 = vperm.slane %v60, 1
  %v66 = vpack.c.bf16 %v62, %v62
  %v67 = vpack.c.bf16 %v63, %v63
  %v100 = vunpack.c.l.b16 %v28
  %v101 = vunpack.c.h.b16 %v28
  %v102 = vunpack.c.l.b16 %v29
  %v103 = vunpack.c.h.b16 %v29
  %v104 = vunpack.c.l.b16 %v30
  %v105 = vunpack.c.h.b16 %v30
  %v106 = vunpack.c.l.b16 %v31
  %v107 = vunpack.c.h.b16 %v31
  %v108 = vunpack.c.l.b16 %v32
  %v109 = vunpack.c.h.b16 %v32
  %v110 = vunpack.c.l.b16 %v33
  %v111 = vunpack.c.h.b16 %v33
  %v112 = vunpack.c.l.b16 %v34
  %v113 = vunpack.c.h.b16 %v34
  %v114 = vunpack.c.l.b16 %v35
  %v115 = vunpack.c.h.b16 %v35
  %v116 = vunpack.c.l.b16 %v36
  %v117 = vunpack.c.h.b16 %v36
  %v118 = vunpack.c.l.b16 %v37
  %v119 = vunpack.c.h.b16 %v37
  %v120 = vunpack.c.l.b16 %v38
  %v121 = vunpack.c.h.b16 %v38
  %v122 = vunpack.c.l.b16 %v39
  %v123 = vunpack.c.h.b16 %v39
  %v124 = vunpack.c.l.b16 %v40
  %v125 = vunpack.c.h.b16 %v40
  %v126 = vunpack.c.l.b16 %v41
  %v127 = vunpack.c.h.b16 %v41
  %v128 = vunpack.c.l.b16 %v42
  %v129 = vunpack.c.h.b16 %v42
  %v130 = vunpack.c.l.b16 %v43
  %v131 = vunpack.c.h.b16 %v43
  %v132 = vunpack.c.l.b16 %v44
  %v133 = vunpack.c.h.b16 %v44
  %v134 = vunpack.c.l.b16 %v45
  %v135 = vunpack.c.h.b16 %v45
  %v136 = vunpack.c.l.b16 %v46
  %v137 = vunpack.c.h.b16 %v46
  %v138 = vunpack.c.l.b16 %v47
  %v139 = vunpack.c.h.b16 %v47
  %v140 = vunpack.c.l.b16 %v48
  %v141 = vunpack.c.h.b16 %v48
  %v142 = vunpack.c.l.b16 %v49
  %v143 = vunpack.c.h.b16 %v49
  %v144 = vunpack.c.l.b16 %v50
  %v145 = vunpack.c.h.b16 %v50
  %v146 = vunpack.c.l.b16 %v51
  %v147 = vunpack.c.h.b16 %v51
  %v148 = vunpack.c.l.b16 %v52
  %v149 = vunpack.c.h.b16 %v52
  %v150 = vunpack.c.l.b16 %v53
  %v151 = vunpack.c.h.b16 %v53
  %v152 = vunpack.c.l.b16 %v54
  %v153 = vunpack.c.h.b16 %v54
  %v154 = vunpack.c.l.b16 %v55
  %v155 = vunpack.c.h.b16 %v55
  %v156 = vunpack.c.l.b16 %v56
  %v157 = vunpack.c.h.b16 %v56
  %v158 = vunpack.c.l.b16 %v57
  %v159 = vunpack.c.h.b16 %v57
  %v160 = vunpack.c.l.b16 %v58
  %v161 = vunpack.c.h.b16 %v58
  %v162 = vunpack.c.l.b16 %v59
  %v163 = vunpack.c.h.b16 %v59
  %v164 = vpack.c.b16 %v102, %v100
  %v165 = vpack.c.b16 %v103, %v101
  %v166 = vpack.c.b16 %v106, %v104
  %v167 = vpack.c.b16 %v107, %v105
  %v168 = vpack.c.b16 %v110, %v108
  %v169 = vpack.c.b16 %v111, %v109
  %v170 = vpack.c.b16 %v114, %v112
  %v171 = vpack.c.b16 %v115, %v113
  %v172 = vpack.c.b16 %v118, %v116
  %v173 = vpack.c.b16 %v119, %v117
  %v174 = vpack.c.b16 %v122, %v120
  %v175 = vpack.c.b16 %v123, %v121
  %v176 = vpack.c.b16 %v126, %v124
  %v177 = vpack.c.b16 %v127, %v125
  %v178 = vpack.c.b16 %v130, %v128
  %v179 = vpack.c.b16 %v131, %v129
  %v180 = vpack.c.b16 %v134, %v132
  %v181 = vpack.c.b16 %v135, %v133
  %v182 = vpack.c.b16 %v138, %v136
  %v183 = vpack.c.b16 %v139, %v137
  %v184 = vpack.c.b16 %v142, %v140
  %v185 = vpack.c.b16 %v143, %v141
  %v186 = vpack.c.b16 %v146, %v144
  %v187 = vpack.c.b16 %v147, %v145
  %v188 = vpack.c.b16 %v150, %v148
  %v189 = vpack.c.b16 %v151, %v149
  %v190 = vpack.c.b16 %v154, %v152
  %v191 = vpack.c.b16 %v155, %v153
  %v192 = vpack.c.b16 %v158, %v156
  %v193 = vpack.c.b16 %v159, %v157
  %v194 = vpack.c.b16 %v162, %v160
  %v195 = vpack.c.b16 %v163, %v161
  %228 = vmatpush.bf16.msra.mxu0 %v178
  %229 = vmatpush.bf16.msra.mxu0 %v176
  %230 = vmatpush.bf16.msra.mxu0 %v174
  %231 = vmatpush.bf16.msra.mxu0 %v172
  %232 = vmatpush.bf16.msra.mxu0 %v170
  %233 = vmatpush.bf16.msra.mxu0 %v168
  %234 = vmatpush.bf16.msra.mxu0 %v166
  %235 = vmatpush.bf16.msra.mxu0 %v164
  %236 = vmatmul.bf16.gmra.mxu0 %v66
  %v237 = vpop.f32.mrf.mxu0
  %v238 = vadd.f32 0.0, %v237
  %v239 = vpop.f32.mrf.mxu0
  %240 = vdwg.mxu0
  %241 = vmatpush.bf16.msra.mxu0 %v194
  %242 = vmatpush.bf16.msra.mxu0 %v192
  %243 = vmatpush.bf16.msra.mxu0 %v190
  %244 = vmatpush.bf16.msra.mxu0 %v188
  %245 = vmatpush.bf16.msra.mxu0 %v186
  %246 = vmatpush.bf16.msra.mxu0 %v184
  %247 = vmatpush.bf16.msra.mxu0 %v182
  %248 = vmatpush.bf16.msra.mxu0 %v180
  %249 = vmatmul.bf16.gmra.mxu0 %v67
  %v250 = vpop.f32.mrf.mxu0
  %v251 = vadd.f32 %v238, %v250
  %v252 = vpop.f32.mrf.mxu0
  %253 = vdwg.mxu0
  %254 = vmatpush.bf16.msra.mxu0 %v179
  %255 = vmatpush.bf16.msra.mxu0 %v177
  %256 = vmatpush.bf16.msra.mxu0 %v175
  %257 = vmatpush.bf16.msra.mxu0 %v173
  %258 = vmatpush.bf16.msra.mxu0 %v171
  %259 = vmatpush.bf16.msra.mxu0 %v169
  %260 = vmatpush.bf16.msra.mxu0 %v167
  %261 = vmatpush.bf16.msra.mxu0 %v165
  %262 = vmatmul.bf16.gmra.mxu0 %v66
  %v263 = vpop.f32.mrf.mxu0
  %v264 = vadd.f32 0.0, %v263
  %v265 = vpop.f32.mrf.mxu0
  %266 = vdwg.mxu0
  %267 = vmatpush.bf16.msra.mxu0 %v195
  %268 = vmatpush.bf16.msra.mxu0 %v193
  %269 = vmatpush.bf16.msra.mxu0 %v191
  %270 = vmatpush.bf16.msra.mxu0 %v189
  %271 = vmatpush.bf16.msra.mxu0 %v187
  %272 = vmatpush.bf16.msra.mxu0 %v185
  %273 = vmatpush.bf16.msra.mxu0 %v183
  %274 = vmatpush.bf16.msra.mxu0 %v181
  %275 = vmatmul.bf16.gmra.mxu0 %v67
  %v276 = vpop.f32.mrf.mxu0
  %v277 = vadd.f32 %v264, %v276
  %v278 = vpop.f32.mrf.mxu0
  %279 = vdwg.mxu0
  %v280 = vadd.f32 %v20, %v251
  %v281 = vadd.f32 %v21, %v277
  %v282 = vtanh.pop %v280
  %v283 = vtanh.pop %v281
  %v284 = vpack.c.bf16 %v282, %v282
  %v285 = vpack.c.bf16 %v283, %v283
  %286 = vmatpush.bf16.msra.mxu0 %v178
  %287 = vmatpush.bf16.msra.mxu0 %v176
  %288 = vmatpush.bf16.msra.mxu0 %v174
  %289 = vmatpush.bf16.msra.mxu0 %v172
  %290 = vmatpush.bf16.msra.mxu0 %v170
  %291 = vmatpush.bf16.msra.mxu0 %v168
  %292 = vmatpush.bf16.msra.mxu0 %v166
  %293 = vmatpush.bf16.msra.mxu0 %v164
  %294 = vmatmul.bf16.gmra.mxu0 %v284
  %v295 = vpop.f32.mrf.mxu0
  %v296 = vadd.f32 0.0, %v295
  %v297 = vpop.f32.mrf.mxu0
  %298 = vdwg.mxu0
  %299 = vmatpush.bf16.msra.mxu0 %v194
  %300 = vmatpush.bf16.msra.mxu0 %v192
  %301 = vmatpush.bf16.msra.mxu0 %v190
  %302 = vmatpush.bf16.msra.mxu0 %v188
  %303 = vmatpush.bf16.msra.mxu0 %v186
  %304 = vmatpush.bf16.msra.mxu0 %v184
  %305 = vmatpush.bf16.msra.mxu0 %v182
  %306 = vmatpush.bf16.msra.mxu0 %v180
  %307 = vmatmul.bf16.gmra.mxu0 %v285
  %v308 = vpop.f32.mrf.mxu0
  %v309 = vadd.f32 %v296, %v308
  %v310 = vpop.f32.mrf.mxu0
  %311 = vdwg.mxu0
  %312 = vmatpush.bf16.msra.mxu0 %v179
  %313 = vmatpush.bf16.msra.mxu0 %v177
  %314 = vmatpush.bf16.msra.mxu0 %v175
  %315 = vmatpush.bf16.msra.mxu0 %v173
  %316 = vmatpush.bf16.msra.mxu0 %v171
  %317 = vmatpush.bf16.msra.mxu0 %v169
  %318 = vmatpush.bf16.msra.mxu0 %v167
  %319 = vmatpush.bf16.msra.mxu0 %v165
  %320 = vmatmul.bf16.gmra.mxu0 %v284
  %v321 = vpop.f32.mrf.mxu0
  %v322 = vadd.f32 0.0, %v321
  %v323 = vpop.f32.mrf.mxu0
  %324 = vdwg.mxu0
  %325 = vmatpush.bf16.msra.mxu0 %v195
  %326 = vmatpush.bf16.msra.mxu0 %v193
  %327 = vmatpush.bf16.msra.mxu0 %v191
  %328 = vmatpush.bf16.msra.mxu0 %v189
  %329 = vmatpush.bf16.msra.mxu0 %v187
  %330 = vmatpush.bf16.msra.mxu0 %v185
  %331 = vmatpush.bf16.msra.mxu0 %v183
  %332 = vmatpush.bf16.msra.mxu0 %v181
  %333 = vmatmul.bf16.gmra.mxu0 %v285
  %v334 = vpop.f32.mrf.mxu0
  %v335 = vadd.f32 %v322, %v334
  %v336 = vpop.f32.mrf.mxu0
  %337 = vdwg.mxu0
  %v340 = vrot.slane %v309, 7
  %v341 = vrot.slane %v335, 7
  %v344 = vadd.f32 %v20, %v340
  %v345 = vadd.f32 %v21, %v341
  %v346 = vtanh.pop %v344
  %v347 = vtanh.pop %v345
  %v348 = vpack.c.bf16 %v346, %v346
  %v349 = vpack.c.bf16 %v347, %v347
  %v351 = vshrl.u32 %v348, 16
  %v354 = vshrl.u32 %v349, 16
  %358 = vmatpush.bf16.msra.mxu0 %v178
  %359 = vmatpush.bf16.msra.mxu0 %v176
  %360 = vmatpush.bf16.msra.mxu0 %v174
  %361 = vmatpush.bf16.msra.mxu0 %v172
  %362 = vmatpush.bf16.msra.mxu0 %v170
  %363 = vmatpush.bf16.msra.mxu0 %v168
  %364 = vmatpush.bf16.msra.mxu0 %v166
  %365 = vmatpush.bf16.msra.mxu0 %v164
  %366 = vmatmul.bf16.gmra.mxu0 %v351
  %v367 = vpop.f32.mrf.mxu0
  %v368 = vadd.f32 0.0, %v367
  %v369 = vpop.f32.mrf.mxu0
  %370 = vdwg.mxu0
  %371 = vmatpush.bf16.msra.mxu0 %v194
  %372 = vmatpush.bf16.msra.mxu0 %v192
  %373 = vmatpush.bf16.msra.mxu0 %v190
  %374 = vmatpush.bf16.msra.mxu0 %v188
  %375 = vmatpush.bf16.msra.mxu0 %v186
  %376 = vmatpush.bf16.msra.mxu0 %v184
  %377 = vmatpush.bf16.msra.mxu0 %v182
  %378 = vmatpush.bf16.msra.mxu0 %v180
  %379 = vmatmul.bf16.gmra.mxu0 %v354
  %v380 = vpop.f32.mrf.mxu0
  %v381 = vadd.f32 %v368, %v380
  %v382 = vpop.f32.mrf.mxu0
  %383 = vdwg.mxu0
  %384 = vmatpush.bf16.msra.mxu0 %v179
  %385 = vmatpush.bf16.msra.mxu0 %v177
  %386 = vmatpush.bf16.msra.mxu0 %v175
  %387 = vmatpush.bf16.msra.mxu0 %v173
  %388 = vmatpush.bf16.msra.mxu0 %v171
  %389 = vmatpush.bf16.msra.mxu0 %v169
  %390 = vmatpush.bf16.msra.mxu0 %v167
  %391 = vmatpush.bf16.msra.mxu0 %v165
  %392 = vmatmul.bf16.gmra.mxu0 %v351
  %v393 = vpop.f32.mrf.mxu0
  %v394 = vadd.f32 0.0, %v393
  %v395 = vpop.f32.mrf.mxu0
  %396 = vdwg.mxu0
  %397 = vmatpush.bf16.msra.mxu0 %v195
  %398 = vmatpush.bf16.msra.mxu0 %v193
  %399 = vmatpush.bf16.msra.mxu0 %v191
  %400 = vmatpush.bf16.msra.mxu0 %v189
  %401 = vmatpush.bf16.msra.mxu0 %v187
  %402 = vmatpush.bf16.msra.mxu0 %v185
  %403 = vmatpush.bf16.msra.mxu0 %v183
  %404 = vmatpush.bf16.msra.mxu0 %v181
  %405 = vmatmul.bf16.gmra.mxu0 %v354
  %v406 = vpop.f32.mrf.mxu0
  %v407 = vadd.f32 %v394, %v406
  %v408 = vpop.f32.mrf.mxu0
  %409 = vdwg.mxu0
  %v412 = vrot.slane %v381, 6
  %v413 = vrot.slane %v407, 6
  %v416 = vadd.f32 %v20, %v412
  %v417 = vadd.f32 %v21, %v413
  %v418 = vtanh.pop %v416
  %v419 = vtanh.pop %v417
  %v420 = vpack.c.bf16 %v418, %v418
  %v421 = vpack.c.bf16 %v419, %v419
  %v424 = vrot.slane %v420, 1
  %v425 = vrot.slane %v421, 1
  %428 = vmatpush.bf16.msra.mxu0 %v178
  %429 = vmatpush.bf16.msra.mxu0 %v176
  %430 = vmatpush.bf16.msra.mxu0 %v174
  %431 = vmatpush.bf16.msra.mxu0 %v172
  %432 = vmatpush.bf16.msra.mxu0 %v170
  %433 = vmatpush.bf16.msra.mxu0 %v168
  %434 = vmatpush.bf16.msra.mxu0 %v166
  %435 = vmatpush.bf16.msra.mxu0 %v164
  %436 = vmatmul.bf16.gmra.mxu0 %v424
  %v437 = vpop.f32.mrf.mxu0
  %v438 = vadd.f32 0.0, %v437
  %v439 = vpop.f32.mrf.mxu0
  %440 = vdwg.mxu0
  %441 = vmatpush.bf16.msra.mxu0 %v194
  %442 = vmatpush.bf16.msra.mxu0 %v192
  %443 = vmatpush.bf16.msra.mxu0 %v190
  %444 = vmatpush.bf16.msra.mxu0 %v188
  %445 = vmatpush.bf16.msra.mxu0 %v186
  %446 = vmatpush.bf16.msra.mxu0 %v184
  %447 = vmatpush.bf16.msra.mxu0 %v182
  %448 = vmatpush.bf16.msra.mxu0 %v180
  %449 = vmatmul.bf16.gmra.mxu0 %v425
  %v450 = vpop.f32.mrf.mxu0
  %v451 = vadd.f32 %v438, %v450
  %v452 = vpop.f32.mrf.mxu0
  %453 = vdwg.mxu0
  %454 = vmatpush.bf16.msra.mxu0 %v179
  %455 = vmatpush.bf16.msra.mxu0 %v177
  %456 = vmatpush.bf16.msra.mxu0 %v175
  %457 = vmatpush.bf16.msra.mxu0 %v173
  %458 = vmatpush.bf16.msra.mxu0 %v171
  %459 = vmatpush.bf16.msra.mxu0 %v169
  %460 = vmatpush.bf16.msra.mxu0 %v167
  %461 = vmatpush.bf16.msra.mxu0 %v165
  %462 = vmatmul.bf16.gmra.mxu0 %v424
  %v463 = vpop.f32.mrf.mxu0
  %v464 = vadd.f32 0.0, %v463
  %v465 = vpop.f32.mrf.mxu0
  %466 = vdwg.mxu0
  %467 = vmatpush.bf16.msra.mxu0 %v195
  %468 = vmatpush.bf16.msra.mxu0 %v193
  %469 = vmatpush.bf16.msra.mxu0 %v191
  %470 = vmatpush.bf16.msra.mxu0 %v189
  %471 = vmatpush.bf16.msra.mxu0 %v187
  %472 = vmatpush.bf16.msra.mxu0 %v185
  %473 = vmatpush.bf16.msra.mxu0 %v183
  %474 = vmatpush.bf16.msra.mxu0 %v181
  %475 = vmatmul.bf16.gmra.mxu0 %v425
  %v476 = vpop.f32.mrf.mxu0
  %v477 = vadd.f32 %v464, %v476
  %v478 = vpop.f32.mrf.mxu0
  %479 = vdwg.mxu0
  %v482 = vrot.slane %v451, 5
  %v483 = vrot.slane %v477, 5
  %v486 = vadd.f32 %v20, %v482
  %v487 = vadd.f32 %v21, %v483
  %v488 = vtanh.pop %v486
  %v489 = vtanh.pop %v487
  %v490 = vpack.c.bf16 %v488, %v488
  %v491 = vpack.c.bf16 %v489, %v489
  %v493 = vshrl.u32 %v490, 16
  %v495 = vrot.slane %v493, 1
  %v497 = vshrl.u32 %v491, 16
  %v499 = vrot.slane %v497, 1
  %502 = vmatpush.bf16.msra.mxu0 %v178
  %503 = vmatpush.bf16.msra.mxu0 %v176
  %504 = vmatpush.bf16.msra.mxu0 %v174
  %505 = vmatpush.bf16.msra.mxu0 %v172
  %506 = vmatpush.bf16.msra.mxu0 %v170
  %507 = vmatpush.bf16.msra.mxu0 %v168
  %508 = vmatpush.bf16.msra.mxu0 %v166
  %509 = vmatpush.bf16.msra.mxu0 %v164
  %510 = vmatmul.bf16.gmra.mxu0 %v495
  %v511 = vpop.f32.mrf.mxu0
  %v512 = vadd.f32 0.0, %v511
  %v513 = vpop.f32.mrf.mxu0
  %514 = vdwg.mxu0
  %515 = vmatpush.bf16.msra.mxu0 %v194
  %516 = vmatpush.bf16.msra.mxu0 %v192
  %517 = vmatpush.bf16.msra.mxu0 %v190
  %518 = vmatpush.bf16.msra.mxu0 %v188
  %519 = vmatpush.bf16.msra.mxu0 %v186
  %520 = vmatpush.bf16.msra.mxu0 %v184
  %521 = vmatpush.bf16.msra.mxu0 %v182
  %522 = vmatpush.bf16.msra.mxu0 %v180
  %523 = vmatmul.bf16.gmra.mxu0 %v499
  %v524 = vpop.f32.mrf.mxu0
  %v525 = vadd.f32 %v512, %v524
  %v526 = vpop.f32.mrf.mxu0
  %527 = vdwg.mxu0
  %528 = vmatpush.bf16.msra.mxu0 %v179
  %529 = vmatpush.bf16.msra.mxu0 %v177
  %530 = vmatpush.bf16.msra.mxu0 %v175
  %531 = vmatpush.bf16.msra.mxu0 %v173
  %532 = vmatpush.bf16.msra.mxu0 %v171
  %533 = vmatpush.bf16.msra.mxu0 %v169
  %534 = vmatpush.bf16.msra.mxu0 %v167
  %535 = vmatpush.bf16.msra.mxu0 %v165
  %536 = vmatmul.bf16.gmra.mxu0 %v495
  %v537 = vpop.f32.mrf.mxu0
  %v538 = vadd.f32 0.0, %v537
  %v539 = vpop.f32.mrf.mxu0
  %540 = vdwg.mxu0
  %541 = vmatpush.bf16.msra.mxu0 %v195
  %542 = vmatpush.bf16.msra.mxu0 %v193
  %543 = vmatpush.bf16.msra.mxu0 %v191
  %544 = vmatpush.bf16.msra.mxu0 %v189
  %545 = vmatpush.bf16.msra.mxu0 %v187
  %546 = vmatpush.bf16.msra.mxu0 %v185
  %547 = vmatpush.bf16.msra.mxu0 %v183
  %548 = vmatpush.bf16.msra.mxu0 %v181
  %549 = vmatmul.bf16.gmra.mxu0 %v499
  %v550 = vpop.f32.mrf.mxu0
  %v551 = vadd.f32 %v538, %v550
  %v552 = vpop.f32.mrf.mxu0
  %553 = vdwg.mxu0
  %v556 = vrot.slane %v525, 4
  %v557 = vrot.slane %v551, 4
  %v560 = vadd.f32 %v20, %v556
  %v561 = vadd.f32 %v21, %v557
  %v562 = vtanh.pop %v560
  %v563 = vtanh.pop %v561
  %v564 = vpack.c.bf16 %v562, %v562
  %v565 = vpack.c.bf16 %v563, %v563
  %v568 = vrot.slane %v564, 2
  %v569 = vrot.slane %v565, 2
  %572 = vmatpush.bf16.msra.mxu0 %v178
  %573 = vmatpush.bf16.msra.mxu0 %v176
  %574 = vmatpush.bf16.msra.mxu0 %v174
  %575 = vmatpush.bf16.msra.mxu0 %v172
  %576 = vmatpush.bf16.msra.mxu0 %v170
  %577 = vmatpush.bf16.msra.mxu0 %v168
  %578 = vmatpush.bf16.msra.mxu0 %v166
  %579 = vmatpush.bf16.msra.mxu0 %v164
  %580 = vmatmul.bf16.gmra.mxu0 %v568
  %v581 = vpop.f32.mrf.mxu0
  %v582 = vadd.f32 0.0, %v581
  %v583 = vpop.f32.mrf.mxu0
  %584 = vdwg.mxu0
  %585 = vmatpush.bf16.msra.mxu0 %v194
  %586 = vmatpush.bf16.msra.mxu0 %v192
  %587 = vmatpush.bf16.msra.mxu0 %v190
  %588 = vmatpush.bf16.msra.mxu0 %v188
  %589 = vmatpush.bf16.msra.mxu0 %v186
  %590 = vmatpush.bf16.msra.mxu0 %v184
  %591 = vmatpush.bf16.msra.mxu0 %v182
  %592 = vmatpush.bf16.msra.mxu0 %v180
  %593 = vmatmul.bf16.gmra.mxu0 %v569
  %v594 = vpop.f32.mrf.mxu0
  %v595 = vadd.f32 %v582, %v594
  %v596 = vpop.f32.mrf.mxu0
  %597 = vdwg.mxu0
  %598 = vmatpush.bf16.msra.mxu0 %v179
  %599 = vmatpush.bf16.msra.mxu0 %v177
  %600 = vmatpush.bf16.msra.mxu0 %v175
  %601 = vmatpush.bf16.msra.mxu0 %v173
  %602 = vmatpush.bf16.msra.mxu0 %v171
  %603 = vmatpush.bf16.msra.mxu0 %v169
  %604 = vmatpush.bf16.msra.mxu0 %v167
  %605 = vmatpush.bf16.msra.mxu0 %v165
  %606 = vmatmul.bf16.gmra.mxu0 %v568
  %v607 = vpop.f32.mrf.mxu0
  %v608 = vadd.f32 0.0, %v607
  %v609 = vpop.f32.mrf.mxu0
  %610 = vdwg.mxu0
  %611 = vmatpush.bf16.msra.mxu0 %v195
  %612 = vmatpush.bf16.msra.mxu0 %v193
  %613 = vmatpush.bf16.msra.mxu0 %v191
  %614 = vmatpush.bf16.msra.mxu0 %v189
  %615 = vmatpush.bf16.msra.mxu0 %v187
  %616 = vmatpush.bf16.msra.mxu0 %v185
  %617 = vmatpush.bf16.msra.mxu0 %v183
  %618 = vmatpush.bf16.msra.mxu0 %v181
  %619 = vmatmul.bf16.gmra.mxu0 %v569
  %v620 = vpop.f32.mrf.mxu0
  %v621 = vadd.f32 %v608, %v620
  %v622 = vpop.f32.mrf.mxu0
  %623 = vdwg.mxu0
  %v626 = vrot.slane %v595, 3
  %v627 = vrot.slane %v621, 3
  %v630 = vadd.f32 %v20, %v626
  %v631 = vadd.f32 %v21, %v627
  %v632 = vtanh.pop %v630
  %v633 = vtanh.pop %v631
  %v634 = vpack.c.bf16 %v632, %v632
  %v635 = vpack.c.bf16 %v633, %v633
  %v637 = vshrl.u32 %v634, 16
  %v639 = vrot.slane %v637, 2
  %v641 = vshrl.u32 %v635, 16
  %v643 = vrot.slane %v641, 2
  %646 = vmatpush.bf16.msra.mxu0 %v178
  %647 = vmatpush.bf16.msra.mxu0 %v176
  %648 = vmatpush.bf16.msra.mxu0 %v174
  %649 = vmatpush.bf16.msra.mxu0 %v172
  %650 = vmatpush.bf16.msra.mxu0 %v170
  %651 = vmatpush.bf16.msra.mxu0 %v168
  %652 = vmatpush.bf16.msra.mxu0 %v166
  %653 = vmatpush.bf16.msra.mxu0 %v164
  %654 = vmatmul.bf16.gmra.mxu0 %v639
  %v655 = vpop.f32.mrf.mxu0
  %v656 = vadd.f32 0.0, %v655
  %v657 = vpop.f32.mrf.mxu0
  %658 = vdwg.mxu0
  %659 = vmatpush.bf16.msra.mxu0 %v194
  %660 = vmatpush.bf16.msra.mxu0 %v192
  %661 = vmatpush.bf16.msra.mxu0 %v190
  %662 = vmatpush.bf16.msra.mxu0 %v188
  %663 = vmatpush.bf16.msra.mxu0 %v186
  %664 = vmatpush.bf16.msra.mxu0 %v184
  %665 = vmatpush.bf16.msra.mxu0 %v182
  %666 = vmatpush.bf16.msra.mxu0 %v180
  %667 = vmatmul.bf16.gmra.mxu0 %v643
  %v668 = vpop.f32.mrf.mxu0
  %v669 = vadd.f32 %v656, %v668
  %v670 = vpop.f32.mrf.mxu0
  %671 = vdwg.mxu0
  %672 = vmatpush.bf16.msra.mxu0 %v179
  %673 = vmatpush.bf16.msra.mxu0 %v177
  %674 = vmatpush.bf16.msra.mxu0 %v175
  %675 = vmatpush.bf16.msra.mxu0 %v173
  %676 = vmatpush.bf16.msra.mxu0 %v171
  %677 = vmatpush.bf16.msra.mxu0 %v169
  %678 = vmatpush.bf16.msra.mxu0 %v167
  %679 = vmatpush.bf16.msra.mxu0 %v165
  %680 = vmatmul.bf16.gmra.mxu0 %v639
  %v681 = vpop.f32.mrf.mxu0
  %v682 = vadd.f32 0.0, %v681
  %v683 = vpop.f32.mrf.mxu0
  %684 = vdwg.mxu0
  %685 = vmatpush.bf16.msra.mxu0 %v195
  %686 = vmatpush.bf16.msra.mxu0 %v193
  %687 = vmatpush.bf16.msra.mxu0 %v191
  %688 = vmatpush.bf16.msra.mxu0 %v189
  %689 = vmatpush.bf16.msra.mxu0 %v187
  %690 = vmatpush.bf16.msra.mxu0 %v185
  %691 = vmatpush.bf16.msra.mxu0 %v183
  %692 = vmatpush.bf16.msra.mxu0 %v181
  %693 = vmatmul.bf16.gmra.mxu0 %v643
  %v694 = vpop.f32.mrf.mxu0
  %v695 = vadd.f32 %v682, %v694
  %v696 = vpop.f32.mrf.mxu0
  %697 = vdwg.mxu0
  %v700 = vrot.slane %v669, 2
  %v701 = vrot.slane %v695, 2
  %v704 = vadd.f32 %v20, %v700
  %v705 = vadd.f32 %v21, %v701
  %v706 = vtanh.pop %v704
  %v707 = vtanh.pop %v705
  %v708 = vpack.c.bf16 %v706, %v706
  %v709 = vpack.c.bf16 %v707, %v707
  %v712 = vrot.slane %v708, 3
  %v713 = vrot.slane %v709, 3
  %716 = vmatpush.bf16.msra.mxu0 %v178
  %717 = vmatpush.bf16.msra.mxu0 %v176
  %718 = vmatpush.bf16.msra.mxu0 %v174
  %719 = vmatpush.bf16.msra.mxu0 %v172
  %720 = vmatpush.bf16.msra.mxu0 %v170
  %721 = vmatpush.bf16.msra.mxu0 %v168
  %722 = vmatpush.bf16.msra.mxu0 %v166
  %723 = vmatpush.bf16.msra.mxu0 %v164
  %724 = vmatmul.bf16.gmra.mxu0 %v712
  %v725 = vpop.f32.mrf.mxu0
  %v726 = vadd.f32 0.0, %v725
  %v727 = vpop.f32.mrf.mxu0
  %728 = vdwg.mxu0
  %729 = vmatpush.bf16.msra.mxu0 %v194
  %730 = vmatpush.bf16.msra.mxu0 %v192
  %731 = vmatpush.bf16.msra.mxu0 %v190
  %732 = vmatpush.bf16.msra.mxu0 %v188
  %733 = vmatpush.bf16.msra.mxu0 %v186
  %734 = vmatpush.bf16.msra.mxu0 %v184
  %735 = vmatpush.bf16.msra.mxu0 %v182
  %736 = vmatpush.bf16.msra.mxu0 %v180
  %737 = vmatmul.bf16.gmra.mxu0 %v713
  %v738 = vpop.f32.mrf.mxu0
  %v739 = vadd.f32 %v726, %v738
  %v740 = vpop.f32.mrf.mxu0
  %741 = vdwg.mxu0
  %742 = vmatpush.bf16.msra.mxu0 %v179
  %743 = vmatpush.bf16.msra.mxu0 %v177
  %744 = vmatpush.bf16.msra.mxu0 %v175
  %745 = vmatpush.bf16.msra.mxu0 %v173
  %746 = vmatpush.bf16.msra.mxu0 %v171
  %747 = vmatpush.bf16.msra.mxu0 %v169
  %748 = vmatpush.bf16.msra.mxu0 %v167
  %749 = vmatpush.bf16.msra.mxu0 %v165
  %750 = vmatmul.bf16.gmra.mxu0 %v712
  %v751 = vpop.f32.mrf.mxu0
  %v752 = vadd.f32 0.0, %v751
  %v753 = vpop.f32.mrf.mxu0
  %754 = vdwg.mxu0
  %755 = vmatpush.bf16.msra.mxu0 %v195
  %756 = vmatpush.bf16.msra.mxu0 %v193
  %757 = vmatpush.bf16.msra.mxu0 %v191
  %758 = vmatpush.bf16.msra.mxu0 %v189
  %759 = vmatpush.bf16.msra.mxu0 %v187
  %760 = vmatpush.bf16.msra.mxu0 %v185
  %761 = vmatpush.bf16.msra.mxu0 %v183
  %762 = vmatpush.bf16.msra.mxu0 %v181
  %763 = vmatmul.bf16.gmra.mxu0 %v713
  %v764 = vpop.f32.mrf.mxu0
  %v765 = vadd.f32 %v752, %v764
  %v766 = vpop.f32.mrf.mxu0
  %767 = vdwg.mxu0
  %v770 = vrot.slane %v739, 1
  %v771 = vrot.slane %v765, 1
  %v774 = vadd.f32 %v20, %v770
  %v775 = vadd.f32 %v21, %v771
  %v776 = vtanh.pop %v774
  %v777 = vtanh.pop %v775
  %v778 = vpack.c.bf16 %v776, %v776
  %v779 = vpack.c.bf16 %v777, %v777
  %v781 = vshrl.u32 %v778, 16
  %v783 = vrot.slane %v781, 3
  %v785 = vshrl.u32 %v779, 16
  %v787 = vrot.slane %v785, 3
  %790 = vmatpush.bf16.msra.mxu0 %v178
  %791 = vmatpush.bf16.msra.mxu0 %v176
  %792 = vmatpush.bf16.msra.mxu0 %v174
  %793 = vmatpush.bf16.msra.mxu0 %v172
  %794 = vmatpush.bf16.msra.mxu0 %v170
  %795 = vmatpush.bf16.msra.mxu0 %v168
  %796 = vmatpush.bf16.msra.mxu0 %v166
  %797 = vmatpush.bf16.msra.mxu0 %v164
  %798 = vmatmul.bf16.gmra.mxu0 %v783
  %v799 = vpop.f32.mrf.mxu0
  %v800 = vadd.f32 0.0, %v799
  %v801 = vpop.f32.mrf.mxu0
  %802 = vdwg.mxu0
  %803 = vmatpush.bf16.msra.mxu0 %v194
  %804 = vmatpush.bf16.msra.mxu0 %v192
  %805 = vmatpush.bf16.msra.mxu0 %v190
  %806 = vmatpush.bf16.msra.mxu0 %v188
  %807 = vmatpush.bf16.msra.mxu0 %v186
  %808 = vmatpush.bf16.msra.mxu0 %v184
  %809 = vmatpush.bf16.msra.mxu0 %v182
  %810 = vmatpush.bf16.msra.mxu0 %v180
  %811 = vmatmul.bf16.gmra.mxu0 %v787
  %v812 = vpop.f32.mrf.mxu0
  %v813 = vadd.f32 %v800, %v812
  %v814 = vpop.f32.mrf.mxu0
  %815 = vdwg.mxu0
  %816 = vmatpush.bf16.msra.mxu0 %v179
  %817 = vmatpush.bf16.msra.mxu0 %v177
  %818 = vmatpush.bf16.msra.mxu0 %v175
  %819 = vmatpush.bf16.msra.mxu0 %v173
  %820 = vmatpush.bf16.msra.mxu0 %v171
  %821 = vmatpush.bf16.msra.mxu0 %v169
  %822 = vmatpush.bf16.msra.mxu0 %v167
  %823 = vmatpush.bf16.msra.mxu0 %v165
  %824 = vmatmul.bf16.gmra.mxu0 %v783
  %v825 = vpop.f32.mrf.mxu0
  %v826 = vadd.f32 0.0, %v825
  %v827 = vpop.f32.mrf.mxu0
  %828 = vdwg.mxu0
  %829 = vmatpush.bf16.msra.mxu0 %v195
  %830 = vmatpush.bf16.msra.mxu0 %v193
  %831 = vmatpush.bf16.msra.mxu0 %v191
  %832 = vmatpush.bf16.msra.mxu0 %v189
  %833 = vmatpush.bf16.msra.mxu0 %v187
  %834 = vmatpush.bf16.msra.mxu0 %v185
  %835 = vmatpush.bf16.msra.mxu0 %v183
  %836 = vmatpush.bf16.msra.mxu0 %v181
  %837 = vmatmul.bf16.gmra.mxu0 %v787
  %v838 = vpop.f32.mrf.mxu0
  %v839 = vadd.f32 %v826, %v838
  %v840 = vpop.f32.mrf.mxu0
  %841 = vdwg.mxu0
  %v842 = vadd.f32 %v22, %v813
  %v843 = vadd.f32 %v23, %v839
  %v844 = vtanh.pop %v842
  %v845 = vtanh.pop %v843
  %v846 = vpack.c.bf16 %v844, %v844
  %v847 = vpack.c.bf16 %v845, %v845
  %848 = vmatpush.bf16.msra.mxu0 %v178
  %849 = vmatpush.bf16.msra.mxu0 %v176
  %850 = vmatpush.bf16.msra.mxu0 %v174
  %851 = vmatpush.bf16.msra.mxu0 %v172
  %852 = vmatpush.bf16.msra.mxu0 %v170
  %853 = vmatpush.bf16.msra.mxu0 %v168
  %854 = vmatpush.bf16.msra.mxu0 %v166
  %855 = vmatpush.bf16.msra.mxu0 %v164
  %856 = vmatmul.bf16.gmra.mxu0 %v846
  %v857 = vpop.f32.mrf.mxu0
  %v858 = vadd.f32 0.0, %v857
  %v859 = vpop.f32.mrf.mxu0
  %860 = vdwg.mxu0
  %861 = vmatpush.bf16.msra.mxu0 %v194
  %862 = vmatpush.bf16.msra.mxu0 %v192
  %863 = vmatpush.bf16.msra.mxu0 %v190
  %864 = vmatpush.bf16.msra.mxu0 %v188
  %865 = vmatpush.bf16.msra.mxu0 %v186
  %866 = vmatpush.bf16.msra.mxu0 %v184
  %867 = vmatpush.bf16.msra.mxu0 %v182
  %868 = vmatpush.bf16.msra.mxu0 %v180
  %869 = vmatmul.bf16.gmra.mxu0 %v847
  %v870 = vpop.f32.mrf.mxu0
  %v871 = vadd.f32 %v858, %v870
  %v872 = vpop.f32.mrf.mxu0
  %873 = vdwg.mxu0
  %874 = vmatpush.bf16.msra.mxu0 %v179
  %875 = vmatpush.bf16.msra.mxu0 %v177
  %876 = vmatpush.bf16.msra.mxu0 %v175
  %877 = vmatpush.bf16.msra.mxu0 %v173
  %878 = vmatpush.bf16.msra.mxu0 %v171
  %879 = vmatpush.bf16.msra.mxu0 %v169
  %880 = vmatpush.bf16.msra.mxu0 %v167
  %881 = vmatpush.bf16.msra.mxu0 %v165
  %882 = vmatmul.bf16.gmra.mxu0 %v846
  %v883 = vpop.f32.mrf.mxu0
  %v884 = vadd.f32 0.0, %v883
  %v885 = vpop.f32.mrf.mxu0
  %886 = vdwg.mxu0
  %887 = vmatpush.bf16.msra.mxu0 %v195
  %888 = vmatpush.bf16.msra.mxu0 %v193
  %889 = vmatpush.bf16.msra.mxu0 %v191
  %890 = vmatpush.bf16.msra.mxu0 %v189
  %891 = vmatpush.bf16.msra.mxu0 %v187
  %892 = vmatpush.bf16.msra.mxu0 %v185
  %893 = vmatpush.bf16.msra.mxu0 %v183
  %894 = vmatpush.bf16.msra.mxu0 %v181
  %895 = vmatmul.bf16.gmra.mxu0 %v847
  %v896 = vpop.f32.mrf.mxu0
  %v897 = vadd.f32 %v884, %v896
  %v898 = vpop.f32.mrf.mxu0
  %899 = vdwg.mxu0
  %v902 = vrot.slane %v871, 7
  %v903 = vrot.slane %v897, 7
  %v906 = vadd.f32 %v22, %v902
  %v907 = vadd.f32 %v23, %v903
  %v908 = vtanh.pop %v906
  %v909 = vtanh.pop %v907
  %v910 = vpack.c.bf16 %v908, %v908
  %v911 = vpack.c.bf16 %v909, %v909
  %v913 = vshrl.u32 %v910, 16
  %v916 = vshrl.u32 %v911, 16
  %920 = vmatpush.bf16.msra.mxu0 %v178
  %921 = vmatpush.bf16.msra.mxu0 %v176
  %922 = vmatpush.bf16.msra.mxu0 %v174
  %923 = vmatpush.bf16.msra.mxu0 %v172
  %924 = vmatpush.bf16.msra.mxu0 %v170
  %925 = vmatpush.bf16.msra.mxu0 %v168
  %926 = vmatpush.bf16.msra.mxu0 %v166
  %927 = vmatpush.bf16.msra.mxu0 %v164
  %928 = vmatmul.bf16.gmra.mxu0 %v913
  %v929 = vpop.f32.mrf.mxu0
  %v930 = vadd.f32 0.0, %v929
  %v931 = vpop.f32.mrf.mxu0
  %932 = vdwg.mxu0
  %933 = vmatpush.bf16.msra.mxu0 %v194
  %934 = vmatpush.bf16.msra.mxu0 %v192
  %935 = vmatpush.bf16.msra.mxu0 %v190
  %936 = vmatpush.bf16.msra.mxu0 %v188
  %937 = vmatpush.bf16.msra.mxu0 %v186
  %938 = vmatpush.bf16.msra.mxu0 %v184
  %939 = vmatpush.bf16.msra.mxu0 %v182
  %940 = vmatpush.bf16.msra.mxu0 %v180
  %941 = vmatmul.bf16.gmra.mxu0 %v916
  %v942 = vpop.f32.mrf.mxu0
  %v943 = vadd.f32 %v930, %v942
  %v944 = vpop.f32.mrf.mxu0
  %945 = vdwg.mxu0
  %946 = vmatpush.bf16.msra.mxu0 %v179
  %947 = vmatpush.bf16.msra.mxu0 %v177
  %948 = vmatpush.bf16.msra.mxu0 %v175
  %949 = vmatpush.bf16.msra.mxu0 %v173
  %950 = vmatpush.bf16.msra.mxu0 %v171
  %951 = vmatpush.bf16.msra.mxu0 %v169
  %952 = vmatpush.bf16.msra.mxu0 %v167
  %953 = vmatpush.bf16.msra.mxu0 %v165
  %954 = vmatmul.bf16.gmra.mxu0 %v913
  %v955 = vpop.f32.mrf.mxu0
  %v956 = vadd.f32 0.0, %v955
  %v957 = vpop.f32.mrf.mxu0
  %958 = vdwg.mxu0
  %959 = vmatpush.bf16.msra.mxu0 %v195
  %960 = vmatpush.bf16.msra.mxu0 %v193
  %961 = vmatpush.bf16.msra.mxu0 %v191
  %962 = vmatpush.bf16.msra.mxu0 %v189
  %963 = vmatpush.bf16.msra.mxu0 %v187
  %964 = vmatpush.bf16.msra.mxu0 %v185
  %965 = vmatpush.bf16.msra.mxu0 %v183
  %966 = vmatpush.bf16.msra.mxu0 %v181
  %967 = vmatmul.bf16.gmra.mxu0 %v916
  %v968 = vpop.f32.mrf.mxu0
  %v969 = vadd.f32 %v956, %v968
  %v970 = vpop.f32.mrf.mxu0
  %971 = vdwg.mxu0
  %v974 = vrot.slane %v943, 6
  %v975 = vrot.slane %v969, 6
  %v978 = vadd.f32 %v22, %v974
  %v979 = vadd.f32 %v23, %v975
  %v980 = vtanh.pop %v978
  %v981 = vtanh.pop %v979
  %v982 = vpack.c.bf16 %v980, %v980
  %v983 = vpack.c.bf16 %v981, %v981
  %v986 = vrot.slane %v982, 1
  %v987 = vrot.slane %v983, 1
  %990 = vmatpush.bf16.msra.mxu0 %v178
  %991 = vmatpush.bf16.msra.mxu0 %v176
  %992 = vmatpush.bf16.msra.mxu0 %v174
  %993 = vmatpush.bf16.msra.mxu0 %v172
  %994 = vmatpush.bf16.msra.mxu0 %v170
  %995 = vmatpush.bf16.msra.mxu0 %v168
  %996 = vmatpush.bf16.msra.mxu0 %v166
  %997 = vmatpush.bf16.msra.mxu0 %v164
  %998 = vmatmul.bf16.gmra.mxu0 %v986
  %v999 = vpop.f32.mrf.mxu0
  %v1000 = vadd.f32 0.0, %v999
  %v1001 = vpop.f32.mrf.mxu0
  %1002 = vdwg.mxu0
  %1003 = vmatpush.bf16.msra.mxu0 %v194
  %1004 = vmatpush.bf16.msra.mxu0 %v192
  %1005 = vmatpush.bf16.msra.mxu0 %v190
  %1006 = vmatpush.bf16.msra.mxu0 %v188
  %1007 = vmatpush.bf16.msra.mxu0 %v186
  %1008 = vmatpush.bf16.msra.mxu0 %v184
  %1009 = vmatpush.bf16.msra.mxu0 %v182
  %1010 = vmatpush.bf16.msra.mxu0 %v180
  %1011 = vmatmul.bf16.gmra.mxu0 %v987
  %v1012 = vpop.f32.mrf.mxu0
  %v1013 = vadd.f32 %v1000, %v1012
  %v1014 = vpop.f32.mrf.mxu0
  %1015 = vdwg.mxu0
  %1016 = vmatpush.bf16.msra.mxu0 %v179
  %1017 = vmatpush.bf16.msra.mxu0 %v177
  %1018 = vmatpush.bf16.msra.mxu0 %v175
  %1019 = vmatpush.bf16.msra.mxu0 %v173
  %1020 = vmatpush.bf16.msra.mxu0 %v171
  %1021 = vmatpush.bf16.msra.mxu0 %v169
  %1022 = vmatpush.bf16.msra.mxu0 %v167
  %1023 = vmatpush.bf16.msra.mxu0 %v165
  %1024 = vmatmul.bf16.gmra.mxu0 %v986
  %v1025 = vpop.f32.mrf.mxu0
  %v1026 = vadd.f32 0.0, %v1025
  %v1027 = vpop.f32.mrf.mxu0
  %1028 = vdwg.mxu0
  %1029 = vmatpush.bf16.msra.mxu0 %v195
  %1030 = vmatpush.bf16.msra.mxu0 %v193
  %1031 = vmatpush.bf16.msra.mxu0 %v191
  %1032 = vmatpush.bf16.msra.mxu0 %v189
  %1033 = vmatpush.bf16.msra.mxu0 %v187
  %1034 = vmatpush.bf16.msra.mxu0 %v185
  %1035 = vmatpush.bf16.msra.mxu0 %v183
  %1036 = vmatpush.bf16.msra.mxu0 %v181
  %1037 = vmatmul.bf16.gmra.mxu0 %v987
  %v1038 = vpop.f32.mrf.mxu0
  %v1039 = vadd.f32 %v1026, %v1038
  %v1040 = vpop.f32.mrf.mxu0
  %1041 = vdwg.mxu0
  %v1044 = vrot.slane %v1013, 5
  %v1045 = vrot.slane %v1039, 5
  %v1048 = vadd.f32 %v22, %v1044
  %v1049 = vadd.f32 %v23, %v1045
  %v1050 = vtanh.pop %v1048
  %v1051 = vtanh.pop %v1049
  %v1052 = vpack.c.bf16 %v1050, %v1050
  %v1053 = vpack.c.bf16 %v1051, %v1051
  %v1055 = vshrl.u32 %v1052, 16
  %v1057 = vrot.slane %v1055, 1
  %v1059 = vshrl.u32 %v1053, 16
  %v1061 = vrot.slane %v1059, 1
  %1064 = vmatpush.bf16.msra.mxu0 %v178
  %1065 = vmatpush.bf16.msra.mxu0 %v176
  %1066 = vmatpush.bf16.msra.mxu0 %v174
  %1067 = vmatpush.bf16.msra.mxu0 %v172
  %1068 = vmatpush.bf16.msra.mxu0 %v170
  %1069 = vmatpush.bf16.msra.mxu0 %v168
  %1070 = vmatpush.bf16.msra.mxu0 %v166
  %1071 = vmatpush.bf16.msra.mxu0 %v164
  %1072 = vmatmul.bf16.gmra.mxu0 %v1057
  %v1073 = vpop.f32.mrf.mxu0
  %v1074 = vadd.f32 0.0, %v1073
  %v1075 = vpop.f32.mrf.mxu0
  %1076 = vdwg.mxu0
  %1077 = vmatpush.bf16.msra.mxu0 %v194
  %1078 = vmatpush.bf16.msra.mxu0 %v192
  %1079 = vmatpush.bf16.msra.mxu0 %v190
  %1080 = vmatpush.bf16.msra.mxu0 %v188
  %1081 = vmatpush.bf16.msra.mxu0 %v186
  %1082 = vmatpush.bf16.msra.mxu0 %v184
  %1083 = vmatpush.bf16.msra.mxu0 %v182
  %1084 = vmatpush.bf16.msra.mxu0 %v180
  %1085 = vmatmul.bf16.gmra.mxu0 %v1061
  %v1086 = vpop.f32.mrf.mxu0
  %v1087 = vadd.f32 %v1074, %v1086
  %v1088 = vpop.f32.mrf.mxu0
  %1089 = vdwg.mxu0
  %1090 = vmatpush.bf16.msra.mxu0 %v179
  %1091 = vmatpush.bf16.msra.mxu0 %v177
  %1092 = vmatpush.bf16.msra.mxu0 %v175
  %1093 = vmatpush.bf16.msra.mxu0 %v173
  %1094 = vmatpush.bf16.msra.mxu0 %v171
  %1095 = vmatpush.bf16.msra.mxu0 %v169
  %1096 = vmatpush.bf16.msra.mxu0 %v167
  %1097 = vmatpush.bf16.msra.mxu0 %v165
  %1098 = vmatmul.bf16.gmra.mxu0 %v1057
  %v1099 = vpop.f32.mrf.mxu0
  %v1100 = vadd.f32 0.0, %v1099
  %v1101 = vpop.f32.mrf.mxu0
  %1102 = vdwg.mxu0
  %1103 = vmatpush.bf16.msra.mxu0 %v195
  %1104 = vmatpush.bf16.msra.mxu0 %v193
  %1105 = vmatpush.bf16.msra.mxu0 %v191
  %1106 = vmatpush.bf16.msra.mxu0 %v189
  %1107 = vmatpush.bf16.msra.mxu0 %v187
  %1108 = vmatpush.bf16.msra.mxu0 %v185
  %1109 = vmatpush.bf16.msra.mxu0 %v183
  %1110 = vmatpush.bf16.msra.mxu0 %v181
  %1111 = vmatmul.bf16.gmra.mxu0 %v1061
  %v1112 = vpop.f32.mrf.mxu0
  %v1113 = vadd.f32 %v1100, %v1112
  %v1114 = vpop.f32.mrf.mxu0
  %1115 = vdwg.mxu0
  %v1118 = vrot.slane %v1087, 4
  %v1119 = vrot.slane %v1113, 4
  %v1122 = vadd.f32 %v22, %v1118
  %v1123 = vadd.f32 %v23, %v1119
  %v1124 = vtanh.pop %v1122
  %v1125 = vtanh.pop %v1123
  %v1126 = vpack.c.bf16 %v1124, %v1124
  %v1127 = vpack.c.bf16 %v1125, %v1125
  %v1130 = vrot.slane %v1126, 2
  %v1131 = vrot.slane %v1127, 2
  %1134 = vmatpush.bf16.msra.mxu0 %v178
  %1135 = vmatpush.bf16.msra.mxu0 %v176
  %1136 = vmatpush.bf16.msra.mxu0 %v174
  %1137 = vmatpush.bf16.msra.mxu0 %v172
  %1138 = vmatpush.bf16.msra.mxu0 %v170
  %1139 = vmatpush.bf16.msra.mxu0 %v168
  %1140 = vmatpush.bf16.msra.mxu0 %v166
  %1141 = vmatpush.bf16.msra.mxu0 %v164
  %1142 = vmatmul.bf16.gmra.mxu0 %v1130
  %v1143 = vpop.f32.mrf.mxu0
  %v1144 = vadd.f32 0.0, %v1143
  %v1145 = vpop.f32.mrf.mxu0
  %1146 = vdwg.mxu0
  %1147 = vmatpush.bf16.msra.mxu0 %v194
  %1148 = vmatpush.bf16.msra.mxu0 %v192
  %1149 = vmatpush.bf16.msra.mxu0 %v190
  %1150 = vmatpush.bf16.msra.mxu0 %v188
  %1151 = vmatpush.bf16.msra.mxu0 %v186
  %1152 = vmatpush.bf16.msra.mxu0 %v184
  %1153 = vmatpush.bf16.msra.mxu0 %v182
  %1154 = vmatpush.bf16.msra.mxu0 %v180
  %1155 = vmatmul.bf16.gmra.mxu0 %v1131
  %v1156 = vpop.f32.mrf.mxu0
  %v1157 = vadd.f32 %v1144, %v1156
  %v1158 = vpop.f32.mrf.mxu0
  %1159 = vdwg.mxu0
  %1160 = vmatpush.bf16.msra.mxu0 %v179
  %1161 = vmatpush.bf16.msra.mxu0 %v177
  %1162 = vmatpush.bf16.msra.mxu0 %v175
  %1163 = vmatpush.bf16.msra.mxu0 %v173
  %1164 = vmatpush.bf16.msra.mxu0 %v171
  %1165 = vmatpush.bf16.msra.mxu0 %v169
  %1166 = vmatpush.bf16.msra.mxu0 %v167
  %1167 = vmatpush.bf16.msra.mxu0 %v165
  %1168 = vmatmul.bf16.gmra.mxu0 %v1130
  %v1169 = vpop.f32.mrf.mxu0
  %v1170 = vadd.f32 0.0, %v1169
  %v1171 = vpop.f32.mrf.mxu0
  %1172 = vdwg.mxu0
  %1173 = vmatpush.bf16.msra.mxu0 %v195
  %1174 = vmatpush.bf16.msra.mxu0 %v193
  %1175 = vmatpush.bf16.msra.mxu0 %v191
  %1176 = vmatpush.bf16.msra.mxu0 %v189
  %1177 = vmatpush.bf16.msra.mxu0 %v187
  %1178 = vmatpush.bf16.msra.mxu0 %v185
  %1179 = vmatpush.bf16.msra.mxu0 %v183
  %1180 = vmatpush.bf16.msra.mxu0 %v181
  %1181 = vmatmul.bf16.gmra.mxu0 %v1131
  %v1182 = vpop.f32.mrf.mxu0
  %v1183 = vadd.f32 %v1170, %v1182
  %v1184 = vpop.f32.mrf.mxu0
  %1185 = vdwg.mxu0
  %v1188 = vrot.slane %v1157, 3
  %v1189 = vrot.slane %v1183, 3
  %v1192 = vadd.f32 %v22, %v1188
  %v1193 = vadd.f32 %v23, %v1189
  %v1194 = vtanh.pop %v1192
  %v1195 = vtanh.pop %v1193
  %v1196 = vpack.c.bf16 %v1194, %v1194
  %v1197 = vpack.c.bf16 %v1195, %v1195
  %v1199 = vshrl.u32 %v1196, 16
  %v1201 = vrot.slane %v1199, 2
  %v1203 = vshrl.u32 %v1197, 16
  %v1205 = vrot.slane %v1203, 2
  %1208 = vmatpush.bf16.msra.mxu0 %v178
  %1209 = vmatpush.bf16.msra.mxu0 %v176
  %1210 = vmatpush.bf16.msra.mxu0 %v174
  %1211 = vmatpush.bf16.msra.mxu0 %v172
  %1212 = vmatpush.bf16.msra.mxu0 %v170
  %1213 = vmatpush.bf16.msra.mxu0 %v168
  %1214 = vmatpush.bf16.msra.mxu0 %v166
  %1215 = vmatpush.bf16.msra.mxu0 %v164
  %1216 = vmatmul.bf16.gmra.mxu0 %v1201
  %v1217 = vpop.f32.mrf.mxu0
  %v1218 = vadd.f32 0.0, %v1217
  %v1219 = vpop.f32.mrf.mxu0
  %1220 = vdwg.mxu0
  %1221 = vmatpush.bf16.msra.mxu0 %v194
  %1222 = vmatpush.bf16.msra.mxu0 %v192
  %1223 = vmatpush.bf16.msra.mxu0 %v190
  %1224 = vmatpush.bf16.msra.mxu0 %v188
  %1225 = vmatpush.bf16.msra.mxu0 %v186
  %1226 = vmatpush.bf16.msra.mxu0 %v184
  %1227 = vmatpush.bf16.msra.mxu0 %v182
  %1228 = vmatpush.bf16.msra.mxu0 %v180
  %1229 = vmatmul.bf16.gmra.mxu0 %v1205
  %v1230 = vpop.f32.mrf.mxu0
  %v1231 = vadd.f32 %v1218, %v1230
  %v1232 = vpop.f32.mrf.mxu0
  %1233 = vdwg.mxu0
  %1234 = vmatpush.bf16.msra.mxu0 %v179
  %1235 = vmatpush.bf16.msra.mxu0 %v177
  %1236 = vmatpush.bf16.msra.mxu0 %v175
  %1237 = vmatpush.bf16.msra.mxu0 %v173
  %1238 = vmatpush.bf16.msra.mxu0 %v171
  %1239 = vmatpush.bf16.msra.mxu0 %v169
  %1240 = vmatpush.bf16.msra.mxu0 %v167
  %1241 = vmatpush.bf16.msra.mxu0 %v165
  %1242 = vmatmul.bf16.gmra.mxu0 %v1201
  %v1243 = vpop.f32.mrf.mxu0
  %v1244 = vadd.f32 0.0, %v1243
  %v1245 = vpop.f32.mrf.mxu0
  %1246 = vdwg.mxu0
  %1247 = vmatpush.bf16.msra.mxu0 %v195
  %1248 = vmatpush.bf16.msra.mxu0 %v193
  %1249 = vmatpush.bf16.msra.mxu0 %v191
  %1250 = vmatpush.bf16.msra.mxu0 %v189
  %1251 = vmatpush.bf16.msra.mxu0 %v187
  %1252 = vmatpush.bf16.msra.mxu0 %v185
  %1253 = vmatpush.bf16.msra.mxu0 %v183
  %1254 = vmatpush.bf16.msra.mxu0 %v181
  %1255 = vmatmul.bf16.gmra.mxu0 %v1205
  %v1256 = vpop.f32.mrf.mxu0
  %v1257 = vadd.f32 %v1244, %v1256
  %v1258 = vpop.f32.mrf.mxu0
  %1259 = vdwg.mxu0
  %v1262 = vrot.slane %v1231, 2
  %v1263 = vrot.slane %v1257, 2
  %v1266 = vadd.f32 %v22, %v1262
  %v1267 = vadd.f32 %v23, %v1263
  %v1268 = vtanh.pop %v1266
  %v1269 = vtanh.pop %v1267
  %v1270 = vpack.c.bf16 %v1268, %v1268
  %v1271 = vpack.c.bf16 %v1269, %v1269
  %v1274 = vrot.slane %v1270, 3
  %v1275 = vrot.slane %v1271, 3
  %1278 = vmatpush.bf16.msra.mxu0 %v178
  %1279 = vmatpush.bf16.msra.mxu0 %v176
  %1280 = vmatpush.bf16.msra.mxu0 %v174
  %1281 = vmatpush.bf16.msra.mxu0 %v172
  %1282 = vmatpush.bf16.msra.mxu0 %v170
  %1283 = vmatpush.bf16.msra.mxu0 %v168
  %1284 = vmatpush.bf16.msra.mxu0 %v166
  %1285 = vmatpush.bf16.msra.mxu0 %v164
  %1286 = vmatmul.bf16.gmra.mxu0 %v1274
  %v1287 = vpop.f32.mrf.mxu0
  %v1288 = vadd.f32 0.0, %v1287
  %v1289 = vpop.f32.mrf.mxu0
  %1290 = vdwg.mxu0
  %1291 = vmatpush.bf16.msra.mxu0 %v194
  %1292 = vmatpush.bf16.msra.mxu0 %v192
  %1293 = vmatpush.bf16.msra.mxu0 %v190
  %1294 = vmatpush.bf16.msra.mxu0 %v188
  %1295 = vmatpush.bf16.msra.mxu0 %v186
  %1296 = vmatpush.bf16.msra.mxu0 %v184
  %1297 = vmatpush.bf16.msra.mxu0 %v182
  %1298 = vmatpush.bf16.msra.mxu0 %v180
  %1299 = vmatmul.bf16.gmra.mxu0 %v1275
  %v1300 = vpop.f32.mrf.mxu0
  %v1301 = vadd.f32 %v1288, %v1300
  %v1302 = vpop.f32.mrf.mxu0
  %1303 = vdwg.mxu0
  %1304 = vmatpush.bf16.msra.mxu0 %v179
  %1305 = vmatpush.bf16.msra.mxu0 %v177
  %1306 = vmatpush.bf16.msra.mxu0 %v175
  %1307 = vmatpush.bf16.msra.mxu0 %v173
  %1308 = vmatpush.bf16.msra.mxu0 %v171
  %1309 = vmatpush.bf16.msra.mxu0 %v169
  %1310 = vmatpush.bf16.msra.mxu0 %v167
  %1311 = vmatpush.bf16.msra.mxu0 %v165
  %1312 = vmatmul.bf16.gmra.mxu0 %v1274
  %v1313 = vpop.f32.mrf.mxu0
  %v1314 = vadd.f32 0.0, %v1313
  %v1315 = vpop.f32.mrf.mxu0
  %1316 = vdwg.mxu0
  %1317 = vmatpush.bf16.msra.mxu0 %v195
  %1318 = vmatpush.bf16.msra.mxu0 %v193
  %1319 = vmatpush.bf16.msra.mxu0 %v191
  %1320 = vmatpush.bf16.msra.mxu0 %v189
  %1321 = vmatpush.bf16.msra.mxu0 %v187
  %1322 = vmatpush.bf16.msra.mxu0 %v185
  %1323 = vmatpush.bf16.msra.mxu0 %v183
  %1324 = vmatpush.bf16.msra.mxu0 %v181
  %1325 = vmatmul.bf16.gmra.mxu0 %v1275
  %v1326 = vpop.f32.mrf.mxu0
  %v1327 = vadd.f32 %v1314, %v1326
  %v1328 = vpop.f32.mrf.mxu0
  %1329 = vdwg.mxu0
  %v1332 = vrot.slane %v1301, 1
  %v1333 = vrot.slane %v1327, 1
  %v1336 = vadd.f32 %v22, %v1332
  %v1337 = vadd.f32 %v23, %v1333
  %v1338 = vtanh.pop %v1336
  %v1339 = vtanh.pop %v1337
  %v1340 = vpack.c.bf16 %v1338, %v1338
  %v1341 = vpack.c.bf16 %v1339, %v1339
  %v1343 = vshrl.u32 %v1340, 16
  %v1345 = vrot.slane %v1343, 3
  %v1347 = vshrl.u32 %v1341, 16
  %v1349 = vrot.slane %v1347, 3
  %1352 = vmatpush.bf16.msra.mxu0 %v178
  %1353 = vmatpush.bf16.msra.mxu0 %v176
  %1354 = vmatpush.bf16.msra.mxu0 %v174
  %1355 = vmatpush.bf16.msra.mxu0 %v172
  %1356 = vmatpush.bf16.msra.mxu0 %v170
  %1357 = vmatpush.bf16.msra.mxu0 %v168
  %1358 = vmatpush.bf16.msra.mxu0 %v166
  %1359 = vmatpush.bf16.msra.mxu0 %v164
  %1360 = vmatmul.bf16.gmra.mxu0 %v1345
  %v1361 = vpop.f32.mrf.mxu0
  %v1362 = vadd.f32 0.0, %v1361
  %v1363 = vpop.f32.mrf.mxu0
  %1364 = vdwg.mxu0
  %1365 = vmatpush.bf16.msra.mxu0 %v194
  %1366 = vmatpush.bf16.msra.mxu0 %v192
  %1367 = vmatpush.bf16.msra.mxu0 %v190
  %1368 = vmatpush.bf16.msra.mxu0 %v188
  %1369 = vmatpush.bf16.msra.mxu0 %v186
  %1370 = vmatpush.bf16.msra.mxu0 %v184
  %1371 = vmatpush.bf16.msra.mxu0 %v182
  %1372 = vmatpush.bf16.msra.mxu0 %v180
  %1373 = vmatmul.bf16.gmra.mxu0 %v1349
  %v1374 = vpop.f32.mrf.mxu0
  %v1375 = vadd.f32 %v1362, %v1374
  %v1376 = vpop.f32.mrf.mxu0
  %1377 = vdwg.mxu0
  %1378 = vmatpush.bf16.msra.mxu0 %v179
  %1379 = vmatpush.bf16.msra.mxu0 %v177
  %1380 = vmatpush.bf16.msra.mxu0 %v175
  %1381 = vmatpush.bf16.msra.mxu0 %v173
  %1382 = vmatpush.bf16.msra.mxu0 %v171
  %1383 = vmatpush.bf16.msra.mxu0 %v169
  %1384 = vmatpush.bf16.msra.mxu0 %v167
  %1385 = vmatpush.bf16.msra.mxu0 %v165
  %1386 = vmatmul.bf16.gmra.mxu0 %v1345
  %v1387 = vpop.f32.mrf.mxu0
  %v1388 = vadd.f32 0.0, %v1387
  %v1389 = vpop.f32.mrf.mxu0
  %1390 = vdwg.mxu0
  %1391 = vmatpush.bf16.msra.mxu0 %v195
  %1392 = vmatpush.bf16.msra.mxu0 %v193
  %1393 = vmatpush.bf16.msra.mxu0 %v191
  %1394 = vmatpush.bf16.msra.mxu0 %v189
  %1395 = vmatpush.bf16.msra.mxu0 %v187
  %1396 = vmatpush.bf16.msra.mxu0 %v185
  %1397 = vmatpush.bf16.msra.mxu0 %v183
  %1398 = vmatpush.bf16.msra.mxu0 %v181
  %1399 = vmatmul.bf16.gmra.mxu0 %v1349
  %v1400 = vpop.f32.mrf.mxu0
  %v1401 = vadd.f32 %v1388, %v1400
  %v1402 = vpop.f32.mrf.mxu0
  %1403 = vdwg.mxu0
  %v1404 = vadd.f32 %v24, %v1375
  %v1405 = vadd.f32 %v25, %v1401
  %v1406 = vtanh.pop %v1404
  %v1407 = vtanh.pop %v1405
  %v1408 = vpack.c.bf16 %v1406, %v1406
  %v1409 = vpack.c.bf16 %v1407, %v1407
  %1410 = vmatpush.bf16.msra.mxu0 %v178
  %1411 = vmatpush.bf16.msra.mxu0 %v176
  %1412 = vmatpush.bf16.msra.mxu0 %v174
  %1413 = vmatpush.bf16.msra.mxu0 %v172
  %1414 = vmatpush.bf16.msra.mxu0 %v170
  %1415 = vmatpush.bf16.msra.mxu0 %v168
  %1416 = vmatpush.bf16.msra.mxu0 %v166
  %1417 = vmatpush.bf16.msra.mxu0 %v164
  %1418 = vmatmul.bf16.gmra.mxu0 %v1408
  %v1419 = vpop.f32.mrf.mxu0
  %v1420 = vadd.f32 0.0, %v1419
  %v1421 = vpop.f32.mrf.mxu0
  %1422 = vdwg.mxu0
  %1423 = vmatpush.bf16.msra.mxu0 %v194
  %1424 = vmatpush.bf16.msra.mxu0 %v192
  %1425 = vmatpush.bf16.msra.mxu0 %v190
  %1426 = vmatpush.bf16.msra.mxu0 %v188
  %1427 = vmatpush.bf16.msra.mxu0 %v186
  %1428 = vmatpush.bf16.msra.mxu0 %v184
  %1429 = vmatpush.bf16.msra.mxu0 %v182
  %1430 = vmatpush.bf16.msra.mxu0 %v180
  %1431 = vmatmul.bf16.gmra.mxu0 %v1409
  %v1432 = vpop.f32.mrf.mxu0
  %v1433 = vadd.f32 %v1420, %v1432
  %v1434 = vpop.f32.mrf.mxu0
  %1435 = vdwg.mxu0
  %1436 = vmatpush.bf16.msra.mxu0 %v179
  %1437 = vmatpush.bf16.msra.mxu0 %v177
  %1438 = vmatpush.bf16.msra.mxu0 %v175
  %1439 = vmatpush.bf16.msra.mxu0 %v173
  %1440 = vmatpush.bf16.msra.mxu0 %v171
  %1441 = vmatpush.bf16.msra.mxu0 %v169
  %1442 = vmatpush.bf16.msra.mxu0 %v167
  %1443 = vmatpush.bf16.msra.mxu0 %v165
  %1444 = vmatmul.bf16.gmra.mxu0 %v1408
  %v1445 = vpop.f32.mrf.mxu0
  %v1446 = vadd.f32 0.0, %v1445
  %v1447 = vpop.f32.mrf.mxu0
  %1448 = vdwg.mxu0
  %1449 = vmatpush.bf16.msra.mxu0 %v195
  %1450 = vmatpush.bf16.msra.mxu0 %v193
  %1451 = vmatpush.bf16.msra.mxu0 %v191
  %1452 = vmatpush.bf16.msra.mxu0 %v189
  %1453 = vmatpush.bf16.msra.mxu0 %v187
  %1454 = vmatpush.bf16.msra.mxu0 %v185
  %1455 = vmatpush.bf16.msra.mxu0 %v183
  %1456 = vmatpush.bf16.msra.mxu0 %v181
  %1457 = vmatmul.bf16.gmra.mxu0 %v1409
  %v1458 = vpop.f32.mrf.mxu0
  %v1459 = vadd.f32 %v1446, %v1458
  %v1460 = vpop.f32.mrf.mxu0
  %1461 = vdwg.mxu0
  %v1464 = vrot.slane %v1433, 7
  %v1465 = vrot.slane %v1459, 7
  %v1468 = vadd.f32 %v24, %v1464
  %v1469 = vadd.f32 %v25, %v1465
  %v1470 = vtanh.pop %v1468
  %v1471 = vtanh.pop %v1469
  %v1472 = vpack.c.bf16 %v1470, %v1470
  %v1473 = vpack.c.bf16 %v1471, %v1471
  %v1475 = vshrl.u32 %v1472, 16
  %v1478 = vshrl.u32 %v1473, 16
  %1482 = vmatpush.bf16.msra.mxu0 %v178
  %1483 = vmatpush.bf16.msra.mxu0 %v176
  %1484 = vmatpush.bf16.msra.mxu0 %v174
  %1485 = vmatpush.bf16.msra.mxu0 %v172
  %1486 = vmatpush.bf16.msra.mxu0 %v170
  %1487 = vmatpush.bf16.msra.mxu0 %v168
  %1488 = vmatpush.bf16.msra.mxu0 %v166
  %1489 = vmatpush.bf16.msra.mxu0 %v164
  %1490 = vmatmul.bf16.gmra.mxu0 %v1475
  %v1491 = vpop.f32.mrf.mxu0
  %v1492 = vadd.f32 0.0, %v1491
  %v1493 = vpop.f32.mrf.mxu0
  %1494 = vdwg.mxu0
  %1495 = vmatpush.bf16.msra.mxu0 %v194
  %1496 = vmatpush.bf16.msra.mxu0 %v192
  %1497 = vmatpush.bf16.msra.mxu0 %v190
  %1498 = vmatpush.bf16.msra.mxu0 %v188
  %1499 = vmatpush.bf16.msra.mxu0 %v186
  %1500 = vmatpush.bf16.msra.mxu0 %v184
  %1501 = vmatpush.bf16.msra.mxu0 %v182
  %1502 = vmatpush.bf16.msra.mxu0 %v180
  %1503 = vmatmul.bf16.gmra.mxu0 %v1478
  %v1504 = vpop.f32.mrf.mxu0
  %v1505 = vadd.f32 %v1492, %v1504
  %v1506 = vpop.f32.mrf.mxu0
  %1507 = vdwg.mxu0
  %1508 = vmatpush.bf16.msra.mxu0 %v179
  %1509 = vmatpush.bf16.msra.mxu0 %v177
  %1510 = vmatpush.bf16.msra.mxu0 %v175
  %1511 = vmatpush.bf16.msra.mxu0 %v173
  %1512 = vmatpush.bf16.msra.mxu0 %v171
  %1513 = vmatpush.bf16.msra.mxu0 %v169
  %1514 = vmatpush.bf16.msra.mxu0 %v167
  %1515 = vmatpush.bf16.msra.mxu0 %v165
  %1516 = vmatmul.bf16.gmra.mxu0 %v1475
  %v1517 = vpop.f32.mrf.mxu0
  %v1518 = vadd.f32 0.0, %v1517
  %v1519 = vpop.f32.mrf.mxu0
  %1520 = vdwg.mxu0
  %1521 = vmatpush.bf16.msra.mxu0 %v195
  %1522 = vmatpush.bf16.msra.mxu0 %v193
  %1523 = vmatpush.bf16.msra.mxu0 %v191
  %1524 = vmatpush.bf16.msra.mxu0 %v189
  %1525 = vmatpush.bf16.msra.mxu0 %v187
  %1526 = vmatpush.bf16.msra.mxu0 %v185
  %1527 = vmatpush.bf16.msra.mxu0 %v183
  %1528 = vmatpush.bf16.msra.mxu0 %v181
  %1529 = vmatmul.bf16.gmra.mxu0 %v1478
  %v1530 = vpop.f32.mrf.mxu0
  %v1531 = vadd.f32 %v1518, %v1530
  %v1532 = vpop.f32.mrf.mxu0
  %1533 = vdwg.mxu0
  %v1536 = vrot.slane %v1505, 6
  %v1537 = vrot.slane %v1531, 6
  %v1540 = vadd.f32 %v24, %v1536
  %v1541 = vadd.f32 %v25, %v1537
  %v1542 = vtanh.pop %v1540
  %v1543 = vtanh.pop %v1541
  %v1544 = vpack.c.bf16 %v1542, %v1542
  %v1545 = vpack.c.bf16 %v1543, %v1543
  %v1548 = vrot.slane %v1544, 1
  %v1549 = vrot.slane %v1545, 1
  %1552 = vmatpush.bf16.msra.mxu0 %v178
  %1553 = vmatpush.bf16.msra.mxu0 %v176
  %1554 = vmatpush.bf16.msra.mxu0 %v174
  %1555 = vmatpush.bf16.msra.mxu0 %v172
  %1556 = vmatpush.bf16.msra.mxu0 %v170
  %1557 = vmatpush.bf16.msra.mxu0 %v168
  %1558 = vmatpush.bf16.msra.mxu0 %v166
  %1559 = vmatpush.bf16.msra.mxu0 %v164
  %1560 = vmatmul.bf16.gmra.mxu0 %v1548
  %v1561 = vpop.f32.mrf.mxu0
  %v1562 = vadd.f32 0.0, %v1561
  %v1563 = vpop.f32.mrf.mxu0
  %1564 = vdwg.mxu0
  %1565 = vmatpush.bf16.msra.mxu0 %v194
  %1566 = vmatpush.bf16.msra.mxu0 %v192
  %1567 = vmatpush.bf16.msra.mxu0 %v190
  %1568 = vmatpush.bf16.msra.mxu0 %v188
  %1569 = vmatpush.bf16.msra.mxu0 %v186
  %1570 = vmatpush.bf16.msra.mxu0 %v184
  %1571 = vmatpush.bf16.msra.mxu0 %v182
  %1572 = vmatpush.bf16.msra.mxu0 %v180
  %1573 = vmatmul.bf16.gmra.mxu0 %v1549
  %v1574 = vpop.f32.mrf.mxu0
  %v1575 = vadd.f32 %v1562, %v1574
  %v1576 = vpop.f32.mrf.mxu0
  %1577 = vdwg.mxu0
  %1578 = vmatpush.bf16.msra.mxu0 %v179
  %1579 = vmatpush.bf16.msra.mxu0 %v177
  %1580 = vmatpush.bf16.msra.mxu0 %v175
  %1581 = vmatpush.bf16.msra.mxu0 %v173
  %1582 = vmatpush.bf16.msra.mxu0 %v171
  %1583 = vmatpush.bf16.msra.mxu0 %v169
  %1584 = vmatpush.bf16.msra.mxu0 %v167
  %1585 = vmatpush.bf16.msra.mxu0 %v165
  %1586 = vmatmul.bf16.gmra.mxu0 %v1548
  %v1587 = vpop.f32.mrf.mxu0
  %v1588 = vadd.f32 0.0, %v1587
  %v1589 = vpop.f32.mrf.mxu0
  %1590 = vdwg.mxu0
  %1591 = vmatpush.bf16.msra.mxu0 %v195
  %1592 = vmatpush.bf16.msra.mxu0 %v193
  %1593 = vmatpush.bf16.msra.mxu0 %v191
  %1594 = vmatpush.bf16.msra.mxu0 %v189
  %1595 = vmatpush.bf16.msra.mxu0 %v187
  %1596 = vmatpush.bf16.msra.mxu0 %v185
  %1597 = vmatpush.bf16.msra.mxu0 %v183
  %1598 = vmatpush.bf16.msra.mxu0 %v181
  %1599 = vmatmul.bf16.gmra.mxu0 %v1549
  %v1600 = vpop.f32.mrf.mxu0
  %v1601 = vadd.f32 %v1588, %v1600
  %v1602 = vpop.f32.mrf.mxu0
  %1603 = vdwg.mxu0
  %v1606 = vrot.slane %v1575, 5
  %v1607 = vrot.slane %v1601, 5
  %v1610 = vadd.f32 %v24, %v1606
  %v1611 = vadd.f32 %v25, %v1607
  %v1612 = vtanh.pop %v1610
  %v1613 = vtanh.pop %v1611
  %v1614 = vpack.c.bf16 %v1612, %v1612
  %v1615 = vpack.c.bf16 %v1613, %v1613
  %v1617 = vshrl.u32 %v1614, 16
  %v1619 = vrot.slane %v1617, 1
  %v1621 = vshrl.u32 %v1615, 16
  %v1623 = vrot.slane %v1621, 1
  %1626 = vmatpush.bf16.msra.mxu0 %v178
  %1627 = vmatpush.bf16.msra.mxu0 %v176
  %1628 = vmatpush.bf16.msra.mxu0 %v174
  %1629 = vmatpush.bf16.msra.mxu0 %v172
  %1630 = vmatpush.bf16.msra.mxu0 %v170
  %1631 = vmatpush.bf16.msra.mxu0 %v168
  %1632 = vmatpush.bf16.msra.mxu0 %v166
  %1633 = vmatpush.bf16.msra.mxu0 %v164
  %1634 = vmatmul.bf16.gmra.mxu0 %v1619
  %v1635 = vpop.f32.mrf.mxu0
  %v1636 = vadd.f32 0.0, %v1635
  %v1637 = vpop.f32.mrf.mxu0
  %1638 = vdwg.mxu0
  %1639 = vmatpush.bf16.msra.mxu0 %v194
  %1640 = vmatpush.bf16.msra.mxu0 %v192
  %1641 = vmatpush.bf16.msra.mxu0 %v190
  %1642 = vmatpush.bf16.msra.mxu0 %v188
  %1643 = vmatpush.bf16.msra.mxu0 %v186
  %1644 = vmatpush.bf16.msra.mxu0 %v184
  %1645 = vmatpush.bf16.msra.mxu0 %v182
  %1646 = vmatpush.bf16.msra.mxu0 %v180
  %1647 = vmatmul.bf16.gmra.mxu0 %v1623
  %v1648 = vpop.f32.mrf.mxu0
  %v1649 = vadd.f32 %v1636, %v1648
  %v1650 = vpop.f32.mrf.mxu0
  %1651 = vdwg.mxu0
  %1652 = vmatpush.bf16.msra.mxu0 %v179
  %1653 = vmatpush.bf16.msra.mxu0 %v177
  %1654 = vmatpush.bf16.msra.mxu0 %v175
  %1655 = vmatpush.bf16.msra.mxu0 %v173
  %1656 = vmatpush.bf16.msra.mxu0 %v171
  %1657 = vmatpush.bf16.msra.mxu0 %v169
  %1658 = vmatpush.bf16.msra.mxu0 %v167
  %1659 = vmatpush.bf16.msra.mxu0 %v165
  %1660 = vmatmul.bf16.gmra.mxu0 %v1619
  %v1661 = vpop.f32.mrf.mxu0
  %v1662 = vadd.f32 0.0, %v1661
  %v1663 = vpop.f32.mrf.mxu0
  %1664 = vdwg.mxu0
  %1665 = vmatpush.bf16.msra.mxu0 %v195
  %1666 = vmatpush.bf16.msra.mxu0 %v193
  %1667 = vmatpush.bf16.msra.mxu0 %v191
  %1668 = vmatpush.bf16.msra.mxu0 %v189
  %1669 = vmatpush.bf16.msra.mxu0 %v187
  %1670 = vmatpush.bf16.msra.mxu0 %v185
  %1671 = vmatpush.bf16.msra.mxu0 %v183
  %1672 = vmatpush.bf16.msra.mxu0 %v181
  %1673 = vmatmul.bf16.gmra.mxu0 %v1623
  %v1674 = vpop.f32.mrf.mxu0
  %v1675 = vadd.f32 %v1662, %v1674
  %v1676 = vpop.f32.mrf.mxu0
  %1677 = vdwg.mxu0
  %v1680 = vrot.slane %v1649, 4
  %v1681 = vrot.slane %v1675, 4
  %v1684 = vadd.f32 %v24, %v1680
  %v1685 = vadd.f32 %v25, %v1681
  %v1686 = vtanh.pop %v1684
  %v1687 = vtanh.pop %v1685
  %v1688 = vpack.c.bf16 %v1686, %v1686
  %v1689 = vpack.c.bf16 %v1687, %v1687
  %v1692 = vrot.slane %v1688, 2
  %v1693 = vrot.slane %v1689, 2
  %1696 = vmatpush.bf16.msra.mxu0 %v178
  %1697 = vmatpush.bf16.msra.mxu0 %v176
  %1698 = vmatpush.bf16.msra.mxu0 %v174
  %1699 = vmatpush.bf16.msra.mxu0 %v172
  %1700 = vmatpush.bf16.msra.mxu0 %v170
  %1701 = vmatpush.bf16.msra.mxu0 %v168
  %1702 = vmatpush.bf16.msra.mxu0 %v166
  %1703 = vmatpush.bf16.msra.mxu0 %v164
  %1704 = vmatmul.bf16.gmra.mxu0 %v1692
  %v1705 = vpop.f32.mrf.mxu0
  %v1706 = vadd.f32 0.0, %v1705
  %v1707 = vpop.f32.mrf.mxu0
  %1708 = vdwg.mxu0
  %1709 = vmatpush.bf16.msra.mxu0 %v194
  %1710 = vmatpush.bf16.msra.mxu0 %v192
  %1711 = vmatpush.bf16.msra.mxu0 %v190
  %1712 = vmatpush.bf16.msra.mxu0 %v188
  %1713 = vmatpush.bf16.msra.mxu0 %v186
  %1714 = vmatpush.bf16.msra.mxu0 %v184
  %1715 = vmatpush.bf16.msra.mxu0 %v182
  %1716 = vmatpush.bf16.msra.mxu0 %v180
  %1717 = vmatmul.bf16.gmra.mxu0 %v1693
  %v1718 = vpop.f32.mrf.mxu0
  %v1719 = vadd.f32 %v1706, %v1718
  %v1720 = vpop.f32.mrf.mxu0
  %1721 = vdwg.mxu0
  %1722 = vmatpush.bf16.msra.mxu0 %v179
  %1723 = vmatpush.bf16.msra.mxu0 %v177
  %1724 = vmatpush.bf16.msra.mxu0 %v175
  %1725 = vmatpush.bf16.msra.mxu0 %v173
  %1726 = vmatpush.bf16.msra.mxu0 %v171
  %1727 = vmatpush.bf16.msra.mxu0 %v169
  %1728 = vmatpush.bf16.msra.mxu0 %v167
  %1729 = vmatpush.bf16.msra.mxu0 %v165
  %1730 = vmatmul.bf16.gmra.mxu0 %v1692
  %v1731 = vpop.f32.mrf.mxu0
  %v1732 = vadd.f32 0.0, %v1731
  %v1733 = vpop.f32.mrf.mxu0
  %1734 = vdwg.mxu0
  %1735 = vmatpush.bf16.msra.mxu0 %v195
  %1736 = vmatpush.bf16.msra.mxu0 %v193
  %1737 = vmatpush.bf16.msra.mxu0 %v191
  %1738 = vmatpush.bf16.msra.mxu0 %v189
  %1739 = vmatpush.bf16.msra.mxu0 %v187
  %1740 = vmatpush.bf16.msra.mxu0 %v185
  %1741 = vmatpush.bf16.msra.mxu0 %v183
  %1742 = vmatpush.bf16.msra.mxu0 %v181
  %1743 = vmatmul.bf16.gmra.mxu0 %v1693
  %v1744 = vpop.f32.mrf.mxu0
  %v1745 = vadd.f32 %v1732, %v1744
  %v1746 = vpop.f32.mrf.mxu0
  %1747 = vdwg.mxu0
  %v1750 = vrot.slane %v1719, 3
  %v1751 = vrot.slane %v1745, 3
  %v1754 = vadd.f32 %v24, %v1750
  %v1755 = vadd.f32 %v25, %v1751
  %v1756 = vtanh.pop %v1754
  %v1757 = vtanh.pop %v1755
  %v1758 = vpack.c.bf16 %v1756, %v1756
  %v1759 = vpack.c.bf16 %v1757, %v1757
  %v1761 = vshrl.u32 %v1758, 16
  %v1763 = vrot.slane %v1761, 2
  %v1765 = vshrl.u32 %v1759, 16
  %v1767 = vrot.slane %v1765, 2
  %1770 = vmatpush.bf16.msra.mxu0 %v178
  %1771 = vmatpush.bf16.msra.mxu0 %v176
  %1772 = vmatpush.bf16.msra.mxu0 %v174
  %1773 = vmatpush.bf16.msra.mxu0 %v172
  %1774 = vmatpush.bf16.msra.mxu0 %v170
  %1775 = vmatpush.bf16.msra.mxu0 %v168
  %1776 = vmatpush.bf16.msra.mxu0 %v166
  %1777 = vmatpush.bf16.msra.mxu0 %v164
  %1778 = vmatmul.bf16.gmra.mxu0 %v1763
  %v1779 = vpop.f32.mrf.mxu0
  %v1780 = vadd.f32 0.0, %v1779
  %v1781 = vpop.f32.mrf.mxu0
  %1782 = vdwg.mxu0
  %1783 = vmatpush.bf16.msra.mxu0 %v194
  %1784 = vmatpush.bf16.msra.mxu0 %v192
  %1785 = vmatpush.bf16.msra.mxu0 %v190
  %1786 = vmatpush.bf16.msra.mxu0 %v188
  %1787 = vmatpush.bf16.msra.mxu0 %v186
  %1788 = vmatpush.bf16.msra.mxu0 %v184
  %1789 = vmatpush.bf16.msra.mxu0 %v182
  %1790 = vmatpush.bf16.msra.mxu0 %v180
  %1791 = vmatmul.bf16.gmra.mxu0 %v1767
  %v1792 = vpop.f32.mrf.mxu0
  %v1793 = vadd.f32 %v1780, %v1792
  %v1794 = vpop.f32.mrf.mxu0
  %1795 = vdwg.mxu0
  %1796 = vmatpush.bf16.msra.mxu0 %v179
  %1797 = vmatpush.bf16.msra.mxu0 %v177
  %1798 = vmatpush.bf16.msra.mxu0 %v175
  %1799 = vmatpush.bf16.msra.mxu0 %v173
  %1800 = vmatpush.bf16.msra.mxu0 %v171
  %1801 = vmatpush.bf16.msra.mxu0 %v169
  %1802 = vmatpush.bf16.msra.mxu0 %v167
  %1803 = vmatpush.bf16.msra.mxu0 %v165
  %1804 = vmatmul.bf16.gmra.mxu0 %v1763
  %v1805 = vpop.f32.mrf.mxu0
  %v1806 = vadd.f32 0.0, %v1805
  %v1807 = vpop.f32.mrf.mxu0
  %1808 = vdwg.mxu0
  %1809 = vmatpush.bf16.msra.mxu0 %v195
  %1810 = vmatpush.bf16.msra.mxu0 %v193
  %1811 = vmatpush.bf16.msra.mxu0 %v191
  %1812 = vmatpush.bf16.msra.mxu0 %v189
  %1813 = vmatpush.bf16.msra.mxu0 %v187
  %1814 = vmatpush.bf16.msra.mxu0 %v185
  %1815 = vmatpush.bf16.msra.mxu0 %v183
  %1816 = vmatpush.bf16.msra.mxu0 %v181
  %1817 = vmatmul.bf16.gmra.mxu0 %v1767
  %v1818 = vpop.f32.mrf.mxu0
  %v1819 = vadd.f32 %v1806, %v1818
  %v1820 = vpop.f32.mrf.mxu0
  %1821 = vdwg.mxu0
  %v1824 = vrot.slane %v1793, 2
  %v1825 = vrot.slane %v1819, 2
  %v1828 = vadd.f32 %v24, %v1824
  %v1829 = vadd.f32 %v25, %v1825
  %v1830 = vtanh.pop %v1828
  %v1831 = vtanh.pop %v1829
  %v1832 = vpack.c.bf16 %v1830, %v1830
  %v1833 = vpack.c.bf16 %v1831, %v1831
  %v1836 = vrot.slane %v1832, 3
  %v1837 = vrot.slane %v1833, 3
  %1840 = vmatpush.bf16.msra.mxu0 %v178
  %1841 = vmatpush.bf16.msra.mxu0 %v176
  %1842 = vmatpush.bf16.msra.mxu0 %v174
  %1843 = vmatpush.bf16.msra.mxu0 %v172
  %1844 = vmatpush.bf16.msra.mxu0 %v170
  %1845 = vmatpush.bf16.msra.mxu0 %v168
  %1846 = vmatpush.bf16.msra.mxu0 %v166
  %1847 = vmatpush.bf16.msra.mxu0 %v164
  %1848 = vmatmul.bf16.gmra.mxu0 %v1836
  %v1849 = vpop.f32.mrf.mxu0
  %v1850 = vadd.f32 0.0, %v1849
  %v1851 = vpop.f32.mrf.mxu0
  %1852 = vdwg.mxu0
  %1853 = vmatpush.bf16.msra.mxu0 %v194
  %1854 = vmatpush.bf16.msra.mxu0 %v192
  %1855 = vmatpush.bf16.msra.mxu0 %v190
  %1856 = vmatpush.bf16.msra.mxu0 %v188
  %1857 = vmatpush.bf16.msra.mxu0 %v186
  %1858 = vmatpush.bf16.msra.mxu0 %v184
  %1859 = vmatpush.bf16.msra.mxu0 %v182
  %1860 = vmatpush.bf16.msra.mxu0 %v180
  %1861 = vmatmul.bf16.gmra.mxu0 %v1837
  %v1862 = vpop.f32.mrf.mxu0
  %v1863 = vadd.f32 %v1850, %v1862
  %v1864 = vpop.f32.mrf.mxu0
  %1865 = vdwg.mxu0
  %1866 = vmatpush.bf16.msra.mxu0 %v179
  %1867 = vmatpush.bf16.msra.mxu0 %v177
  %1868 = vmatpush.bf16.msra.mxu0 %v175
  %1869 = vmatpush.bf16.msra.mxu0 %v173
  %1870 = vmatpush.bf16.msra.mxu0 %v171
  %1871 = vmatpush.bf16.msra.mxu0 %v169
  %1872 = vmatpush.bf16.msra.mxu0 %v167
  %1873 = vmatpush.bf16.msra.mxu0 %v165
  %1874 = vmatmul.bf16.gmra.mxu0 %v1836
  %v1875 = vpop.f32.mrf.mxu0
  %v1876 = vadd.f32 0.0, %v1875
  %v1877 = vpop.f32.mrf.mxu0
  %1878 = vdwg.mxu0
  %1879 = vmatpush.bf16.msra.mxu0 %v195
  %1880 = vmatpush.bf16.msra.mxu0 %v193
  %1881 = vmatpush.bf16.msra.mxu0 %v191
  %1882 = vmatpush.bf16.msra.mxu0 %v189
  %1883 = vmatpush.bf16.msra.mxu0 %v187
  %1884 = vmatpush.bf16.msra.mxu0 %v185
  %1885 = vmatpush.bf16.msra.mxu0 %v183
  %1886 = vmatpush.bf16.msra.mxu0 %v181
  %1887 = vmatmul.bf16.gmra.mxu0 %v1837
  %v1888 = vpop.f32.mrf.mxu0
  %v1889 = vadd.f32 %v1876, %v1888
  %v1890 = vpop.f32.mrf.mxu0
  %1891 = vdwg.mxu0
  %v1894 = vrot.slane %v1863, 1
  %v1895 = vrot.slane %v1889, 1
  %v1898 = vadd.f32 %v24, %v1894
  %v1899 = vadd.f32 %v25, %v1895
  %v1900 = vtanh.pop %v1898
  %v1901 = vtanh.pop %v1899
  %v1902 = vpack.c.bf16 %v1900, %v1900
  %v1903 = vpack.c.bf16 %v1901, %v1901
  %v1905 = vshrl.u32 %v1902, 16
  %v1907 = vrot.slane %v1905, 3
  %v1909 = vshrl.u32 %v1903, 16
  %v1911 = vrot.slane %v1909, 3
  %1914 = vmatpush.bf16.msra.mxu0 %v178
  %1915 = vmatpush.bf16.msra.mxu0 %v176
  %1916 = vmatpush.bf16.msra.mxu0 %v174
  %1917 = vmatpush.bf16.msra.mxu0 %v172
  %1918 = vmatpush.bf16.msra.mxu0 %v170
  %1919 = vmatpush.bf16.msra.mxu0 %v168
  %1920 = vmatpush.bf16.msra.mxu0 %v166
  %1921 = vmatpush.bf16.msra.mxu0 %v164
  %1922 = vmatmul.bf16.gmra.mxu0 %v1907
  %v1923 = vpop.f32.mrf.mxu0
  %v1924 = vadd.f32 0.0, %v1923
  %v1925 = vpop.f32.mrf.mxu0
  %1926 = vdwg.mxu0
  %1927 = vmatpush.bf16.msra.mxu0 %v194
  %1928 = vmatpush.bf16.msra.mxu0 %v192
  %1929 = vmatpush.bf16.msra.mxu0 %v190
  %1930 = vmatpush.bf16.msra.mxu0 %v188
  %1931 = vmatpush.bf16.msra.mxu0 %v186
  %1932 = vmatpush.bf16.msra.mxu0 %v184
  %1933 = vmatpush.bf16.msra.mxu0 %v182
  %1934 = vmatpush.bf16.msra.mxu0 %v180
  %1935 = vmatmul.bf16.gmra.mxu0 %v1911
  %v1936 = vpop.f32.mrf.mxu0
  %v1937 = vadd.f32 %v1924, %v1936
  %v1938 = vpop.f32.mrf.mxu0
  %1939 = vdwg.mxu0
  %1940 = vmatpush.bf16.msra.mxu0 %v179
  %1941 = vmatpush.bf16.msra.mxu0 %v177
  %1942 = vmatpush.bf16.msra.mxu0 %v175
  %1943 = vmatpush.bf16.msra.mxu0 %v173
  %1944 = vmatpush.bf16.msra.mxu0 %v171
  %1945 = vmatpush.bf16.msra.mxu0 %v169
  %1946 = vmatpush.bf16.msra.mxu0 %v167
  %1947 = vmatpush.bf16.msra.mxu0 %v165
  %1948 = vmatmul.bf16.gmra.mxu0 %v1907
  %v1949 = vpop.f32.mrf.mxu0
  %v1950 = vadd.f32 0.0, %v1949
  %v1951 = vpop.f32.mrf.mxu0
  %1952 = vdwg.mxu0
  %1953 = vmatpush.bf16.msra.mxu0 %v195
  %1954 = vmatpush.bf16.msra.mxu0 %v193
  %1955 = vmatpush.bf16.msra.mxu0 %v191
  %1956 = vmatpush.bf16.msra.mxu0 %v189
  %1957 = vmatpush.bf16.msra.mxu0 %v187
  %1958 = vmatpush.bf16.msra.mxu0 %v185
  %1959 = vmatpush.bf16.msra.mxu0 %v183
  %1960 = vmatpush.bf16.msra.mxu0 %v181
  %1961 = vmatmul.bf16.gmra.mxu0 %v1911
  %v1962 = vpop.f32.mrf.mxu0
  %v1963 = vadd.f32 %v1950, %v1962
  %v1964 = vpop.f32.mrf.mxu0
  %1965 = vdwg.mxu0
  %v1966 = vadd.f32 %v26, %v1937
  %v1967 = vadd.f32 %v27, %v1963
  %v1968 = vtanh.pop %v1966
  %v1969 = vtanh.pop %v1967
  %v1970 = vpack.c.bf16 %v1968, %v1968
  %v1971 = vpack.c.bf16 %v1969, %v1969
  %1972 = vmatpush.bf16.msra.mxu0 %v178
  %1973 = vmatpush.bf16.msra.mxu0 %v176
  %1974 = vmatpush.bf16.msra.mxu0 %v174
  %1975 = vmatpush.bf16.msra.mxu0 %v172
  %1976 = vmatpush.bf16.msra.mxu0 %v170
  %1977 = vmatpush.bf16.msra.mxu0 %v168
  %1978 = vmatpush.bf16.msra.mxu0 %v166
  %1979 = vmatpush.bf16.msra.mxu0 %v164
  %1980 = vmatmul.bf16.gmra.mxu0 %v1970
  %v1981 = vpop.f32.mrf.mxu0
  %v1982 = vadd.f32 0.0, %v1981
  %v1983 = vpop.f32.mrf.mxu0
  %1984 = vdwg.mxu0
  %1985 = vmatpush.bf16.msra.mxu0 %v194
  %1986 = vmatpush.bf16.msra.mxu0 %v192
  %1987 = vmatpush.bf16.msra.mxu0 %v190
  %1988 = vmatpush.bf16.msra.mxu0 %v188
  %1989 = vmatpush.bf16.msra.mxu0 %v186
  %1990 = vmatpush.bf16.msra.mxu0 %v184
  %1991 = vmatpush.bf16.msra.mxu0 %v182
  %1992 = vmatpush.bf16.msra.mxu0 %v180
  %1993 = vmatmul.bf16.gmra.mxu0 %v1971
  %v1994 = vpop.f32.mrf.mxu0
  %v1995 = vadd.f32 %v1982, %v1994
  %v1996 = vpop.f32.mrf.mxu0
  %1997 = vdwg.mxu0
  %1998 = vmatpush.bf16.msra.mxu0 %v179
  %1999 = vmatpush.bf16.msra.mxu0 %v177
  %2000 = vmatpush.bf16.msra.mxu0 %v175
  %2001 = vmatpush.bf16.msra.mxu0 %v173
  %2002 = vmatpush.bf16.msra.mxu0 %v171
  %2003 = vmatpush.bf16.msra.mxu0 %v169
  %2004 = vmatpush.bf16.msra.mxu0 %v167
  %2005 = vmatpush.bf16.msra.mxu0 %v165
  %2006 = vmatmul.bf16.gmra.mxu0 %v1970
  %v2007 = vpop.f32.mrf.mxu0
  %v2008 = vadd.f32 0.0, %v2007
  %v2009 = vpop.f32.mrf.mxu0
  %2010 = vdwg.mxu0
  %2011 = vmatpush.bf16.msra.mxu0 %v195
  %2012 = vmatpush.bf16.msra.mxu0 %v193
  %2013 = vmatpush.bf16.msra.mxu0 %v191
  %2014 = vmatpush.bf16.msra.mxu0 %v189
  %2015 = vmatpush.bf16.msra.mxu0 %v187
  %2016 = vmatpush.bf16.msra.mxu0 %v185
  %2017 = vmatpush.bf16.msra.mxu0 %v183
  %2018 = vmatpush.bf16.msra.mxu0 %v181
  %2019 = vmatmul.bf16.gmra.mxu0 %v1971
  %v2020 = vpop.f32.mrf.mxu0
  %v2021 = vadd.f32 %v2008, %v2020
  %v2022 = vpop.f32.mrf.mxu0
  %2023 = vdwg.mxu0
  %v2026 = vrot.slane %v1995, 7
  %v2027 = vrot.slane %v2021, 7
  %v2030 = vadd.f32 %v26, %v2026
  %v2031 = vadd.f32 %v27, %v2027
  %v2032 = vtanh.pop %v2030
  %v2033 = vtanh.pop %v2031
  %v2034 = vpack.c.bf16 %v2032, %v2032
  %v2035 = vpack.c.bf16 %v2033, %v2033
  %v2037 = vshrl.u32 %v2034, 16
  %v2040 = vshrl.u32 %v2035, 16
  %2044 = vmatpush.bf16.msra.mxu0 %v178
  %2045 = vmatpush.bf16.msra.mxu0 %v176
  %2046 = vmatpush.bf16.msra.mxu0 %v174
  %2047 = vmatpush.bf16.msra.mxu0 %v172
  %2048 = vmatpush.bf16.msra.mxu0 %v170
  %2049 = vmatpush.bf16.msra.mxu0 %v168
  %2050 = vmatpush.bf16.msra.mxu0 %v166
  %2051 = vmatpush.bf16.msra.mxu0 %v164
  %2052 = vmatmul.bf16.gmra.mxu0 %v2037
  %v2053 = vpop.f32.mrf.mxu0
  %v2054 = vadd.f32 0.0, %v2053
  %v2055 = vpop.f32.mrf.mxu0
  %2056 = vdwg.mxu0
  %2057 = vmatpush.bf16.msra.mxu0 %v194
  %2058 = vmatpush.bf16.msra.mxu0 %v192
  %2059 = vmatpush.bf16.msra.mxu0 %v190
  %2060 = vmatpush.bf16.msra.mxu0 %v188
  %2061 = vmatpush.bf16.msra.mxu0 %v186
  %2062 = vmatpush.bf16.msra.mxu0 %v184
  %2063 = vmatpush.bf16.msra.mxu0 %v182
  %2064 = vmatpush.bf16.msra.mxu0 %v180
  %2065 = vmatmul.bf16.gmra.mxu0 %v2040
  %v2066 = vpop.f32.mrf.mxu0
  %v2067 = vadd.f32 %v2054, %v2066
  %v2068 = vpop.f32.mrf.mxu0
  %2069 = vdwg.mxu0
  %2070 = vmatpush.bf16.msra.mxu0 %v179
  %2071 = vmatpush.bf16.msra.mxu0 %v177
  %2072 = vmatpush.bf16.msra.mxu0 %v175
  %2073 = vmatpush.bf16.msra.mxu0 %v173
  %2074 = vmatpush.bf16.msra.mxu0 %v171
  %2075 = vmatpush.bf16.msra.mxu0 %v169
  %2076 = vmatpush.bf16.msra.mxu0 %v167
  %2077 = vmatpush.bf16.msra.mxu0 %v165
  %2078 = vmatmul.bf16.gmra.mxu0 %v2037
  %v2079 = vpop.f32.mrf.mxu0
  %v2080 = vadd.f32 0.0, %v2079
  %v2081 = vpop.f32.mrf.mxu0
  %2082 = vdwg.mxu0
  %2083 = vmatpush.bf16.msra.mxu0 %v195
  %2084 = vmatpush.bf16.msra.mxu0 %v193
  %2085 = vmatpush.bf16.msra.mxu0 %v191
  %2086 = vmatpush.bf16.msra.mxu0 %v189
  %2087 = vmatpush.bf16.msra.mxu0 %v187
  %2088 = vmatpush.bf16.msra.mxu0 %v185
  %2089 = vmatpush.bf16.msra.mxu0 %v183
  %2090 = vmatpush.bf16.msra.mxu0 %v181
  %2091 = vmatmul.bf16.gmra.mxu0 %v2040
  %v2092 = vpop.f32.mrf.mxu0
  %v2093 = vadd.f32 %v2080, %v2092
  %v2094 = vpop.f32.mrf.mxu0
  %2095 = vdwg.mxu0
  %v2098 = vrot.slane %v2067, 6
  %v2099 = vrot.slane %v2093, 6
  %v2102 = vadd.f32 %v26, %v2098
  %v2103 = vadd.f32 %v27, %v2099
  %v2104 = vtanh.pop %v2102
  %v2105 = vtanh.pop %v2103
  %v2106 = vpack.c.bf16 %v2104, %v2104
  %v2107 = vpack.c.bf16 %v2105, %v2105
  %v2110 = vrot.slane %v2106, 1
  %v2111 = vrot.slane %v2107, 1
  %2114 = vmatpush.bf16.msra.mxu0 %v178
  %2115 = vmatpush.bf16.msra.mxu0 %v176
  %2116 = vmatpush.bf16.msra.mxu0 %v174
  %2117 = vmatpush.bf16.msra.mxu0 %v172
  %2118 = vmatpush.bf16.msra.mxu0 %v170
  %2119 = vmatpush.bf16.msra.mxu0 %v168
  %2120 = vmatpush.bf16.msra.mxu0 %v166
  %2121 = vmatpush.bf16.msra.mxu0 %v164
  %2122 = vmatmul.bf16.gmra.mxu0 %v2110
  %v2123 = vpop.f32.mrf.mxu0
  %v2124 = vadd.f32 0.0, %v2123
  %v2125 = vpop.f32.mrf.mxu0
  %2126 = vdwg.mxu0
  %2127 = vmatpush.bf16.msra.mxu0 %v194
  %2128 = vmatpush.bf16.msra.mxu0 %v192
  %2129 = vmatpush.bf16.msra.mxu0 %v190
  %2130 = vmatpush.bf16.msra.mxu0 %v188
  %2131 = vmatpush.bf16.msra.mxu0 %v186
  %2132 = vmatpush.bf16.msra.mxu0 %v184
  %2133 = vmatpush.bf16.msra.mxu0 %v182
  %2134 = vmatpush.bf16.msra.mxu0 %v180
  %2135 = vmatmul.bf16.gmra.mxu0 %v2111
  %v2136 = vpop.f32.mrf.mxu0
  %v2137 = vadd.f32 %v2124, %v2136
  %v2138 = vpop.f32.mrf.mxu0
  %2139 = vdwg.mxu0
  %2140 = vmatpush.bf16.msra.mxu0 %v179
  %2141 = vmatpush.bf16.msra.mxu0 %v177
  %2142 = vmatpush.bf16.msra.mxu0 %v175
  %2143 = vmatpush.bf16.msra.mxu0 %v173
  %2144 = vmatpush.bf16.msra.mxu0 %v171
  %2145 = vmatpush.bf16.msra.mxu0 %v169
  %2146 = vmatpush.bf16.msra.mxu0 %v167
  %2147 = vmatpush.bf16.msra.mxu0 %v165
  %2148 = vmatmul.bf16.gmra.mxu0 %v2110
  %v2149 = vpop.f32.mrf.mxu0
  %v2150 = vadd.f32 0.0, %v2149
  %v2151 = vpop.f32.mrf.mxu0
  %2152 = vdwg.mxu0
  %2153 = vmatpush.bf16.msra.mxu0 %v195
  %2154 = vmatpush.bf16.msra.mxu0 %v193
  %2155 = vmatpush.bf16.msra.mxu0 %v191
  %2156 = vmatpush.bf16.msra.mxu0 %v189
  %2157 = vmatpush.bf16.msra.mxu0 %v187
  %2158 = vmatpush.bf16.msra.mxu0 %v185
  %2159 = vmatpush.bf16.msra.mxu0 %v183
  %2160 = vmatpush.bf16.msra.mxu0 %v181
  %2161 = vmatmul.bf16.gmra.mxu0 %v2111
  %v2162 = vpop.f32.mrf.mxu0
  %v2163 = vadd.f32 %v2150, %v2162
  %v2164 = vpop.f32.mrf.mxu0
  %2165 = vdwg.mxu0
  %v2168 = vrot.slane %v2137, 5
  %v2169 = vrot.slane %v2163, 5
  %v2172 = vadd.f32 %v26, %v2168
  %v2173 = vadd.f32 %v27, %v2169
  %v2174 = vtanh.pop %v2172
  %v2175 = vtanh.pop %v2173
  %v2176 = vpack.c.bf16 %v2174, %v2174
  %v2177 = vpack.c.bf16 %v2175, %v2175
  %v2179 = vshrl.u32 %v2176, 16
  %v2181 = vrot.slane %v2179, 1
  %v2183 = vshrl.u32 %v2177, 16
  %v2185 = vrot.slane %v2183, 1
  %2188 = vmatpush.bf16.msra.mxu0 %v178
  %2189 = vmatpush.bf16.msra.mxu0 %v176
  %2190 = vmatpush.bf16.msra.mxu0 %v174
  %2191 = vmatpush.bf16.msra.mxu0 %v172
  %2192 = vmatpush.bf16.msra.mxu0 %v170
  %2193 = vmatpush.bf16.msra.mxu0 %v168
  %2194 = vmatpush.bf16.msra.mxu0 %v166
  %2195 = vmatpush.bf16.msra.mxu0 %v164
  %2196 = vmatmul.bf16.gmra.mxu0 %v2181
  %v2197 = vpop.f32.mrf.mxu0
  %v2198 = vadd.f32 0.0, %v2197
  %v2199 = vpop.f32.mrf.mxu0
  %2200 = vdwg.mxu0
  %2201 = vmatpush.bf16.msra.mxu0 %v194
  %2202 = vmatpush.bf16.msra.mxu0 %v192
  %2203 = vmatpush.bf16.msra.mxu0 %v190
  %2204 = vmatpush.bf16.msra.mxu0 %v188
  %2205 = vmatpush.bf16.msra.mxu0 %v186
  %2206 = vmatpush.bf16.msra.mxu0 %v184
  %2207 = vmatpush.bf16.msra.mxu0 %v182
  %2208 = vmatpush.bf16.msra.mxu0 %v180
  %2209 = vmatmul.bf16.gmra.mxu0 %v2185
  %v2210 = vpop.f32.mrf.mxu0
  %v2211 = vadd.f32 %v2198, %v2210
  %v2212 = vpop.f32.mrf.mxu0
  %2213 = vdwg.mxu0
  %2214 = vmatpush.bf16.msra.mxu0 %v179
  %2215 = vmatpush.bf16.msra.mxu0 %v177
  %2216 = vmatpush.bf16.msra.mxu0 %v175
  %2217 = vmatpush.bf16.msra.mxu0 %v173
  %2218 = vmatpush.bf16.msra.mxu0 %v171
  %2219 = vmatpush.bf16.msra.mxu0 %v169
  %2220 = vmatpush.bf16.msra.mxu0 %v167
  %2221 = vmatpush.bf16.msra.mxu0 %v165
  %2222 = vmatmul.bf16.gmra.mxu0 %v2181
  %v2223 = vpop.f32.mrf.mxu0
  %v2224 = vadd.f32 0.0, %v2223
  %v2225 = vpop.f32.mrf.mxu0
  %2226 = vdwg.mxu0
  %2227 = vmatpush.bf16.msra.mxu0 %v195
  %2228 = vmatpush.bf16.msra.mxu0 %v193
  %2229 = vmatpush.bf16.msra.mxu0 %v191
  %2230 = vmatpush.bf16.msra.mxu0 %v189
  %2231 = vmatpush.bf16.msra.mxu0 %v187
  %2232 = vmatpush.bf16.msra.mxu0 %v185
  %2233 = vmatpush.bf16.msra.mxu0 %v183
  %2234 = vmatpush.bf16.msra.mxu0 %v181
  %2235 = vmatmul.bf16.gmra.mxu0 %v2185
  %v2236 = vpop.f32.mrf.mxu0
  %v2237 = vadd.f32 %v2224, %v2236
  %v2238 = vpop.f32.mrf.mxu0
  %2239 = vdwg.mxu0
  %v2242 = vrot.slane %v2211, 4
  %v2243 = vrot.slane %v2237, 4
  %v2246 = vadd.f32 %v26, %v2242
  %v2247 = vadd.f32 %v27, %v2243
  %v2248 = vtanh.pop %v2246
  %v2249 = vtanh.pop %v2247
  %v2250 = vpack.c.bf16 %v2248, %v2248
  %v2251 = vpack.c.bf16 %v2249, %v2249
  %v2254 = vrot.slane %v2250, 2
  %v2255 = vrot.slane %v2251, 2
  %2258 = vmatpush.bf16.msra.mxu0 %v178
  %2259 = vmatpush.bf16.msra.mxu0 %v176
  %2260 = vmatpush.bf16.msra.mxu0 %v174
  %2261 = vmatpush.bf16.msra.mxu0 %v172
  %2262 = vmatpush.bf16.msra.mxu0 %v170
  %2263 = vmatpush.bf16.msra.mxu0 %v168
  %2264 = vmatpush.bf16.msra.mxu0 %v166
  %2265 = vmatpush.bf16.msra.mxu0 %v164
  %2266 = vmatmul.bf16.gmra.mxu0 %v2254
  %v2267 = vpop.f32.mrf.mxu0
  %v2268 = vadd.f32 0.0, %v2267
  %v2269 = vpop.f32.mrf.mxu0
  %2270 = vdwg.mxu0
  %2271 = vmatpush.bf16.msra.mxu0 %v194
  %2272 = vmatpush.bf16.msra.mxu0 %v192
  %2273 = vmatpush.bf16.msra.mxu0 %v190
  %2274 = vmatpush.bf16.msra.mxu0 %v188
  %2275 = vmatpush.bf16.msra.mxu0 %v186
  %2276 = vmatpush.bf16.msra.mxu0 %v184
  %2277 = vmatpush.bf16.msra.mxu0 %v182
  %2278 = vmatpush.bf16.msra.mxu0 %v180
  %2279 = vmatmul.bf16.gmra.mxu0 %v2255
  %v2280 = vpop.f32.mrf.mxu0
  %v2281 = vadd.f32 %v2268, %v2280
  %v2282 = vpop.f32.mrf.mxu0
  %2283 = vdwg.mxu0
  %2284 = vmatpush.bf16.msra.mxu0 %v179
  %2285 = vmatpush.bf16.msra.mxu0 %v177
  %2286 = vmatpush.bf16.msra.mxu0 %v175
  %2287 = vmatpush.bf16.msra.mxu0 %v173
  %2288 = vmatpush.bf16.msra.mxu0 %v171
  %2289 = vmatpush.bf16.msra.mxu0 %v169
  %2290 = vmatpush.bf16.msra.mxu0 %v167
  %2291 = vmatpush.bf16.msra.mxu0 %v165
  %2292 = vmatmul.bf16.gmra.mxu0 %v2254
  %v2293 = vpop.f32.mrf.mxu0
  %v2294 = vadd.f32 0.0, %v2293
  %v2295 = vpop.f32.mrf.mxu0
  %2296 = vdwg.mxu0
  %2297 = vmatpush.bf16.msra.mxu0 %v195
  %2298 = vmatpush.bf16.msra.mxu0 %v193
  %2299 = vmatpush.bf16.msra.mxu0 %v191
  %2300 = vmatpush.bf16.msra.mxu0 %v189
  %2301 = vmatpush.bf16.msra.mxu0 %v187
  %2302 = vmatpush.bf16.msra.mxu0 %v185
  %2303 = vmatpush.bf16.msra.mxu0 %v183
  %2304 = vmatpush.bf16.msra.mxu0 %v181
  %2305 = vmatmul.bf16.gmra.mxu0 %v2255
  %v2306 = vpop.f32.mrf.mxu0
  %v2307 = vadd.f32 %v2294, %v2306
  %v2308 = vpop.f32.mrf.mxu0
  %2309 = vdwg.mxu0
  %v2312 = vrot.slane %v2281, 3
  %v2313 = vrot.slane %v2307, 3
  %v2316 = vadd.f32 %v26, %v2312
  %v2317 = vadd.f32 %v27, %v2313
  %v2318 = vtanh.pop %v2316
  %v2319 = vtanh.pop %v2317
  %v2320 = vpack.c.bf16 %v2318, %v2318
  %v2321 = vpack.c.bf16 %v2319, %v2319
  %v2323 = vshrl.u32 %v2320, 16
  %v2325 = vrot.slane %v2323, 2
  %v2327 = vshrl.u32 %v2321, 16
  %v2329 = vrot.slane %v2327, 2
  %2332 = vmatpush.bf16.msra.mxu0 %v178
  %2333 = vmatpush.bf16.msra.mxu0 %v176
  %2334 = vmatpush.bf16.msra.mxu0 %v174
  %2335 = vmatpush.bf16.msra.mxu0 %v172
  %2336 = vmatpush.bf16.msra.mxu0 %v170
  %2337 = vmatpush.bf16.msra.mxu0 %v168
  %2338 = vmatpush.bf16.msra.mxu0 %v166
  %2339 = vmatpush.bf16.msra.mxu0 %v164
  %2340 = vmatmul.bf16.gmra.mxu0 %v2325
  %v2341 = vpop.f32.mrf.mxu0
  %v2342 = vadd.f32 0.0, %v2341
  %v2343 = vpop.f32.mrf.mxu0
  %2344 = vdwg.mxu0
  %2345 = vmatpush.bf16.msra.mxu0 %v194
  %2346 = vmatpush.bf16.msra.mxu0 %v192
  %2347 = vmatpush.bf16.msra.mxu0 %v190
  %2348 = vmatpush.bf16.msra.mxu0 %v188
  %2349 = vmatpush.bf16.msra.mxu0 %v186
  %2350 = vmatpush.bf16.msra.mxu0 %v184
  %2351 = vmatpush.bf16.msra.mxu0 %v182
  %2352 = vmatpush.bf16.msra.mxu0 %v180
  %2353 = vmatmul.bf16.gmra.mxu0 %v2329
  %v2354 = vpop.f32.mrf.mxu0
  %v2355 = vadd.f32 %v2342, %v2354
  %v2356 = vpop.f32.mrf.mxu0
  %2357 = vdwg.mxu0
  %2358 = vmatpush.bf16.msra.mxu0 %v179
  %2359 = vmatpush.bf16.msra.mxu0 %v177
  %2360 = vmatpush.bf16.msra.mxu0 %v175
  %2361 = vmatpush.bf16.msra.mxu0 %v173
  %2362 = vmatpush.bf16.msra.mxu0 %v171
  %2363 = vmatpush.bf16.msra.mxu0 %v169
  %2364 = vmatpush.bf16.msra.mxu0 %v167
  %2365 = vmatpush.bf16.msra.mxu0 %v165
  %2366 = vmatmul.bf16.gmra.mxu0 %v2325
  %v2367 = vpop.f32.mrf.mxu0
  %v2368 = vadd.f32 0.0, %v2367
  %v2369 = vpop.f32.mrf.mxu0
  %2370 = vdwg.mxu0
  %2371 = vmatpush.bf16.msra.mxu0 %v195
  %2372 = vmatpush.bf16.msra.mxu0 %v193
  %2373 = vmatpush.bf16.msra.mxu0 %v191
  %2374 = vmatpush.bf16.msra.mxu0 %v189
  %2375 = vmatpush.bf16.msra.mxu0 %v187
  %2376 = vmatpush.bf16.msra.mxu0 %v185
  %2377 = vmatpush.bf16.msra.mxu0 %v183
  %2378 = vmatpush.bf16.msra.mxu0 %v181
  %2379 = vmatmul.bf16.gmra.mxu0 %v2329
  %v2380 = vpop.f32.mrf.mxu0
  %v2381 = vadd.f32 %v2368, %v2380
  %v2382 = vpop.f32.mrf.mxu0
  %2383 = vdwg.mxu0
  %v2386 = vrot.slane %v2355, 2
  %v2387 = vrot.slane %v2381, 2
  %v2390 = vadd.f32 %v26, %v2386
  %v2391 = vadd.f32 %v27, %v2387
  %v2392 = vtanh.pop %v2390
  %v2393 = vtanh.pop %v2391
  %v2394 = vpack.c.bf16 %v2392, %v2392
  %v2395 = vpack.c.bf16 %v2393, %v2393
  %v2398 = vrot.slane %v2394, 3
  %v2399 = vrot.slane %v2395, 3
  %2402 = vmatpush.bf16.msra.mxu0 %v178
  %2403 = vmatpush.bf16.msra.mxu0 %v176
  %2404 = vmatpush.bf16.msra.mxu0 %v174
  %2405 = vmatpush.bf16.msra.mxu0 %v172
  %2406 = vmatpush.bf16.msra.mxu0 %v170
  %2407 = vmatpush.bf16.msra.mxu0 %v168
  %2408 = vmatpush.bf16.msra.mxu0 %v166
  %2409 = vmatpush.bf16.msra.mxu0 %v164
  %2410 = vmatmul.bf16.gmra.mxu0 %v2398
  %v2411 = vpop.f32.mrf.mxu0
  %v2412 = vadd.f32 0.0, %v2411
  %v2413 = vpop.f32.mrf.mxu0
  %2414 = vdwg.mxu0
  %2415 = vmatpush.bf16.msra.mxu0 %v194
  %2416 = vmatpush.bf16.msra.mxu0 %v192
  %2417 = vmatpush.bf16.msra.mxu0 %v190
  %2418 = vmatpush.bf16.msra.mxu0 %v188
  %2419 = vmatpush.bf16.msra.mxu0 %v186
  %2420 = vmatpush.bf16.msra.mxu0 %v184
  %2421 = vmatpush.bf16.msra.mxu0 %v182
  %2422 = vmatpush.bf16.msra.mxu0 %v180
  %2423 = vmatmul.bf16.gmra.mxu0 %v2399
  %v2424 = vpop.f32.mrf.mxu0
  %v2425 = vadd.f32 %v2412, %v2424
  %v2426 = vpop.f32.mrf.mxu0
  %2427 = vdwg.mxu0
  %2428 = vmatpush.bf16.msra.mxu0 %v179
  %2429 = vmatpush.bf16.msra.mxu0 %v177
  %2430 = vmatpush.bf16.msra.mxu0 %v175
  %2431 = vmatpush.bf16.msra.mxu0 %v173
  %2432 = vmatpush.bf16.msra.mxu0 %v171
  %2433 = vmatpush.bf16.msra.mxu0 %v169
  %2434 = vmatpush.bf16.msra.mxu0 %v167
  %2435 = vmatpush.bf16.msra.mxu0 %v165
  %2436 = vmatmul.bf16.gmra.mxu0 %v2398
  %v2437 = vpop.f32.mrf.mxu0
  %v2438 = vadd.f32 0.0, %v2437
  %v2439 = vpop.f32.mrf.mxu0
  %2440 = vdwg.mxu0
  %2441 = vmatpush.bf16.msra.mxu0 %v195
  %2442 = vmatpush.bf16.msra.mxu0 %v193
  %2443 = vmatpush.bf16.msra.mxu0 %v191
  %2444 = vmatpush.bf16.msra.mxu0 %v189
  %2445 = vmatpush.bf16.msra.mxu0 %v187
  %2446 = vmatpush.bf16.msra.mxu0 %v185
  %2447 = vmatpush.bf16.msra.mxu0 %v183
  %2448 = vmatpush.bf16.msra.mxu0 %v181
  %2449 = vmatmul.bf16.gmra.mxu0 %v2399
  %v2450 = vpop.f32.mrf.mxu0
  %v2451 = vadd.f32 %v2438, %v2450
  %v2452 = vpop.f32.mrf.mxu0
  %2453 = vdwg.mxu0
  %v2456 = vrot.slane %v2425, 1
  %v2457 = vrot.slane %v2451, 1
  %v2460 = vadd.f32 %v26, %v2456
  %v2461 = vadd.f32 %v27, %v2457
  %v2462 = vtanh.pop %v2460
  %v2463 = vtanh.pop %v2461
  %vm2464 = vcmask 1040384
  %v2465 = vsel %vm2464, %v282, %v346
  %v2466 = vsel %vm2464, %v283, %v347
  %vm2467 = vcmask 1041408
  %v2468 = vsel %vm2467, %v2465, %v418
  %v2469 = vsel %vm2467, %v2466, %v419
  %vm2470 = vcmask 1042432
  %v2471 = vsel %vm2470, %v2468, %v488
  %v2472 = vsel %vm2470, %v2469, %v489
  %vm2473 = vcmask 1043456
  %v2474 = vsel %vm2473, %v2471, %v562
  %v2475 = vsel %vm2473, %v2472, %v563
  %vm2476 = vcmask 1044480
  %v2477 = vsel %vm2476, %v2474, %v632
  %v2478 = vsel %vm2476, %v2475, %v633
  %vm2479 = vcmask 1045504
  %v2480 = vsel %vm2479, %v2477, %v706
  %v2481 = vsel %vm2479, %v2478, %v707
  %vm2482 = vcmask 1046528
  %v2483 = vsel %vm2482, %v2480, %v776
  %v2484 = vsel %vm2482, %v2481, %v777
  %v2485 = vsel %vm2464, %v844, %v908
  %v2486 = vsel %vm2464, %v845, %v909
  %v2487 = vsel %vm2467, %v2485, %v980
  %v2488 = vsel %vm2467, %v2486, %v981
  %v2489 = vsel %vm2470, %v2487, %v1050
  %v2490 = vsel %vm2470, %v2488, %v1051
  %v2491 = vsel %vm2473, %v2489, %v1124
  %v2492 = vsel %vm2473, %v2490, %v1125
  %v2493 = vsel %vm2476, %v2491, %v1194
  %v2494 = vsel %vm2476, %v2492, %v1195
  %v2495 = vsel %vm2479, %v2493, %v1268
  %v2496 = vsel %vm2479, %v2494, %v1269
  %v2497 = vsel %vm2482, %v2495, %v1338
  %v2498 = vsel %vm2482, %v2496, %v1339
  %v2499 = vsel %vm2464, %v1406, %v1470
  %v2500 = vsel %vm2464, %v1407, %v1471
  %v2501 = vsel %vm2467, %v2499, %v1542
  %v2502 = vsel %vm2467, %v2500, %v1543
  %v2503 = vsel %vm2470, %v2501, %v1612
  %v2504 = vsel %vm2470, %v2502, %v1613
  %v2505 = vsel %vm2473, %v2503, %v1686
  %v2506 = vsel %vm2473, %v2504, %v1687
  %v2507 = vsel %vm2476, %v2505, %v1756
  %v2508 = vsel %vm2476, %v2506, %v1757
  %v2509 = vsel %vm2479, %v2507, %v1830
  %v2510 = vsel %vm2479, %v2508, %v1831
  %v2511 = vsel %vm2482, %v2509, %v1900
  %v2512 = vsel %vm2482, %v2510, %v1901
  %v2513 = vsel %vm2464, %v1968, %v2032
  %v2514 = vsel %vm2464, %v1969, %v2033
  %v2515 = vsel %vm2467, %v2513, %v2104
  %v2516 = vsel %vm2467, %v2514, %v2105
  %v2517 = vsel %vm2470, %v2515, %v2174
  %v2518 = vsel %vm2470, %v2516, %v2175
  %v2519 = vsel %vm2473, %v2517, %v2248
  %v2520 = vsel %vm2473, %v2518, %v2249
  %v2521 = vsel %vm2476, %v2519, %v2318
  %v2522 = vsel %vm2476, %v2520, %v2319
  %v2523 = vsel %vm2479, %v2521, %v2392
  %v2524 = vsel %vm2479, %v2522, %v2393
  %v2525 = vsel %vm2482, %v2523, %v2462
  %v2526 = vsel %vm2482, %v2524, %v2463
  %2527 = vst [vmem:[%s2] sm:$0xff] %v2483
  %2528 = vst [vmem:[%s2 + $0x8] sm:$0xff] %v2484
  %2529 = vst [vmem:[%s2 + $0x10] sm:$0xff] %v2497
  %2530 = vst [vmem:[%s2 + $0x18] sm:$0xff] %v2498
  %2531 = vst [vmem:[%s2 + $0x20] sm:$0xff] %v2511
  %2532 = vst [vmem:[%s2 + $0x28] sm:$0xff] %v2512
  %2533 = vst [vmem:[%s2 + $0x30] sm:$0xff] %v2525
  %2534 = vst [vmem:[%s2 + $0x38] sm:$0xff] %v2526
  %2537 = vst [vmem:[#allocation1] sm:$0xff] %v2462
  %2538 = vst [vmem:[#allocation1 + $0x9] sm:$0xff] %v2463
  %s2539 = scalar_lea.vmem [#allocation1], 7
  %v2540 = vld [vmem:[%s2539] ss:$9 sm:$0xff]
  %v2542 = vlaneseq
  %vm2543 = vcmp.ge.s32.totalorder %v2542, 0
  %vm2544 = vcmp.lt.s32.totalorder %v2542, 256
  %vm2545 = vmand %vm2543, %vm2544
  %2546 = vst.msk [vmem:[#allocation2] sm:$0x3] %vm2545, %v2540
  // Predicated region
  $region14: #{audio_encoder_forward.7} parent=0 // pred_check
    _
  $region15: #{audio_encoder_forward.7} parent=0 // pred_check_branch
    %2548 = sbr.rel (0) target = $region17
  $region16: #{audio_encoder_forward.7} parent=0 // pred_region
    _
  $region17: #{audio_encoder_forward.7} parent=0 // pred_fallthru
    _
  // Predicated region
  $region18: #{audio_encoder_forward.7} parent=0 // pred_check
    _
  $region19: #{audio_encoder_forward.7} parent=0 // pred_check_branch
    %2550 = sbr.rel (0) target = $region21
  $region20: #{audio_encoder_forward.7} parent=0 // pred_region
    _
  $region21: #{audio_encoder_forward.7} parent=0 // pred_fallthru
    _

</llo_original>
